<compile_context>
chip_gen: v5e
topology: v5e:2x2
jax: 0.10.0
libtpu: 0.0.40
codegen_flags: <defaults>
</compile_context>

<pallas_src>
import functools

import jax
import jax.numpy as jnp
from jax.experimental import pallas as pl
from jax.experimental.pallas import tpu as pltpu


# ----------------------------- Pallas kernels ------------------------------

def _lstm_core(x_parts, wih_parts, whh, b, gx_ref, out_ref):
    """Fused forward+backward LSTM over the whole (time-major) sequence.

    x_parts  : list of bf16 [T, B, C_k] inputs (already loaded values)
    wih_parts: list of bf16 [C_k, 8Hp] input-projection weights, columns =
               [fwd (i,f,o,g) | bwd (i,f,o,g)], each gate padded to Hp lanes
    whh      : bf16 [2Hp, 8Hp] block-diag(W_hh_f^T, W_hh_b^T)
    b        : f32 [1, 8Hp] (b_ih + b_hh, both directions, zero-padded)
    gx_ref   : f32 VMEM scratch [T, B, 8Hp] for the hoisted input projection
    out_ref  : direction-major [2, T, B, Hp] output ref, or None (last layer)

    Returns the final (h_fwd, h_bwd), each f32 [B, Hp].
    """
    T, B, _ = x_parts[0].shape
    Hp = whh.shape[0] // 2
    G4 = 4 * Hp

    # ---- Hoisted input projection: one big bf16 MXU matmul per input part,
    # ---- bias folded in, written to VMEM scratch (bounds its live range).
    gx = b.astype(jnp.float32)                                  # [1, 8Hp]
    for xp, wp in zip(x_parts, wih_parts):
        gx = gx + jnp.dot(xp.reshape(T * B, xp.shape[-1]), wp,
                          preferred_element_type=jnp.float32)   # [T*B, 8Hp]
    gx_ref[...] = gx.reshape(T, B, 8 * Hp)

    def gate_update(gates, c):
        # gate columns pre-ordered (i, f, o, g), each Hp (=128) lanes wide.
        # sigmoid(x) = 0.5*(tanh(0.5*x)+1): one EUP op instead of two.
        sfo = 0.5 * jnp.tanh(0.5 * gates[:, :3 * Hp]) + 0.5
        g = jnp.tanh(gates[:, 3 * Hp:])
        i = sfo[:, :Hp]
        f = sfo[:, Hp:2 * Hp]
        o = sfo[:, 2 * Hp:3 * Hp]
        c_new = f * c + i * g                                   # f32 VPU math
        h_new = o * jnp.tanh(c_new)
        return h_new, c_new

    z = jnp.zeros((B, Hp), jnp.float32)
    h_f, c_f, h_b, c_b = z, z, z, z

    # Static Python loop: T is small & static here -> static store indices.
    # TODO(synk): lax.fori_loop(..., unroll=k) / T-grid for production T.
    for s in range(T):
        t_b = T - 1 - s
        # ONE recurrence matmul for both directions (block-diag W_hh^T).
        hcat = jnp.concatenate([h_f, h_b], axis=-1).astype(jnp.bfloat16)
        ghh = jnp.dot(hcat, whh, preferred_element_type=jnp.float32)  # [B,8Hp]
        gates_f = gx_ref[s, :, :G4] + ghh[:, :G4]
        gates_b = gx_ref[t_b, :, G4:] + ghh[:, G4:]
        h_f, c_f = gate_update(gates_f, c_f)
        h_b, c_b = gate_update(gates_b, c_b)
        if out_ref is not None:
            out_ref[0, s] = h_f.astype(out_ref.dtype)     # full-lane stores
            out_ref[1, t_b] = h_b.astype(out_ref.dtype)

    return h_f, h_b


def _fc_head(h_f, h_b, fcw_f_ref, fcw_b_ref, fcb_ref, logits_ref):
    """Fused Linear head without an in-kernel concat: two dots + bias."""
    logits_ref[...] = (
        jnp.dot(h_f.astype(jnp.bfloat16), fcw_f_ref[...],
                preferred_element_type=jnp.float32)
        + jnp.dot(h_b.astype(jnp.bfloat16), fcw_b_ref[...],
                  preferred_element_type=jnp.float32)
        + fcb_ref[...])


def _lstm_seq_single_kernel(x_ref, wih_ref, whh_ref, b_ref, out_ref, gx_ref):
    """First layer (single [T,B,E] input), writes [2,T,B,Hp] sequence."""
    _lstm_core([x_ref[...]], [wih_ref[...]], whh_ref[...], b_ref[...],
               gx_ref, out_ref)


def _lstm_seq_dir_kernel(x_ref, wih_top_ref, wih_bot_ref, whh_ref, b_ref,
                         out_ref, gx_ref):
    """Middle layer (direction-major [2,T,B,Hp] input), writes sequence."""
    _lstm_core([x_ref[0], x_ref[1]], [wih_top_ref[...], wih_bot_ref[...]],
               whh_ref[...], b_ref[...], gx_ref, out_ref)


def _lstm_fc_single_kernel(x_ref, wih_ref, whh_ref, b_ref,
                           fcw_f_ref, fcw_b_ref, fcb_ref, logits_ref, gx_ref):
    """Single-layer model: first layer is also last; FC fused, no sequence."""
    h_f, h_b = _lstm_core([x_ref[...]], [wih_ref[...]], whh_ref[...],
                          b_ref[...], gx_ref, None)
    _fc_head(h_f, h_b, fcw_f_ref, fcw_b_ref, fcb_ref, logits_ref)


def _lstm_fc_dir_kernel(x_ref, wih_top_ref, wih_bot_ref, whh_ref, b_ref,
                        fcw_f_ref, fcw_b_ref, fcb_ref, logits_ref, gx_ref):
    """Last layer (dir-major input): FC fused in, no sequence output."""
    h_f, h_b = _lstm_core([x_ref[0], x_ref[1]],
                          [wih_top_ref[...], wih_bot_ref[...]],
                          whh_ref[...], b_ref[...], gx_ref, None)
    _fc_head(h_f, h_b, fcw_f_ref, fcw_b_ref, fcb_ref, logits_ref)


# ------------------------------ call wrappers --------------------------------

_VMEM = pl.BlockSpec(memory_space=pltpu.MemorySpace.VMEM)


def _round_up(x, m):
    return (x + m - 1) // m * m


def _vmem_params(nbytes):
    # Actual working set + headroom; stays within physical VMEM on all chips.
    limit = int(min(64 * 1024 * 1024, max(nbytes + (8 << 20), 32 << 20)))
    return pltpu.CompilerParams(vmem_limit_bytes=limit)


def _call_lstm_seq_single(x, lp):
    T, B, _ = x.shape
    Hp = lp["whh"].shape[0] // 2
    nbytes = (x.nbytes + lp["wih"].nbytes + lp["whh"].nbytes + lp["b"].nbytes
              + T * B * 8 * Hp * 4 + 2 * T * B * Hp * 2)
    return pl.pallas_call(
        _lstm_seq_single_kernel,
        out_shape=jax.ShapeDtypeStruct((2, T, B, Hp), jnp.bfloat16),
        in_specs=[_VMEM] * 4,
        out_specs=_VMEM,
        scratch_shapes=[pltpu.VMEM((T, B, 8 * Hp), jnp.float32)],
        compiler_params=_vmem_params(nbytes),
    )(x, lp["wih"], lp["whh"], lp["b"])


def _call_lstm_seq_dir(x, lp):
    _, T, B, Hp = x.shape
    nbytes = (x.nbytes + 2 * lp["wih_top"].nbytes + lp["whh"].nbytes
              + lp["b"].nbytes + T * B * 8 * Hp * 4 + 2 * T * B * Hp * 2)
    return pl.pallas_call(
        _lstm_seq_dir_kernel,
        out_shape=jax.ShapeDtypeStruct((2, T, B, Hp), jnp.bfloat16),
        in_specs=[_VMEM] * 5,
        out_specs=_VMEM,
        scratch_shapes=[pltpu.VMEM((T, B, 8 * Hp), jnp.float32)],
        compiler_params=_vmem_params(nbytes),
    )(x, lp["wih_top"], lp["wih_bot"], lp["whh"], lp["b"])


def _call_lstm_fc_single(x, lp, fc):
    T, B, _ = x.shape
    Hp = lp["whh"].shape[0] // 2
    Op = fc["fcb"].shape[1]
    nbytes = (x.nbytes + lp["wih"].nbytes + lp["whh"].nbytes + lp["b"].nbytes
              + 2 * fc["fcw_f"].nbytes + fc["fcb"].nbytes
              + T * B * 8 * Hp * 4 + B * Op * 4)
    return pl.pallas_call(
        _lstm_fc_single_kernel,
        out_shape=jax.ShapeDtypeStruct((B, Op), jnp.float32),
        in_specs=[_VMEM] * 7,
        out_specs=_VMEM,
        scratch_shapes=[pltpu.VMEM((T, B, 8 * Hp), jnp.float32)],
        compiler_params=_vmem_params(nbytes),
    )(x, lp["wih"], lp["whh"], lp["b"], fc["fcw_f"], fc["fcw_b"], fc["fcb"])


def _call_lstm_fc_dir(x, lp, fc):
    _, T, B, Hp = x.shape
    Op = fc["fcb"].shape[1]
    nbytes = (x.nbytes + 2 * lp["wih_top"].nbytes + lp["whh"].nbytes
              + lp["b"].nbytes + 2 * fc["fcw_f"].nbytes + fc["fcb"].nbytes
              + T * B * 8 * Hp * 4 + B * Op * 4)
    return pl.pallas_call(
        _lstm_fc_dir_kernel,
        out_shape=jax.ShapeDtypeStruct((B, Op), jnp.float32),
        in_specs=[_VMEM] * 8,
        out_specs=_VMEM,
        scratch_shapes=[pltpu.VMEM((T, B, 8 * Hp), jnp.float32)],
        compiler_params=_vmem_params(nbytes),
    )(x, lp["wih_top"], lp["wih_bot"], lp["whh"], lp["b"],
      fc["fcw_f"], fc["fcw_b"], fc["fcb"])


# --------------------- one-time weight pre-packing ---------------------------

def _reorder_pad_gates_cols(w, H, Hp):
    """Last-axis gate blocks: PyTorch order (i,f,g,o) -> (i,f,o,g), each gate
    zero-padded from H to Hp columns."""
    i = w[..., 0:H]
    f = w[..., H:2 * H]
    g = w[..., 2 * H:3 * H]
    o = w[..., 3 * H:4 * H]
    pad = [(0, 0)] * (w.ndim - 1) + [(0, Hp - H)]
    return jnp.concatenate([jnp.pad(blk, pad) for blk in (i, f, o, g)],
                           axis=-1)


def _prep_direction(p, H, Hp):
    wih_t = _reorder_pad_gates_cols(jnp.transpose(p["w_ih"]), H, Hp)  # [In,4Hp]
    whh_t = _reorder_pad_gates_cols(jnp.transpose(p["w_hh"]), H, Hp)  # [H,4Hp]
    whh_t = jnp.pad(whh_t, ((0, Hp - H), (0, 0)))                     # [Hp,4Hp]
    b = _reorder_pad_gates_cols((p["b_ih"] + p["b_hh"])[None, :], H, Hp)
    return wih_t, whh_t, b


def _prep_layer(layer_params, H, Hp, first_layer):
    wih_f, whh_f, b_f = _prep_direction(layer_params["fwd"], H, Hp)
    wih_b, whh_b, b_b = _prep_direction(layer_params["bwd"], H, Hp)

    # block_diag(W_hh_f^T, W_hh_b^T): one fused recurrence matmul per step.
    z = jnp.zeros((Hp, 4 * Hp), jnp.float32)
    whh = jnp.concatenate(
        [jnp.concatenate([whh_f, z], axis=1),
         jnp.concatenate([z, whh_b], axis=1)], axis=0).astype(jnp.bfloat16)
    b = jnp.concatenate([b_f, b_b], axis=1).astype(jnp.float32)       # [1,8Hp]

    if first_layer:
        wih = jnp.concatenate([wih_f, wih_b], axis=1).astype(jnp.bfloat16)
        return {"wih": wih, "whh": whh, "b": b}

    # Layer >0 input features are [prev fwd h | prev bwd h]; split the input
    # rows so the direction-major [2,T,B,Hp] sequence feeds two row matmuls.
    def split_pad_rows(w):
        top = jnp.pad(w[:H], ((0, Hp - H), (0, 0)))
        bot = jnp.pad(w[H:2 * H], ((0, Hp - H), (0, 0)))
        return top, bot

    top_f, bot_f = split_pad_rows(wih_f)
    top_b, bot_b = split_pad_rows(wih_b)
    wih_top = jnp.concatenate([top_f, top_b], axis=1).astype(jnp.bfloat16)
    wih_bot = jnp.concatenate([bot_f, bot_b], axis=1).astype(jnp.bfloat16)
    return {"wih_top": wih_top, "wih_bot": wih_bot, "whh": whh, "b": b}


def _prep_fc(fc_w, fc_b, H, Hp, Op):
    O = fc_w.shape[0]
    fcw_t = jnp.transpose(fc_w)                                        # [2H,O]
    fcw_f = jnp.pad(fcw_t[:H], ((0, Hp - H), (0, Op - O))).astype(jnp.bfloat16)
    fcw_b = jnp.pad(fcw_t[H:], ((0, Hp - H), (0, Op - O))).astype(jnp.bfloat16)
    fcb = jnp.pad(fc_b, (0, Op - O)).reshape(1, Op).astype(jnp.float32)
    return {"fcw_f": fcw_f, "fcw_b": fcw_b, "fcb": fcb}


def prepack_params(params):
    """One-time weight prep (gate reorder, padding, bf16) — not per-call."""
    H = params["lstm"][0]["fwd"]["w_hh"].shape[1]
    Hp = _round_up(H, 128)                      # lane-dense gates & stores
    O = params["fc_w"].shape[0]
    Op = _round_up(O, 128)                      # lane-dense logits store
    layers = [_prep_layer(lp, H, Hp, first_layer=(li == 0))
              for li, lp in enumerate(params["lstm"])]
    return {
        "embedding": params["embedding"].astype(jnp.float32),
        "layers": layers,
        "fc": _prep_fc(params["fc_w"], params["fc_b"], H, Hp, Op),
    }


# ------------------------------ forward pass ---------------------------------

def sentiment_lstm_forward(packed, text, *, output_dim):
    """text: [B, T] int32 token ids -> logits [B, output_dim]."""
    B, T = text.shape
    # Embedding lookup (gather) stays in plain JAX glue.
    emb = jnp.take(packed["embedding"], text, axis=0)            # [B, T, E]
    x = jnp.transpose(emb, (1, 0, 2)).astype(jnp.bfloat16)       # [T, B, E]
    # NOTE: dropout = identity (inference / eval mode).

    # Pad batch to a multiple of 16 sublanes (bf16 packing); sliced back below.
    B_pad = _round_up(B, 16)
    if B_pad != B:
        x = jnp.pad(x, ((0, 0), (0, B_pad - B), (0, 0)))

    layers = packed["layers"]
    n_layers = len(layers)
    logits = None
    for li, lp in enumerate(layers):
        last = li == n_layers - 1
        if li == 0 and last:
            logits = _call_lstm_fc_single(x, lp, packed["fc"])
        elif li == 0:
            x = _call_lstm_seq_single(x, lp)          # [2, T, B_pad, Hp] bf16
        elif last:
            logits = _call_lstm_fc_dir(x, lp, packed["fc"])
        else:
            x = _call_lstm_seq_dir(x, lp)
    return logits[:B, :output_dim]


# ---------------------------- Parameter init --------------------------------

def init_params(key, vocab_size, embedding_dim, hidden_dim, output_dim,
                n_layers):
    keys = jax.random.split(key, 3 + n_layers * 16)
    ki = iter(keys)

    # nn.Embedding: N(0, 1), padding_idx=0 row zeroed.
    emb = jax.random.normal(next(ki), (vocab_size, embedding_dim), jnp.float32)
    emb = emb.at[0].set(0.0)

    def u(k, shape, bound):
        return jax.random.uniform(k, shape, jnp.float32, -bound, bound)

    bound = 1.0 / jnp.sqrt(jnp.float32(hidden_dim))
    lstm_layers = []
    for layer in range(n_layers):
        in_dim = embedding_dim if layer == 0 else 2 * hidden_dim
        layer_p = {}
        for direction in ("fwd", "bwd"):
            layer_p[direction] = {
                "w_ih": u(next(ki), (4 * hidden_dim, in_dim), bound),
                "w_hh": u(next(ki), (4 * hidden_dim, hidden_dim), bound),
                "b_ih": u(next(ki), (4 * hidden_dim,), bound),
                "b_hh": u(next(ki), (4 * hidden_dim,), bound),
            }
        lstm_layers.append(layer_p)

    fc_bound = 1.0 / jnp.sqrt(jnp.float32(2 * hidden_dim))
    fc_w = u(next(ki), (output_dim, 2 * hidden_dim), fc_bound)
    fc_b = u(next(ki), (output_dim,), fc_bound)

    return {"embedding": emb, "lstm": lstm_layers, "fc_w": fc_w, "fc_b": fc_b}


# --------------------------------- main --------------------------------------

if __name__ == "__main__":
    vocab_size = 50
    embedding_dim = 32
    hidden_dim = 32
    output_dim = 2
    n_layers = 2
    batch = 2
    seq = 8

    key = jax.random.PRNGKey(0)
    k_param, k_text = jax.random.split(key)
    params = init_params(k_param, vocab_size, embedding_dim, hidden_dim,
                         output_dim, n_layers)
    packed = prepack_params(params)       # one-time weight prep, off hot path
    text = jax.random.randint(k_text, (batch, seq), 0, vocab_size,
                              dtype=jnp.int32)

    forward = jax.jit(functools.partial(sentiment_lstm_forward,
                                        output_dim=output_dim))
    logits = forward(packed, text)
    jax.block_until_ready(logits)
    assert logits.shape == (batch, output_dim)
    print("KERNEL_OK")
</pallas_src>

<mosaic_0001>
module attributes {stable_mosaic.version = 11 : i64} {
  func.func @_lstm_seq_single_kernel(%arg0: memref<8x16x32xbf16, #tpu.memory_space<vmem>>, %arg1: memref<32x1024xbf16, #tpu.memory_space<vmem>>, %arg2: memref<256x1024xbf16, #tpu.memory_space<vmem>>, %arg3: memref<1x1024xf32, #tpu.memory_space<vmem>>, %arg4: memref<2x8x16x128xbf16, #tpu.memory_space<vmem>>, %arg5: memref<8x16x1024xf32, #tpu.memory_space<vmem>>) attributes {dimension_semantics = [], scalar_prefetch = 0 : i64, scratch_operands = 1 : i64, tpu.core_type = #tpu.core_type<tc>} {
    %c0 = arith.constant 0 : index
    %c0_0 = arith.constant 0 : index
    %c0_1 = arith.constant 0 : index
    %0 = vector.load %arg0[%c0, %c0_0, %c0_1] : memref<8x16x32xbf16, #tpu.memory_space<vmem>>, vector<8x16x32xbf16>
    %c0_2 = arith.constant 0 : index
    %c0_3 = arith.constant 0 : index
    %1 = vector.load %arg1[%c0_2, %c0_3] : memref<32x1024xbf16, #tpu.memory_space<vmem>>, vector<32x1024xbf16>
    %c0_4 = arith.constant 0 : index
    %c0_5 = arith.constant 0 : index
    %2 = vector.load %arg2[%c0_4, %c0_5] : memref<256x1024xbf16, #tpu.memory_space<vmem>>, vector<256x1024xbf16>
    %c0_6 = arith.constant 0 : index
    %c0_7 = arith.constant 0 : index
    %3 = vector.load %arg3[%c0_6, %c0_7] : memref<1x1024xf32, #tpu.memory_space<vmem>>, vector<1x1024xf32>
    %4 = vector.shape_cast %0 : vector<8x16x32xbf16> to vector<128x32xbf16>
    %cst = arith.constant dense<0.000000e+00> : vector<128x1024xf32>
    %5 = tpu.matmul %4, %1, %cst {dimension_numbers = #tpu.dot_dimension_numbers<[1], [0], [0], [1], [0, 0, 1, 1], [], []>} : vector<128x32xbf16>, vector<32x1024xbf16>, vector<128x1024xf32> -> vector<128x1024xf32>
    %6 = vector.broadcast %3 : vector<1x1024xf32> to vector<128x1024xf32>
    %7 = arith.addf %6, %5 : vector<128x1024xf32>
    %8 = vector.shape_cast %7 : vector<128x1024xf32> to vector<8x16x1024xf32>
    %c0_8 = arith.constant 0 : index
    %c0_9 = arith.constant 0 : index
    %c0_10 = arith.constant 0 : index
    %9 = vector.load %arg5[%c0_8, %c0_9, %c0_10] : memref<8x16x1024xf32, #tpu.memory_space<vmem>>, vector<8x16x1024xf32>
    tpu.vector_store %arg5[%c0_8, %c0_9, %c0_10], %8 {strides = array<i32>} : memref<8x16x1024xf32, #tpu.memory_space<vmem>>, vector<8x16x1024xf32>,
    %cst_11 = arith.constant 0.000000e+00 : f32
    %10 = vector.broadcast %cst_11 : f32 to vector<16x128xf32>
    %11 = tpu.concatenate %10, %10 in 1 : vector<16x128xf32>, vector<16x128xf32> -> vector<16x256xf32>
    %12 = arith.truncf %11 : vector<16x256xf32> to vector<16x256xbf16>
    %cst_12 = arith.constant dense<0.000000e+00> : vector<16x1024xf32>
    %13 = tpu.matmul %12, %2, %cst_12 {dimension_numbers = #tpu.dot_dimension_numbers<[1], [0], [0], [1], [0, 0, 1, 1], [], []>} : vector<16x256xbf16>, vector<256x1024xbf16>, vector<16x1024xf32> -> vector<16x1024xf32>
    %c0_13 = arith.constant 0 : index
    %c0_14 = arith.constant 0 : index
    %c0_15 = arith.constant 0 : index
    %14 = vector.load %arg5[%c0_13, %c0_14, %c0_15] : memref<8x16x1024xf32, #tpu.memory_space<vmem>>, vector<1x16x512xf32>
    %15 = vector.shape_cast %14 : vector<1x16x512xf32> to vector<16x512xf32>
    %16 = vector.extract_strided_slice %13 {offsets = [0, 0], sizes = [16, 512], strides = [1, 1]} : vector<16x1024xf32> to vector<16x512xf32>
    %17 = arith.addf %15, %16 : vector<16x512xf32>
    %c7 = arith.constant 7 : index
    %c0_16 = arith.constant 0 : index
    %c512 = arith.constant 512 : index
    %18 = vector.load %arg5[%c7, %c0_16, %c512] : memref<8x16x1024xf32, #tpu.memory_space<vmem>>, vector<1x16x512xf32>
    %19 = vector.shape_cast %18 : vector<1x16x512xf32> to vector<16x512xf32>
    %20 = vector.extract_strided_slice %13 {offsets = [0, 512], sizes = [16, 512], strides = [1, 1]} : vector<16x1024xf32> to vector<16x512xf32>
    %21 = arith.addf %19, %20 : vector<16x512xf32>
    %22 = vector.extract_strided_slice %17 {offsets = [0, 0], sizes = [16, 384], strides = [1, 1]} : vector<16x512xf32> to vector<16x384xf32>
    %cst_17 = arith.constant 5.000000e-01 : f32
    %23 = vector.broadcast %cst_17 : f32 to vector<16x384xf32>
    %24 = arith.mulf %23, %22 : vector<16x384xf32>
    %25 = math.tanh %24 : vector<16x384xf32>
    %cst_18 = arith.constant 5.000000e-01 : f32
    %26 = vector.broadcast %cst_18 : f32 to vector<16x384xf32>
    %27 = arith.mulf %26, %25 : vector<16x384xf32>
    %cst_19 = arith.constant 5.000000e-01 : f32
    %28 = vector.broadcast %cst_19 : f32 to vector<16x384xf32>
    %29 = arith.addf %27, %28 : vector<16x384xf32>
    %30 = vector.extract_strided_slice %17 {offsets = [0, 384], sizes = [16, 128], strides = [1, 1]} : vector<16x512xf32> to vector<16x128xf32>
    %31 = math.tanh %30 : vector<16x128xf32>
    %32 = vector.extract_strided_slice %29 {offsets = [0, 0], sizes = [16, 128], strides = [1, 1]} : vector<16x384xf32> to vector<16x128xf32>
    %33 = vector.extract_strided_slice %29 {offsets = [0, 128], sizes = [16, 128], strides = [1, 1]} : vector<16x384xf32> to vector<16x128xf32>
    %34 = vector.extract_strided_slice %29 {offsets = [0, 256], sizes = [16, 128], strides = [1, 1]} : vector<16x384xf32> to vector<16x128xf32>
    %35 = arith.mulf %33, %10 : vector<16x128xf32>
    %36 = arith.mulf %32, %31 : vector<16x128xf32>
    %37 = arith.addf %35, %36 : vector<16x128xf32>
    %38 = math.tanh %37 : vector<16x128xf32>
    %39 = arith.mulf %34, %38 : vector<16x128xf32>
    %40 = vector.extract_strided_slice %21 {offsets = [0, 0], sizes = [16, 384], strides = [1, 1]} : vector<16x512xf32> to vector<16x384xf32>
    %cst_20 = arith.constant 5.000000e-01 : f32
    %41 = vector.broadcast %cst_20 : f32 to vector<16x384xf32>
    %42 = arith.mulf %41, %40 : vector<16x384xf32>
    %43 = math.tanh %42 : vector<16x384xf32>
    %cst_21 = arith.constant 5.000000e-01 : f32
    %44 = vector.broadcast %cst_21 : f32 to vector<16x384xf32>
    %45 = arith.mulf %44, %43 : vector<16x384xf32>
    %cst_22 = arith.constant 5.000000e-01 : f32
    %46 = vector.broadcast %cst_22 : f32 to vector<16x384xf32>
    %47 = arith.addf %45, %46 : vector<16x384xf32>
    %48 = vector.extract_strided_slice %21 {offsets = [0, 384], sizes = [16, 128], strides = [1, 1]} : vector<16x512xf32> to vector<16x128xf32>
    %49 = math.tanh %48 : vector<16x128xf32>
    %50 = vector.extract_strided_slice %47 {offsets = [0, 0], sizes = [16, 128], strides = [1, 1]} : vector<16x384xf32> to vector<16x128xf32>
    %51 = vector.extract_strided_slice %47 {offsets = [0, 128], sizes = [16, 128], strides = [1, 1]} : vector<16x384xf32> to vector<16x128xf32>
    %52 = vector.extract_strided_slice %47 {offsets = [0, 256], sizes = [16, 128], strides = [1, 1]} : vector<16x384xf32> to vector<16x128xf32>
    %53 = arith.mulf %51, %10 : vector<16x128xf32>
    %54 = arith.mulf %50, %49 : vector<16x128xf32>
    %55 = arith.addf %53, %54 : vector<16x128xf32>
    %56 = math.tanh %55 : vector<16x128xf32>
    %57 = arith.mulf %52, %56 : vector<16x128xf32>
    %58 = arith.truncf %39 : vector<16x128xf32> to vector<16x128xbf16>
    %c0_23 = arith.constant 0 : index
    %c0_24 = arith.constant 0 : index
    %c0_25 = arith.constant 0 : index
    %c0_26 = arith.constant 0 : index
    %59 = vector.load %arg4[%c0_23, %c0_24, %c0_25, %c0_26] : memref<2x8x16x128xbf16, #tpu.memory_space<vmem>>, vector<1x1x16x128xbf16>
    %60 = vector.shape_cast %59 : vector<1x1x16x128xbf16> to vector<16x128xbf16>
    %61 = vector.shape_cast %58 : vector<16x128xbf16> to vector<1x1x16x128xbf16>
    tpu.vector_store %arg4[%c0_23, %c0_24, %c0_25, %c0_26], %61 {strides = array<i32>} : memref<2x8x16x128xbf16, #tpu.memory_space<vmem>>, vector<1x1x16x128xbf16>,
    %62 = arith.truncf %57 : vector<16x128xf32> to vector<16x128xbf16>
    %c1 = arith.constant 1 : index
    %c7_27 = arith.constant 7 : index
    %c0_28 = arith.constant 0 : index
    %c0_29 = arith.constant 0 : index
    %63 = vector.load %arg4[%c1, %c7_27, %c0_28, %c0_29] : memref<2x8x16x128xbf16, #tpu.memory_space<vmem>>, vector<1x1x16x128xbf16>
    %64 = vector.shape_cast %63 : vector<1x1x16x128xbf16> to vector<16x128xbf16>
    %65 = vector.shape_cast %62 : vector<16x128xbf16> to vector<1x1x16x128xbf16>
    tpu.vector_store %arg4[%c1, %c7_27, %c0_28, %c0_29], %65 {strides = array<i32>} : memref<2x8x16x128xbf16, #tpu.memory_space<vmem>>, vector<1x1x16x128xbf16>,
    %66 = tpu.concatenate %39, %57 in 1 : vector<16x128xf32>, vector<16x128xf32> -> vector<16x256xf32>
    %67 = arith.truncf %66 : vector<16x256xf32> to vector<16x256xbf16>
    %cst_30 = arith.constant dense<0.000000e+00> : vector<16x1024xf32>
    %68 = tpu.matmul %67, %2, %cst_30 {dimension_numbers = #tpu.dot_dimension_numbers<[1], [0], [0], [1], [0, 0, 1, 1], [], []>} : vector<16x256xbf16>, vector<256x1024xbf16>, vector<16x1024xf32> -> vector<16x1024xf32>
    %c1_31 = arith.constant 1 : index
    %c0_32 = arith.constant 0 : index
    %c0_33 = arith.constant 0 : index
    %69 = vector.load %arg5[%c1_31, %c0_32, %c0_33] : memref<8x16x1024xf32, #tpu.memory_space<vmem>>, vector<1x16x512xf32>
    %70 = vector.shape_cast %69 : vector<1x16x512xf32> to vector<16x512xf32>
    %71 = vector.extract_strided_slice %68 {offsets = [0, 0], sizes = [16, 512], strides = [1, 1]} : vector<16x1024xf32> to vector<16x512xf32>
    %72 = arith.addf %70, %71 : vector<16x512xf32>
    %c6 = arith.constant 6 : index
    %c0_34 = arith.constant 0 : index
    %c512_35 = arith.constant 512 : index
    %73 = vector.load %arg5[%c6, %c0_34, %c512_35] : memref<8x16x1024xf32, #tpu.memory_space<vmem>>, vector<1x16x512xf32>
    %74 = vector.shape_cast %73 : vector<1x16x512xf32> to vector<16x512xf32>
    %75 = vector.extract_strided_slice %68 {offsets = [0, 512], sizes = [16, 512], strides = [1, 1]} : vector<16x1024xf32> to vector<16x512xf32>
    %76 = arith.addf %74, %75 : vector<16x512xf32>
    %77 = vector.extract_strided_slice %72 {offsets = [0, 0], sizes = [16, 384], strides = [1, 1]} : vector<16x512xf32> to vector<16x384xf32>
    %cst_36 = arith.constant 5.000000e-01 : f32
    %78 = vector.broadcast %cst_36 : f32 to vector<16x384xf32>
    %79 = arith.mulf %78, %77 : vector<16x384xf32>
    %80 = math.tanh %79 : vector<16x384xf32>
    %cst_37 = arith.constant 5.000000e-01 : f32
    %81 = vector.broadcast %cst_37 : f32 to vector<16x384xf32>
    %82 = arith.mulf %81, %80 : vector<16x384xf32>
    %cst_38 = arith.constant 5.000000e-01 : f32
    %83 = vector.broadcast %cst_38 : f32 to vector<16x384xf32>
    %84 = arith.addf %82, %83 : vector<16x384xf32>
    %85 = vector.extract_strided_slice %72 {offsets = [0, 384], sizes = [16, 128], strides = [1, 1]} : vector<16x512xf32> to vector<16x128xf32>
    %86 = math.tanh %85 : vector<16x128xf32>
    %87 = vector.extract_strided_slice %84 {offsets = [0, 0], sizes = [16, 128], strides = [1, 1]} : vector<16x384xf32> to vector<16x128xf32>
    %88 = vector.extract_strided_slice %84 {offsets = [0, 128], sizes = [16, 128], strides = [1, 1]} : vector<16x384xf32> to vector<16x128xf32>
    %89 = vector.extract_strided_slice %84 {offsets = [0, 256], sizes = [16, 128], strides = [1, 1]} : vector<16x384xf32> to vector<16x128xf32>
    %90 = arith.mulf %88, %37 : vector<16x128xf32>
    %91 = arith.mulf %87, %86 : vector<16x128xf32>
    %92 = arith.addf %90, %91 : vector<16x128xf32>
    %93 = math.tanh %92 : vector<16x128xf32>
    %94 = arith.mulf %89, %93 : vector<16x128xf32>
    %95 = vector.extract_strided_slice %76 {offsets = [0, 0], sizes = [16, 384], strides = [1, 1]} : vector<16x512xf32> to vector<16x384xf32>
    %cst_39 = arith.constant 5.000000e-01 : f32
    %96 = vector.broadcast %cst_39 : f32 to vector<16x384xf32>
    %97 = arith.mulf %96, %95 : vector<16x384xf32>
    %98 = math.tanh %97 : vector<16x384xf32>
    %cst_40 = arith.constant 5.000000e-01 : f32
    %99 = vector.broadcast %cst_40 : f32 to vector<16x384xf32>
    %100 = arith.mulf %99, %98 : vector<16x384xf32>
    %cst_41 = arith.constant 5.000000e-01 : f32
    %101 = vector.broadcast %cst_41 : f32 to vector<16x384xf32>
    %102 = arith.addf %100, %101 : vector<16x384xf32>
    %103 = vector.extract_strided_slice %76 {offsets = [0, 384], sizes = [16, 128], strides = [1, 1]} : vector<16x512xf32> to vector<16x128xf32>
    %104 = math.tanh %103 : vector<16x128xf32>
    %105 = vector.extract_strided_slice %102 {offsets = [0, 0], sizes = [16, 128], strides = [1, 1]} : vector<16x384xf32> to vector<16x128xf32>
    %106 = vector.extract_strided_slice %102 {offsets = [0, 128], sizes = [16, 128], strides = [1, 1]} : vector<16x384xf32> to vector<16x128xf32>
    %107 = vector.extract_strided_slice %102 {offsets = [0, 256], sizes = [16, 128], strides = [1, 1]} : vector<16x384xf32> to vector<16x128xf32>
    %108 = arith.mulf %106, %55 : vector<16x128xf32>
    %109 = arith.mulf %105, %104 : vector<16x128xf32>
    %110 = arith.addf %108, %109 : vector<16x128xf32>
    %111 = math.tanh %110 : vector<16x128xf32>
    %112 = arith.mulf %107, %111 : vector<16x128xf32>
    %113 = arith.truncf %94 : vector<16x128xf32> to vector<16x128xbf16>
    %c0_42 = arith.constant 0 : index
    %c1_43 = arith.constant 1 : index
    %c0_44 = arith.constant 0 : index
    %c0_45 = arith.constant 0 : index
    %114 = vector.load %arg4[%c0_42, %c1_43, %c0_44, %c0_45] : memref<2x8x16x128xbf16, #tpu.memory_space<vmem>>, vector<1x1x16x128xbf16>
    %115 = vector.shape_cast %114 : vector<1x1x16x128xbf16> to vector<16x128xbf16>
    %116 = vector.shape_cast %113 : vector<16x128xbf16> to vector<1x1x16x128xbf16>
    tpu.vector_store %arg4[%c0_42, %c1_43, %c0_44, %c0_45], %116 {strides = array<i32>} : memref<2x8x16x128xbf16, #tpu.memory_space<vmem>>, vector<1x1x16x128xbf16>,
    %117 = arith.truncf %112 : vector<16x128xf32> to vector<16x128xbf16>
    %c1_46 = arith.constant 1 : index
    %c6_47 = arith.constant 6 : index
    %c0_48 = arith.constant 0 : index
    %c0_49 = arith.constant 0 : index
    %118 = vector.load %arg4[%c1_46, %c6_47, %c0_48, %c0_49] : memref<2x8x16x128xbf16, #tpu.memory_space<vmem>>, vector<1x1x16x128xbf16>
    %119 = vector.shape_cast %118 : vector<1x1x16x128xbf16> to vector<16x128xbf16>
    %120 = vector.shape_cast %117 : vector<16x128xbf16> to vector<1x1x16x128xbf16>
    tpu.vector_store %arg4[%c1_46, %c6_47, %c0_48, %c0_49], %120 {strides = array<i32>} : memref<2x8x16x128xbf16, #tpu.memory_space<vmem>>, vector<1x1x16x128xbf16>,
    %121 = tpu.concatenate %94, %112 in 1 : vector<16x128xf32>, vector<16x128xf32> -> vector<16x256xf32>
    %122 = arith.truncf %121 : vector<16x256xf32> to vector<16x256xbf16>
    %cst_50 = arith.constant dense<0.000000e+00> : vector<16x1024xf32>
    %123 = tpu.matmul %122, %2, %cst_50 {dimension_numbers = #tpu.dot_dimension_numbers<[1], [0], [0], [1], [0, 0, 1, 1], [], []>} : vector<16x256xbf16>, vector<256x1024xbf16>, vector<16x1024xf32> -> vector<16x1024xf32>
    %c2 = arith.constant 2 : index
    %c0_51 = arith.constant 0 : index
    %c0_52 = arith.constant 0 : index
    %124 = vector.load %arg5[%c2, %c0_51, %c0_52] : memref<8x16x1024xf32, #tpu.memory_space<vmem>>, vector<1x16x512xf32>
    %125 = vector.shape_cast %124 : vector<1x16x512xf32> to vector<16x512xf32>
    %126 = vector.extract_strided_slice %123 {offsets = [0, 0], sizes = [16, 512], strides = [1, 1]} : vector<16x1024xf32> to vector<16x512xf32>
    %127 = arith.addf %125, %126 : vector<16x512xf32>
    %c5 = arith.constant 5 : index
    %c0_53 = arith.constant 0 : index
    %c512_54 = arith.constant 512 : index
    %128 = vector.load %arg5[%c5, %c0_53, %c512_54] : memref<8x16x1024xf32, #tpu.memory_space<vmem>>, vector<1x16x512xf32>
    %129 = vector.shape_cast %128 : vector<1x16x512xf32> to vector<16x512xf32>
    %130 = vector.extract_strided_slice %123 {offsets = [0, 512], sizes = [16, 512], strides = [1, 1]} : vector<16x1024xf32> to vector<16x512xf32>
    %131 = arith.addf %129, %130 : vector<16x512xf32>
    %132 = vector.extract_strided_slice %127 {offsets = [0, 0], sizes = [16, 384], strides = [1, 1]} : vector<16x512xf32> to vector<16x384xf32>
    %cst_55 = arith.constant 5.000000e-01 : f32
    %133 = vector.broadcast %cst_55 : f32 to vector<16x384xf32>
    %134 = arith.mulf %133, %132 : vector<16x384xf32>
    %135 = math.tanh %134 : vector<16x384xf32>
    %cst_56 = arith.constant 5.000000e-01 : f32
    %136 = vector.broadcast %cst_56 : f32 to vector<16x384xf32>
    %137 = arith.mulf %136, %135 : vector<16x384xf32>
    %cst_57 = arith.constant 5.000000e-01 : f32
    %138 = vector.broadcast %cst_57 : f32 to vector<16x384xf32>
    %139 = arith.addf %137, %138 : vector<16x384xf32>
    %140 = vector.extract_strided_slice %127 {offsets = [0, 384], sizes = [16, 128], strides = [1, 1]} : vector<16x512xf32> to vector<16x128xf32>
    %141 = math.tanh %140 : vector<16x128xf32>
    %142 = vector.extract_strided_slice %139 {offsets = [0, 0], sizes = [16, 128], strides = [1, 1]} : vector<16x384xf32> to vector<16x128xf32>
    %143 = vector.extract_strided_slice %139 {offsets = [0, 128], sizes = [16, 128], strides = [1, 1]} : vector<16x384xf32> to vector<16x128xf32>
    %144 = vector.extract_strided_slice %139 {offsets = [0, 256], sizes = [16, 128], strides = [1, 1]} : vector<16x384xf32> to vector<16x128xf32>
    %145 = arith.mulf %143, %92 : vector<16x128xf32>
    %146 = arith.mulf %142, %141 : vector<16x128xf32>
    %147 = arith.addf %145, %146 : vector<16x128xf32>
    %148 = math.tanh %147 : vector<16x128xf32>
    %149 = arith.mulf %144, %148 : vector<16x128xf32>
    %150 = vector.extract_strided_slice %131 {offsets = [0, 0], sizes = [16, 384], strides = [1, 1]} : vector<16x512xf32> to vector<16x384xf32>
    %cst_58 = arith.constant 5.000000e-01 : f32
    %151 = vector.broadcast %cst_58 : f32 to vector<16x384xf32>
    %152 = arith.mulf %151, %150 : vector<16x384xf32>
    %153 = math.tanh %152 : vector<16x384xf32>
    %cst_59 = arith.constant 5.000000e-01 : f32
    %154 = vector.broadcast %cst_59 : f32 to vector<16x384xf32>
    %155 = arith.mulf %154, %153 : vector<16x384xf32>
    %cst_60 = arith.constant 5.000000e-01 : f32
    %156 = vector.broadcast %cst_60 : f32 to vector<16x384xf32>
    %157 = arith.addf %155, %156 : vector<16x384xf32>
    %158 = vector.extract_strided_slice %131 {offsets = [0, 384], sizes = [16, 128], strides = [1, 1]} : vector<16x512xf32> to vector<16x128xf32>
    %159 = math.tanh %158 : vector<16x128xf32>
    %160 = vector.extract_strided_slice %157 {offsets = [0, 0], sizes = [16, 128], strides = [1, 1]} : vector<16x384xf32> to vector<16x128xf32>
    %161 = vector.extract_strided_slice %157 {offsets = [0, 128], sizes = [16, 128], strides = [1, 1]} : vector<16x384xf32> to vector<16x128xf32>
    %162 = vector.extract_strided_slice %157 {offsets = [0, 256], sizes = [16, 128], strides = [1, 1]} : vector<16x384xf32> to vector<16x128xf32>
    %163 = arith.mulf %161, %110 : vector<16x128xf32>
    %164 = arith.mulf %160, %159 : vector<16x128xf32>
    %165 = arith.addf %163, %164 : vector<16x128xf32>
    %166 = math.tanh %165 : vector<16x128xf32>
    %167 = arith.mulf %162, %166 : vector<16x128xf32>
    %168 = arith.truncf %149 : vector<16x128xf32> to vector<16x128xbf16>
    %c0_61 = arith.constant 0 : index
    %c2_62 = arith.constant 2 : index
    %c0_63 = arith.constant 0 : index
    %c0_64 = arith.constant 0 : index
    %169 = vector.load %arg4[%c0_61, %c2_62, %c0_63, %c0_64] : memref<2x8x16x128xbf16, #tpu.memory_space<vmem>>, vector<1x1x16x128xbf16>
    %170 = vector.shape_cast %169 : vector<1x1x16x128xbf16> to vector<16x128xbf16>
    %171 = vector.shape_cast %168 : vector<16x128xbf16> to vector<1x1x16x128xbf16>
    tpu.vector_store %arg4[%c0_61, %c2_62, %c0_63, %c0_64], %171 {strides = array<i32>} : memref<2x8x16x128xbf16, #tpu.memory_space<vmem>>, vector<1x1x16x128xbf16>,
    %172 = arith.truncf %167 : vector<16x128xf32> to vector<16x128xbf16>
    %c1_65 = arith.constant 1 : index
    %c5_66 = arith.constant 5 : index
    %c0_67 = arith.constant 0 : index
    %c0_68 = arith.constant 0 : index
    %173 = vector.load %arg4[%c1_65, %c5_66, %c0_67, %c0_68] : memref<2x8x16x128xbf16, #tpu.memory_space<vmem>>, vector<1x1x16x128xbf16>
    %174 = vector.shape_cast %173 : vector<1x1x16x128xbf16> to vector<16x128xbf16>
    %175 = vector.shape_cast %172 : vector<16x128xbf16> to vector<1x1x16x128xbf16>
    tpu.vector_store %arg4[%c1_65, %c5_66, %c0_67, %c0_68], %175 {strides = array<i32>} : memref<2x8x16x128xbf16, #tpu.memory_space<vmem>>, vector<1x1x16x128xbf16>,
    %176 = tpu.concatenate %149, %167 in 1 : vector<16x128xf32>, vector<16x128xf32> -> vector<16x256xf32>
    %177 = arith.truncf %176 : vector<16x256xf32> to vector<16x256xbf16>
    %cst_69 = arith.constant dense<0.000000e+00> : vector<16x1024xf32>
    %178 = tpu.matmul %177, %2, %cst_69 {dimension_numbers = #tpu.dot_dimension_numbers<[1], [0], [0], [1], [0, 0, 1, 1], [], []>} : vector<16x256xbf16>, vector<256x1024xbf16>, vector<16x1024xf32> -> vector<16x1024xf32>
    %c3 = arith.constant 3 : index
    %c0_70 = arith.constant 0 : index
    %c0_71 = arith.constant 0 : index
    %179 = vector.load %arg5[%c3, %c0_70, %c0_71] : memref<8x16x1024xf32, #tpu.memory_space<vmem>>, vector<1x16x512xf32>
    %180 = vector.shape_cast %179 : vector<1x16x512xf32> to vector<16x512xf32>
    %181 = vector.extract_strided_slice %178 {offsets = [0, 0], sizes = [16, 512], strides = [1, 1]} : vector<16x1024xf32> to vector<16x512xf32>
    %182 = arith.addf %180, %181 : vector<16x512xf32>
    %c4 = arith.constant 4 : index
    %c0_72 = arith.constant 0 : index
    %c512_73 = arith.constant 512 : index
    %183 = vector.load %arg5[%c4, %c0_72, %c512_73] : memref<8x16x1024xf32, #tpu.memory_space<vmem>>, vector<1x16x512xf32>
    %184 = vector.shape_cast %183 : vector<1x16x512xf32> to vector<16x512xf32>
    %185 = vector.extract_strided_slice %178 {offsets = [0, 512], sizes = [16, 512], strides = [1, 1]} : vector<16x1024xf32> to vector<16x512xf32>
    %186 = arith.addf %184, %185 : vector<16x512xf32>
    %187 = vector.extract_strided_slice %182 {offsets = [0, 0], sizes = [16, 384], strides = [1, 1]} : vector<16x512xf32> to vector<16x384xf32>
    %cst_74 = arith.constant 5.000000e-01 : f32
    %188 = vector.broadcast %cst_74 : f32 to vector<16x384xf32>
    %189 = arith.mulf %188, %187 : vector<16x384xf32>
    %190 = math.tanh %189 : vector<16x384xf32>
    %cst_75 = arith.constant 5.000000e-01 : f32
    %191 = vector.broadcast %cst_75 : f32 to vector<16x384xf32>
    %192 = arith.mulf %191, %190 : vector<16x384xf32>
    %cst_76 = arith.constant 5.000000e-01 : f32
    %193 = vector.broadcast %cst_76 : f32 to vector<16x384xf32>
    %194 = arith.addf %192, %193 : vector<16x384xf32>
    %195 = vector.extract_strided_slice %182 {offsets = [0, 384], sizes = [16, 128], strides = [1, 1]} : vector<16x512xf32> to vector<16x128xf32>
    %196 = math.tanh %195 : vector<16x128xf32>
    %197 = vector.extract_strided_slice %194 {offsets = [0, 0], sizes = [16, 128], strides = [1, 1]} : vector<16x384xf32> to vector<16x128xf32>
    %198 = vector.extract_strided_slice %194 {offsets = [0, 128], sizes = [16, 128], strides = [1, 1]} : vector<16x384xf32> to vector<16x128xf32>
    %199 = vector.extract_strided_slice %194 {offsets = [0, 256], sizes = [16, 128], strides = [1, 1]} : vector<16x384xf32> to vector<16x128xf32>
    %200 = arith.mulf %198, %147 : vector<16x128xf32>
    %201 = arith.mulf %197, %196 : vector<16x128xf32>
    %202 = arith.addf %200, %201 : vector<16x128xf32>
    %203 = math.tanh %202 : vector<16x128xf32>
    %204 = arith.mulf %199, %203 : vector<16x128xf32>
    %205 = vector.extract_strided_slice %186 {offsets = [0, 0], sizes = [16, 384], strides = [1, 1]} : vector<16x512xf32> to vector<16x384xf32>
    %cst_77 = arith.constant 5.000000e-01 : f32
    %206 = vector.broadcast %cst_77 : f32 to vector<16x384xf32>
    %207 = arith.mulf %206, %205 : vector<16x384xf32>
    %208 = math.tanh %207 : vector<16x384xf32>
    %cst_78 = arith.constant 5.000000e-01 : f32
    %209 = vector.broadcast %cst_78 : f32 to vector<16x384xf32>
    %210 = arith.mulf %209, %208 : vector<16x384xf32>
    %cst_79 = arith.constant 5.000000e-01 : f32
    %211 = vector.broadcast %cst_79 : f32 to vector<16x384xf32>
    %212 = arith.addf %210, %211 : vector<16x384xf32>
    %213 = vector.extract_strided_slice %186 {offsets = [0, 384], sizes = [16, 128], strides = [1, 1]} : vector<16x512xf32> to vector<16x128xf32>
    %214 = math.tanh %213 : vector<16x128xf32>
    %215 = vector.extract_strided_slice %212 {offsets = [0, 0], sizes = [16, 128], strides = [1, 1]} : vector<16x384xf32> to vector<16x128xf32>
    %216 = vector.extract_strided_slice %212 {offsets = [0, 128], sizes = [16, 128], strides = [1, 1]} : vector<16x384xf32> to vector<16x128xf32>
    %217 = vector.extract_strided_slice %212 {offsets = [0, 256], sizes = [16, 128], strides = [1, 1]} : vector<16x384xf32> to vector<16x128xf32>
    %218 = arith.mulf %216, %165 : vector<16x128xf32>
    %219 = arith.mulf %215, %214 : vector<16x128xf32>
    %220 = arith.addf %218, %219 : vector<16x128xf32>
    %221 = math.tanh %220 : vector<16x128xf32>
    %222 = arith.mulf %217, %221 : vector<16x128xf32>
    %223 = arith.truncf %204 : vector<16x128xf32> to vector<16x128xbf16>
    %c0_80 = arith.constant 0 : index
    %c3_81 = arith.constant 3 : index
    %c0_82 = arith.constant 0 : index
    %c0_83 = arith.constant 0 : index
    %224 = vector.load %arg4[%c0_80, %c3_81, %c0_82, %c0_83] : memref<2x8x16x128xbf16, #tpu.memory_space<vmem>>, vector<1x1x16x128xbf16>
    %225 = vector.shape_cast %224 : vector<1x1x16x128xbf16> to vector<16x128xbf16>
    %226 = vector.shape_cast %223 : vector<16x128xbf16> to vector<1x1x16x128xbf16>
    tpu.vector_store %arg4[%c0_80, %c3_81, %c0_82, %c0_83], %226 {strides = array<i32>} : memref<2x8x16x128xbf16, #tpu.memory_space<vmem>>, vector<1x1x16x128xbf16>,
    %227 = arith.truncf %222 : vector<16x128xf32> to vector<16x128xbf16>
    %c1_84 = arith.constant 1 : index
    %c4_85 = arith.constant 4 : index
    %c0_86 = arith.constant 0 : index
    %c0_87 = arith.constant 0 : index
    %228 = vector.load %arg4[%c1_84, %c4_85, %c0_86, %c0_87] : memref<2x8x16x128xbf16, #tpu.memory_space<vmem>>, vector<1x1x16x128xbf16>
    %229 = vector.shape_cast %228 : vector<1x1x16x128xbf16> to vector<16x128xbf16>
    %230 = vector.shape_cast %227 : vector<16x128xbf16> to vector<1x1x16x128xbf16>
    tpu.vector_store %arg4[%c1_84, %c4_85, %c0_86, %c0_87], %230 {strides = array<i32>} : memref<2x8x16x128xbf16, #tpu.memory_space<vmem>>, vector<1x1x16x128xbf16>,
    %231 = tpu.concatenate %204, %222 in 1 : vector<16x128xf32>, vector<16x128xf32> -> vector<16x256xf32>
    %232 = arith.truncf %231 : vector<16x256xf32> to vector<16x256xbf16>
    %cst_88 = arith.constant dense<0.000000e+00> : vector<16x1024xf32>
    %233 = tpu.matmul %232, %2, %cst_88 {dimension_numbers = #tpu.dot_dimension_numbers<[1], [0], [0], [1], [0, 0, 1, 1], [], []>} : vector<16x256xbf16>, vector<256x1024xbf16>, vector<16x1024xf32> -> vector<16x1024xf32>
    %c4_89 = arith.constant 4 : index
    %c0_90 = arith.constant 0 : index
    %c0_91 = arith.constant 0 : index
    %234 = vector.load %arg5[%c4_89, %c0_90, %c0_91] : memref<8x16x1024xf32, #tpu.memory_space<vmem>>, vector<1x16x512xf32>
    %235 = vector.shape_cast %234 : vector<1x16x512xf32> to vector<16x512xf32>
    %236 = vector.extract_strided_slice %233 {offsets = [0, 0], sizes = [16, 512], strides = [1, 1]} : vector<16x1024xf32> to vector<16x512xf32>
    %237 = arith.addf %235, %236 : vector<16x512xf32>
    %c3_92 = arith.constant 3 : index
    %c0_93 = arith.constant 0 : index
    %c512_94 = arith.constant 512 : index
    %238 = vector.load %arg5[%c3_92, %c0_93, %c512_94] : memref<8x16x1024xf32, #tpu.memory_space<vmem>>, vector<1x16x512xf32>
    %239 = vector.shape_cast %238 : vector<1x16x512xf32> to vector<16x512xf32>
    %240 = vector.extract_strided_slice %233 {offsets = [0, 512], sizes = [16, 512], strides = [1, 1]} : vector<16x1024xf32> to vector<16x512xf32>
    %241 = arith.addf %239, %240 : vector<16x512xf32>
    %242 = vector.extract_strided_slice %237 {offsets = [0, 0], sizes = [16, 384], strides = [1, 1]} : vector<16x512xf32> to vector<16x384xf32>
    %cst_95 = arith.constant 5.000000e-01 : f32
    %243 = vector.broadcast %cst_95 : f32 to vector<16x384xf32>
    %244 = arith.mulf %243, %242 : vector<16x384xf32>
    %245 = math.tanh %244 : vector<16x384xf32>
    %cst_96 = arith.constant 5.000000e-01 : f32
    %246 = vector.broadcast %cst_96 : f32 to vector<16x384xf32>
    %247 = arith.mulf %246, %245 : vector<16x384xf32>
    %cst_97 = arith.constant 5.000000e-01 : f32
    %248 = vector.broadcast %cst_97 : f32 to vector<16x384xf32>
    %249 = arith.addf %247, %248 : vector<16x384xf32>
    %250 = vector.extract_strided_slice %237 {offsets = [0, 384], sizes = [16, 128], strides = [1, 1]} : vector<16x512xf32> to vector<16x128xf32>
    %251 = math.tanh %250 : vector<16x128xf32>
    %252 = vector.extract_strided_slice %249 {offsets = [0, 0], sizes = [16, 128], strides = [1, 1]} : vector<16x384xf32> to vector<16x128xf32>
    %253 = vector.extract_strided_slice %249 {offsets = [0, 128], sizes = [16, 128], strides = [1, 1]} : vector<16x384xf32> to vector<16x128xf32>
    %254 = vector.extract_strided_slice %249 {offsets = [0, 256], sizes = [16, 128], strides = [1, 1]} : vector<16x384xf32> to vector<16x128xf32>
    %255 = arith.mulf %253, %202 : vector<16x128xf32>
    %256 = arith.mulf %252, %251 : vector<16x128xf32>
    %257 = arith.addf %255, %256 : vector<16x128xf32>
    %258 = math.tanh %257 : vector<16x128xf32>
    %259 = arith.mulf %254, %258 : vector<16x128xf32>
    %260 = vector.extract_strided_slice %241 {offsets = [0, 0], sizes = [16, 384], strides = [1, 1]} : vector<16x512xf32> to vector<16x384xf32>
    %cst_98 = arith.constant 5.000000e-01 : f32
    %261 = vector.broadcast %cst_98 : f32 to vector<16x384xf32>
    %262 = arith.mulf %261, %260 : vector<16x384xf32>
    %263 = math.tanh %262 : vector<16x384xf32>
    %cst_99 = arith.constant 5.000000e-01 : f32
    %264 = vector.broadcast %cst_99 : f32 to vector<16x384xf32>
    %265 = arith.mulf %264, %263 : vector<16x384xf32>
    %cst_100 = arith.constant 5.000000e-01 : f32
    %266 = vector.broadcast %cst_100 : f32 to vector<16x384xf32>
    %267 = arith.addf %265, %266 : vector<16x384xf32>
    %268 = vector.extract_strided_slice %241 {offsets = [0, 384], sizes = [16, 128], strides = [1, 1]} : vector<16x512xf32> to vector<16x128xf32>
    %269 = math.tanh %268 : vector<16x128xf32>
    %270 = vector.extract_strided_slice %267 {offsets = [0, 0], sizes = [16, 128], strides = [1, 1]} : vector<16x384xf32> to vector<16x128xf32>
    %271 = vector.extract_strided_slice %267 {offsets = [0, 128], sizes = [16, 128], strides = [1, 1]} : vector<16x384xf32> to vector<16x128xf32>
    %272 = vector.extract_strided_slice %267 {offsets = [0, 256], sizes = [16, 128], strides = [1, 1]} : vector<16x384xf32> to vector<16x128xf32>
    %273 = arith.mulf %271, %220 : vector<16x128xf32>
    %274 = arith.mulf %270, %269 : vector<16x128xf32>
    %275 = arith.addf %273, %274 : vector<16x128xf32>
    %276 = math.tanh %275 : vector<16x128xf32>
    %277 = arith.mulf %272, %276 : vector<16x128xf32>
    %278 = arith.truncf %259 : vector<16x128xf32> to vector<16x128xbf16>
    %c0_101 = arith.constant 0 : index
    %c4_102 = arith.constant 4 : index
    %c0_103 = arith.constant 0 : index
    %c0_104 = arith.constant 0 : index
    %279 = vector.load %arg4[%c0_101, %c4_102, %c0_103, %c0_104] : memref<2x8x16x128xbf16, #tpu.memory_space<vmem>>, vector<1x1x16x128xbf16>
    %280 = vector.shape_cast %279 : vector<1x1x16x128xbf16> to vector<16x128xbf16>
    %281 = vector.shape_cast %278 : vector<16x128xbf16> to vector<1x1x16x128xbf16>
    tpu.vector_store %arg4[%c0_101, %c4_102, %c0_103, %c0_104], %281 {strides = array<i32>} : memref<2x8x16x128xbf16, #tpu.memory_space<vmem>>, vector<1x1x16x128xbf16>,
    %282 = arith.truncf %277 : vector<16x128xf32> to vector<16x128xbf16>
    %c1_105 = arith.constant 1 : index
    %c3_106 = arith.constant 3 : index
    %c0_107 = arith.constant 0 : index
    %c0_108 = arith.constant 0 : index
    %283 = vector.load %arg4[%c1_105, %c3_106, %c0_107, %c0_108] : memref<2x8x16x128xbf16, #tpu.memory_space<vmem>>, vector<1x1x16x128xbf16>
    %284 = vector.shape_cast %283 : vector<1x1x16x128xbf16> to vector<16x128xbf16>
    %285 = vector.shape_cast %282 : vector<16x128xbf16> to vector<1x1x16x128xbf16>
    tpu.vector_store %arg4[%c1_105, %c3_106, %c0_107, %c0_108], %285 {strides = array<i32>} : memref<2x8x16x128xbf16, #tpu.memory_space<vmem>>, vector<1x1x16x128xbf16>,
    %286 = tpu.concatenate %259, %277 in 1 : vector<16x128xf32>, vector<16x128xf32> -> vector<16x256xf32>
    %287 = arith.truncf %286 : vector<16x256xf32> to vector<16x256xbf16>
    %cst_109 = arith.constant dense<0.000000e+00> : vector<16x1024xf32>
    %288 = tpu.matmul %287, %2, %cst_109 {dimension_numbers = #tpu.dot_dimension_numbers<[1], [0], [0], [1], [0, 0, 1, 1], [], []>} : vector<16x256xbf16>, vector<256x1024xbf16>, vector<16x1024xf32> -> vector<16x1024xf32>
    %c5_110 = arith.constant 5 : index
    %c0_111 = arith.constant 0 : index
    %c0_112 = arith.constant 0 : index
    %289 = vector.load %arg5[%c5_110, %c0_111, %c0_112] : memref<8x16x1024xf32, #tpu.memory_space<vmem>>, vector<1x16x512xf32>
    %290 = vector.shape_cast %289 : vector<1x16x512xf32> to vector<16x512xf32>
    %291 = vector.extract_strided_slice %288 {offsets = [0, 0], sizes = [16, 512], strides = [1, 1]} : vector<16x1024xf32> to vector<16x512xf32>
    %292 = arith.addf %290, %291 : vector<16x512xf32>
    %c2_113 = arith.constant 2 : index
    %c0_114 = arith.constant 0 : index
    %c512_115 = arith.constant 512 : index
    %293 = vector.load %arg5[%c2_113, %c0_114, %c512_115] : memref<8x16x1024xf32, #tpu.memory_space<vmem>>, vector<1x16x512xf32>
    %294 = vector.shape_cast %293 : vector<1x16x512xf32> to vector<16x512xf32>
    %295 = vector.extract_strided_slice %288 {offsets = [0, 512], sizes = [16, 512], strides = [1, 1]} : vector<16x1024xf32> to vector<16x512xf32>
    %296 = arith.addf %294, %295 : vector<16x512xf32>
    %297 = vector.extract_strided_slice %292 {offsets = [0, 0], sizes = [16, 384], strides = [1, 1]} : vector<16x512xf32> to vector<16x384xf32>
    %cst_116 = arith.constant 5.000000e-01 : f32
    %298 = vector.broadcast %cst_116 : f32 to vector<16x384xf32>
    %299 = arith.mulf %298, %297 : vector<16x384xf32>
    %300 = math.tanh %299 : vector<16x384xf32>
    %cst_117 = arith.constant 5.000000e-01 : f32
    %301 = vector.broadcast %cst_117 : f32 to vector<16x384xf32>
    %302 = arith.mulf %301, %300 : vector<16x384xf32>
    %cst_118 = arith.constant 5.000000e-01 : f32
    %303 = vector.broadcast %cst_118 : f32 to vector<16x384xf32>
    %304 = arith.addf %302, %303 : vector<16x384xf32>
    %305 = vector.extract_strided_slice %292 {offsets = [0, 384], sizes = [16, 128], strides = [1, 1]} : vector<16x512xf32> to vector<16x128xf32>
    %306 = math.tanh %305 : vector<16x128xf32>
    %307 = vector.extract_strided_slice %304 {offsets = [0, 0], sizes = [16, 128], strides = [1, 1]} : vector<16x384xf32> to vector<16x128xf32>
    %308 = vector.extract_strided_slice %304 {offsets = [0, 128], sizes = [16, 128], strides = [1, 1]} : vector<16x384xf32> to vector<16x128xf32>
    %309 = vector.extract_strided_slice %304 {offsets = [0, 256], sizes = [16, 128], strides = [1, 1]} : vector<16x384xf32> to vector<16x128xf32>
    %310 = arith.mulf %308, %257 : vector<16x128xf32>
    %311 = arith.mulf %307, %306 : vector<16x128xf32>
    %312 = arith.addf %310, %311 : vector<16x128xf32>
    %313 = math.tanh %312 : vector<16x128xf32>
    %314 = arith.mulf %309, %313 : vector<16x128xf32>
    %315 = vector.extract_strided_slice %296 {offsets = [0, 0], sizes = [16, 384], strides = [1, 1]} : vector<16x512xf32> to vector<16x384xf32>
    %cst_119 = arith.constant 5.000000e-01 : f32
    %316 = vector.broadcast %cst_119 : f32 to vector<16x384xf32>
    %317 = arith.mulf %316, %315 : vector<16x384xf32>
    %318 = math.tanh %317 : vector<16x384xf32>
    %cst_120 = arith.constant 5.000000e-01 : f32
    %319 = vector.broadcast %cst_120 : f32 to vector<16x384xf32>
    %320 = arith.mulf %319, %318 : vector<16x384xf32>
    %cst_121 = arith.constant 5.000000e-01 : f32
    %321 = vector.broadcast %cst_121 : f32 to vector<16x384xf32>
    %322 = arith.addf %320, %321 : vector<16x384xf32>
    %323 = vector.extract_strided_slice %296 {offsets = [0, 384], sizes = [16, 128], strides = [1, 1]} : vector<16x512xf32> to vector<16x128xf32>
    %324 = math.tanh %323 : vector<16x128xf32>
    %325 = vector.extract_strided_slice %322 {offsets = [0, 0], sizes = [16, 128], strides = [1, 1]} : vector<16x384xf32> to vector<16x128xf32>
    %326 = vector.extract_strided_slice %322 {offsets = [0, 128], sizes = [16, 128], strides = [1, 1]} : vector<16x384xf32> to vector<16x128xf32>
    %327 = vector.extract_strided_slice %322 {offsets = [0, 256], sizes = [16, 128], strides = [1, 1]} : vector<16x384xf32> to vector<16x128xf32>
    %328 = arith.mulf %326, %275 : vector<16x128xf32>
    %329 = arith.mulf %325, %324 : vector<16x128xf32>
    %330 = arith.addf %328, %329 : vector<16x128xf32>
    %331 = math.tanh %330 : vector<16x128xf32>
    %332 = arith.mulf %327, %331 : vector<16x128xf32>
    %333 = arith.truncf %314 : vector<16x128xf32> to vector<16x128xbf16>
    %c0_122 = arith.constant 0 : index
    %c5_123 = arith.constant 5 : index
    %c0_124 = arith.constant 0 : index
    %c0_125 = arith.constant 0 : index
    %334 = vector.load %arg4[%c0_122, %c5_123, %c0_124, %c0_125] : memref<2x8x16x128xbf16, #tpu.memory_space<vmem>>, vector<1x1x16x128xbf16>
    %335 = vector.shape_cast %334 : vector<1x1x16x128xbf16> to vector<16x128xbf16>
    %336 = vector.shape_cast %333 : vector<16x128xbf16> to vector<1x1x16x128xbf16>
    tpu.vector_store %arg4[%c0_122, %c5_123, %c0_124, %c0_125], %336 {strides = array<i32>} : memref<2x8x16x128xbf16, #tpu.memory_space<vmem>>, vector<1x1x16x128xbf16>,
    %337 = arith.truncf %332 : vector<16x128xf32> to vector<16x128xbf16>
    %c1_126 = arith.constant 1 : index
    %c2_127 = arith.constant 2 : index
    %c0_128 = arith.constant 0 : index
    %c0_129 = arith.constant 0 : index
    %338 = vector.load %arg4[%c1_126, %c2_127, %c0_128, %c0_129] : memref<2x8x16x128xbf16, #tpu.memory_space<vmem>>, vector<1x1x16x128xbf16>
    %339 = vector.shape_cast %338 : vector<1x1x16x128xbf16> to vector<16x128xbf16>
    %340 = vector.shape_cast %337 : vector<16x128xbf16> to vector<1x1x16x128xbf16>
    tpu.vector_store %arg4[%c1_126, %c2_127, %c0_128, %c0_129], %340 {strides = array<i32>} : memref<2x8x16x128xbf16, #tpu.memory_space<vmem>>, vector<1x1x16x128xbf16>,
    %341 = tpu.concatenate %314, %332 in 1 : vector<16x128xf32>, vector<16x128xf32> -> vector<16x256xf32>
    %342 = arith.truncf %341 : vector<16x256xf32> to vector<16x256xbf16>
    %cst_130 = arith.constant dense<0.000000e+00> : vector<16x1024xf32>
    %343 = tpu.matmul %342, %2, %cst_130 {dimension_numbers = #tpu.dot_dimension_numbers<[1], [0], [0], [1], [0, 0, 1, 1], [], []>} : vector<16x256xbf16>, vector<256x1024xbf16>, vector<16x1024xf32> -> vector<16x1024xf32>
    %c6_131 = arith.constant 6 : index
    %c0_132 = arith.constant 0 : index
    %c0_133 = arith.constant 0 : index
    %344 = vector.load %arg5[%c6_131, %c0_132, %c0_133] : memref<8x16x1024xf32, #tpu.memory_space<vmem>>, vector<1x16x512xf32>
    %345 = vector.shape_cast %344 : vector<1x16x512xf32> to vector<16x512xf32>
    %346 = vector.extract_strided_slice %343 {offsets = [0, 0], sizes = [16, 512], strides = [1, 1]} : vector<16x1024xf32> to vector<16x512xf32>
    %347 = arith.addf %345, %346 : vector<16x512xf32>
    %c1_134 = arith.constant 1 : index
    %c0_135 = arith.constant 0 : index
    %c512_136 = arith.constant 512 : index
    %348 = vector.load %arg5[%c1_134, %c0_135, %c512_136] : memref<8x16x1024xf32, #tpu.memory_space<vmem>>, vector<1x16x512xf32>
    %349 = vector.shape_cast %348 : vector<1x16x512xf32> to vector<16x512xf32>
    %350 = vector.extract_strided_slice %343 {offsets = [0, 512], sizes = [16, 512], strides = [1, 1]} : vector<16x1024xf32> to vector<16x512xf32>
    %351 = arith.addf %349, %350 : vector<16x512xf32>
    %352 = vector.extract_strided_slice %347 {offsets = [0, 0], sizes = [16, 384], strides = [1, 1]} : vector<16x512xf32> to vector<16x384xf32>
    %cst_137 = arith.constant 5.000000e-01 : f32
    %353 = vector.broadcast %cst_137 : f32 to vector<16x384xf32>
    %354 = arith.mulf %353, %352 : vector<16x384xf32>
    %355 = math.tanh %354 : vector<16x384xf32>
    %cst_138 = arith.constant 5.000000e-01 : f32
    %356 = vector.broadcast %cst_138 : f32 to vector<16x384xf32>
    %357 = arith.mulf %356, %355 : vector<16x384xf32>
    %cst_139 = arith.constant 5.000000e-01 : f32
    %358 = vector.broadcast %cst_139 : f32 to vector<16x384xf32>
    %359 = arith.addf %357, %358 : vector<16x384xf32>
    %360 = vector.extract_strided_slice %347 {offsets = [0, 384], sizes = [16, 128], strides = [1, 1]} : vector<16x512xf32> to vector<16x128xf32>
    %361 = math.tanh %360 : vector<16x128xf32>
    %362 = vector.extract_strided_slice %359 {offsets = [0, 0], sizes = [16, 128], strides = [1, 1]} : vector<16x384xf32> to vector<16x128xf32>
    %363 = vector.extract_strided_slice %359 {offsets = [0, 128], sizes = [16, 128], strides = [1, 1]} : vector<16x384xf32> to vector<16x128xf32>
    %364 = vector.extract_strided_slice %359 {offsets = [0, 256], sizes = [16, 128], strides = [1, 1]} : vector<16x384xf32> to vector<16x128xf32>
    %365 = arith.mulf %363, %312 : vector<16x128xf32>
    %366 = arith.mulf %362, %361 : vector<16x128xf32>
    %367 = arith.addf %365, %366 : vector<16x128xf32>
    %368 = math.tanh %367 : vector<16x128xf32>
    %369 = arith.mulf %364, %368 : vector<16x128xf32>
    %370 = vector.extract_strided_slice %351 {offsets = [0, 0], sizes = [16, 384], strides = [1, 1]} : vector<16x512xf32> to vector<16x384xf32>
    %cst_140 = arith.constant 5.000000e-01 : f32
    %371 = vector.broadcast %cst_140 : f32 to vector<16x384xf32>
    %372 = arith.mulf %371, %370 : vector<16x384xf32>
    %373 = math.tanh %372 : vector<16x384xf32>
    %cst_141 = arith.constant 5.000000e-01 : f32
    %374 = vector.broadcast %cst_141 : f32 to vector<16x384xf32>
    %375 = arith.mulf %374, %373 : vector<16x384xf32>
    %cst_142 = arith.constant 5.000000e-01 : f32
    %376 = vector.broadcast %cst_142 : f32 to vector<16x384xf32>
    %377 = arith.addf %375, %376 : vector<16x384xf32>
    %378 = vector.extract_strided_slice %351 {offsets = [0, 384], sizes = [16, 128], strides = [1, 1]} : vector<16x512xf32> to vector<16x128xf32>
    %379 = math.tanh %378 : vector<16x128xf32>
    %380 = vector.extract_strided_slice %377 {offsets = [0, 0], sizes = [16, 128], strides = [1, 1]} : vector<16x384xf32> to vector<16x128xf32>
    %381 = vector.extract_strided_slice %377 {offsets = [0, 128], sizes = [16, 128], strides = [1, 1]} : vector<16x384xf32> to vector<16x128xf32>
    %382 = vector.extract_strided_slice %377 {offsets = [0, 256], sizes = [16, 128], strides = [1, 1]} : vector<16x384xf32> to vector<16x128xf32>
    %383 = arith.mulf %381, %330 : vector<16x128xf32>
    %384 = arith.mulf %380, %379 : vector<16x128xf32>
    %385 = arith.addf %383, %384 : vector<16x128xf32>
    %386 = math.tanh %385 : vector<16x128xf32>
    %387 = arith.mulf %382, %386 : vector<16x128xf32>
    %388 = arith.truncf %369 : vector<16x128xf32> to vector<16x128xbf16>
    %c0_143 = arith.constant 0 : index
    %c6_144 = arith.constant 6 : index
    %c0_145 = arith.constant 0 : index
    %c0_146 = arith.constant 0 : index
    %389 = vector.load %arg4[%c0_143, %c6_144, %c0_145, %c0_146] : memref<2x8x16x128xbf16, #tpu.memory_space<vmem>>, vector<1x1x16x128xbf16>
    %390 = vector.shape_cast %389 : vector<1x1x16x128xbf16> to vector<16x128xbf16>
    %391 = vector.shape_cast %388 : vector<16x128xbf16> to vector<1x1x16x128xbf16>
    tpu.vector_store %arg4[%c0_143, %c6_144, %c0_145, %c0_146], %391 {strides = array<i32>} : memref<2x8x16x128xbf16, #tpu.memory_space<vmem>>, vector<1x1x16x128xbf16>,
    %392 = arith.truncf %387 : vector<16x128xf32> to vector<16x128xbf16>
    %c1_147 = arith.constant 1 : index
    %c1_148 = arith.constant 1 : index
    %c0_149 = arith.constant 0 : index
    %c0_150 = arith.constant 0 : index
    %393 = vector.load %arg4[%c1_147, %c1_148, %c0_149, %c0_150] : memref<2x8x16x128xbf16, #tpu.memory_space<vmem>>, vector<1x1x16x128xbf16>
    %394 = vector.shape_cast %393 : vector<1x1x16x128xbf16> to vector<16x128xbf16>
    %395 = vector.shape_cast %392 : vector<16x128xbf16> to vector<1x1x16x128xbf16>
    tpu.vector_store %arg4[%c1_147, %c1_148, %c0_149, %c0_150], %395 {strides = array<i32>} : memref<2x8x16x128xbf16, #tpu.memory_space<vmem>>, vector<1x1x16x128xbf16>,
    %396 = tpu.concatenate %369, %387 in 1 : vector<16x128xf32>, vector<16x128xf32> -> vector<16x256xf32>
    %397 = arith.truncf %396 : vector<16x256xf32> to vector<16x256xbf16>
    %cst_151 = arith.constant dense<0.000000e+00> : vector<16x1024xf32>
    %398 = tpu.matmul %397, %2, %cst_151 {dimension_numbers = #tpu.dot_dimension_numbers<[1], [0], [0], [1], [0, 0, 1, 1], [], []>} : vector<16x256xbf16>, vector<256x1024xbf16>, vector<16x1024xf32> -> vector<16x1024xf32>
    %c7_152 = arith.constant 7 : index
    %c0_153 = arith.constant 0 : index
    %c0_154 = arith.constant 0 : index
    %399 = vector.load %arg5[%c7_152, %c0_153, %c0_154] : memref<8x16x1024xf32, #tpu.memory_space<vmem>>, vector<1x16x512xf32>
    %400 = vector.shape_cast %399 : vector<1x16x512xf32> to vector<16x512xf32>
    %401 = vector.extract_strided_slice %398 {offsets = [0, 0], sizes = [16, 512], strides = [1, 1]} : vector<16x1024xf32> to vector<16x512xf32>
    %402 = arith.addf %400, %401 : vector<16x512xf32>
    %c0_155 = arith.constant 0 : index
    %c0_156 = arith.constant 0 : index
    %c512_157 = arith.constant 512 : index
    %403 = vector.load %arg5[%c0_155, %c0_156, %c512_157] : memref<8x16x1024xf32, #tpu.memory_space<vmem>>, vector<1x16x512xf32>
    %404 = vector.shape_cast %403 : vector<1x16x512xf32> to vector<16x512xf32>
    %405 = vector.extract_strided_slice %398 {offsets = [0, 512], sizes = [16, 512], strides = [1, 1]} : vector<16x1024xf32> to vector<16x512xf32>
    %406 = arith.addf %404, %405 : vector<16x512xf32>
    %407 = vector.extract_strided_slice %402 {offsets = [0, 0], sizes = [16, 384], strides = [1, 1]} : vector<16x512xf32> to vector<16x384xf32>
    %cst_158 = arith.constant 5.000000e-01 : f32
    %408 = vector.broadcast %cst_158 : f32 to vector<16x384xf32>
    %409 = arith.mulf %408, %407 : vector<16x384xf32>
    %410 = math.tanh %409 : vector<16x384xf32>
    %cst_159 = arith.constant 5.000000e-01 : f32
    %411 = vector.broadcast %cst_159 : f32 to vector<16x384xf32>
    %412 = arith.mulf %411, %410 : vector<16x384xf32>
    %cst_160 = arith.constant 5.000000e-01 : f32
    %413 = vector.broadcast %cst_160 : f32 to vector<16x384xf32>
    %414 = arith.addf %412, %413 : vector<16x384xf32>
    %415 = vector.extract_strided_slice %402 {offsets = [0, 384], sizes = [16, 128], strides = [1, 1]} : vector<16x512xf32> to vector<16x128xf32>
    %416 = math.tanh %415 : vector<16x128xf32>
    %417 = vector.extract_strided_slice %414 {offsets = [0, 0], sizes = [16, 128], strides = [1, 1]} : vector<16x384xf32> to vector<16x128xf32>
    %418 = vector.extract_strided_slice %414 {offsets = [0, 128], sizes = [16, 128], strides = [1, 1]} : vector<16x384xf32> to vector<16x128xf32>
    %419 = vector.extract_strided_slice %414 {offsets = [0, 256], sizes = [16, 128], strides = [1, 1]} : vector<16x384xf32> to vector<16x128xf32>
    %420 = arith.mulf %418, %367 : vector<16x128xf32>
    %421 = arith.mulf %417, %416 : vector<16x128xf32>
    %422 = arith.addf %420, %421 : vector<16x128xf32>
    %423 = math.tanh %422 : vector<16x128xf32>
    %424 = arith.mulf %419, %423 : vector<16x128xf32>
    %425 = vector.extract_strided_slice %406 {offsets = [0, 0], sizes = [16, 384], strides = [1, 1]} : vector<16x512xf32> to vector<16x384xf32>
    %cst_161 = arith.constant 5.000000e-01 : f32
    %426 = vector.broadcast %cst_161 : f32 to vector<16x384xf32>
    %427 = arith.mulf %426, %425 : vector<16x384xf32>
    %428 = math.tanh %427 : vector<16x384xf32>
    %cst_162 = arith.constant 5.000000e-01 : f32
    %429 = vector.broadcast %cst_162 : f32 to vector<16x384xf32>
    %430 = arith.mulf %429, %428 : vector<16x384xf32>
    %cst_163 = arith.constant 5.000000e-01 : f32
    %431 = vector.broadcast %cst_163 : f32 to vector<16x384xf32>
    %432 = arith.addf %430, %431 : vector<16x384xf32>
    %433 = vector.extract_strided_slice %406 {offsets = [0, 384], sizes = [16, 128], strides = [1, 1]} : vector<16x512xf32> to vector<16x128xf32>
    %434 = math.tanh %433 : vector<16x128xf32>
    %435 = vector.extract_strided_slice %432 {offsets = [0, 0], sizes = [16, 128], strides = [1, 1]} : vector<16x384xf32> to vector<16x128xf32>
    %436 = vector.extract_strided_slice %432 {offsets = [0, 128], sizes = [16, 128], strides = [1, 1]} : vector<16x384xf32> to vector<16x128xf32>
    %437 = vector.extract_strided_slice %432 {offsets = [0, 256], sizes = [16, 128], strides = [1, 1]} : vector<16x384xf32> to vector<16x128xf32>
    %438 = arith.mulf %436, %385 : vector<16x128xf32>
    %439 = arith.mulf %435, %434 : vector<16x128xf32>
    %440 = arith.addf %438, %439 : vector<16x128xf32>
    %441 = math.tanh %440 : vector<16x128xf32>
    %442 = arith.mulf %437, %441 : vector<16x128xf32>
    %443 = arith.truncf %424 : vector<16x128xf32> to vector<16x128xbf16>
    %c0_164 = arith.constant 0 : index
    %c7_165 = arith.constant 7 : index
    %c0_166 = arith.constant 0 : index
    %c0_167 = arith.constant 0 : index
    %444 = vector.load %arg4[%c0_164, %c7_165, %c0_166, %c0_167] : memref<2x8x16x128xbf16, #tpu.memory_space<vmem>>, vector<1x1x16x128xbf16>
    %445 = vector.shape_cast %444 : vector<1x1x16x128xbf16> to vector<16x128xbf16>
    %446 = vector.shape_cast %443 : vector<16x128xbf16> to vector<1x1x16x128xbf16>
    tpu.vector_store %arg4[%c0_164, %c7_165, %c0_166, %c0_167], %446 {strides = array<i32>} : memref<2x8x16x128xbf16, #tpu.memory_space<vmem>>, vector<1x1x16x128xbf16>,
    %447 = arith.truncf %442 : vector<16x128xf32> to vector<16x128xbf16>
    %c1_168 = arith.constant 1 : index
    %c0_169 = arith.constant 0 : index
    %c0_170 = arith.constant 0 : index
    %c0_171 = arith.constant 0 : index
    %448 = vector.load %arg4[%c1_168, %c0_169, %c0_170, %c0_171] : memref<2x8x16x128xbf16, #tpu.memory_space<vmem>>, vector<1x1x16x128xbf16>
    %449 = vector.shape_cast %448 : vector<1x1x16x128xbf16> to vector<16x128xbf16>
    %450 = vector.shape_cast %447 : vector<16x128xbf16> to vector<1x1x16x128xbf16>
    tpu.vector_store %arg4[%c1_168, %c0_169, %c0_170, %c0_171], %450 {strides = array<i32>} : memref<2x8x16x128xbf16, #tpu.memory_space<vmem>>, vector<1x1x16x128xbf16>,
    return
  }
}

module attributes {stable_mosaic.version = 11 : i64} {
  func.func @_lstm_fc_dir_kernel(%arg0: memref<2x8x16x128xbf16, #tpu.memory_space<vmem>>, %arg1: memref<128x1024xbf16, #tpu.memory_space<vmem>>, %arg2: memref<128x1024xbf16, #tpu.memory_space<vmem>>, %arg3: memref<256x1024xbf16, #tpu.memory_space<vmem>>, %arg4: memref<1x1024xf32, #tpu.memory_space<vmem>>, %arg5: memref<128x128xbf16, #tpu.memory_space<vmem>>, %arg6: memref<128x128xbf16, #tpu.memory_space<vmem>>, %arg7: memref<1x128xf32, #tpu.memory_space<vmem>>, %arg8: memref<16x128xf32, #tpu.memory_space<vmem>>, %arg9: memref<8x16x1024xf32, #tpu.memory_space<vmem>>) attributes {dimension_semantics = [], scalar_prefetch = 0 : i64, scratch_operands = 1 : i64, tpu.core_type = #tpu.core_type<tc>} {
    %c0 = arith.constant 0 : index
    %c0_0 = arith.constant 0 : index
    %c0_1 = arith.constant 0 : index
    %c0_2 = arith.constant 0 : index
    %0 = vector.load %arg0[%c0, %c0_0, %c0_1, %c0_2] : memref<2x8x16x128xbf16, #tpu.memory_space<vmem>>, vector<1x8x16x128xbf16>
    %1 = vector.shape_cast %0 : vector<1x8x16x128xbf16> to vector<8x16x128xbf16>
    %c1 = arith.constant 1 : index
    %c0_3 = arith.constant 0 : index
    %c0_4 = arith.constant 0 : index
    %c0_5 = arith.constant 0 : index
    %2 = vector.load %arg0[%c1, %c0_3, %c0_4, %c0_5] : memref<2x8x16x128xbf16, #tpu.memory_space<vmem>>, vector<1x8x16x128xbf16>
    %3 = vector.shape_cast %2 : vector<1x8x16x128xbf16> to vector<8x16x128xbf16>
    %c0_6 = arith.constant 0 : index
    %c0_7 = arith.constant 0 : index
    %4 = vector.load %arg1[%c0_6, %c0_7] : memref<128x1024xbf16, #tpu.memory_space<vmem>>, vector<128x1024xbf16>
    %c0_8 = arith.constant 0 : index
    %c0_9 = arith.constant 0 : index
    %5 = vector.load %arg2[%c0_8, %c0_9] : memref<128x1024xbf16, #tpu.memory_space<vmem>>, vector<128x1024xbf16>
    %c0_10 = arith.constant 0 : index
    %c0_11 = arith.constant 0 : index
    %6 = vector.load %arg3[%c0_10, %c0_11] : memref<256x1024xbf16, #tpu.memory_space<vmem>>, vector<256x1024xbf16>
    %c0_12 = arith.constant 0 : index
    %c0_13 = arith.constant 0 : index
    %7 = vector.load %arg4[%c0_12, %c0_13] : memref<1x1024xf32, #tpu.memory_space<vmem>>, vector<1x1024xf32>
    %8 = vector.shape_cast %1 : vector<8x16x128xbf16> to vector<128x128xbf16>
    %cst = arith.constant dense<0.000000e+00> : vector<128x1024xf32>
    %9 = tpu.matmul %8, %4, %cst {dimension_numbers = #tpu.dot_dimension_numbers<[1], [0], [0], [1], [0, 0, 1, 1], [], []>} : vector<128x128xbf16>, vector<128x1024xbf16>, vector<128x1024xf32> -> vector<128x1024xf32>
    %10 = vector.broadcast %7 : vector<1x1024xf32> to vector<128x1024xf32>
    %11 = arith.addf %10, %9 : vector<128x1024xf32>
    %12 = vector.shape_cast %3 : vector<8x16x128xbf16> to vector<128x128xbf16>
    %cst_14 = arith.constant dense<0.000000e+00> : vector<128x1024xf32>
    %13 = tpu.matmul %12, %5, %cst_14 {dimension_numbers = #tpu.dot_dimension_numbers<[1], [0], [0], [1], [0, 0, 1, 1], [], []>} : vector<128x128xbf16>, vector<128x1024xbf16>, vector<128x1024xf32> -> vector<128x1024xf32>
    %14 = arith.addf %11, %13 : vector<128x1024xf32>
    %15 = vector.shape_cast %14 : vector<128x1024xf32> to vector<8x16x1024xf32>
    %c0_15 = arith.constant 0 : index
    %c0_16 = arith.constant 0 : index
    %c0_17 = arith.constant 0 : index
    %16 = vector.load %arg9[%c0_15, %c0_16, %c0_17] : memref<8x16x1024xf32, #tpu.memory_space<vmem>>, vector<8x16x1024xf32>
    tpu.vector_store %arg9[%c0_15, %c0_16, %c0_17], %15 {strides = array<i32>} : memref<8x16x1024xf32, #tpu.memory_space<vmem>>, vector<8x16x1024xf32>,
    %cst_18 = arith.constant 0.000000e+00 : f32
    %17 = vector.broadcast %cst_18 : f32 to vector<16x128xf32>
    %18 = tpu.concatenate %17, %17 in 1 : vector<16x128xf32>, vector<16x128xf32> -> vector<16x256xf32>
    %19 = arith.truncf %18 : vector<16x256xf32> to vector<16x256xbf16>
    %cst_19 = arith.constant dense<0.000000e+00> : vector<16x1024xf32>
    %20 = tpu.matmul %19, %6, %cst_19 {dimension_numbers = #tpu.dot_dimension_numbers<[1], [0], [0], [1], [0, 0, 1, 1], [], []>} : vector<16x256xbf16>, vector<256x1024xbf16>, vector<16x1024xf32> -> vector<16x1024xf32>
    %c0_20 = arith.constant 0 : index
    %c0_21 = arith.constant 0 : index
    %c0_22 = arith.constant 0 : index
    %21 = vector.load %arg9[%c0_20, %c0_21, %c0_22] : memref<8x16x1024xf32, #tpu.memory_space<vmem>>, vector<1x16x512xf32>
    %22 = vector.shape_cast %21 : vector<1x16x512xf32> to vector<16x512xf32>
    %23 = vector.extract_strided_slice %20 {offsets = [0, 0], sizes = [16, 512], strides = [1, 1]} : vector<16x1024xf32> to vector<16x512xf32>
    %24 = arith.addf %22, %23 : vector<16x512xf32>
    %c7 = arith.constant 7 : index
    %c0_23 = arith.constant 0 : index
    %c512 = arith.constant 512 : index
    %25 = vector.load %arg9[%c7, %c0_23, %c512] : memref<8x16x1024xf32, #tpu.memory_space<vmem>>, vector<1x16x512xf32>
    %26 = vector.shape_cast %25 : vector<1x16x512xf32> to vector<16x512xf32>
    %27 = vector.extract_strided_slice %20 {offsets = [0, 512], sizes = [16, 512], strides = [1, 1]} : vector<16x1024xf32> to vector<16x512xf32>
    %28 = arith.addf %26, %27 : vector<16x512xf32>
    %29 = vector.extract_strided_slice %24 {offsets = [0, 0], sizes = [16, 384], strides = [1, 1]} : vector<16x512xf32> to vector<16x384xf32>
    %cst_24 = arith.constant 5.000000e-01 : f32
    %30 = vector.broadcast %cst_24 : f32 to vector<16x384xf32>
    %31 = arith.mulf %30, %29 : vector<16x384xf32>
    %32 = math.tanh %31 : vector<16x384xf32>
    %cst_25 = arith.constant 5.000000e-01 : f32
    %33 = vector.broadcast %cst_25 : f32 to vector<16x384xf32>
    %34 = arith.mulf %33, %32 : vector<16x384xf32>
    %cst_26 = arith.constant 5.000000e-01 : f32
    %35 = vector.broadcast %cst_26 : f32 to vector<16x384xf32>
    %36 = arith.addf %34, %35 : vector<16x384xf32>
    %37 = vector.extract_strided_slice %24 {offsets = [0, 384], sizes = [16, 128], strides = [1, 1]} : vector<16x512xf32> to vector<16x128xf32>
    %38 = math.tanh %37 : vector<16x128xf32>
    %39 = vector.extract_strided_slice %36 {offsets = [0, 0], sizes = [16, 128], strides = [1, 1]} : vector<16x384xf32> to vector<16x128xf32>
    %40 = vector.extract_strided_slice %36 {offsets = [0, 128], sizes = [16, 128], strides = [1, 1]} : vector<16x384xf32> to vector<16x128xf32>
    %41 = vector.extract_strided_slice %36 {offsets = [0, 256], sizes = [16, 128], strides = [1, 1]} : vector<16x384xf32> to vector<16x128xf32>
    %42 = arith.mulf %40, %17 : vector<16x128xf32>
    %43 = arith.mulf %39, %38 : vector<16x128xf32>
    %44 = arith.addf %42, %43 : vector<16x128xf32>
    %45 = math.tanh %44 : vector<16x128xf32>
    %46 = arith.mulf %41, %45 : vector<16x128xf32>
    %47 = vector.extract_strided_slice %28 {offsets = [0, 0], sizes = [16, 384], strides = [1, 1]} : vector<16x512xf32> to vector<16x384xf32>
    %cst_27 = arith.constant 5.000000e-01 : f32
    %48 = vector.broadcast %cst_27 : f32 to vector<16x384xf32>
    %49 = arith.mulf %48, %47 : vector<16x384xf32>
    %50 = math.tanh %49 : vector<16x384xf32>
    %cst_28 = arith.constant 5.000000e-01 : f32
    %51 = vector.broadcast %cst_28 : f32 to vector<16x384xf32>
    %52 = arith.mulf %51, %50 : vector<16x384xf32>
    %cst_29 = arith.constant 5.000000e-01 : f32
    %53 = vector.broadcast %cst_29 : f32 to vector<16x384xf32>
    %54 = arith.addf %52, %53 : vector<16x384xf32>
    %55 = vector.extract_strided_slice %28 {offsets = [0, 384], sizes = [16, 128], strides = [1, 1]} : vector<16x512xf32> to vector<16x128xf32>
    %56 = math.tanh %55 : vector<16x128xf32>
    %57 = vector.extract_strided_slice %54 {offsets = [0, 0], sizes = [16, 128], strides = [1, 1]} : vector<16x384xf32> to vector<16x128xf32>
    %58 = vector.extract_strided_slice %54 {offsets = [0, 128], sizes = [16, 128], strides = [1, 1]} : vector<16x384xf32> to vector<16x128xf32>
    %59 = vector.extract_strided_slice %54 {offsets = [0, 256], sizes = [16, 128], strides = [1, 1]} : vector<16x384xf32> to vector<16x128xf32>
    %60 = arith.mulf %58, %17 : vector<16x128xf32>
    %61 = arith.mulf %57, %56 : vector<16x128xf32>
    %62 = arith.addf %60, %61 : vector<16x128xf32>
    %63 = math.tanh %62 : vector<16x128xf32>
    %64 = arith.mulf %59, %63 : vector<16x128xf32>
    %65 = tpu.concatenate %46, %64 in 1 : vector<16x128xf32>, vector<16x128xf32> -> vector<16x256xf32>
    %66 = arith.truncf %65 : vector<16x256xf32> to vector<16x256xbf16>
    %cst_30 = arith.constant dense<0.000000e+00> : vector<16x1024xf32>
    %67 = tpu.matmul %66, %6, %cst_30 {dimension_numbers = #tpu.dot_dimension_numbers<[1], [0], [0], [1], [0, 0, 1, 1], [], []>} : vector<16x256xbf16>, vector<256x1024xbf16>, vector<16x1024xf32> -> vector<16x1024xf32>
    %c1_31 = arith.constant 1 : index
    %c0_32 = arith.constant 0 : index
    %c0_33 = arith.constant 0 : index
    %68 = vector.load %arg9[%c1_31, %c0_32, %c0_33] : memref<8x16x1024xf32, #tpu.memory_space<vmem>>, vector<1x16x512xf32>
    %69 = vector.shape_cast %68 : vector<1x16x512xf32> to vector<16x512xf32>
    %70 = vector.extract_strided_slice %67 {offsets = [0, 0], sizes = [16, 512], strides = [1, 1]} : vector<16x1024xf32> to vector<16x512xf32>
    %71 = arith.addf %69, %70 : vector<16x512xf32>
    %c6 = arith.constant 6 : index
    %c0_34 = arith.constant 0 : index
    %c512_35 = arith.constant 512 : index
    %72 = vector.load %arg9[%c6, %c0_34, %c512_35] : memref<8x16x1024xf32, #tpu.memory_space<vmem>>, vector<1x16x512xf32>
    %73 = vector.shape_cast %72 : vector<1x16x512xf32> to vector<16x512xf32>
    %74 = vector.extract_strided_slice %67 {offsets = [0, 512], sizes = [16, 512], strides = [1, 1]} : vector<16x1024xf32> to vector<16x512xf32>
    %75 = arith.addf %73, %74 : vector<16x512xf32>
    %76 = vector.extract_strided_slice %71 {offsets = [0, 0], sizes = [16, 384], strides = [1, 1]} : vector<16x512xf32> to vector<16x384xf32>
    %cst_36 = arith.constant 5.000000e-01 : f32
    %77 = vector.broadcast %cst_36 : f32 to vector<16x384xf32>
    %78 = arith.mulf %77, %76 : vector<16x384xf32>
    %79 = math.tanh %78 : vector<16x384xf32>
    %cst_37 = arith.constant 5.000000e-01 : f32
    %80 = vector.broadcast %cst_37 : f32 to vector<16x384xf32>
    %81 = arith.mulf %80, %79 : vector<16x384xf32>
    %cst_38 = arith.constant 5.000000e-01 : f32
    %82 = vector.broadcast %cst_38 : f32 to vector<16x384xf32>
    %83 = arith.addf %81, %82 : vector<16x384xf32>
    %84 = vector.extract_strided_slice %71 {offsets = [0, 384], sizes = [16, 128], strides = [1, 1]} : vector<16x512xf32> to vector<16x128xf32>
    %85 = math.tanh %84 : vector<16x128xf32>
    %86 = vector.extract_strided_slice %83 {offsets = [0, 0], sizes = [16, 128], strides = [1, 1]} : vector<16x384xf32> to vector<16x128xf32>
    %87 = vector.extract_strided_slice %83 {offsets = [0, 128], sizes = [16, 128], strides = [1, 1]} : vector<16x384xf32> to vector<16x128xf32>
    %88 = vector.extract_strided_slice %83 {offsets = [0, 256], sizes = [16, 128], strides = [1, 1]} : vector<16x384xf32> to vector<16x128xf32>
    %89 = arith.mulf %87, %44 : vector<16x128xf32>
    %90 = arith.mulf %86, %85 : vector<16x128xf32>
    %91 = arith.addf %89, %90 : vector<16x128xf32>
    %92 = math.tanh %91 : vector<16x128xf32>
    %93 = arith.mulf %88, %92 : vector<16x128xf32>
    %94 = vector.extract_strided_slice %75 {offsets = [0, 0], sizes = [16, 384], strides = [1, 1]} : vector<16x512xf32> to vector<16x384xf32>
    %cst_39 = arith.constant 5.000000e-01 : f32
    %95 = vector.broadcast %cst_39 : f32 to vector<16x384xf32>
    %96 = arith.mulf %95, %94 : vector<16x384xf32>
    %97 = math.tanh %96 : vector<16x384xf32>
    %cst_40 = arith.constant 5.000000e-01 : f32
    %98 = vector.broadcast %cst_40 : f32 to vector<16x384xf32>
    %99 = arith.mulf %98, %97 : vector<16x384xf32>
    %cst_41 = arith.constant 5.000000e-01 : f32
    %100 = vector.broadcast %cst_41 : f32 to vector<16x384xf32>
    %101 = arith.addf %99, %100 : vector<16x384xf32>
    %102 = vector.extract_strided_slice %75 {offsets = [0, 384], sizes = [16, 128], strides = [1, 1]} : vector<16x512xf32> to vector<16x128xf32>
    %103 = math.tanh %102 : vector<16x128xf32>
    %104 = vector.extract_strided_slice %101 {offsets = [0, 0], sizes = [16, 128], strides = [1, 1]} : vector<16x384xf32> to vector<16x128xf32>
    %105 = vector.extract_strided_slice %101 {offsets = [0, 128], sizes = [16, 128], strides = [1, 1]} : vector<16x384xf32> to vector<16x128xf32>
    %106 = vector.extract_strided_slice %101 {offsets = [0, 256], sizes = [16, 128], strides = [1, 1]} : vector<16x384xf32> to vector<16x128xf32>
    %107 = arith.mulf %105, %62 : vector<16x128xf32>
    %108 = arith.mulf %104, %103 : vector<16x128xf32>
    %109 = arith.addf %107, %108 : vector<16x128xf32>
    %110 = math.tanh %109 : vector<16x128xf32>
    %111 = arith.mulf %106, %110 : vector<16x128xf32>
    %112 = tpu.concatenate %93, %111 in 1 : vector<16x128xf32>, vector<16x128xf32> -> vector<16x256xf32>
    %113 = arith.truncf %112 : vector<16x256xf32> to vector<16x256xbf16>
    %cst_42 = arith.constant dense<0.000000e+00> : vector<16x1024xf32>
    %114 = tpu.matmul %113, %6, %cst_42 {dimension_numbers = #tpu.dot_dimension_numbers<[1], [0], [0], [1], [0, 0, 1, 1], [], []>} : vector<16x256xbf16>, vector<256x1024xbf16>, vector<16x1024xf32> -> vector<16x1024xf32>
    %c2 = arith.constant 2 : index
    %c0_43 = arith.constant 0 : index
    %c0_44 = arith.constant 0 : index
    %115 = vector.load %arg9[%c2, %c0_43, %c0_44] : memref<8x16x1024xf32, #tpu.memory_space<vmem>>, vector<1x16x512xf32>
    %116 = vector.shape_cast %115 : vector<1x16x512xf32> to vector<16x512xf32>
    %117 = vector.extract_strided_slice %114 {offsets = [0, 0], sizes = [16, 512], strides = [1, 1]} : vector<16x1024xf32> to vector<16x512xf32>
    %118 = arith.addf %116, %117 : vector<16x512xf32>
    %c5 = arith.constant 5 : index
    %c0_45 = arith.constant 0 : index
    %c512_46 = arith.constant 512 : index
    %119 = vector.load %arg9[%c5, %c0_45, %c512_46] : memref<8x16x1024xf32, #tpu.memory_space<vmem>>, vector<1x16x512xf32>
    %120 = vector.shape_cast %119 : vector<1x16x512xf32> to vector<16x512xf32>
    %121 = vector.extract_strided_slice %114 {offsets = [0, 512], sizes = [16, 512], strides = [1, 1]} : vector<16x1024xf32> to vector<16x512xf32>
    %122 = arith.addf %120, %121 : vector<16x512xf32>
    %123 = vector.extract_strided_slice %118 {offsets = [0, 0], sizes = [16, 384], strides = [1, 1]} : vector<16x512xf32> to vector<16x384xf32>
    %cst_47 = arith.constant 5.000000e-01 : f32
    %124 = vector.broadcast %cst_47 : f32 to vector<16x384xf32>
    %125 = arith.mulf %124, %123 : vector<16x384xf32>
    %126 = math.tanh %125 : vector<16x384xf32>
    %cst_48 = arith.constant 5.000000e-01 : f32
    %127 = vector.broadcast %cst_48 : f32 to vector<16x384xf32>
    %128 = arith.mulf %127, %126 : vector<16x384xf32>
    %cst_49 = arith.constant 5.000000e-01 : f32
    %129 = vector.broadcast %cst_49 : f32 to vector<16x384xf32>
    %130 = arith.addf %128, %129 : vector<16x384xf32>
    %131 = vector.extract_strided_slice %118 {offsets = [0, 384], sizes = [16, 128], strides = [1, 1]} : vector<16x512xf32> to vector<16x128xf32>
    %132 = math.tanh %131 : vector<16x128xf32>
    %133 = vector.extract_strided_slice %130 {offsets = [0, 0], sizes = [16, 128], strides = [1, 1]} : vector<16x384xf32> to vector<16x128xf32>
    %134 = vector.extract_strided_slice %130 {offsets = [0, 128], sizes = [16, 128], strides = [1, 1]} : vector<16x384xf32> to vector<16x128xf32>
    %135 = vector.extract_strided_slice %130 {offsets = [0, 256], sizes = [16, 128], strides = [1, 1]} : vector<16x384xf32> to vector<16x128xf32>
    %136 = arith.mulf %134, %91 : vector<16x128xf32>
    %137 = arith.mulf %133, %132 : vector<16x128xf32>
    %138 = arith.addf %136, %137 : vector<16x128xf32>
    %139 = math.tanh %138 : vector<16x128xf32>
    %140 = arith.mulf %135, %139 : vector<16x128xf32>
    %141 = vector.extract_strided_slice %122 {offsets = [0, 0], sizes = [16, 384], strides = [1, 1]} : vector<16x512xf32> to vector<16x384xf32>
    %cst_50 = arith.constant 5.000000e-01 : f32
    %142 = vector.broadcast %cst_50 : f32 to vector<16x384xf32>
    %143 = arith.mulf %142, %141 : vector<16x384xf32>
    %144 = math.tanh %143 : vector<16x384xf32>
    %cst_51 = arith.constant 5.000000e-01 : f32
    %145 = vector.broadcast %cst_51 : f32 to vector<16x384xf32>
    %146 = arith.mulf %145, %144 : vector<16x384xf32>
    %cst_52 = arith.constant 5.000000e-01 : f32
    %147 = vector.broadcast %cst_52 : f32 to vector<16x384xf32>
    %148 = arith.addf %146, %147 : vector<16x384xf32>
    %149 = vector.extract_strided_slice %122 {offsets = [0, 384], sizes = [16, 128], strides = [1, 1]} : vector<16x512xf32> to vector<16x128xf32>
    %150 = math.tanh %149 : vector<16x128xf32>
    %151 = vector.extract_strided_slice %148 {offsets = [0, 0], sizes = [16, 128], strides = [1, 1]} : vector<16x384xf32> to vector<16x128xf32>
    %152 = vector.extract_strided_slice %148 {offsets = [0, 128], sizes = [16, 128], strides = [1, 1]} : vector<16x384xf32> to vector<16x128xf32>
    %153 = vector.extract_strided_slice %148 {offsets = [0, 256], sizes = [16, 128], strides = [1, 1]} : vector<16x384xf32> to vector<16x128xf32>
    %154 = arith.mulf %152, %109 : vector<16x128xf32>
    %155 = arith.mulf %151, %150 : vector<16x128xf32>
    %156 = arith.addf %154, %155 : vector<16x128xf32>
    %157 = math.tanh %156 : vector<16x128xf32>
    %158 = arith.mulf %153, %157 : vector<16x128xf32>
    %159 = tpu.concatenate %140, %158 in 1 : vector<16x128xf32>, vector<16x128xf32> -> vector<16x256xf32>
    %160 = arith.truncf %159 : vector<16x256xf32> to vector<16x256xbf16>
    %cst_53 = arith.constant dense<0.000000e+00> : vector<16x1024xf32>
    %161 = tpu.matmul %160, %6, %cst_53 {dimension_numbers = #tpu.dot_dimension_numbers<[1], [0], [0], [1], [0, 0, 1, 1], [], []>} : vector<16x256xbf16>, vector<256x1024xbf16>, vector<16x1024xf32> -> vector<16x1024xf32>
    %c3 = arith.constant 3 : index
    %c0_54 = arith.constant 0 : index
    %c0_55 = arith.constant 0 : index
    %162 = vector.load %arg9[%c3, %c0_54, %c0_55] : memref<8x16x1024xf32, #tpu.memory_space<vmem>>, vector<1x16x512xf32>
    %163 = vector.shape_cast %162 : vector<1x16x512xf32> to vector<16x512xf32>
    %164 = vector.extract_strided_slice %161 {offsets = [0, 0], sizes = [16, 512], strides = [1, 1]} : vector<16x1024xf32> to vector<16x512xf32>
    %165 = arith.addf %163, %164 : vector<16x512xf32>
    %c4 = arith.constant 4 : index
    %c0_56 = arith.constant 0 : index
    %c512_57 = arith.constant 512 : index
    %166 = vector.load %arg9[%c4, %c0_56, %c512_57] : memref<8x16x1024xf32, #tpu.memory_space<vmem>>, vector<1x16x512xf32>
    %167 = vector.shape_cast %166 : vector<1x16x512xf32> to vector<16x512xf32>
    %168 = vector.extract_strided_slice %161 {offsets = [0, 512], sizes = [16, 512], strides = [1, 1]} : vector<16x1024xf32> to vector<16x512xf32>
    %169 = arith.addf %167, %168 : vector<16x512xf32>
    %170 = vector.extract_strided_slice %165 {offsets = [0, 0], sizes = [16, 384], strides = [1, 1]} : vector<16x512xf32> to vector<16x384xf32>
    %cst_58 = arith.constant 5.000000e-01 : f32
    %171 = vector.broadcast %cst_58 : f32 to vector<16x384xf32>
    %172 = arith.mulf %171, %170 : vector<16x384xf32>
    %173 = math.tanh %172 : vector<16x384xf32>
    %cst_59 = arith.constant 5.000000e-01 : f32
    %174 = vector.broadcast %cst_59 : f32 to vector<16x384xf32>
    %175 = arith.mulf %174, %173 : vector<16x384xf32>
    %cst_60 = arith.constant 5.000000e-01 : f32
    %176 = vector.broadcast %cst_60 : f32 to vector<16x384xf32>
    %177 = arith.addf %175, %176 : vector<16x384xf32>
    %178 = vector.extract_strided_slice %165 {offsets = [0, 384], sizes = [16, 128], strides = [1, 1]} : vector<16x512xf32> to vector<16x128xf32>
    %179 = math.tanh %178 : vector<16x128xf32>
    %180 = vector.extract_strided_slice %177 {offsets = [0, 0], sizes = [16, 128], strides = [1, 1]} : vector<16x384xf32> to vector<16x128xf32>
    %181 = vector.extract_strided_slice %177 {offsets = [0, 128], sizes = [16, 128], strides = [1, 1]} : vector<16x384xf32> to vector<16x128xf32>
    %182 = vector.extract_strided_slice %177 {offsets = [0, 256], sizes = [16, 128], strides = [1, 1]} : vector<16x384xf32> to vector<16x128xf32>
    %183 = arith.mulf %181, %138 : vector<16x128xf32>
    %184 = arith.mulf %180, %179 : vector<16x128xf32>
    %185 = arith.addf %183, %184 : vector<16x128xf32>
    %186 = math.tanh %185 : vector<16x128xf32>
    %187 = arith.mulf %182, %186 : vector<16x128xf32>
    %188 = vector.extract_strided_slice %169 {offsets = [0, 0], sizes = [16, 384], strides = [1, 1]} : vector<16x512xf32> to vector<16x384xf32>
    %cst_61 = arith.constant 5.000000e-01 : f32
    %189 = vector.broadcast %cst_61 : f32 to vector<16x384xf32>
    %190 = arith.mulf %189, %188 : vector<16x384xf32>
    %191 = math.tanh %190 : vector<16x384xf32>
    %cst_62 = arith.constant 5.000000e-01 : f32
    %192 = vector.broadcast %cst_62 : f32 to vector<16x384xf32>
    %193 = arith.mulf %192, %191 : vector<16x384xf32>
    %cst_63 = arith.constant 5.000000e-01 : f32
    %194 = vector.broadcast %cst_63 : f32 to vector<16x384xf32>
    %195 = arith.addf %193, %194 : vector<16x384xf32>
    %196 = vector.extract_strided_slice %169 {offsets = [0, 384], sizes = [16, 128], strides = [1, 1]} : vector<16x512xf32> to vector<16x128xf32>
    %197 = math.tanh %196 : vector<16x128xf32>
    %198 = vector.extract_strided_slice %195 {offsets = [0, 0], sizes = [16, 128], strides = [1, 1]} : vector<16x384xf32> to vector<16x128xf32>
    %199 = vector.extract_strided_slice %195 {offsets = [0, 128], sizes = [16, 128], strides = [1, 1]} : vector<16x384xf32> to vector<16x128xf32>
    %200 = vector.extract_strided_slice %195 {offsets = [0, 256], sizes = [16, 128], strides = [1, 1]} : vector<16x384xf32> to vector<16x128xf32>
    %201 = arith.mulf %199, %156 : vector<16x128xf32>
    %202 = arith.mulf %198, %197 : vector<16x128xf32>
    %203 = arith.addf %201, %202 : vector<16x128xf32>
    %204 = math.tanh %203 : vector<16x128xf32>
    %205 = arith.mulf %200, %204 : vector<16x128xf32>
    %206 = tpu.concatenate %187, %205 in 1 : vector<16x128xf32>, vector<16x128xf32> -> vector<16x256xf32>
    %207 = arith.truncf %206 : vector<16x256xf32> to vector<16x256xbf16>
    %cst_64 = arith.constant dense<0.000000e+00> : vector<16x1024xf32>
    %208 = tpu.matmul %207, %6, %cst_64 {dimension_numbers = #tpu.dot_dimension_numbers<[1], [0], [0], [1], [0, 0, 1, 1], [], []>} : vector<16x256xbf16>, vector<256x1024xbf16>, vector<16x1024xf32> -> vector<16x1024xf32>
    %c4_65 = arith.constant 4 : index
    %c0_66 = arith.constant 0 : index
    %c0_67 = arith.constant 0 : index
    %209 = vector.load %arg9[%c4_65, %c0_66, %c0_67] : memref<8x16x1024xf32, #tpu.memory_space<vmem>>, vector<1x16x512xf32>
    %210 = vector.shape_cast %209 : vector<1x16x512xf32> to vector<16x512xf32>
    %211 = vector.extract_strided_slice %208 {offsets = [0, 0], sizes = [16, 512], strides = [1, 1]} : vector<16x1024xf32> to vector<16x512xf32>
    %212 = arith.addf %210, %211 : vector<16x512xf32>
    %c3_68 = arith.constant 3 : index
    %c0_69 = arith.constant 0 : index
    %c512_70 = arith.constant 512 : index
    %213 = vector.load %arg9[%c3_68, %c0_69, %c512_70] : memref<8x16x1024xf32, #tpu.memory_space<vmem>>, vector<1x16x512xf32>
    %214 = vector.shape_cast %213 : vector<1x16x512xf32> to vector<16x512xf32>
    %215 = vector.extract_strided_slice %208 {offsets = [0, 512], sizes = [16, 512], strides = [1, 1]} : vector<16x1024xf32> to vector<16x512xf32>
    %216 = arith.addf %214, %215 : vector<16x512xf32>
    %217 = vector.extract_strided_slice %212 {offsets = [0, 0], sizes = [16, 384], strides = [1, 1]} : vector<16x512xf32> to vector<16x384xf32>
    %cst_71 = arith.constant 5.000000e-01 : f32
    %218 = vector.broadcast %cst_71 : f32 to vector<16x384xf32>
    %219 = arith.mulf %218, %217 : vector<16x384xf32>
    %220 = math.tanh %219 : vector<16x384xf32>
    %cst_72 = arith.constant 5.000000e-01 : f32
    %221 = vector.broadcast %cst_72 : f32 to vector<16x384xf32>
    %222 = arith.mulf %221, %220 : vector<16x384xf32>
    %cst_73 = arith.constant 5.000000e-01 : f32
    %223 = vector.broadcast %cst_73 : f32 to vector<16x384xf32>
    %224 = arith.addf %222, %223 : vector<16x384xf32>
    %225 = vector.extract_strided_slice %212 {offsets = [0, 384], sizes = [16, 128], strides = [1, 1]} : vector<16x512xf32> to vector<16x128xf32>
    %226 = math.tanh %225 : vector<16x128xf32>
    %227 = vector.extract_strided_slice %224 {offsets = [0, 0], sizes = [16, 128], strides = [1, 1]} : vector<16x384xf32> to vector<16x128xf32>
    %228 = vector.extract_strided_slice %224 {offsets = [0, 128], sizes = [16, 128], strides = [1, 1]} : vector<16x384xf32> to vector<16x128xf32>
    %229 = vector.extract_strided_slice %224 {offsets = [0, 256], sizes = [16, 128], strides = [1, 1]} : vector<16x384xf32> to vector<16x128xf32>
    %230 = arith.mulf %228, %185 : vector<16x128xf32>
    %231 = arith.mulf %227, %226 : vector<16x128xf32>
    %232 = arith.addf %230, %231 : vector<16x128xf32>
    %233 = math.tanh %232 : vector<16x128xf32>
    %234 = arith.mulf %229, %233 : vector<16x128xf32>
    %235 = vector.extract_strided_slice %216 {offsets = [0, 0], sizes = [16, 384], strides = [1, 1]} : vector<16x512xf32> to vector<16x384xf32>
    %cst_74 = arith.constant 5.000000e-01 : f32
    %236 = vector.broadcast %cst_74 : f32 to vector<16x384xf32>
    %237 = arith.mulf %236, %235 : vector<16x384xf32>
    %238 = math.tanh %237 : vector<16x384xf32>
    %cst_75 = arith.constant 5.000000e-01 : f32
    %239 = vector.broadcast %cst_75 : f32 to vector<16x384xf32>
    %240 = arith.mulf %239, %238 : vector<16x384xf32>
    %cst_76 = arith.constant 5.000000e-01 : f32
    %241 = vector.broadcast %cst_76 : f32 to vector<16x384xf32>
    %242 = arith.addf %240, %241 : vector<16x384xf32>
    %243 = vector.extract_strided_slice %216 {offsets = [0, 384], sizes = [16, 128], strides = [1, 1]} : vector<16x512xf32> to vector<16x128xf32>
    %244 = math.tanh %243 : vector<16x128xf32>
    %245 = vector.extract_strided_slice %242 {offsets = [0, 0], sizes = [16, 128], strides = [1, 1]} : vector<16x384xf32> to vector<16x128xf32>
    %246 = vector.extract_strided_slice %242 {offsets = [0, 128], sizes = [16, 128], strides = [1, 1]} : vector<16x384xf32> to vector<16x128xf32>
    %247 = vector.extract_strided_slice %242 {offsets = [0, 256], sizes = [16, 128], strides = [1, 1]} : vector<16x384xf32> to vector<16x128xf32>
    %248 = arith.mulf %246, %203 : vector<16x128xf32>
    %249 = arith.mulf %245, %244 : vector<16x128xf32>
    %250 = arith.addf %248, %249 : vector<16x128xf32>
    %251 = math.tanh %250 : vector<16x128xf32>
    %252 = arith.mulf %247, %251 : vector<16x128xf32>
    %253 = tpu.concatenate %234, %252 in 1 : vector<16x128xf32>, vector<16x128xf32> -> vector<16x256xf32>
    %254 = arith.truncf %253 : vector<16x256xf32> to vector<16x256xbf16>
    %cst_77 = arith.constant dense<0.000000e+00> : vector<16x1024xf32>
    %255 = tpu.matmul %254, %6, %cst_77 {dimension_numbers = #tpu.dot_dimension_numbers<[1], [0], [0], [1], [0, 0, 1, 1], [], []>} : vector<16x256xbf16>, vector<256x1024xbf16>, vector<16x1024xf32> -> vector<16x1024xf32>
    %c5_78 = arith.constant 5 : index
    %c0_79 = arith.constant 0 : index
    %c0_80 = arith.constant 0 : index
    %256 = vector.load %arg9[%c5_78, %c0_79, %c0_80] : memref<8x16x1024xf32, #tpu.memory_space<vmem>>, vector<1x16x512xf32>
    %257 = vector.shape_cast %256 : vector<1x16x512xf32> to vector<16x512xf32>
    %258 = vector.extract_strided_slice %255 {offsets = [0, 0], sizes = [16, 512], strides = [1, 1]} : vector<16x1024xf32> to vector<16x512xf32>
    %259 = arith.addf %257, %258 : vector<16x512xf32>
    %c2_81 = arith.constant 2 : index
    %c0_82 = arith.constant 0 : index
    %c512_83 = arith.constant 512 : index
    %260 = vector.load %arg9[%c2_81, %c0_82, %c512_83] : memref<8x16x1024xf32, #tpu.memory_space<vmem>>, vector<1x16x512xf32>
    %261 = vector.shape_cast %260 : vector<1x16x512xf32> to vector<16x512xf32>
    %262 = vector.extract_strided_slice %255 {offsets = [0, 512], sizes = [16, 512], strides = [1, 1]} : vector<16x1024xf32> to vector<16x512xf32>
    %263 = arith.addf %261, %262 : vector<16x512xf32>
    %264 = vector.extract_strided_slice %259 {offsets = [0, 0], sizes = [16, 384], strides = [1, 1]} : vector<16x512xf32> to vector<16x384xf32>
    %cst_84 = arith.constant 5.000000e-01 : f32
    %265 = vector.broadcast %cst_84 : f32 to vector<16x384xf32>
    %266 = arith.mulf %265, %264 : vector<16x384xf32>
    %267 = math.tanh %266 : vector<16x384xf32>
    %cst_85 = arith.constant 5.000000e-01 : f32
    %268 = vector.broadcast %cst_85 : f32 to vector<16x384xf32>
    %269 = arith.mulf %268, %267 : vector<16x384xf32>
    %cst_86 = arith.constant 5.000000e-01 : f32
    %270 = vector.broadcast %cst_86 : f32 to vector<16x384xf32>
    %271 = arith.addf %269, %270 : vector<16x384xf32>
    %272 = vector.extract_strided_slice %259 {offsets = [0, 384], sizes = [16, 128], strides = [1, 1]} : vector<16x512xf32> to vector<16x128xf32>
    %273 = math.tanh %272 : vector<16x128xf32>
    %274 = vector.extract_strided_slice %271 {offsets = [0, 0], sizes = [16, 128], strides = [1, 1]} : vector<16x384xf32> to vector<16x128xf32>
    %275 = vector.extract_strided_slice %271 {offsets = [0, 128], sizes = [16, 128], strides = [1, 1]} : vector<16x384xf32> to vector<16x128xf32>
    %276 = vector.extract_strided_slice %271 {offsets = [0, 256], sizes = [16, 128], strides = [1, 1]} : vector<16x384xf32> to vector<16x128xf32>
    %277 = arith.mulf %275, %232 : vector<16x128xf32>
    %278 = arith.mulf %274, %273 : vector<16x128xf32>
    %279 = arith.addf %277, %278 : vector<16x128xf32>
    %280 = math.tanh %279 : vector<16x128xf32>
    %281 = arith.mulf %276, %280 : vector<16x128xf32>
    %282 = vector.extract_strided_slice %263 {offsets = [0, 0], sizes = [16, 384], strides = [1, 1]} : vector<16x512xf32> to vector<16x384xf32>
    %cst_87 = arith.constant 5.000000e-01 : f32
    %283 = vector.broadcast %cst_87 : f32 to vector<16x384xf32>
    %284 = arith.mulf %283, %282 : vector<16x384xf32>
    %285 = math.tanh %284 : vector<16x384xf32>
    %cst_88 = arith.constant 5.000000e-01 : f32
    %286 = vector.broadcast %cst_88 : f32 to vector<16x384xf32>
    %287 = arith.mulf %286, %285 : vector<16x384xf32>
    %cst_89 = arith.constant 5.000000e-01 : f32
    %288 = vector.broadcast %cst_89 : f32 to vector<16x384xf32>
    %289 = arith.addf %287, %288 : vector<16x384xf32>
    %290 = vector.extract_strided_slice %263 {offsets = [0, 384], sizes = [16, 128], strides = [1, 1]} : vector<16x512xf32> to vector<16x128xf32>
    %291 = math.tanh %290 : vector<16x128xf32>
    %292 = vector.extract_strided_slice %289 {offsets = [0, 0], sizes = [16, 128], strides = [1, 1]} : vector<16x384xf32> to vector<16x128xf32>
    %293 = vector.extract_strided_slice %289 {offsets = [0, 128], sizes = [16, 128], strides = [1, 1]} : vector<16x384xf32> to vector<16x128xf32>
    %294 = vector.extract_strided_slice %289 {offsets = [0, 256], sizes = [16, 128], strides = [1, 1]} : vector<16x384xf32> to vector<16x128xf32>
    %295 = arith.mulf %293, %250 : vector<16x128xf32>
    %296 = arith.mulf %292, %291 : vector<16x128xf32>
    %297 = arith.addf %295, %296 : vector<16x128xf32>
    %298 = math.tanh %297 : vector<16x128xf32>
    %299 = arith.mulf %294, %298 : vector<16x128xf32>
    %300 = tpu.concatenate %281, %299 in 1 : vector<16x128xf32>, vector<16x128xf32> -> vector<16x256xf32>
    %301 = arith.truncf %300 : vector<16x256xf32> to vector<16x256xbf16>
    %cst_90 = arith.constant dense<0.000000e+00> : vector<16x1024xf32>
    %302 = tpu.matmul %301, %6, %cst_90 {dimension_numbers = #tpu.dot_dimension_numbers<[1], [0], [0], [1], [0, 0, 1, 1], [], []>} : vector<16x256xbf16>, vector<256x1024xbf16>, vector<16x1024xf32> -> vector<16x1024xf32>
    %c6_91 = arith.constant 6 : index
    %c0_92 = arith.constant 0 : index
    %c0_93 = arith.constant 0 : index
    %303 = vector.load %arg9[%c6_91, %c0_92, %c0_93] : memref<8x16x1024xf32, #tpu.memory_space<vmem>>, vector<1x16x512xf32>
    %304 = vector.shape_cast %303 : vector<1x16x512xf32> to vector<16x512xf32>
    %305 = vector.extract_strided_slice %302 {offsets = [0, 0], sizes = [16, 512], strides = [1, 1]} : vector<16x1024xf32> to vector<16x512xf32>
    %306 = arith.addf %304, %305 : vector<16x512xf32>
    %c1_94 = arith.constant 1 : index
    %c0_95 = arith.constant 0 : index
    %c512_96 = arith.constant 512 : index
    %307 = vector.load %arg9[%c1_94, %c0_95, %c512_96] : memref<8x16x1024xf32, #tpu.memory_space<vmem>>, vector<1x16x512xf32>
    %308 = vector.shape_cast %307 : vector<1x16x512xf32> to vector<16x512xf32>
    %309 = vector.extract_strided_slice %302 {offsets = [0, 512], sizes = [16, 512], strides = [1, 1]} : vector<16x1024xf32> to vector<16x512xf32>
    %310 = arith.addf %308, %309 : vector<16x512xf32>
    %311 = vector.extract_strided_slice %306 {offsets = [0, 0], sizes = [16, 384], strides = [1, 1]} : vector<16x512xf32> to vector<16x384xf32>
    %cst_97 = arith.constant 5.000000e-01 : f32
    %312 = vector.broadcast %cst_97 : f32 to vector<16x384xf32>
    %313 = arith.mulf %312, %311 : vector<16x384xf32>
    %314 = math.tanh %313 : vector<16x384xf32>
    %cst_98 = arith.constant 5.000000e-01 : f32
    %315 = vector.broadcast %cst_98 : f32 to vector<16x384xf32>
    %316 = arith.mulf %315, %314 : vector<16x384xf32>
    %cst_99 = arith.constant 5.000000e-01 : f32
    %317 = vector.broadcast %cst_99 : f32 to vector<16x384xf32>
    %318 = arith.addf %316, %317 : vector<16x384xf32>
    %319 = vector.extract_strided_slice %306 {offsets = [0, 384], sizes = [16, 128], strides = [1, 1]} : vector<16x512xf32> to vector<16x128xf32>
    %320 = math.tanh %319 : vector<16x128xf32>
    %321 = vector.extract_strided_slice %318 {offsets = [0, 0], sizes = [16, 128], strides = [1, 1]} : vector<16x384xf32> to vector<16x128xf32>
    %322 = vector.extract_strided_slice %318 {offsets = [0, 128], sizes = [16, 128], strides = [1, 1]} : vector<16x384xf32> to vector<16x128xf32>
    %323 = vector.extract_strided_slice %318 {offsets = [0, 256], sizes = [16, 128], strides = [1, 1]} : vector<16x384xf32> to vector<16x128xf32>
    %324 = arith.mulf %322, %279 : vector<16x128xf32>
    %325 = arith.mulf %321, %320 : vector<16x128xf32>
    %326 = arith.addf %324, %325 : vector<16x128xf32>
    %327 = math.tanh %326 : vector<16x128xf32>
    %328 = arith.mulf %323, %327 : vector<16x128xf32>
    %329 = vector.extract_strided_slice %310 {offsets = [0, 0], sizes = [16, 384], strides = [1, 1]} : vector<16x512xf32> to vector<16x384xf32>
    %cst_100 = arith.constant 5.000000e-01 : f32
    %330 = vector.broadcast %cst_100 : f32 to vector<16x384xf32>
    %331 = arith.mulf %330, %329 : vector<16x384xf32>
    %332 = math.tanh %331 : vector<16x384xf32>
    %cst_101 = arith.constant 5.000000e-01 : f32
    %333 = vector.broadcast %cst_101 : f32 to vector<16x384xf32>
    %334 = arith.mulf %333, %332 : vector<16x384xf32>
    %cst_102 = arith.constant 5.000000e-01 : f32
    %335 = vector.broadcast %cst_102 : f32 to vector<16x384xf32>
    %336 = arith.addf %334, %335 : vector<16x384xf32>
    %337 = vector.extract_strided_slice %310 {offsets = [0, 384], sizes = [16, 128], strides = [1, 1]} : vector<16x512xf32> to vector<16x128xf32>
    %338 = math.tanh %337 : vector<16x128xf32>
    %339 = vector.extract_strided_slice %336 {offsets = [0, 0], sizes = [16, 128], strides = [1, 1]} : vector<16x384xf32> to vector<16x128xf32>
    %340 = vector.extract_strided_slice %336 {offsets = [0, 128], sizes = [16, 128], strides = [1, 1]} : vector<16x384xf32> to vector<16x128xf32>
    %341 = vector.extract_strided_slice %336 {offsets = [0, 256], sizes = [16, 128], strides = [1, 1]} : vector<16x384xf32> to vector<16x128xf32>
    %342 = arith.mulf %340, %297 : vector<16x128xf32>
    %343 = arith.mulf %339, %338 : vector<16x128xf32>
    %344 = arith.addf %342, %343 : vector<16x128xf32>
    %345 = math.tanh %344 : vector<16x128xf32>
    %346 = arith.mulf %341, %345 : vector<16x128xf32>
    %347 = tpu.concatenate %328, %346 in 1 : vector<16x128xf32>, vector<16x128xf32> -> vector<16x256xf32>
    %348 = arith.truncf %347 : vector<16x256xf32> to vector<16x256xbf16>
    %cst_103 = arith.constant dense<0.000000e+00> : vector<16x1024xf32>
    %349 = tpu.matmul %348, %6, %cst_103 {dimension_numbers = #tpu.dot_dimension_numbers<[1], [0], [0], [1], [0, 0, 1, 1], [], []>} : vector<16x256xbf16>, vector<256x1024xbf16>, vector<16x1024xf32> -> vector<16x1024xf32>
    %c7_104 = arith.constant 7 : index
    %c0_105 = arith.constant 0 : index
    %c0_106 = arith.constant 0 : index
    %350 = vector.load %arg9[%c7_104, %c0_105, %c0_106] : memref<8x16x1024xf32, #tpu.memory_space<vmem>>, vector<1x16x512xf32>
    %351 = vector.shape_cast %350 : vector<1x16x512xf32> to vector<16x512xf32>
    %352 = vector.extract_strided_slice %349 {offsets = [0, 0], sizes = [16, 512], strides = [1, 1]} : vector<16x1024xf32> to vector<16x512xf32>
    %353 = arith.addf %351, %352 : vector<16x512xf32>
    %c0_107 = arith.constant 0 : index
    %c0_108 = arith.constant 0 : index
    %c512_109 = arith.constant 512 : index
    %354 = vector.load %arg9[%c0_107, %c0_108, %c512_109] : memref<8x16x1024xf32, #tpu.memory_space<vmem>>, vector<1x16x512xf32>
    %355 = vector.shape_cast %354 : vector<1x16x512xf32> to vector<16x512xf32>
    %356 = vector.extract_strided_slice %349 {offsets = [0, 512], sizes = [16, 512], strides = [1, 1]} : vector<16x1024xf32> to vector<16x512xf32>
    %357 = arith.addf %355, %356 : vector<16x512xf32>
    %358 = vector.extract_strided_slice %353 {offsets = [0, 0], sizes = [16, 384], strides = [1, 1]} : vector<16x512xf32> to vector<16x384xf32>
    %cst_110 = arith.constant 5.000000e-01 : f32
    %359 = vector.broadcast %cst_110 : f32 to vector<16x384xf32>
    %360 = arith.mulf %359, %358 : vector<16x384xf32>
    %361 = math.tanh %360 : vector<16x384xf32>
    %cst_111 = arith.constant 5.000000e-01 : f32
    %362 = vector.broadcast %cst_111 : f32 to vector<16x384xf32>
    %363 = arith.mulf %362, %361 : vector<16x384xf32>
    %cst_112 = arith.constant 5.000000e-01 : f32
    %364 = vector.broadcast %cst_112 : f32 to vector<16x384xf32>
    %365 = arith.addf %363, %364 : vector<16x384xf32>
    %366 = vector.extract_strided_slice %353 {offsets = [0, 384], sizes = [16, 128], strides = [1, 1]} : vector<16x512xf32> to vector<16x128xf32>
    %367 = math.tanh %366 : vector<16x128xf32>
    %368 = vector.extract_strided_slice %365 {offsets = [0, 0], sizes = [16, 128], strides = [1, 1]} : vector<16x384xf32> to vector<16x128xf32>
    %369 = vector.extract_strided_slice %365 {offsets = [0, 128], sizes = [16, 128], strides = [1, 1]} : vector<16x384xf32> to vector<16x128xf32>
    %370 = vector.extract_strided_slice %365 {offsets = [0, 256], sizes = [16, 128], strides = [1, 1]} : vector<16x384xf32> to vector<16x128xf32>
    %371 = arith.mulf %369, %326 : vector<16x128xf32>
    %372 = arith.mulf %368, %367 : vector<16x128xf32>
    %373 = arith.addf %371, %372 : vector<16x128xf32>
    %374 = math.tanh %373 : vector<16x128xf32>
    %375 = arith.mulf %370, %374 : vector<16x128xf32>
    %376 = vector.extract_strided_slice %357 {offsets = [0, 0], sizes = [16, 384], strides = [1, 1]} : vector<16x512xf32> to vector<16x384xf32>
    %cst_113 = arith.constant 5.000000e-01 : f32
    %377 = vector.broadcast %cst_113 : f32 to vector<16x384xf32>
    %378 = arith.mulf %377, %376 : vector<16x384xf32>
    %379 = math.tanh %378 : vector<16x384xf32>
    %cst_114 = arith.constant 5.000000e-01 : f32
    %380 = vector.broadcast %cst_114 : f32 to vector<16x384xf32>
    %381 = arith.mulf %380, %379 : vector<16x384xf32>
    %cst_115 = arith.constant 5.000000e-01 : f32
    %382 = vector.broadcast %cst_115 : f32 to vector<16x384xf32>
    %383 = arith.addf %381, %382 : vector<16x384xf32>
    %384 = vector.extract_strided_slice %357 {offsets = [0, 384], sizes = [16, 128], strides = [1, 1]} : vector<16x512xf32> to vector<16x128xf32>
    %385 = math.tanh %384 : vector<16x128xf32>
    %386 = vector.extract_strided_slice %383 {offsets = [0, 0], sizes = [16, 128], strides = [1, 1]} : vector<16x384xf32> to vector<16x128xf32>
    %387 = vector.extract_strided_slice %383 {offsets = [0, 128], sizes = [16, 128], strides = [1, 1]} : vector<16x384xf32> to vector<16x128xf32>
    %388 = vector.extract_strided_slice %383 {offsets = [0, 256], sizes = [16, 128], strides = [1, 1]} : vector<16x384xf32> to vector<16x128xf32>
    %389 = arith.mulf %387, %344 : vector<16x128xf32>
    %390 = arith.mulf %386, %385 : vector<16x128xf32>
    %391 = arith.addf %389, %390 : vector<16x128xf32>
    %392 = math.tanh %391 : vector<16x128xf32>
    %393 = arith.mulf %388, %392 : vector<16x128xf32>
    %394 = arith.truncf %375 : vector<16x128xf32> to vector<16x128xbf16>
    %c0_116 = arith.constant 0 : index
    %c0_117 = arith.constant 0 : index
    %395 = vector.load %arg5[%c0_116, %c0_117] : memref<128x128xbf16, #tpu.memory_space<vmem>>, vector<128x128xbf16>
    %cst_118 = arith.constant dense<0.000000e+00> : vector<16x128xf32>
    %396 = tpu.matmul %394, %395, %cst_118 {dimension_numbers = #tpu.dot_dimension_numbers<[1], [0], [0], [1], [0, 0, 1, 1], [], []>} : vector<16x128xbf16>, vector<128x128xbf16>, vector<16x128xf32> -> vector<16x128xf32>
    %397 = arith.truncf %393 : vector<16x128xf32> to vector<16x128xbf16>
    %c0_119 = arith.constant 0 : index
    %c0_120 = arith.constant 0 : index
    %398 = vector.load %arg6[%c0_119, %c0_120] : memref<128x128xbf16, #tpu.memory_space<vmem>>, vector<128x128xbf16>
    %cst_121 = arith.constant dense<0.000000e+00> : vector<16x128xf32>
    %399 = tpu.matmul %397, %398, %cst_121 {dimension_numbers = #tpu.dot_dimension_numbers<[1], [0], [0], [1], [0, 0, 1, 1], [], []>} : vector<16x128xbf16>, vector<128x128xbf16>, vector<16x128xf32> -> vector<16x128xf32>
    %400 = arith.addf %396, %399 : vector<16x128xf32>
    %c0_122 = arith.constant 0 : index
    %c0_123 = arith.constant 0 : index
    %401 = vector.load %arg7[%c0_122, %c0_123] : memref<1x128xf32, #tpu.memory_space<vmem>>, vector<1x128xf32>
    %402 = vector.broadcast %401 : vector<1x128xf32> to vector<16x128xf32>
    %403 = arith.addf %400, %402 : vector<16x128xf32>
    %c0_124 = arith.constant 0 : index
    %c0_125 = arith.constant 0 : index
    %404 = vector.load %arg8[%c0_124, %c0_125] : memref<16x128xf32, #tpu.memory_space<vmem>>, vector<16x128xf32>
    tpu.vector_store %arg8[%c0_124, %c0_125], %403 {strides = array<i32>} : memref<16x128xf32, #tpu.memory_space<vmem>>, vector<16x128xf32>,
    return
  }
}

</mosaic_0001>

<llo_original>
// kernel: sentiment_lstm_forward.2
$region0: #{sentiment_lstm_forward.2}
  #allocation0 [shape = 'u32[]', space=smem, size = 0x4, offset = 0x4, fixed_abs, tag = 'smem constant byte address 0x4 - core index']
  #allocation1 [shape = 'u32[72,128]{1,0:T(1,128)}', space=vmem, size = 0x9000, scoped, tag = 'internal scratch']
  #allocation2 [shape = 'f32[8,16,1024]{2,1,0:T(8,128)}', space=vmem, size = 0x80000, scoped, tag = 'scratch operand']
  %s0 = inlined_call_operand.vmem [shape: bf16[8,16,32], index: 0, kind: input, shape index: {}]
  %s1 = inlined_call_operand.vmem [shape: bf16[32,1024], index: 1, kind: input, shape index: {}]
  %s2 = inlined_call_operand.hbm [shape: bf16[256,1024], index: 2, kind: input, shape index: {}]
  %s3 = inlined_call_operand.vmem [shape: f32[1,1024], index: 3, kind: input, shape index: {}]
  %s4 = inlined_call_operand.vmem [shape: bf16[2,8,16,128], index: 4, kind: output, shape index: {}]
  %s5 = sld [smem:[#allocation0]]
  $region30: #{sentiment_lstm_forward.2} parent=0
    _
  %s7 = ssub.s32 1, %s5
  %s8 = scalar_select 0, %s7, %s5
  $region1: #{sentiment_lstm_forward.2} parent=0
    #allocation3 [shape = 'u8[524288]{0}', space=vmem, size = 0x80000, scoped, tag = 'input window, operand 2, single buffered']
    #allocation4 [shape = 's32[1]{0}', space=sflag, size = 0x4, scoped, tag = 'scoped memory for sentiment_lstm_forward.2']
    %9 = vsyncpa [#allocation4], 0
    // Predicated region
    $region2: #{sentiment_lstm_forward.2} parent=1 // pred_check
      _
    $region3: #{sentiment_lstm_forward.2} parent=1 // pred_check_branch
      %11 = sbr.rel (0) target = $region5
    $region4: #{sentiment_lstm_forward.2} parent=1 // pred_region
      _
    $region5: #{sentiment_lstm_forward.2} parent=1 // pred_fallthru
      _
    // Predicated region
    $region6: #{sentiment_lstm_forward.2} parent=1 // pred_check
      _
    $region7: #{sentiment_lstm_forward.2} parent=1 // pred_check_branch
      %13 = sbr.rel (0) target = $region9
    $region8: #{sentiment_lstm_forward.2} parent=1 // pred_region
      _
    $region9: #{sentiment_lstm_forward.2} parent=1 // pred_fallthru
      _
    // Predicated region
    $region10: #{sentiment_lstm_forward.2} parent=1 // pred_check
      _
    $region11: #{sentiment_lstm_forward.2} parent=1 // pred_check_branch
      %15 = sbr.rel (0) target = $region13
    $region12: #{sentiment_lstm_forward.2} parent=1 // pred_region
      %17 = vsyncadd [#allocation4], 0
      %s18 = sshll.u32 %s2, 4
      %s19 = int_to_ptr.hbm [resolvable:$true] %s18
      %s20 = sshll.u32 [#allocation3], 4
      %s21 = int_to_ptr.vmem [resolvable:$true] %s20
      %26 = dma.hbm_to_vmem [thread:$0]  %s19, 16384, %s21, [#allocation4], 512, 512, 32
    $region13: #{sentiment_lstm_forward.2} parent=1 // pred_fallthru
      _
    // Predicated region
    $region14: #{sentiment_lstm_forward.2} parent=1 // pred_check
      _
    $region15: #{sentiment_lstm_forward.2} parent=1 // pred_check_branch
      %28 = sbr.rel (0) target = $region17
    $region16: #{sentiment_lstm_forward.2} parent=1 // pred_region
      _
    $region17: #{sentiment_lstm_forward.2} parent=1 // pred_fallthru
      _
    // Predicated region
    $region18: #{sentiment_lstm_forward.2} parent=1 // pred_check
      _
    $region19: #{sentiment_lstm_forward.2} parent=1 // pred_check_branch
      %30 = sbr.rel (0) target = $region21
    $region20: #{sentiment_lstm_forward.2} parent=1 // pred_region
      %32 = dma.done [#allocation4], 16384
    $region21: #{sentiment_lstm_forward.2} parent=1 // pred_fallthru
      _
    %v34 = vld [vmem:[%s0] sm:$0xf]
    %v35 = vld [vmem:[%s0 + $0x4] sm:$0xf]
    %v36 = vld [vmem:[%s0 + $0x8] sm:$0xf]
    %v37 = vld [vmem:[%s0 + $0xc] sm:$0xf]
    %v38 = vld [vmem:[%s0 + $0x10] sm:$0xf]
    %v39 = vld [vmem:[%s0 + $0x14] sm:$0xf]
    %v40 = vld [vmem:[%s0 + $0x18] sm:$0xf]
    %v41 = vld [vmem:[%s0 + $0x1c] sm:$0xf]
    %v42 = vld [vmem:[%s0 + $0x20] sm:$0xf]
    %v43 = vld [vmem:[%s0 + $0x24] sm:$0xf]
    %v44 = vld [vmem:[%s0 + $0x28] sm:$0xf]
    %v45 = vld [vmem:[%s0 + $0x2c] sm:$0xf]
    %v46 = vld [vmem:[%s0 + $0x30] sm:$0xf]
    %v47 = vld [vmem:[%s0 + $0x34] sm:$0xf]
    %v48 = vld [vmem:[%s0 + $0x38] sm:$0xf]
    %v49 = vld [vmem:[%s0 + $0x3c] sm:$0xf]
    %v50 = vld [vmem:[%s1] sm:$0xff]
    %v51 = vld [vmem:[%s1 + $0x8] sm:$0xff]
    %v52 = vld [vmem:[%s1 + $0x10] sm:$0xff]
    %v53 = vld [vmem:[%s1 + $0x18] sm:$0xff]
    %v54 = vld [vmem:[%s1 + $0x20] sm:$0xff]
    %v55 = vld [vmem:[%s1 + $0x28] sm:$0xff]
    %v56 = vld [vmem:[%s1 + $0x30] sm:$0xff]
    %v57 = vld [vmem:[%s1 + $0x38] sm:$0xff]
    %v58 = vld [vmem:[%s1 + $0x40] sm:$0xff]
    %v59 = vld [vmem:[%s1 + $0x48] sm:$0xff]
    %v60 = vld [vmem:[%s1 + $0x50] sm:$0xff]
    %v61 = vld [vmem:[%s1 + $0x58] sm:$0xff]
    %v62 = vld [vmem:[%s1 + $0x60] sm:$0xff]
    %v63 = vld [vmem:[%s1 + $0x68] sm:$0xff]
    %v64 = vld [vmem:[%s1 + $0x70] sm:$0xff]
    %v65 = vld [vmem:[%s1 + $0x78] sm:$0xff]
    %v66 = vld [vmem:[#allocation3] sm:$0xff]
    %v67 = vld [vmem:[#allocation3 + $0x8] sm:$0xff]
    %v68 = vld [vmem:[#allocation3 + $0x10] sm:$0xff]
    %v69 = vld [vmem:[#allocation3 + $0x18] sm:$0xff]
    %v70 = vld [vmem:[#allocation3 + $0x20] sm:$0xff]
    %v71 = vld [vmem:[#allocation3 + $0x28] sm:$0xff]
    %v72 = vld [vmem:[#allocation3 + $0x30] sm:$0xff]
    %v73 = vld [vmem:[#allocation3 + $0x38] sm:$0xff]
    %v74 = vld [vmem:[#allocation3 + $0x40] sm:$0xff]
    %v75 = vld [vmem:[#allocation3 + $0x48] sm:$0xff]
    %v76 = vld [vmem:[#allocation3 + $0x50] sm:$0xff]
    %v77 = vld [vmem:[#allocation3 + $0x58] sm:$0xff]
    %v78 = vld [vmem:[#allocation3 + $0x60] sm:$0xff]
    %v79 = vld [vmem:[#allocation3 + $0x68] sm:$0xff]
    %v80 = vld [vmem:[#allocation3 + $0x70] sm:$0xff]
    %v81 = vld [vmem:[#allocation3 + $0x78] sm:$0xff]
    %v82 = vld [vmem:[#allocation3 + $0x80] sm:$0xff]
    %v83 = vld [vmem:[#allocation3 + $0x88] sm:$0xff]
    %v84 = vld [vmem:[#allocation3 + $0x90] sm:$0xff]
    %v85 = vld [vmem:[#allocation3 + $0x98] sm:$0xff]
    %v86 = vld [vmem:[#allocation3 + $0xa0] sm:$0xff]
    %v87 = vld [vmem:[#allocation3 + $0xa8] sm:$0xff]
    %v88 = vld [vmem:[#allocation3 + $0xb0] sm:$0xff]
    %v89 = vld [vmem:[#allocation3 + $0xb8] sm:$0xff]
    %v90 = vld [vmem:[#allocation3 + $0xc0] sm:$0xff]
    %v91 = vld [vmem:[#allocation3 + $0xc8] sm:$0xff]
    %v92 = vld [vmem:[#allocation3 + $0xd0] sm:$0xff]
    %v93 = vld [vmem:[#allocation3 + $0xd8] sm:$0xff]
    %v94 = vld [vmem:[#allocation3 + $0xe0] sm:$0xff]
    %v95 = vld [vmem:[#allocation3 + $0xe8] sm:$0xff]
    %v96 = vld [vmem:[#allocation3 + $0xf0] sm:$0xff]
    %v97 = vld [vmem:[#allocation3 + $0xf8] sm:$0xff]
    %v98 = vld [vmem:[#allocation3 + $0x100] sm:$0xff]
    %v99 = vld [vmem:[#allocation3 + $0x108] sm:$0xff]
    %v100 = vld [vmem:[#allocation3 + $0x110] sm:$0xff]
    %v101 = vld [vmem:[#allocation3 + $0x118] sm:$0xff]
    %v102 = vld [vmem:[#allocation3 + $0x120] sm:$0xff]
    %v103 = vld [vmem:[#allocation3 + $0x128] sm:$0xff]
    %v104 = vld [vmem:[#allocation3 + $0x130] sm:$0xff]
    %v105 = vld [vmem:[#allocation3 + $0x138] sm:$0xff]
    %v106 = vld [vmem:[#allocation3 + $0x140] sm:$0xff]
    %v107 = vld [vmem:[#allocation3 + $0x148] sm:$0xff]
    %v108 = vld [vmem:[#allocation3 + $0x150] sm:$0xff]
    %v109 = vld [vmem:[#allocation3 + $0x158] sm:$0xff]
    %v110 = vld [vmem:[#allocation3 + $0x160] sm:$0xff]
    %v111 = vld [vmem:[#allocation3 + $0x168] sm:$0xff]
    %v112 = vld [vmem:[#allocation3 + $0x170] sm:$0xff]
    %v113 = vld [vmem:[#allocation3 + $0x178] sm:$0xff]
    %v114 = vld [vmem:[#allocation3 + $0x180] sm:$0xff]
    %v115 = vld [vmem:[#allocation3 + $0x188] sm:$0xff]
    %v116 = vld [vmem:[#allocation3 + $0x190] sm:$0xff]
    %v117 = vld [vmem:[#allocation3 + $0x198] sm:$0xff]
    %v118 = vld [vmem:[#allocation3 + $0x1a0] sm:$0xff]
    %v119 = vld [vmem:[#allocation3 + $0x1a8] sm:$0xff]
    %v120 = vld [vmem:[#allocation3 + $0x1b0] sm:$0xff]
    %v121 = vld [vmem:[#allocation3 + $0x1b8] sm:$0xff]
    %v122 = vld [vmem:[#allocation3 + $0x1c0] sm:$0xff]
    %v123 = vld [vmem:[#allocation3 + $0x1c8] sm:$0xff]
    %v124 = vld [vmem:[#allocation3 + $0x1d0] sm:$0xff]
    %v125 = vld [vmem:[#allocation3 + $0x1d8] sm:$0xff]
    %v126 = vld [vmem:[#allocation3 + $0x1e0] sm:$0xff]
    %v127 = vld [vmem:[#allocation3 + $0x1e8] sm:$0xff]
    %v128 = vld [vmem:[#allocation3 + $0x1f0] sm:$0xff]
    %v129 = vld [vmem:[#allocation3 + $0x1f8] sm:$0xff]
    %v130 = vld [vmem:[#allocation3 + $0x200] sm:$0xff]
    %v131 = vld [vmem:[#allocation3 + $0x208] sm:$0xff]
    %v132 = vld [vmem:[#allocation3 + $0x210] sm:$0xff]
    %v133 = vld [vmem:[#allocation3 + $0x218] sm:$0xff]
    %v134 = vld [vmem:[#allocation3 + $0x220] sm:$0xff]
    %v135 = vld [vmem:[#allocation3 + $0x228] sm:$0xff]
    %v136 = vld [vmem:[#allocation3 + $0x230] sm:$0xff]
    %v137 = vld [vmem:[#allocation3 + $0x238] sm:$0xff]
    %v138 = vld [vmem:[#allocation3 + $0x240] sm:$0xff]
    %v139 = vld [vmem:[#allocation3 + $0x248] sm:$0xff]
    %v140 = vld [vmem:[#allocation3 + $0x250] sm:$0xff]
    %v141 = vld [vmem:[#allocation3 + $0x258] sm:$0xff]
    %v142 = vld [vmem:[#allocation3 + $0x260] sm:$0xff]
    %v143 = vld [vmem:[#allocation3 + $0x268] sm:$0xff]
    %v144 = vld [vmem:[#allocation3 + $0x270] sm:$0xff]
    %v145 = vld [vmem:[#allocation3 + $0x278] sm:$0xff]
    %v146 = vld [vmem:[#allocation3 + $0x280] sm:$0xff]
    %v147 = vld [vmem:[#allocation3 + $0x288] sm:$0xff]
    %v148 = vld [vmem:[#allocation3 + $0x290] sm:$0xff]
    %v149 = vld [vmem:[#allocation3 + $0x298] sm:$0xff]
    %v150 = vld [vmem:[#allocation3 + $0x2a0] sm:$0xff]
    %v151 = vld [vmem:[#allocation3 + $0x2a8] sm:$0xff]
    %v152 = vld [vmem:[#allocation3 + $0x2b0] sm:$0xff]
    %v153 = vld [vmem:[#allocation3 + $0x2b8] sm:$0xff]
    %v154 = vld [vmem:[#allocation3 + $0x2c0] sm:$0xff]
    %v155 = vld [vmem:[#allocation3 + $0x2c8] sm:$0xff]
    %v156 = vld [vmem:[#allocation3 + $0x2d0] sm:$0xff]
    %v157 = vld [vmem:[#allocation3 + $0x2d8] sm:$0xff]
    %v158 = vld [vmem:[#allocation3 + $0x2e0] sm:$0xff]
    %v159 = vld [vmem:[#allocation3 + $0x2e8] sm:$0xff]
    %v160 = vld [vmem:[#allocation3 + $0x2f0] sm:$0xff]
    %v161 = vld [vmem:[#allocation3 + $0x2f8] sm:$0xff]
    %v162 = vld [vmem:[#allocation3 + $0x300] sm:$0xff]
    %v163 = vld [vmem:[#allocation3 + $0x308] sm:$0xff]
    %v164 = vld [vmem:[#allocation3 + $0x310] sm:$0xff]
    %v165 = vld [vmem:[#allocation3 + $0x318] sm:$0xff]
    %v166 = vld [vmem:[#allocation3 + $0x320] sm:$0xff]
    %v167 = vld [vmem:[#allocation3 + $0x328] sm:$0xff]
    %v168 = vld [vmem:[#allocation3 + $0x330] sm:$0xff]
    %v169 = vld [vmem:[#allocation3 + $0x338] sm:$0xff]
    %v170 = vld [vmem:[#allocation3 + $0x340] sm:$0xff]
    %v171 = vld [vmem:[#allocation3 + $0x348] sm:$0xff]
    %v172 = vld [vmem:[#allocation3 + $0x350] sm:$0xff]
    %v173 = vld [vmem:[#allocation3 + $0x358] sm:$0xff]
    %v174 = vld [vmem:[#allocation3 + $0x360] sm:$0xff]
    %v175 = vld [vmem:[#allocation3 + $0x368] sm:$0xff]
    %v176 = vld [vmem:[#allocation3 + $0x370] sm:$0xff]
    %v177 = vld [vmem:[#allocation3 + $0x378] sm:$0xff]
    %v178 = vld [vmem:[#allocation3 + $0x380] sm:$0xff]
    %v179 = vld [vmem:[#allocation3 + $0x388] sm:$0xff]
    %v180 = vld [vmem:[#allocation3 + $0x390] sm:$0xff]
    %v181 = vld [vmem:[#allocation3 + $0x398] sm:$0xff]
    %v182 = vld [vmem:[#allocation3 + $0x3a0] sm:$0xff]
    %v183 = vld [vmem:[#allocation3 + $0x3a8] sm:$0xff]
    %v184 = vld [vmem:[#allocation3 + $0x3b0] sm:$0xff]
    %v185 = vld [vmem:[#allocation3 + $0x3b8] sm:$0xff]
    %v186 = vld [vmem:[#allocation3 + $0x3c0] sm:$0xff]
    %v187 = vld [vmem:[#allocation3 + $0x3c8] sm:$0xff]
    %v188 = vld [vmem:[#allocation3 + $0x3d0] sm:$0xff]
    %v189 = vld [vmem:[#allocation3 + $0x3d8] sm:$0xff]
    %v190 = vld [vmem:[#allocation3 + $0x3e0] sm:$0xff]
    %v191 = vld [vmem:[#allocation3 + $0x3e8] sm:$0xff]
    %v192 = vld [vmem:[#allocation3 + $0x3f0] sm:$0xff]
    %v193 = vld [vmem:[#allocation3 + $0x3f8] sm:$0xff]
    %v194 = vld [vmem:[%s3] sm:$0xff]
    %v211 = vunpack.c.l.b16 %v34
    %v212 = vunpack.c.l.b16 %v35
    %v213 = vunpack.c.l.b16 %v36
    %v214 = vunpack.c.l.b16 %v37
    %v215 = vunpack.c.l.b16 %v38
    %v216 = vunpack.c.l.b16 %v39
    %v217 = vunpack.c.l.b16 %v40
    %v218 = vunpack.c.l.b16 %v41
    %v219 = vunpack.c.l.b16 %v42
    %v220 = vunpack.c.l.b16 %v43
    %v221 = vunpack.c.l.b16 %v44
    %v222 = vunpack.c.l.b16 %v45
    %v223 = vunpack.c.l.b16 %v46
    %v224 = vunpack.c.l.b16 %v47
    %v225 = vunpack.c.l.b16 %v48
    %v226 = vunpack.c.l.b16 %v49
    %v227 = vpack.c.b16 %v212, %v211
    %v228 = vpack.c.b16 %v214, %v213
    %v229 = vpack.c.b16 %v216, %v215
    %v230 = vpack.c.b16 %v218, %v217
    %v231 = vpack.c.b16 %v220, %v219
    %v232 = vpack.c.b16 %v222, %v221
    %v233 = vpack.c.b16 %v224, %v223
    %v234 = vpack.c.b16 %v226, %v225
    %v251 = vunpack.c.l.b16 %v50
    %v252 = vunpack.c.h.b16 %v50
    %v253 = vunpack.c.l.b16 %v51
    %v254 = vunpack.c.h.b16 %v51
    %v255 = vunpack.c.l.b16 %v52
    %v256 = vunpack.c.h.b16 %v52
    %v257 = vunpack.c.l.b16 %v53
    %v258 = vunpack.c.h.b16 %v53
    %v259 = vunpack.c.l.b16 %v54
    %v260 = vunpack.c.h.b16 %v54
    %v261 = vunpack.c.l.b16 %v55
    %v262 = vunpack.c.h.b16 %v55
    %v263 = vunpack.c.l.b16 %v56
    %v264 = vunpack.c.h.b16 %v56
    %v265 = vunpack.c.l.b16 %v57
    %v266 = vunpack.c.h.b16 %v57
    %v267 = vunpack.c.l.b16 %v58
    %v268 = vunpack.c.h.b16 %v58
    %v269 = vunpack.c.l.b16 %v59
    %v270 = vunpack.c.h.b16 %v59
    %v271 = vunpack.c.l.b16 %v60
    %v272 = vunpack.c.h.b16 %v60
    %v273 = vunpack.c.l.b16 %v61
    %v274 = vunpack.c.h.b16 %v61
    %v275 = vunpack.c.l.b16 %v62
    %v276 = vunpack.c.h.b16 %v62
    %v277 = vunpack.c.l.b16 %v63
    %v278 = vunpack.c.h.b16 %v63
    %v279 = vunpack.c.l.b16 %v64
    %v280 = vunpack.c.h.b16 %v64
    %v281 = vunpack.c.l.b16 %v65
    %v282 = vunpack.c.h.b16 %v65
    %v283 = vpack.c.b16 %v259, %v251
    %v284 = vpack.c.b16 %v260, %v252
    %v285 = vpack.c.b16 %v261, %v253
    %v286 = vpack.c.b16 %v262, %v254
    %v287 = vpack.c.b16 %v263, %v255
    %v288 = vpack.c.b16 %v264, %v256
    %v289 = vpack.c.b16 %v265, %v257
    %v290 = vpack.c.b16 %v266, %v258
    %v291 = vpack.c.b16 %v275, %v267
    %v292 = vpack.c.b16 %v276, %v268
    %v293 = vpack.c.b16 %v277, %v269
    %v294 = vpack.c.b16 %v278, %v270
    %v295 = vpack.c.b16 %v279, %v271
    %v296 = vpack.c.b16 %v280, %v272
    %v297 = vpack.c.b16 %v281, %v273
    %v298 = vpack.c.b16 %v282, %v274
    %vm315 = vcmask 261120
    %v317 = vsel %vm315, %v227, 0
    %v320 = vsel %vm315, %v228, 0
    %v323 = vsel %vm315, %v229, 0
    %v326 = vsel %vm315, %v230, 0
    %v329 = vsel %vm315, %v231, 0
    %v332 = vsel %vm315, %v232, 0
    %v335 = vsel %vm315, %v233, 0
    %v338 = vsel %vm315, %v234, 0
    %340 = vmatpush.bf16.msra.mxu0 0
    %341 = vmatpush.bf16.msra.mxu0 0
    %342 = vmatpush.bf16.msra.mxu0 0
    %343 = vmatpush.bf16.msra.mxu0 0
    %344 = vmatpush.bf16.msra.mxu0 0
    %345 = vmatpush.bf16.msra.mxu0 0
    %346 = vmatpush.bf16.msra.mxu0 %v291
    %347 = vmatpush.bf16.msra.mxu0 %v283
    %348 = vmatmul.bf16.gmra.mxu0 %v317
    %v349 = vpop.f32.mrf.mxu0
    %v350 = vadd.f32 0.0, %v349
    %v351 = vpop.f32.mrf.mxu0
    %v352 = vadd.f32 0.0, %v351
    %353 = vmatmul.bf16.gmra.mxu0 %v320
    %v354 = vpop.f32.mrf.mxu0
    %v355 = vadd.f32 0.0, %v354
    %v356 = vpop.f32.mrf.mxu0
    %v357 = vadd.f32 0.0, %v356
    %358 = vmatmul.bf16.gmra.mxu0 %v323
    %v359 = vpop.f32.mrf.mxu0
    %v360 = vadd.f32 0.0, %v359
    %v361 = vpop.f32.mrf.mxu0
    %v362 = vadd.f32 0.0, %v361
    %363 = vmatmul.bf16.gmra.mxu0 %v326
    %v364 = vpop.f32.mrf.mxu0
    %v365 = vadd.f32 0.0, %v364
    %v366 = vpop.f32.mrf.mxu0
    %v367 = vadd.f32 0.0, %v366
    %368 = vmatmul.bf16.gmra.mxu0 %v329
    %v369 = vpop.f32.mrf.mxu0
    %v370 = vadd.f32 0.0, %v369
    %v371 = vpop.f32.mrf.mxu0
    %v372 = vadd.f32 0.0, %v371
    %373 = vmatmul.bf16.gmra.mxu0 %v332
    %v374 = vpop.f32.mrf.mxu0
    %v375 = vadd.f32 0.0, %v374
    %v376 = vpop.f32.mrf.mxu0
    %v377 = vadd.f32 0.0, %v376
    %378 = vmatmul.bf16.gmra.mxu0 %v335
    %v379 = vpop.f32.mrf.mxu0
    %v380 = vadd.f32 0.0, %v379
    %v381 = vpop.f32.mrf.mxu0
    %v382 = vadd.f32 0.0, %v381
    %383 = vmatmul.bf16.gmra.mxu0 %v338
    %v384 = vpop.f32.mrf.mxu0
    %v385 = vadd.f32 0.0, %v384
    %v386 = vpop.f32.mrf.mxu0
    %v387 = vadd.f32 0.0, %v386
    %388 = vdwg.mxu0
    %389 = vmatpush.bf16.msra.mxu0 0
    %390 = vmatpush.bf16.msra.mxu0 0
    %391 = vmatpush.bf16.msra.mxu0 0
    %392 = vmatpush.bf16.msra.mxu0 0
    %393 = vmatpush.bf16.msra.mxu0 0
    %394 = vmatpush.bf16.msra.mxu0 0
    %395 = vmatpush.bf16.msra.mxu0 %v292
    %396 = vmatpush.bf16.msra.mxu0 %v284
    %397 = vmatmul.bf16.gmra.mxu0 %v317
    %v398 = vpop.f32.mrf.mxu0
    %v399 = vadd.f32 0.0, %v398
    %v400 = vpop.f32.mrf.mxu0
    %v401 = vadd.f32 0.0, %v400
    %402 = vmatmul.bf16.gmra.mxu0 %v320
    %v403 = vpop.f32.mrf.mxu0
    %v404 = vadd.f32 0.0, %v403
    %v405 = vpop.f32.mrf.mxu0
    %v406 = vadd.f32 0.0, %v405
    %407 = vmatmul.bf16.gmra.mxu0 %v323
    %v408 = vpop.f32.mrf.mxu0
    %v409 = vadd.f32 0.0, %v408
    %v410 = vpop.f32.mrf.mxu0
    %v411 = vadd.f32 0.0, %v410
    %412 = vmatmul.bf16.gmra.mxu0 %v326
    %v413 = vpop.f32.mrf.mxu0
    %v414 = vadd.f32 0.0, %v413
    %v415 = vpop.f32.mrf.mxu0
    %v416 = vadd.f32 0.0, %v415
    %417 = vmatmul.bf16.gmra.mxu0 %v329
    %v418 = vpop.f32.mrf.mxu0
    %v419 = vadd.f32 0.0, %v418
    %v420 = vpop.f32.mrf.mxu0
    %v421 = vadd.f32 0.0, %v420
    %422 = vmatmul.bf16.gmra.mxu0 %v332
    %v423 = vpop.f32.mrf.mxu0
    %v424 = vadd.f32 0.0, %v423
    %v425 = vpop.f32.mrf.mxu0
    %v426 = vadd.f32 0.0, %v425
    %427 = vmatmul.bf16.gmra.mxu0 %v335
    %v428 = vpop.f32.mrf.mxu0
    %v429 = vadd.f32 0.0, %v428
    %v430 = vpop.f32.mrf.mxu0
    %v431 = vadd.f32 0.0, %v430
    %432 = vmatmul.bf16.gmra.mxu0 %v338
    %v433 = vpop.f32.mrf.mxu0
    %v434 = vadd.f32 0.0, %v433
    %v435 = vpop.f32.mrf.mxu0
    %v436 = vadd.f32 0.0, %v435
    %437 = vdwg.mxu0
    %438 = vmatpush.bf16.msra.mxu0 0
    %439 = vmatpush.bf16.msra.mxu0 0
    %440 = vmatpush.bf16.msra.mxu0 0
    %441 = vmatpush.bf16.msra.mxu0 0
    %442 = vmatpush.bf16.msra.mxu0 0
    %443 = vmatpush.bf16.msra.mxu0 0
    %444 = vmatpush.bf16.msra.mxu0 %v293
    %445 = vmatpush.bf16.msra.mxu0 %v285
    %446 = vmatmul.bf16.gmra.mxu0 %v317
    %v447 = vpop.f32.mrf.mxu0
    %v448 = vadd.f32 0.0, %v447
    %v449 = vpop.f32.mrf.mxu0
    %v450 = vadd.f32 0.0, %v449
    %451 = vmatmul.bf16.gmra.mxu0 %v320
    %v452 = vpop.f32.mrf.mxu0
    %v453 = vadd.f32 0.0, %v452
    %v454 = vpop.f32.mrf.mxu0
    %v455 = vadd.f32 0.0, %v454
    %456 = vmatmul.bf16.gmra.mxu0 %v323
    %v457 = vpop.f32.mrf.mxu0
    %v458 = vadd.f32 0.0, %v457
    %v459 = vpop.f32.mrf.mxu0
    %v460 = vadd.f32 0.0, %v459
    %461 = vmatmul.bf16.gmra.mxu0 %v326
    %v462 = vpop.f32.mrf.mxu0
    %v463 = vadd.f32 0.0, %v462
    %v464 = vpop.f32.mrf.mxu0
    %v465 = vadd.f32 0.0, %v464
    %466 = vmatmul.bf16.gmra.mxu0 %v329
    %v467 = vpop.f32.mrf.mxu0
    %v468 = vadd.f32 0.0, %v467
    %v469 = vpop.f32.mrf.mxu0
    %v470 = vadd.f32 0.0, %v469
    %471 = vmatmul.bf16.gmra.mxu0 %v332
    %v472 = vpop.f32.mrf.mxu0
    %v473 = vadd.f32 0.0, %v472
    %v474 = vpop.f32.mrf.mxu0
    %v475 = vadd.f32 0.0, %v474
    %476 = vmatmul.bf16.gmra.mxu0 %v335
    %v477 = vpop.f32.mrf.mxu0
    %v478 = vadd.f32 0.0, %v477
    %v479 = vpop.f32.mrf.mxu0
    %v480 = vadd.f32 0.0, %v479
    %481 = vmatmul.bf16.gmra.mxu0 %v338
    %v482 = vpop.f32.mrf.mxu0
    %v483 = vadd.f32 0.0, %v482
    %v484 = vpop.f32.mrf.mxu0
    %v485 = vadd.f32 0.0, %v484
    %486 = vdwg.mxu0
    %487 = vmatpush.bf16.msra.mxu0 0
    %488 = vmatpush.bf16.msra.mxu0 0
    %489 = vmatpush.bf16.msra.mxu0 0
    %490 = vmatpush.bf16.msra.mxu0 0
    %491 = vmatpush.bf16.msra.mxu0 0
    %492 = vmatpush.bf16.msra.mxu0 0
    %493 = vmatpush.bf16.msra.mxu0 %v294
    %494 = vmatpush.bf16.msra.mxu0 %v286
    %495 = vmatmul.bf16.gmra.mxu0 %v317
    %v496 = vpop.f32.mrf.mxu0
    %v497 = vadd.f32 0.0, %v496
    %v498 = vpop.f32.mrf.mxu0
    %v499 = vadd.f32 0.0, %v498
    %500 = vmatmul.bf16.gmra.mxu0 %v320
    %v501 = vpop.f32.mrf.mxu0
    %v502 = vadd.f32 0.0, %v501
    %v503 = vpop.f32.mrf.mxu0
    %v504 = vadd.f32 0.0, %v503
    %505 = vmatmul.bf16.gmra.mxu0 %v323
    %v506 = vpop.f32.mrf.mxu0
    %v507 = vadd.f32 0.0, %v506
    %v508 = vpop.f32.mrf.mxu0
    %v509 = vadd.f32 0.0, %v508
    %510 = vmatmul.bf16.gmra.mxu0 %v326
    %v511 = vpop.f32.mrf.mxu0
    %v512 = vadd.f32 0.0, %v511
    %v513 = vpop.f32.mrf.mxu0
    %v514 = vadd.f32 0.0, %v513
    %515 = vmatmul.bf16.gmra.mxu0 %v329
    %v516 = vpop.f32.mrf.mxu0
    %v517 = vadd.f32 0.0, %v516
    %v518 = vpop.f32.mrf.mxu0
    %v519 = vadd.f32 0.0, %v518
    %520 = vmatmul.bf16.gmra.mxu0 %v332
    %v521 = vpop.f32.mrf.mxu0
    %v522 = vadd.f32 0.0, %v521
    %v523 = vpop.f32.mrf.mxu0
    %v524 = vadd.f32 0.0, %v523
    %525 = vmatmul.bf16.gmra.mxu0 %v335
    %v526 = vpop.f32.mrf.mxu0
    %v527 = vadd.f32 0.0, %v526
    %v528 = vpop.f32.mrf.mxu0
    %v529 = vadd.f32 0.0, %v528
    %530 = vmatmul.bf16.gmra.mxu0 %v338
    %v531 = vpop.f32.mrf.mxu0
    %v532 = vadd.f32 0.0, %v531
    %v533 = vpop.f32.mrf.mxu0
    %v534 = vadd.f32 0.0, %v533
    %535 = vdwg.mxu0
    %536 = vmatpush.bf16.msra.mxu0 0
    %537 = vmatpush.bf16.msra.mxu0 0
    %538 = vmatpush.bf16.msra.mxu0 0
    %539 = vmatpush.bf16.msra.mxu0 0
    %540 = vmatpush.bf16.msra.mxu0 0
    %541 = vmatpush.bf16.msra.mxu0 0
    %542 = vmatpush.bf16.msra.mxu0 %v295
    %543 = vmatpush.bf16.msra.mxu0 %v287
    %544 = vmatmul.bf16.gmra.mxu0 %v317
    %v545 = vpop.f32.mrf.mxu0
    %v546 = vadd.f32 0.0, %v545
    %v547 = vpop.f32.mrf.mxu0
    %v548 = vadd.f32 0.0, %v547
    %549 = vmatmul.bf16.gmra.mxu0 %v320
    %v550 = vpop.f32.mrf.mxu0
    %v551 = vadd.f32 0.0, %v550
    %v552 = vpop.f32.mrf.mxu0
    %v553 = vadd.f32 0.0, %v552
    %554 = vmatmul.bf16.gmra.mxu0 %v323
    %v555 = vpop.f32.mrf.mxu0
    %v556 = vadd.f32 0.0, %v555
    %v557 = vpop.f32.mrf.mxu0
    %v558 = vadd.f32 0.0, %v557
    %559 = vmatmul.bf16.gmra.mxu0 %v326
    %v560 = vpop.f32.mrf.mxu0
    %v561 = vadd.f32 0.0, %v560
    %v562 = vpop.f32.mrf.mxu0
    %v563 = vadd.f32 0.0, %v562
    %564 = vmatmul.bf16.gmra.mxu0 %v329
    %v565 = vpop.f32.mrf.mxu0
    %v566 = vadd.f32 0.0, %v565
    %v567 = vpop.f32.mrf.mxu0
    %v568 = vadd.f32 0.0, %v567
    %569 = vmatmul.bf16.gmra.mxu0 %v332
    %v570 = vpop.f32.mrf.mxu0
    %v571 = vadd.f32 0.0, %v570
    %v572 = vpop.f32.mrf.mxu0
    %v573 = vadd.f32 0.0, %v572
    %574 = vmatmul.bf16.gmra.mxu0 %v335
    %v575 = vpop.f32.mrf.mxu0
    %v576 = vadd.f32 0.0, %v575
    %v577 = vpop.f32.mrf.mxu0
    %v578 = vadd.f32 0.0, %v577
    %579 = vmatmul.bf16.gmra.mxu0 %v338
    %v580 = vpop.f32.mrf.mxu0
    %v581 = vadd.f32 0.0, %v580
    %v582 = vpop.f32.mrf.mxu0
    %v583 = vadd.f32 0.0, %v582
    %584 = vdwg.mxu0
    %585 = vmatpush.bf16.msra.mxu0 0
    %586 = vmatpush.bf16.msra.mxu0 0
    %587 = vmatpush.bf16.msra.mxu0 0
    %588 = vmatpush.bf16.msra.mxu0 0
    %589 = vmatpush.bf16.msra.mxu0 0
    %590 = vmatpush.bf16.msra.mxu0 0
    %591 = vmatpush.bf16.msra.mxu0 %v296
    %592 = vmatpush.bf16.msra.mxu0 %v288
    %593 = vmatmul.bf16.gmra.mxu0 %v317
    %v594 = vpop.f32.mrf.mxu0
    %v595 = vadd.f32 0.0, %v594
    %v596 = vpop.f32.mrf.mxu0
    %v597 = vadd.f32 0.0, %v596
    %598 = vmatmul.bf16.gmra.mxu0 %v320
    %v599 = vpop.f32.mrf.mxu0
    %v600 = vadd.f32 0.0, %v599
    %v601 = vpop.f32.mrf.mxu0
    %v602 = vadd.f32 0.0, %v601
    %603 = vmatmul.bf16.gmra.mxu0 %v323
    %v604 = vpop.f32.mrf.mxu0
    %v605 = vadd.f32 0.0, %v604
    %v606 = vpop.f32.mrf.mxu0
    %v607 = vadd.f32 0.0, %v606
    %608 = vmatmul.bf16.gmra.mxu0 %v326
    %v609 = vpop.f32.mrf.mxu0
    %v610 = vadd.f32 0.0, %v609
    %v611 = vpop.f32.mrf.mxu0
    %v612 = vadd.f32 0.0, %v611
    %613 = vmatmul.bf16.gmra.mxu0 %v329
    %v614 = vpop.f32.mrf.mxu0
    %v615 = vadd.f32 0.0, %v614
    %v616 = vpop.f32.mrf.mxu0
    %v617 = vadd.f32 0.0, %v616
    %618 = vmatmul.bf16.gmra.mxu0 %v332
    %v619 = vpop.f32.mrf.mxu0
    %v620 = vadd.f32 0.0, %v619
    %v621 = vpop.f32.mrf.mxu0
    %v622 = vadd.f32 0.0, %v621
    %623 = vmatmul.bf16.gmra.mxu0 %v335
    %v624 = vpop.f32.mrf.mxu0
    %v625 = vadd.f32 0.0, %v624
    %v626 = vpop.f32.mrf.mxu0
    %v627 = vadd.f32 0.0, %v626
    %628 = vmatmul.bf16.gmra.mxu0 %v338
    %v629 = vpop.f32.mrf.mxu0
    %v630 = vadd.f32 0.0, %v629
    %v631 = vpop.f32.mrf.mxu0
    %v632 = vadd.f32 0.0, %v631
    %633 = vdwg.mxu0
    %634 = vmatpush.bf16.msra.mxu0 0
    %635 = vmatpush.bf16.msra.mxu0 0
    %636 = vmatpush.bf16.msra.mxu0 0
    %637 = vmatpush.bf16.msra.mxu0 0
    %638 = vmatpush.bf16.msra.mxu0 0
    %639 = vmatpush.bf16.msra.mxu0 0
    %640 = vmatpush.bf16.msra.mxu0 %v297
    %641 = vmatpush.bf16.msra.mxu0 %v289
    %642 = vmatmul.bf16.gmra.mxu0 %v317
    %v643 = vpop.f32.mrf.mxu0
    %v644 = vadd.f32 0.0, %v643
    %v645 = vpop.f32.mrf.mxu0
    %v646 = vadd.f32 0.0, %v645
    %647 = vmatmul.bf16.gmra.mxu0 %v320
    %v648 = vpop.f32.mrf.mxu0
    %v649 = vadd.f32 0.0, %v648
    %v650 = vpop.f32.mrf.mxu0
    %v651 = vadd.f32 0.0, %v650
    %652 = vmatmul.bf16.gmra.mxu0 %v323
    %v653 = vpop.f32.mrf.mxu0
    %v654 = vadd.f32 0.0, %v653
    %v655 = vpop.f32.mrf.mxu0
    %v656 = vadd.f32 0.0, %v655
    %657 = vmatmul.bf16.gmra.mxu0 %v326
    %v658 = vpop.f32.mrf.mxu0
    %v659 = vadd.f32 0.0, %v658
    %v660 = vpop.f32.mrf.mxu0
    %v661 = vadd.f32 0.0, %v660
    %662 = vmatmul.bf16.gmra.mxu0 %v329
    %v663 = vpop.f32.mrf.mxu0
    %v664 = vadd.f32 0.0, %v663
    %v665 = vpop.f32.mrf.mxu0
    %v666 = vadd.f32 0.0, %v665
    %667 = vmatmul.bf16.gmra.mxu0 %v332
    %v668 = vpop.f32.mrf.mxu0
    %v669 = vadd.f32 0.0, %v668
    %v670 = vpop.f32.mrf.mxu0
    %v671 = vadd.f32 0.0, %v670
    %672 = vmatmul.bf16.gmra.mxu0 %v335
    %v673 = vpop.f32.mrf.mxu0
    %v674 = vadd.f32 0.0, %v673
    %v675 = vpop.f32.mrf.mxu0
    %v676 = vadd.f32 0.0, %v675
    %677 = vmatmul.bf16.gmra.mxu0 %v338
    %v678 = vpop.f32.mrf.mxu0
    %v679 = vadd.f32 0.0, %v678
    %v680 = vpop.f32.mrf.mxu0
    %v681 = vadd.f32 0.0, %v680
    %682 = vdwg.mxu0
    %683 = vmatpush.bf16.msra.mxu0 0
    %684 = vmatpush.bf16.msra.mxu0 0
    %685 = vmatpush.bf16.msra.mxu0 0
    %686 = vmatpush.bf16.msra.mxu0 0
    %687 = vmatpush.bf16.msra.mxu0 0
    %688 = vmatpush.bf16.msra.mxu0 0
    %689 = vmatpush.bf16.msra.mxu0 %v298
    %690 = vmatpush.bf16.msra.mxu0 %v290
    %691 = vmatmul.bf16.gmra.mxu0 %v317
    %v692 = vpop.f32.mrf.mxu0
    %v693 = vadd.f32 0.0, %v692
    %v694 = vpop.f32.mrf.mxu0
    %v695 = vadd.f32 0.0, %v694
    %696 = vmatmul.bf16.gmra.mxu0 %v320
    %v697 = vpop.f32.mrf.mxu0
    %v698 = vadd.f32 0.0, %v697
    %v699 = vpop.f32.mrf.mxu0
    %v700 = vadd.f32 0.0, %v699
    %701 = vmatmul.bf16.gmra.mxu0 %v323
    %v702 = vpop.f32.mrf.mxu0
    %v703 = vadd.f32 0.0, %v702
    %v704 = vpop.f32.mrf.mxu0
    %v705 = vadd.f32 0.0, %v704
    %706 = vmatmul.bf16.gmra.mxu0 %v326
    %v707 = vpop.f32.mrf.mxu0
    %v708 = vadd.f32 0.0, %v707
    %v709 = vpop.f32.mrf.mxu0
    %v710 = vadd.f32 0.0, %v709
    %711 = vmatmul.bf16.gmra.mxu0 %v329
    %v712 = vpop.f32.mrf.mxu0
    %v713 = vadd.f32 0.0, %v712
    %v714 = vpop.f32.mrf.mxu0
    %v715 = vadd.f32 0.0, %v714
    %716 = vmatmul.bf16.gmra.mxu0 %v332
    %v717 = vpop.f32.mrf.mxu0
    %v718 = vadd.f32 0.0, %v717
    %v719 = vpop.f32.mrf.mxu0
    %v720 = vadd.f32 0.0, %v719
    %721 = vmatmul.bf16.gmra.mxu0 %v335
    %v722 = vpop.f32.mrf.mxu0
    %v723 = vadd.f32 0.0, %v722
    %v724 = vpop.f32.mrf.mxu0
    %v725 = vadd.f32 0.0, %v724
    %726 = vmatmul.bf16.gmra.mxu0 %v338
    %v727 = vpop.f32.mrf.mxu0
    %v728 = vadd.f32 0.0, %v727
    %v729 = vpop.f32.mrf.mxu0
    %v730 = vadd.f32 0.0, %v729
    %731 = vdwg.mxu0
    %v733 = vperm.slane %v194, 0
    %v734 = vperm.slane %v194, 1
    %v735 = vperm.slane %v194, 2
    %v736 = vperm.slane %v194, 3
    %v737 = vperm.slane %v194, 4
    %v738 = vperm.slane %v194, 5
    %v739 = vperm.slane %v194, 6
    %v740 = vperm.slane %v194, 7
    %v749 = vadd.f32 %v733, %v350
    %v750 = vadd.f32 %v734, %v399
    %v751 = vadd.f32 %v735, %v448
    %v752 = vadd.f32 %v736, %v497
    %v753 = vadd.f32 %v737, %v546
    %v754 = vadd.f32 %v738, %v595
    %v755 = vadd.f32 %v739, %v644
    %v756 = vadd.f32 %v740, %v693
    %v757 = vadd.f32 %v733, %v352
    %v758 = vadd.f32 %v734, %v401
    %v759 = vadd.f32 %v735, %v450
    %v760 = vadd.f32 %v736, %v499
    %v761 = vadd.f32 %v737, %v548
    %v762 = vadd.f32 %v738, %v597
    %v763 = vadd.f32 %v739, %v646
    %v764 = vadd.f32 %v740, %v695
    %v765 = vadd.f32 %v733, %v355
    %v766 = vadd.f32 %v734, %v404
    %v767 = vadd.f32 %v735, %v453
    %v768 = vadd.f32 %v736, %v502
    %v769 = vadd.f32 %v737, %v551
    %v770 = vadd.f32 %v738, %v600
    %v771 = vadd.f32 %v739, %v649
    %v772 = vadd.f32 %v740, %v698
    %v773 = vadd.f32 %v733, %v357
    %v774 = vadd.f32 %v734, %v406
    %v775 = vadd.f32 %v735, %v455
    %v776 = vadd.f32 %v736, %v504
    %v777 = vadd.f32 %v737, %v553
    %v778 = vadd.f32 %v738, %v602
    %v779 = vadd.f32 %v739, %v651
    %v780 = vadd.f32 %v740, %v700
    %v781 = vadd.f32 %v733, %v360
    %v782 = vadd.f32 %v734, %v409
    %v783 = vadd.f32 %v735, %v458
    %v784 = vadd.f32 %v736, %v507
    %v785 = vadd.f32 %v737, %v556
    %v786 = vadd.f32 %v738, %v605
    %v787 = vadd.f32 %v739, %v654
    %v788 = vadd.f32 %v740, %v703
    %v789 = vadd.f32 %v733, %v362
    %v790 = vadd.f32 %v734, %v411
    %v791 = vadd.f32 %v735, %v460
    %v792 = vadd.f32 %v736, %v509
    %v793 = vadd.f32 %v737, %v558
    %v794 = vadd.f32 %v738, %v607
    %v795 = vadd.f32 %v739, %v656
    %v796 = vadd.f32 %v740, %v705
    %v797 = vadd.f32 %v733, %v365
    %v798 = vadd.f32 %v734, %v414
    %v799 = vadd.f32 %v735, %v463
    %v800 = vadd.f32 %v736, %v512
    %v801 = vadd.f32 %v737, %v561
    %v802 = vadd.f32 %v738, %v610
    %v803 = vadd.f32 %v739, %v659
    %v804 = vadd.f32 %v740, %v708
    %v805 = vadd.f32 %v733, %v367
    %v806 = vadd.f32 %v734, %v416
    %v807 = vadd.f32 %v735, %v465
    %v808 = vadd.f32 %v736, %v514
    %v809 = vadd.f32 %v737, %v563
    %v810 = vadd.f32 %v738, %v612
    %v811 = vadd.f32 %v739, %v661
    %v812 = vadd.f32 %v740, %v710
    %v813 = vadd.f32 %v733, %v370
    %v814 = vadd.f32 %v734, %v419
    %v815 = vadd.f32 %v735, %v468
    %v816 = vadd.f32 %v736, %v517
    %v817 = vadd.f32 %v737, %v566
    %v818 = vadd.f32 %v738, %v615
    %v819 = vadd.f32 %v739, %v664
    %v820 = vadd.f32 %v740, %v713
    %v821 = vadd.f32 %v733, %v372
    %v822 = vadd.f32 %v734, %v421
    %v823 = vadd.f32 %v735, %v470
    %v824 = vadd.f32 %v736, %v519
    %v825 = vadd.f32 %v737, %v568
    %v826 = vadd.f32 %v738, %v617
    %v827 = vadd.f32 %v739, %v666
    %v828 = vadd.f32 %v740, %v715
    %v829 = vadd.f32 %v733, %v375
    %v830 = vadd.f32 %v734, %v424
    %v831 = vadd.f32 %v735, %v473
    %v832 = vadd.f32 %v736, %v522
    %v833 = vadd.f32 %v737, %v571
    %v834 = vadd.f32 %v738, %v620
    %v835 = vadd.f32 %v739, %v669
    %v836 = vadd.f32 %v740, %v718
    %v837 = vadd.f32 %v733, %v377
    %v838 = vadd.f32 %v734, %v426
    %v839 = vadd.f32 %v735, %v475
    %v840 = vadd.f32 %v736, %v524
    %v841 = vadd.f32 %v737, %v573
    %v842 = vadd.f32 %v738, %v622
    %v843 = vadd.f32 %v739, %v671
    %v844 = vadd.f32 %v740, %v720
    %v845 = vadd.f32 %v733, %v380
    %v846 = vadd.f32 %v734, %v429
    %v847 = vadd.f32 %v735, %v478
    %v848 = vadd.f32 %v736, %v527
    %v849 = vadd.f32 %v737, %v576
    %v850 = vadd.f32 %v738, %v625
    %v851 = vadd.f32 %v739, %v674
    %v852 = vadd.f32 %v740, %v723
    %v853 = vadd.f32 %v733, %v382
    %v854 = vadd.f32 %v734, %v431
    %v855 = vadd.f32 %v735, %v480
    %v856 = vadd.f32 %v736, %v529
    %v857 = vadd.f32 %v737, %v578
    %v858 = vadd.f32 %v738, %v627
    %v859 = vadd.f32 %v739, %v676
    %v860 = vadd.f32 %v740, %v725
    %v861 = vadd.f32 %v733, %v385
    %v862 = vadd.f32 %v734, %v434
    %v863 = vadd.f32 %v735, %v483
    %v864 = vadd.f32 %v736, %v532
    %v865 = vadd.f32 %v737, %v581
    %v866 = vadd.f32 %v738, %v630
    %v867 = vadd.f32 %v739, %v679
    %v868 = vadd.f32 %v740, %v728
    %v869 = vadd.f32 %v733, %v387
    %v870 = vadd.f32 %v734, %v436
    %v871 = vadd.f32 %v735, %v485
    %v872 = vadd.f32 %v736, %v534
    %v873 = vadd.f32 %v737, %v583
    %v874 = vadd.f32 %v738, %v632
    %v875 = vadd.f32 %v739, %v681
    %v876 = vadd.f32 %v740, %v730
    %877 = vst [vmem:[#allocation2] sm:$0xff] %v749
    %878 = vst [vmem:[#allocation2 + $0x8] sm:$0xff] %v750
    %879 = vst [vmem:[#allocation2 + $0x10] sm:$0xff] %v751
    %880 = vst [vmem:[#allocation2 + $0x18] sm:$0xff] %v752
    %881 = vst [vmem:[#allocation2 + $0x20] sm:$0xff] %v753
    %882 = vst [vmem:[#allocation2 + $0x28] sm:$0xff] %v754
    %883 = vst [vmem:[#allocation2 + $0x30] sm:$0xff] %v755
    %884 = vst [vmem:[#allocation2 + $0x38] sm:$0xff] %v756
    %885 = vst [vmem:[#allocation2 + $0x40] sm:$0xff] %v757
    %886 = vst [vmem:[#allocation2 + $0x48] sm:$0xff] %v758
    %887 = vst [vmem:[#allocation2 + $0x50] sm:$0xff] %v759
    %888 = vst [vmem:[#allocation2 + $0x58] sm:$0xff] %v760
    %889 = vst [vmem:[#allocation2 + $0x60] sm:$0xff] %v761
    %890 = vst [vmem:[#allocation2 + $0x68] sm:$0xff] %v762
    %891 = vst [vmem:[#allocation2 + $0x70] sm:$0xff] %v763
    %892 = vst [vmem:[#allocation2 + $0x78] sm:$0xff] %v764
    %893 = vst [vmem:[#allocation2 + $0x80] sm:$0xff] %v765
    %894 = vst [vmem:[#allocation2 + $0x88] sm:$0xff] %v766
    %895 = vst [vmem:[#allocation2 + $0x90] sm:$0xff] %v767
    %896 = vst [vmem:[#allocation2 + $0x98] sm:$0xff] %v768
    %897 = vst [vmem:[#allocation2 + $0xa0] sm:$0xff] %v769
    %898 = vst [vmem:[#allocation2 + $0xa8] sm:$0xff] %v770
    %899 = vst [vmem:[#allocation2 + $0xb0] sm:$0xff] %v771
    %900 = vst [vmem:[#allocation2 + $0xb8] sm:$0xff] %v772
    %901 = vst [vmem:[#allocation2 + $0xc0] sm:$0xff] %v773
    %902 = vst [vmem:[#allocation2 + $0xc8] sm:$0xff] %v774
    %903 = vst [vmem:[#allocation2 + $0xd0] sm:$0xff] %v775
    %904 = vst [vmem:[#allocation2 + $0xd8] sm:$0xff] %v776
    %905 = vst [vmem:[#allocation2 + $0xe0] sm:$0xff] %v777
    %906 = vst [vmem:[#allocation2 + $0xe8] sm:$0xff] %v778
    %907 = vst [vmem:[#allocation2 + $0xf0] sm:$0xff] %v779
    %908 = vst [vmem:[#allocation2 + $0xf8] sm:$0xff] %v780
    %909 = vst [vmem:[#allocation2 + $0x100] sm:$0xff] %v781
    %910 = vst [vmem:[#allocation2 + $0x108] sm:$0xff] %v782
    %911 = vst [vmem:[#allocation2 + $0x110] sm:$0xff] %v783
    %912 = vst [vmem:[#allocation2 + $0x118] sm:$0xff] %v784
    %913 = vst [vmem:[#allocation2 + $0x120] sm:$0xff] %v785
    %914 = vst [vmem:[#allocation2 + $0x128] sm:$0xff] %v786
    %915 = vst [vmem:[#allocation2 + $0x130] sm:$0xff] %v787
    %916 = vst [vmem:[#allocation2 + $0x138] sm:$0xff] %v788
    %917 = vst [vmem:[#allocation2 + $0x140] sm:$0xff] %v789
    %918 = vst [vmem:[#allocation2 + $0x148] sm:$0xff] %v790
    %919 = vst [vmem:[#allocation2 + $0x150] sm:$0xff] %v791
    %920 = vst [vmem:[#allocation2 + $0x158] sm:$0xff] %v792
    %921 = vst [vmem:[#allocation2 + $0x160] sm:$0xff] %v793
    %922 = vst [vmem:[#allocation2 + $0x168] sm:$0xff] %v794
    %923 = vst [vmem:[#allocation2 + $0x170] sm:$0xff] %v795
    %924 = vst [vmem:[#allocation2 + $0x178] sm:$0xff] %v796
    %925 = vst [vmem:[#allocation2 + $0x180] sm:$0xff] %v797
    %926 = vst [vmem:[#allocation2 + $0x188] sm:$0xff] %v798
    %927 = vst [vmem:[#allocation2 + $0x190] sm:$0xff] %v799
    %928 = vst [vmem:[#allocation2 + $0x198] sm:$0xff] %v800
    %929 = vst [vmem:[#allocation2 + $0x1a0] sm:$0xff] %v801
    %930 = vst [vmem:[#allocation2 + $0x1a8] sm:$0xff] %v802
    %931 = vst [vmem:[#allocation2 + $0x1b0] sm:$0xff] %v803
    %932 = vst [vmem:[#allocation2 + $0x1b8] sm:$0xff] %v804
    %933 = vst [vmem:[#allocation2 + $0x1c0] sm:$0xff] %v805
    %934 = vst [vmem:[#allocation2 + $0x1c8] sm:$0xff] %v806
    %935 = vst [vmem:[#allocation2 + $0x1d0] sm:$0xff] %v807
    %936 = vst [vmem:[#allocation2 + $0x1d8] sm:$0xff] %v808
    %937 = vst [vmem:[#allocation2 + $0x1e0] sm:$0xff] %v809
    %938 = vst [vmem:[#allocation2 + $0x1e8] sm:$0xff] %v810
    %939 = vst [vmem:[#allocation2 + $0x1f0] sm:$0xff] %v811
    %940 = vst [vmem:[#allocation2 + $0x1f8] sm:$0xff] %v812
    %941 = vst [vmem:[#allocation2 + $0x200] sm:$0xff] %v813
    %942 = vst [vmem:[#allocation2 + $0x208] sm:$0xff] %v814
    %943 = vst [vmem:[#allocation2 + $0x210] sm:$0xff] %v815
    %944 = vst [vmem:[#allocation2 + $0x218] sm:$0xff] %v816
    %945 = vst [vmem:[#allocation2 + $0x220] sm:$0xff] %v817
    %946 = vst [vmem:[#allocation2 + $0x228] sm:$0xff] %v818
    %947 = vst [vmem:[#allocation2 + $0x230] sm:$0xff] %v819
    %948 = vst [vmem:[#allocation2 + $0x238] sm:$0xff] %v820
    %949 = vst [vmem:[#allocation2 + $0x240] sm:$0xff] %v821
    %950 = vst [vmem:[#allocation2 + $0x248] sm:$0xff] %v822
    %951 = vst [vmem:[#allocation2 + $0x250] sm:$0xff] %v823
    %952 = vst [vmem:[#allocation2 + $0x258] sm:$0xff] %v824
    %953 = vst [vmem:[#allocation2 + $0x260] sm:$0xff] %v825
    %954 = vst [vmem:[#allocation2 + $0x268] sm:$0xff] %v826
    %955 = vst [vmem:[#allocation2 + $0x270] sm:$0xff] %v827
    %956 = vst [vmem:[#allocation2 + $0x278] sm:$0xff] %v828
    %957 = vst [vmem:[#allocation2 + $0x280] sm:$0xff] %v829
    %958 = vst [vmem:[#allocation2 + $0x288] sm:$0xff] %v830
    %959 = vst [vmem:[#allocation2 + $0x290] sm:$0xff] %v831
    %960 = vst [vmem:[#allocation2 + $0x298] sm:$0xff] %v832
    %961 = vst [vmem:[#allocation2 + $0x2a0] sm:$0xff] %v833
    %962 = vst [vmem:[#allocation2 + $0x2a8] sm:$0xff] %v834
    %963 = vst [vmem:[#allocation2 + $0x2b0] sm:$0xff] %v835
    %964 = vst [vmem:[#allocation2 + $0x2b8] sm:$0xff] %v836
    %965 = vst [vmem:[#allocation2 + $0x2c0] sm:$0xff] %v837
    %966 = vst [vmem:[#allocation2 + $0x2c8] sm:$0xff] %v838
    %967 = vst [vmem:[#allocation2 + $0x2d0] sm:$0xff] %v839
    %968 = vst [vmem:[#allocation2 + $0x2d8] sm:$0xff] %v840
    %969 = vst [vmem:[#allocation2 + $0x2e0] sm:$0xff] %v841
    %970 = vst [vmem:[#allocation2 + $0x2e8] sm:$0xff] %v842
    %971 = vst [vmem:[#allocation2 + $0x2f0] sm:$0xff] %v843
    %972 = vst [vmem:[#allocation2 + $0x2f8] sm:$0xff] %v844
    %973 = vst [vmem:[#allocation2 + $0x300] sm:$0xff] %v845
    %974 = vst [vmem:[#allocation2 + $0x308] sm:$0xff] %v846
    %975 = vst [vmem:[#allocation2 + $0x310] sm:$0xff] %v847
    %976 = vst [vmem:[#allocation2 + $0x318] sm:$0xff] %v848
    %977 = vst [vmem:[#allocation2 + $0x320] sm:$0xff] %v849
    %978 = vst [vmem:[#allocation2 + $0x328] sm:$0xff] %v850
    %979 = vst [vmem:[#allocation2 + $0x330] sm:$0xff] %v851
    %980 = vst [vmem:[#allocation2 + $0x338] sm:$0xff] %v852
    %981 = vst [vmem:[#allocation2 + $0x340] sm:$0xff] %v853
    %982 = vst [vmem:[#allocation2 + $0x348] sm:$0xff] %v854
    %983 = vst [vmem:[#allocation2 + $0x350] sm:$0xff] %v855
    %984 = vst [vmem:[#allocation2 + $0x358] sm:$0xff] %v856
    %985 = vst [vmem:[#allocation2 + $0x360] sm:$0xff] %v857
    %986 = vst [vmem:[#allocation2 + $0x368] sm:$0xff] %v858
    %987 = vst [vmem:[#allocation2 + $0x370] sm:$0xff] %v859
    %988 = vst [vmem:[#allocation2 + $0x378] sm:$0xff] %v860
    %989 = vst [vmem:[#allocation2 + $0x380] sm:$0xff] %v861
    %990 = vst [vmem:[#allocation2 + $0x388] sm:$0xff] %v862
    %991 = vst [vmem:[#allocation2 + $0x390] sm:$0xff] %v863
    %992 = vst [vmem:[#allocation2 + $0x398] sm:$0xff] %v864
    %993 = vst [vmem:[#allocation2 + $0x3a0] sm:$0xff] %v865
    %994 = vst [vmem:[#allocation2 + $0x3a8] sm:$0xff] %v866
    %995 = vst [vmem:[#allocation2 + $0x3b0] sm:$0xff] %v867
    %996 = vst [vmem:[#allocation2 + $0x3b8] sm:$0xff] %v868
    %997 = vst [vmem:[#allocation2 + $0x3c0] sm:$0xff] %v869
    %998 = vst [vmem:[#allocation2 + $0x3c8] sm:$0xff] %v870
    %999 = vst [vmem:[#allocation2 + $0x3d0] sm:$0xff] %v871
    %1000 = vst [vmem:[#allocation2 + $0x3d8] sm:$0xff] %v872
    %1001 = vst [vmem:[#allocation2 + $0x3e0] sm:$0xff] %v873
    %1002 = vst [vmem:[#allocation2 + $0x3e8] sm:$0xff] %v874
    %1003 = vst [vmem:[#allocation2 + $0x3f0] sm:$0xff] %v875
    %1004 = vst [vmem:[#allocation2 + $0x3f8] sm:$0xff] %v876
    %v1005 = vpack.c.bf16 0.0, 0.0
    %v1134 = vunpack.c.l.b16 %v66
    %v1135 = vunpack.c.h.b16 %v66
    %v1136 = vunpack.c.l.b16 %v67
    %v1137 = vunpack.c.h.b16 %v67
    %v1138 = vunpack.c.l.b16 %v68
    %v1139 = vunpack.c.h.b16 %v68
    %v1140 = vunpack.c.l.b16 %v69
    %v1141 = vunpack.c.h.b16 %v69
    %v1142 = vunpack.c.l.b16 %v70
    %v1143 = vunpack.c.h.b16 %v70
    %v1144 = vunpack.c.l.b16 %v71
    %v1145 = vunpack.c.h.b16 %v71
    %v1146 = vunpack.c.l.b16 %v72
    %v1147 = vunpack.c.h.b16 %v72
    %v1148 = vunpack.c.l.b16 %v73
    %v1149 = vunpack.c.h.b16 %v73
    %v1150 = vunpack.c.l.b16 %v74
    %v1151 = vunpack.c.h.b16 %v74
    %v1152 = vunpack.c.l.b16 %v75
    %v1153 = vunpack.c.h.b16 %v75
    %v1154 = vunpack.c.l.b16 %v76
    %v1155 = vunpack.c.h.b16 %v76
    %v1156 = vunpack.c.l.b16 %v77
    %v1157 = vunpack.c.h.b16 %v77
    %v1158 = vunpack.c.l.b16 %v78
    %v1159 = vunpack.c.h.b16 %v78
    %v1160 = vunpack.c.l.b16 %v79
    %v1161 = vunpack.c.h.b16 %v79
    %v1162 = vunpack.c.l.b16 %v80
    %v1163 = vunpack.c.h.b16 %v80
    %v1164 = vunpack.c.l.b16 %v81
    %v1165 = vunpack.c.h.b16 %v81
    %v1166 = vunpack.c.l.b16 %v82
    %v1167 = vunpack.c.h.b16 %v82
    %v1168 = vunpack.c.l.b16 %v83
    %v1169 = vunpack.c.h.b16 %v83
    %v1170 = vunpack.c.l.b16 %v84
    %v1171 = vunpack.c.h.b16 %v84
    %v1172 = vunpack.c.l.b16 %v85
    %v1173 = vunpack.c.h.b16 %v85
    %v1174 = vunpack.c.l.b16 %v86
    %v1175 = vunpack.c.h.b16 %v86
    %v1176 = vunpack.c.l.b16 %v87
    %v1177 = vunpack.c.h.b16 %v87
    %v1178 = vunpack.c.l.b16 %v88
    %v1179 = vunpack.c.h.b16 %v88
    %v1180 = vunpack.c.l.b16 %v89
    %v1181 = vunpack.c.h.b16 %v89
    %v1182 = vunpack.c.l.b16 %v90
    %v1183 = vunpack.c.h.b16 %v90
    %v1184 = vunpack.c.l.b16 %v91
    %v1185 = vunpack.c.h.b16 %v91
    %v1186 = vunpack.c.l.b16 %v92
    %v1187 = vunpack.c.h.b16 %v92
    %v1188 = vunpack.c.l.b16 %v93
    %v1189 = vunpack.c.h.b16 %v93
    %v1190 = vunpack.c.l.b16 %v94
    %v1191 = vunpack.c.h.b16 %v94
    %v1192 = vunpack.c.l.b16 %v95
    %v1193 = vunpack.c.h.b16 %v95
    %v1194 = vunpack.c.l.b16 %v96
    %v1195 = vunpack.c.h.b16 %v96
    %v1196 = vunpack.c.l.b16 %v97
    %v1197 = vunpack.c.h.b16 %v97
    %v1198 = vunpack.c.l.b16 %v98
    %v1199 = vunpack.c.h.b16 %v98
    %v1200 = vunpack.c.l.b16 %v99
    %v1201 = vunpack.c.h.b16 %v99
    %v1202 = vunpack.c.l.b16 %v100
    %v1203 = vunpack.c.h.b16 %v100
    %v1204 = vunpack.c.l.b16 %v101
    %v1205 = vunpack.c.h.b16 %v101
    %v1206 = vunpack.c.l.b16 %v102
    %v1207 = vunpack.c.h.b16 %v102
    %v1208 = vunpack.c.l.b16 %v103
    %v1209 = vunpack.c.h.b16 %v103
    %v1210 = vunpack.c.l.b16 %v104
    %v1211 = vunpack.c.h.b16 %v104
    %v1212 = vunpack.c.l.b16 %v105
    %v1213 = vunpack.c.h.b16 %v105
    %v1214 = vunpack.c.l.b16 %v106
    %v1215 = vunpack.c.h.b16 %v106
    %v1216 = vunpack.c.l.b16 %v107
    %v1217 = vunpack.c.h.b16 %v107
    %v1218 = vunpack.c.l.b16 %v108
    %v1219 = vunpack.c.h.b16 %v108
    %v1220 = vunpack.c.l.b16 %v109
    %v1221 = vunpack.c.h.b16 %v109
    %v1222 = vunpack.c.l.b16 %v110
    %v1223 = vunpack.c.h.b16 %v110
    %v1224 = vunpack.c.l.b16 %v111
    %v1225 = vunpack.c.h.b16 %v111
    %v1226 = vunpack.c.l.b16 %v112
    %v1227 = vunpack.c.h.b16 %v112
    %v1228 = vunpack.c.l.b16 %v113
    %v1229 = vunpack.c.h.b16 %v113
    %v1230 = vunpack.c.l.b16 %v114
    %v1231 = vunpack.c.h.b16 %v114
    %v1232 = vunpack.c.l.b16 %v115
    %v1233 = vunpack.c.h.b16 %v115
    %v1234 = vunpack.c.l.b16 %v116
    %v1235 = vunpack.c.h.b16 %v116
    %v1236 = vunpack.c.l.b16 %v117
    %v1237 = vunpack.c.h.b16 %v117
    %v1238 = vunpack.c.l.b16 %v118
    %v1239 = vunpack.c.h.b16 %v118
    %v1240 = vunpack.c.l.b16 %v119
    %v1241 = vunpack.c.h.b16 %v119
    %v1242 = vunpack.c.l.b16 %v120
    %v1243 = vunpack.c.h.b16 %v120
    %v1244 = vunpack.c.l.b16 %v121
    %v1245 = vunpack.c.h.b16 %v121
    %v1246 = vunpack.c.l.b16 %v122
    %v1247 = vunpack.c.h.b16 %v122
    %v1248 = vunpack.c.l.b16 %v123
    %v1249 = vunpack.c.h.b16 %v123
    %v1250 = vunpack.c.l.b16 %v124
    %v1251 = vunpack.c.h.b16 %v124
    %v1252 = vunpack.c.l.b16 %v125
    %v1253 = vunpack.c.h.b16 %v125
    %v1254 = vunpack.c.l.b16 %v126
    %v1255 = vunpack.c.h.b16 %v126
    %v1256 = vunpack.c.l.b16 %v127
    %v1257 = vunpack.c.h.b16 %v127
    %v1258 = vunpack.c.l.b16 %v128
    %v1259 = vunpack.c.h.b16 %v128
    %v1260 = vunpack.c.l.b16 %v129
    %v1261 = vunpack.c.h.b16 %v129
    %v1262 = vunpack.c.l.b16 %v130
    %v1263 = vunpack.c.h.b16 %v130
    %v1264 = vunpack.c.l.b16 %v131
    %v1265 = vunpack.c.h.b16 %v131
    %v1266 = vunpack.c.l.b16 %v132
    %v1267 = vunpack.c.h.b16 %v132
    %v1268 = vunpack.c.l.b16 %v133
    %v1269 = vunpack.c.h.b16 %v133
    %v1270 = vunpack.c.l.b16 %v134
    %v1271 = vunpack.c.h.b16 %v134
    %v1272 = vunpack.c.l.b16 %v135
    %v1273 = vunpack.c.h.b16 %v135
    %v1274 = vunpack.c.l.b16 %v136
    %v1275 = vunpack.c.h.b16 %v136
    %v1276 = vunpack.c.l.b16 %v137
    %v1277 = vunpack.c.h.b16 %v137
    %v1278 = vunpack.c.l.b16 %v138
    %v1279 = vunpack.c.h.b16 %v138
    %v1280 = vunpack.c.l.b16 %v139
    %v1281 = vunpack.c.h.b16 %v139
    %v1282 = vunpack.c.l.b16 %v140
    %v1283 = vunpack.c.h.b16 %v140
    %v1284 = vunpack.c.l.b16 %v141
    %v1285 = vunpack.c.h.b16 %v141
    %v1286 = vunpack.c.l.b16 %v142
    %v1287 = vunpack.c.h.b16 %v142
    %v1288 = vunpack.c.l.b16 %v143
    %v1289 = vunpack.c.h.b16 %v143
    %v1290 = vunpack.c.l.b16 %v144
    %v1291 = vunpack.c.h.b16 %v144
    %v1292 = vunpack.c.l.b16 %v145
    %v1293 = vunpack.c.h.b16 %v145
    %v1294 = vunpack.c.l.b16 %v146
    %v1295 = vunpack.c.h.b16 %v146
    %v1296 = vunpack.c.l.b16 %v147
    %v1297 = vunpack.c.h.b16 %v147
    %v1298 = vunpack.c.l.b16 %v148
    %v1299 = vunpack.c.h.b16 %v148
    %v1300 = vunpack.c.l.b16 %v149
    %v1301 = vunpack.c.h.b16 %v149
    %v1302 = vunpack.c.l.b16 %v150
    %v1303 = vunpack.c.h.b16 %v150
    %v1304 = vunpack.c.l.b16 %v151
    %v1305 = vunpack.c.h.b16 %v151
    %v1306 = vunpack.c.l.b16 %v152
    %v1307 = vunpack.c.h.b16 %v152
    %v1308 = vunpack.c.l.b16 %v153
    %v1309 = vunpack.c.h.b16 %v153
    %v1310 = vunpack.c.l.b16 %v154
    %v1311 = vunpack.c.h.b16 %v154
    %v1312 = vunpack.c.l.b16 %v155
    %v1313 = vunpack.c.h.b16 %v155
    %v1314 = vunpack.c.l.b16 %v156
    %v1315 = vunpack.c.h.b16 %v156
    %v1316 = vunpack.c.l.b16 %v157
    %v1317 = vunpack.c.h.b16 %v157
    %v1318 = vunpack.c.l.b16 %v158
    %v1319 = vunpack.c.h.b16 %v158
    %v1320 = vunpack.c.l.b16 %v159
    %v1321 = vunpack.c.h.b16 %v159
    %v1322 = vunpack.c.l.b16 %v160
    %v1323 = vunpack.c.h.b16 %v160
    %v1324 = vunpack.c.l.b16 %v161
    %v1325 = vunpack.c.h.b16 %v161
    %v1326 = vunpack.c.l.b16 %v162
    %v1327 = vunpack.c.h.b16 %v162
    %v1328 = vunpack.c.l.b16 %v163
    %v1329 = vunpack.c.h.b16 %v163
    %v1330 = vunpack.c.l.b16 %v164
    %v1331 = vunpack.c.h.b16 %v164
    %v1332 = vunpack.c.l.b16 %v165
    %v1333 = vunpack.c.h.b16 %v165
    %v1334 = vunpack.c.l.b16 %v166
    %v1335 = vunpack.c.h.b16 %v166
    %v1336 = vunpack.c.l.b16 %v167
    %v1337 = vunpack.c.h.b16 %v167
    %v1338 = vunpack.c.l.b16 %v168
    %v1339 = vunpack.c.h.b16 %v168
    %v1340 = vunpack.c.l.b16 %v169
    %v1341 = vunpack.c.h.b16 %v169
    %v1342 = vunpack.c.l.b16 %v170
    %v1343 = vunpack.c.h.b16 %v170
    %v1344 = vunpack.c.l.b16 %v171
    %v1345 = vunpack.c.h.b16 %v171
    %v1346 = vunpack.c.l.b16 %v172
    %v1347 = vunpack.c.h.b16 %v172
    %v1348 = vunpack.c.l.b16 %v173
    %v1349 = vunpack.c.h.b16 %v173
    %v1350 = vunpack.c.l.b16 %v174
    %v1351 = vunpack.c.h.b16 %v174
    %v1352 = vunpack.c.l.b16 %v175
    %v1353 = vunpack.c.h.b16 %v175
    %v1354 = vunpack.c.l.b16 %v176
    %v1355 = vunpack.c.h.b16 %v176
    %v1356 = vunpack.c.l.b16 %v177
    %v1357 = vunpack.c.h.b16 %v177
    %v1358 = vunpack.c.l.b16 %v178
    %v1359 = vunpack.c.h.b16 %v178
    %v1360 = vunpack.c.l.b16 %v179
    %v1361 = vunpack.c.h.b16 %v179
    %v1362 = vunpack.c.l.b16 %v180
    %v1363 = vunpack.c.h.b16 %v180
    %v1364 = vunpack.c.l.b16 %v181
    %v1365 = vunpack.c.h.b16 %v181
    %v1366 = vunpack.c.l.b16 %v182
    %v1367 = vunpack.c.h.b16 %v182
    %v1368 = vunpack.c.l.b16 %v183
    %v1369 = vunpack.c.h.b16 %v183
    %v1370 = vunpack.c.l.b16 %v184
    %v1371 = vunpack.c.h.b16 %v184
    %v1372 = vunpack.c.l.b16 %v185
    %v1373 = vunpack.c.h.b16 %v185
    %v1374 = vunpack.c.l.b16 %v186
    %v1375 = vunpack.c.h.b16 %v186
    %v1376 = vunpack.c.l.b16 %v187
    %v1377 = vunpack.c.h.b16 %v187
    %v1378 = vunpack.c.l.b16 %v188
    %v1379 = vunpack.c.h.b16 %v188
    %v1380 = vunpack.c.l.b16 %v189
    %v1381 = vunpack.c.h.b16 %v189
    %v1382 = vunpack.c.l.b16 %v190
    %v1383 = vunpack.c.h.b16 %v190
    %v1384 = vunpack.c.l.b16 %v191
    %v1385 = vunpack.c.h.b16 %v191
    %v1386 = vunpack.c.l.b16 %v192
    %v1387 = vunpack.c.h.b16 %v192
    %v1388 = vunpack.c.l.b16 %v193
    %v1389 = vunpack.c.h.b16 %v193
    %v1390 = vpack.c.b16 %v1142, %v1134
    %v1391 = vpack.c.b16 %v1143, %v1135
    %v1392 = vpack.c.b16 %v1144, %v1136
    %v1393 = vpack.c.b16 %v1145, %v1137
    %v1394 = vpack.c.b16 %v1146, %v1138
    %v1395 = vpack.c.b16 %v1147, %v1139
    %v1396 = vpack.c.b16 %v1148, %v1140
    %v1397 = vpack.c.b16 %v1149, %v1141
    %v1398 = vpack.c.b16 %v1158, %v1150
    %v1399 = vpack.c.b16 %v1159, %v1151
    %v1400 = vpack.c.b16 %v1160, %v1152
    %v1401 = vpack.c.b16 %v1161, %v1153
    %v1402 = vpack.c.b16 %v1162, %v1154
    %v1403 = vpack.c.b16 %v1163, %v1155
    %v1404 = vpack.c.b16 %v1164, %v1156
    %v1405 = vpack.c.b16 %v1165, %v1157
    %v1406 = vpack.c.b16 %v1174, %v1166
    %v1407 = vpack.c.b16 %v1175, %v1167
    %v1408 = vpack.c.b16 %v1176, %v1168
    %v1409 = vpack.c.b16 %v1177, %v1169
    %v1410 = vpack.c.b16 %v1178, %v1170
    %v1411 = vpack.c.b16 %v1179, %v1171
    %v1412 = vpack.c.b16 %v1180, %v1172
    %v1413 = vpack.c.b16 %v1181, %v1173
    %v1414 = vpack.c.b16 %v1190, %v1182
    %v1415 = vpack.c.b16 %v1191, %v1183
    %v1416 = vpack.c.b16 %v1192, %v1184
    %v1417 = vpack.c.b16 %v1193, %v1185
    %v1418 = vpack.c.b16 %v1194, %v1186
    %v1419 = vpack.c.b16 %v1195, %v1187
    %v1420 = vpack.c.b16 %v1196, %v1188
    %v1421 = vpack.c.b16 %v1197, %v1189
    %v1422 = vpack.c.b16 %v1206, %v1198
    %v1423 = vpack.c.b16 %v1207, %v1199
    %v1424 = vpack.c.b16 %v1208, %v1200
    %v1425 = vpack.c.b16 %v1209, %v1201
    %v1426 = vpack.c.b16 %v1210, %v1202
    %v1427 = vpack.c.b16 %v1211, %v1203
    %v1428 = vpack.c.b16 %v1212, %v1204
    %v1429 = vpack.c.b16 %v1213, %v1205
    %v1430 = vpack.c.b16 %v1222, %v1214
    %v1431 = vpack.c.b16 %v1223, %v1215
    %v1432 = vpack.c.b16 %v1224, %v1216
    %v1433 = vpack.c.b16 %v1225, %v1217
    %v1434 = vpack.c.b16 %v1226, %v1218
    %v1435 = vpack.c.b16 %v1227, %v1219
    %v1436 = vpack.c.b16 %v1228, %v1220
    %v1437 = vpack.c.b16 %v1229, %v1221
    %v1438 = vpack.c.b16 %v1238, %v1230
    %v1439 = vpack.c.b16 %v1239, %v1231
    %v1440 = vpack.c.b16 %v1240, %v1232
    %v1441 = vpack.c.b16 %v1241, %v1233
    %v1442 = vpack.c.b16 %v1242, %v1234
    %v1443 = vpack.c.b16 %v1243, %v1235
    %v1444 = vpack.c.b16 %v1244, %v1236
    %v1445 = vpack.c.b16 %v1245, %v1237
    %v1446 = vpack.c.b16 %v1254, %v1246
    %v1447 = vpack.c.b16 %v1255, %v1247
    %v1448 = vpack.c.b16 %v1256, %v1248
    %v1449 = vpack.c.b16 %v1257, %v1249
    %v1450 = vpack.c.b16 %v1258, %v1250
    %v1451 = vpack.c.b16 %v1259, %v1251
    %v1452 = vpack.c.b16 %v1260, %v1252
    %v1453 = vpack.c.b16 %v1261, %v1253
    %v1454 = vpack.c.b16 %v1270, %v1262
    %v1455 = vpack.c.b16 %v1271, %v1263
    %v1456 = vpack.c.b16 %v1272, %v1264
    %v1457 = vpack.c.b16 %v1273, %v1265
    %v1458 = vpack.c.b16 %v1274, %v1266
    %v1459 = vpack.c.b16 %v1275, %v1267
    %v1460 = vpack.c.b16 %v1276, %v1268
    %v1461 = vpack.c.b16 %v1277, %v1269
    %v1462 = vpack.c.b16 %v1286, %v1278
    %v1463 = vpack.c.b16 %v1287, %v1279
    %v1464 = vpack.c.b16 %v1288, %v1280
    %v1465 = vpack.c.b16 %v1289, %v1281
    %v1466 = vpack.c.b16 %v1290, %v1282
    %v1467 = vpack.c.b16 %v1291, %v1283
    %v1468 = vpack.c.b16 %v1292, %v1284
    %v1469 = vpack.c.b16 %v1293, %v1285
    %v1470 = vpack.c.b16 %v1302, %v1294
    %v1471 = vpack.c.b16 %v1303, %v1295
    %v1472 = vpack.c.b16 %v1304, %v1296
    %v1473 = vpack.c.b16 %v1305, %v1297
    %v1474 = vpack.c.b16 %v1306, %v1298
    %v1475 = vpack.c.b16 %v1307, %v1299
    %v1476 = vpack.c.b16 %v1308, %v1300
    %v1477 = vpack.c.b16 %v1309, %v1301
    %v1478 = vpack.c.b16 %v1318, %v1310
    %v1479 = vpack.c.b16 %v1319, %v1311
    %v1480 = vpack.c.b16 %v1320, %v1312
    %v1481 = vpack.c.b16 %v1321, %v1313
    %v1482 = vpack.c.b16 %v1322, %v1314
    %v1483 = vpack.c.b16 %v1323, %v1315
    %v1484 = vpack.c.b16 %v1324, %v1316
    %v1485 = vpack.c.b16 %v1325, %v1317
    %v1486 = vpack.c.b16 %v1334, %v1326
    %v1487 = vpack.c.b16 %v1335, %v1327
    %v1488 = vpack.c.b16 %v1336, %v1328
    %v1489 = vpack.c.b16 %v1337, %v1329
    %v1490 = vpack.c.b16 %v1338, %v1330
    %v1491 = vpack.c.b16 %v1339, %v1331
    %v1492 = vpack.c.b16 %v1340, %v1332
    %v1493 = vpack.c.b16 %v1341, %v1333
    %v1494 = vpack.c.b16 %v1350, %v1342
    %v1495 = vpack.c.b16 %v1351, %v1343
    %v1496 = vpack.c.b16 %v1352, %v1344
    %v1497 = vpack.c.b16 %v1353, %v1345
    %v1498 = vpack.c.b16 %v1354, %v1346
    %v1499 = vpack.c.b16 %v1355, %v1347
    %v1500 = vpack.c.b16 %v1356, %v1348
    %v1501 = vpack.c.b16 %v1357, %v1349
    %v1502 = vpack.c.b16 %v1366, %v1358
    %v1503 = vpack.c.b16 %v1367, %v1359
    %v1504 = vpack.c.b16 %v1368, %v1360
    %v1505 = vpack.c.b16 %v1369, %v1361
    %v1506 = vpack.c.b16 %v1370, %v1362
    %v1507 = vpack.c.b16 %v1371, %v1363
    %v1508 = vpack.c.b16 %v1372, %v1364
    %v1509 = vpack.c.b16 %v1373, %v1365
    %v1510 = vpack.c.b16 %v1382, %v1374
    %v1511 = vpack.c.b16 %v1383, %v1375
    %v1512 = vpack.c.b16 %v1384, %v1376
    %v1513 = vpack.c.b16 %v1385, %v1377
    %v1514 = vpack.c.b16 %v1386, %v1378
    %v1515 = vpack.c.b16 %v1387, %v1379
    %v1516 = vpack.c.b16 %v1388, %v1380
    %v1517 = vpack.c.b16 %v1389, %v1381
    %1646 = vmatpush.bf16.msra.mxu0 %v1446
    %1647 = vmatpush.bf16.msra.mxu0 %v1438
    %1648 = vmatpush.bf16.msra.mxu0 %v1430
    %1649 = vmatpush.bf16.msra.mxu0 %v1422
    %1650 = vmatpush.bf16.msra.mxu0 %v1414
    %1651 = vmatpush.bf16.msra.mxu0 %v1406
    %1652 = vmatpush.bf16.msra.mxu0 %v1398
    %1653 = vmatpush.bf16.msra.mxu0 %v1390
    %1654 = vmatmul.bf16.gmra.mxu0 %v1005
    %v1655 = vpop.f32.mrf.mxu0
    %v1656 = vadd.f32 0.0, %v1655
    %v1657 = vpop.f32.mrf.mxu0
    %v1658 = vadd.f32 0.0, %v1657
    %1659 = vdwg.mxu0
    %1660 = vmatpush.bf16.msra.mxu0 %v1510
    %1661 = vmatpush.bf16.msra.mxu0 %v1502
    %1662 = vmatpush.bf16.msra.mxu0 %v1494
    %1663 = vmatpush.bf16.msra.mxu0 %v1486
    %1664 = vmatpush.bf16.msra.mxu0 %v1478
    %1665 = vmatpush.bf16.msra.mxu0 %v1470
    %1666 = vmatpush.bf16.msra.mxu0 %v1462
    %1667 = vmatpush.bf16.msra.mxu0 %v1454
    %1668 = vmatmul.bf16.gmra.mxu0 %v1005
    %v1669 = vpop.f32.mrf.mxu0
    %v1670 = vadd.f32 %v1656, %v1669
    %v1671 = vpop.f32.mrf.mxu0
    %v1672 = vadd.f32 %v1658, %v1671
    %1673 = vdwg.mxu0
    %1674 = vmatpush.bf16.msra.mxu0 %v1447
    %1675 = vmatpush.bf16.msra.mxu0 %v1439
    %1676 = vmatpush.bf16.msra.mxu0 %v1431
    %1677 = vmatpush.bf16.msra.mxu0 %v1423
    %1678 = vmatpush.bf16.msra.mxu0 %v1415
    %1679 = vmatpush.bf16.msra.mxu0 %v1407
    %1680 = vmatpush.bf16.msra.mxu0 %v1399
    %1681 = vmatpush.bf16.msra.mxu0 %v1391
    %1682 = vmatmul.bf16.gmra.mxu0 %v1005
    %v1683 = vpop.f32.mrf.mxu0
    %v1684 = vadd.f32 0.0, %v1683
    %v1685 = vpop.f32.mrf.mxu0
    %v1686 = vadd.f32 0.0, %v1685
    %1687 = vdwg.mxu0
    %1688 = vmatpush.bf16.msra.mxu0 %v1511
    %1689 = vmatpush.bf16.msra.mxu0 %v1503
    %1690 = vmatpush.bf16.msra.mxu0 %v1495
    %1691 = vmatpush.bf16.msra.mxu0 %v1487
    %1692 = vmatpush.bf16.msra.mxu0 %v1479
    %1693 = vmatpush.bf16.msra.mxu0 %v1471
    %1694 = vmatpush.bf16.msra.mxu0 %v1463
    %1695 = vmatpush.bf16.msra.mxu0 %v1455
    %1696 = vmatmul.bf16.gmra.mxu0 %v1005
    %v1697 = vpop.f32.mrf.mxu0
    %v1698 = vadd.f32 %v1684, %v1697
    %v1699 = vpop.f32.mrf.mxu0
    %v1700 = vadd.f32 %v1686, %v1699
    %1701 = vdwg.mxu0
    %1702 = vmatpush.bf16.msra.mxu0 %v1448
    %1703 = vmatpush.bf16.msra.mxu0 %v1440
    %1704 = vmatpush.bf16.msra.mxu0 %v1432
    %1705 = vmatpush.bf16.msra.mxu0 %v1424
    %1706 = vmatpush.bf16.msra.mxu0 %v1416
    %1707 = vmatpush.bf16.msra.mxu0 %v1408
    %1708 = vmatpush.bf16.msra.mxu0 %v1400
    %1709 = vmatpush.bf16.msra.mxu0 %v1392
    %1710 = vmatmul.bf16.gmra.mxu0 %v1005
    %v1711 = vpop.f32.mrf.mxu0
    %v1712 = vadd.f32 0.0, %v1711
    %v1713 = vpop.f32.mrf.mxu0
    %v1714 = vadd.f32 0.0, %v1713
    %1715 = vdwg.mxu0
    %1716 = vmatpush.bf16.msra.mxu0 %v1512
    %1717 = vmatpush.bf16.msra.mxu0 %v1504
    %1718 = vmatpush.bf16.msra.mxu0 %v1496
    %1719 = vmatpush.bf16.msra.mxu0 %v1488
    %1720 = vmatpush.bf16.msra.mxu0 %v1480
    %1721 = vmatpush.bf16.msra.mxu0 %v1472
    %1722 = vmatpush.bf16.msra.mxu0 %v1464
    %1723 = vmatpush.bf16.msra.mxu0 %v1456
    %1724 = vmatmul.bf16.gmra.mxu0 %v1005
    %v1725 = vpop.f32.mrf.mxu0
    %v1726 = vadd.f32 %v1712, %v1725
    %v1727 = vpop.f32.mrf.mxu0
    %v1728 = vadd.f32 %v1714, %v1727
    %1729 = vdwg.mxu0
    %1730 = vmatpush.bf16.msra.mxu0 %v1449
    %1731 = vmatpush.bf16.msra.mxu0 %v1441
    %1732 = vmatpush.bf16.msra.mxu0 %v1433
    %1733 = vmatpush.bf16.msra.mxu0 %v1425
    %1734 = vmatpush.bf16.msra.mxu0 %v1417
    %1735 = vmatpush.bf16.msra.mxu0 %v1409
    %1736 = vmatpush.bf16.msra.mxu0 %v1401
    %1737 = vmatpush.bf16.msra.mxu0 %v1393
    %1738 = vmatmul.bf16.gmra.mxu0 %v1005
    %v1739 = vpop.f32.mrf.mxu0
    %v1740 = vadd.f32 0.0, %v1739
    %v1741 = vpop.f32.mrf.mxu0
    %v1742 = vadd.f32 0.0, %v1741
    %1743 = vdwg.mxu0
    %1744 = vmatpush.bf16.msra.mxu0 %v1513
    %1745 = vmatpush.bf16.msra.mxu0 %v1505
    %1746 = vmatpush.bf16.msra.mxu0 %v1497
    %1747 = vmatpush.bf16.msra.mxu0 %v1489
    %1748 = vmatpush.bf16.msra.mxu0 %v1481
    %1749 = vmatpush.bf16.msra.mxu0 %v1473
    %1750 = vmatpush.bf16.msra.mxu0 %v1465
    %1751 = vmatpush.bf16.msra.mxu0 %v1457
    %1752 = vmatmul.bf16.gmra.mxu0 %v1005
    %v1753 = vpop.f32.mrf.mxu0
    %v1754 = vadd.f32 %v1740, %v1753
    %v1755 = vpop.f32.mrf.mxu0
    %v1756 = vadd.f32 %v1742, %v1755
    %1757 = vdwg.mxu0
    %1758 = vmatpush.bf16.msra.mxu0 %v1450
    %1759 = vmatpush.bf16.msra.mxu0 %v1442
    %1760 = vmatpush.bf16.msra.mxu0 %v1434
    %1761 = vmatpush.bf16.msra.mxu0 %v1426
    %1762 = vmatpush.bf16.msra.mxu0 %v1418
    %1763 = vmatpush.bf16.msra.mxu0 %v1410
    %1764 = vmatpush.bf16.msra.mxu0 %v1402
    %1765 = vmatpush.bf16.msra.mxu0 %v1394
    %1766 = vmatmul.bf16.gmra.mxu0 %v1005
    %v1767 = vpop.f32.mrf.mxu0
    %v1768 = vadd.f32 0.0, %v1767
    %v1769 = vpop.f32.mrf.mxu0
    %v1770 = vadd.f32 0.0, %v1769
    %1771 = vdwg.mxu0
    %1772 = vmatpush.bf16.msra.mxu0 %v1514
    %1773 = vmatpush.bf16.msra.mxu0 %v1506
    %1774 = vmatpush.bf16.msra.mxu0 %v1498
    %1775 = vmatpush.bf16.msra.mxu0 %v1490
    %1776 = vmatpush.bf16.msra.mxu0 %v1482
    %1777 = vmatpush.bf16.msra.mxu0 %v1474
    %1778 = vmatpush.bf16.msra.mxu0 %v1466
    %1779 = vmatpush.bf16.msra.mxu0 %v1458
    %1780 = vmatmul.bf16.gmra.mxu0 %v1005
    %v1781 = vpop.f32.mrf.mxu0
    %v1782 = vadd.f32 %v1768, %v1781
    %v1783 = vpop.f32.mrf.mxu0
    %v1784 = vadd.f32 %v1770, %v1783
    %1785 = vdwg.mxu0
    %1786 = vmatpush.bf16.msra.mxu0 %v1451
    %1787 = vmatpush.bf16.msra.mxu0 %v1443
    %1788 = vmatpush.bf16.msra.mxu0 %v1435
    %1789 = vmatpush.bf16.msra.mxu0 %v1427
    %1790 = vmatpush.bf16.msra.mxu0 %v1419
    %1791 = vmatpush.bf16.msra.mxu0 %v1411
    %1792 = vmatpush.bf16.msra.mxu0 %v1403
    %1793 = vmatpush.bf16.msra.mxu0 %v1395
    %1794 = vmatmul.bf16.gmra.mxu0 %v1005
    %v1795 = vpop.f32.mrf.mxu0
    %v1796 = vadd.f32 0.0, %v1795
    %v1797 = vpop.f32.mrf.mxu0
    %v1798 = vadd.f32 0.0, %v1797
    %1799 = vdwg.mxu0
    %1800 = vmatpush.bf16.msra.mxu0 %v1515
    %1801 = vmatpush.bf16.msra.mxu0 %v1507
    %1802 = vmatpush.bf16.msra.mxu0 %v1499
    %1803 = vmatpush.bf16.msra.mxu0 %v1491
    %1804 = vmatpush.bf16.msra.mxu0 %v1483
    %1805 = vmatpush.bf16.msra.mxu0 %v1475
    %1806 = vmatpush.bf16.msra.mxu0 %v1467
    %1807 = vmatpush.bf16.msra.mxu0 %v1459
    %1808 = vmatmul.bf16.gmra.mxu0 %v1005
    %v1809 = vpop.f32.mrf.mxu0
    %v1810 = vadd.f32 %v1796, %v1809
    %v1811 = vpop.f32.mrf.mxu0
    %v1812 = vadd.f32 %v1798, %v1811
    %1813 = vdwg.mxu0
    %1814 = vmatpush.bf16.msra.mxu0 %v1452
    %1815 = vmatpush.bf16.msra.mxu0 %v1444
    %1816 = vmatpush.bf16.msra.mxu0 %v1436
    %1817 = vmatpush.bf16.msra.mxu0 %v1428
    %1818 = vmatpush.bf16.msra.mxu0 %v1420
    %1819 = vmatpush.bf16.msra.mxu0 %v1412
    %1820 = vmatpush.bf16.msra.mxu0 %v1404
    %1821 = vmatpush.bf16.msra.mxu0 %v1396
    %1822 = vmatmul.bf16.gmra.mxu0 %v1005
    %v1823 = vpop.f32.mrf.mxu0
    %v1824 = vadd.f32 0.0, %v1823
    %v1825 = vpop.f32.mrf.mxu0
    %v1826 = vadd.f32 0.0, %v1825
    %1827 = vdwg.mxu0
    %1828 = vmatpush.bf16.msra.mxu0 %v1516
    %1829 = vmatpush.bf16.msra.mxu0 %v1508
    %1830 = vmatpush.bf16.msra.mxu0 %v1500
    %1831 = vmatpush.bf16.msra.mxu0 %v1492
    %1832 = vmatpush.bf16.msra.mxu0 %v1484
    %1833 = vmatpush.bf16.msra.mxu0 %v1476
    %1834 = vmatpush.bf16.msra.mxu0 %v1468
    %1835 = vmatpush.bf16.msra.mxu0 %v1460
    %1836 = vmatmul.bf16.gmra.mxu0 %v1005
    %v1837 = vpop.f32.mrf.mxu0
    %v1838 = vadd.f32 %v1824, %v1837
    %v1839 = vpop.f32.mrf.mxu0
    %v1840 = vadd.f32 %v1826, %v1839
    %1841 = vdwg.mxu0
    %1842 = vmatpush.bf16.msra.mxu0 %v1453
    %1843 = vmatpush.bf16.msra.mxu0 %v1445
    %1844 = vmatpush.bf16.msra.mxu0 %v1437
    %1845 = vmatpush.bf16.msra.mxu0 %v1429
    %1846 = vmatpush.bf16.msra.mxu0 %v1421
    %1847 = vmatpush.bf16.msra.mxu0 %v1413
    %1848 = vmatpush.bf16.msra.mxu0 %v1405
    %1849 = vmatpush.bf16.msra.mxu0 %v1397
    %1850 = vmatmul.bf16.gmra.mxu0 %v1005
    %v1851 = vpop.f32.mrf.mxu0
    %v1852 = vadd.f32 0.0, %v1851
    %v1853 = vpop.f32.mrf.mxu0
    %v1854 = vadd.f32 0.0, %v1853
    %1855 = vdwg.mxu0
    %1856 = vmatpush.bf16.msra.mxu0 %v1517
    %1857 = vmatpush.bf16.msra.mxu0 %v1509
    %1858 = vmatpush.bf16.msra.mxu0 %v1501
    %1859 = vmatpush.bf16.msra.mxu0 %v1493
    %1860 = vmatpush.bf16.msra.mxu0 %v1485
    %1861 = vmatpush.bf16.msra.mxu0 %v1477
    %1862 = vmatpush.bf16.msra.mxu0 %v1469
    %1863 = vmatpush.bf16.msra.mxu0 %v1461
    %1864 = vmatmul.bf16.gmra.mxu0 %v1005
    %v1865 = vpop.f32.mrf.mxu0
    %v1866 = vadd.f32 %v1852, %v1865
    %v1867 = vpop.f32.mrf.mxu0
    %v1868 = vadd.f32 %v1854, %v1867
    %1869 = vdwg.mxu0
    %v1870 = vld [vmem:[#allocation2] sm:$0xff]
    %v1871 = vld [vmem:[#allocation2 + $0x8] sm:$0xff]
    %v1872 = vld [vmem:[#allocation2 + $0x10] sm:$0xff]
    %v1873 = vld [vmem:[#allocation2 + $0x18] sm:$0xff]
    %v1874 = vld [vmem:[#allocation2 + $0x40] sm:$0xff]
    %v1875 = vld [vmem:[#allocation2 + $0x48] sm:$0xff]
    %v1876 = vld [vmem:[#allocation2 + $0x50] sm:$0xff]
    %v1877 = vld [vmem:[#allocation2 + $0x58] sm:$0xff]
    %v1878 = vadd.f32 %v1870, %v1670
    %v1879 = vadd.f32 %v1871, %v1698
    %v1880 = vadd.f32 %v1872, %v1726
    %v1881 = vadd.f32 %v1873, %v1754
    %v1882 = vadd.f32 %v1874, %v1672
    %v1883 = vadd.f32 %v1875, %v1700
    %v1884 = vadd.f32 %v1876, %v1728
    %v1885 = vadd.f32 %v1877, %v1756
    %s1886 = scalar_lea.vmem [#allocation2], 896
    %v1887 = vld [vmem:[%s1886 + $0x20] sm:$0xff]
    %v1888 = vld [vmem:[%s1886 + $0x28] sm:$0xff]
    %v1889 = vld [vmem:[%s1886 + $0x30] sm:$0xff]
    %v1890 = vld [vmem:[%s1886 + $0x38] sm:$0xff]
    %v1891 = vld [vmem:[%s1886 + $0x60] sm:$0xff]
    %v1892 = vld [vmem:[%s1886 + $0x68] sm:$0xff]
    %v1893 = vld [vmem:[%s1886 + $0x70] sm:$0xff]
    %v1894 = vld [vmem:[%s1886 + $0x78] sm:$0xff]
    %v1895 = vadd.f32 %v1887, %v1782
    %v1896 = vadd.f32 %v1888, %v1810
    %v1897 = vadd.f32 %v1889, %v1838
    %v1898 = vadd.f32 %v1890, %v1866
    %v1899 = vadd.f32 %v1891, %v1784
    %v1900 = vadd.f32 %v1892, %v1812
    %v1901 = vadd.f32 %v1893, %v1840
    %v1902 = vadd.f32 %v1894, %v1868
    %v1903 = vmul.f32 %v1878, 0.5
    %v1904 = vmul.f32 %v1879, 0.5
    %v1905 = vmul.f32 %v1880, 0.5
    %v1906 = vmul.f32 %v1882, 0.5
    %v1907 = vmul.f32 %v1883, 0.5
    %v1908 = vmul.f32 %v1884, 0.5
    %v1909 = vtanh.pop %v1903
    %v1910 = vtanh.pop %v1904
    %v1911 = vtanh.pop %v1905
    %v1912 = vtanh.pop %v1906
    %v1913 = vtanh.pop %v1907
    %v1914 = vtanh.pop %v1908
    %v1915 = vmul.f32 %v1909, 0.5
    %v1916 = vmul.f32 %v1910, 0.5
    %v1917 = vmul.f32 %v1911, 0.5
    %v1918 = vmul.f32 %v1912, 0.5
    %v1919 = vmul.f32 %v1913, 0.5
    %v1920 = vmul.f32 %v1914, 0.5
    %v1921 = vadd.f32 %v1915, 0.5
    %v1922 = vadd.f32 %v1916, 0.5
    %v1923 = vadd.f32 %v1917, 0.5
    %v1924 = vadd.f32 %v1918, 0.5
    %v1925 = vadd.f32 %v1919, 0.5
    %v1926 = vadd.f32 %v1920, 0.5
    %v1927 = vtanh.pop %v1881
    %v1928 = vtanh.pop %v1885
    %v1929 = vmul.f32 %v1922, 0.0
    %v1930 = vmul.f32 %v1925, 0.0
    %v1931 = vmul.f32 %v1921, %v1927
    %v1932 = vmul.f32 %v1924, %v1928
    %v1933 = vadd.f32 %v1929, %v1931
    %v1934 = vadd.f32 %v1930, %v1932
    %v1935 = vtanh.pop %v1933
    %v1936 = vtanh.pop %v1934
    %v1937 = vmul.f32 %v1923, %v1935
    %v1938 = vmul.f32 %v1926, %v1936
    %v1939 = vmul.f32 %v1895, 0.5
    %v1940 = vmul.f32 %v1896, 0.5
    %v1941 = vmul.f32 %v1897, 0.5
    %v1942 = vmul.f32 %v1899, 0.5
    %v1943 = vmul.f32 %v1900, 0.5
    %v1944 = vmul.f32 %v1901, 0.5
    %v1945 = vtanh.pop %v1939
    %v1946 = vtanh.pop %v1940
    %v1947 = vtanh.pop %v1941
    %v1948 = vtanh.pop %v1942
    %v1949 = vtanh.pop %v1943
    %v1950 = vtanh.pop %v1944
    %v1951 = vmul.f32 %v1945, 0.5
    %v1952 = vmul.f32 %v1946, 0.5
    %v1953 = vmul.f32 %v1947, 0.5
    %v1954 = vmul.f32 %v1948, 0.5
    %v1955 = vmul.f32 %v1949, 0.5
    %v1956 = vmul.f32 %v1950, 0.5
    %v1957 = vadd.f32 %v1951, 0.5
    %v1958 = vadd.f32 %v1952, 0.5
    %v1959 = vadd.f32 %v1953, 0.5
    %v1960 = vadd.f32 %v1954, 0.5
    %v1961 = vadd.f32 %v1955, 0.5
    %v1962 = vadd.f32 %v1956, 0.5
    %v1963 = vtanh.pop %v1898
    %v1964 = vtanh.pop %v1902
    %v1965 = vmul.f32 %v1958, 0.0
    %v1966 = vmul.f32 %v1961, 0.0
    %v1967 = vmul.f32 %v1957, %v1963
    %v1968 = vmul.f32 %v1960, %v1964
    %v1969 = vadd.f32 %v1965, %v1967
    %v1970 = vadd.f32 %v1966, %v1968
    %v1971 = vtanh.pop %v1969
    %v1972 = vtanh.pop %v1970
    %v1973 = vmul.f32 %v1959, %v1971
    %v1974 = vmul.f32 %v1962, %v1972
    %v1975 = vpack.c.bf16 %v1937, %v1937
    %v1976 = vpack.c.bf16 %v1938, %v1938
    %1977 = vst [vmem:[%s4] sm:$0xf] %v1975
    %1978 = vst [vmem:[%s4 + $0x4] sm:$0xf] %v1976
    %v1979 = vpack.c.bf16 %v1973, %v1973
    %v1980 = vpack.c.bf16 %v1974, %v1974
    %s1981 = scalar_lea.vmem %s4, 120
    %1982 = vst [vmem:[%s1981] sm:$0xf] %v1979
    %1983 = vst [vmem:[%s1981 + $0x4] sm:$0xf] %v1980
    %v1984 = vpack.c.bf16 %v1938, %v1937
    %v1985 = vpack.c.bf16 %v1974, %v1973
    %1986 = vmatpush.bf16.msra.mxu0 %v1446
    %1987 = vmatpush.bf16.msra.mxu0 %v1438
    %1988 = vmatpush.bf16.msra.mxu0 %v1430
    %1989 = vmatpush.bf16.msra.mxu0 %v1422
    %1990 = vmatpush.bf16.msra.mxu0 %v1414
    %1991 = vmatpush.bf16.msra.mxu0 %v1406
    %1992 = vmatpush.bf16.msra.mxu0 %v1398
    %1993 = vmatpush.bf16.msra.mxu0 %v1390
    %1994 = vmatmul.bf16.gmra.mxu0 %v1984
    %v1995 = vpop.f32.mrf.mxu0
    %v1996 = vadd.f32 0.0, %v1995
    %v1997 = vpop.f32.mrf.mxu0
    %v1998 = vadd.f32 0.0, %v1997
    %1999 = vdwg.mxu0
    %2000 = vmatpush.bf16.msra.mxu0 %v1510
    %2001 = vmatpush.bf16.msra.mxu0 %v1502
    %2002 = vmatpush.bf16.msra.mxu0 %v1494
    %2003 = vmatpush.bf16.msra.mxu0 %v1486
    %2004 = vmatpush.bf16.msra.mxu0 %v1478
    %2005 = vmatpush.bf16.msra.mxu0 %v1470
    %2006 = vmatpush.bf16.msra.mxu0 %v1462
    %2007 = vmatpush.bf16.msra.mxu0 %v1454
    %2008 = vmatmul.bf16.gmra.mxu0 %v1985
    %v2009 = vpop.f32.mrf.mxu0
    %v2010 = vadd.f32 %v1996, %v2009
    %v2011 = vpop.f32.mrf.mxu0
    %v2012 = vadd.f32 %v1998, %v2011
    %2013 = vdwg.mxu0
    %2014 = vmatpush.bf16.msra.mxu0 %v1447
    %2015 = vmatpush.bf16.msra.mxu0 %v1439
    %2016 = vmatpush.bf16.msra.mxu0 %v1431
    %2017 = vmatpush.bf16.msra.mxu0 %v1423
    %2018 = vmatpush.bf16.msra.mxu0 %v1415
    %2019 = vmatpush.bf16.msra.mxu0 %v1407
    %2020 = vmatpush.bf16.msra.mxu0 %v1399
    %2021 = vmatpush.bf16.msra.mxu0 %v1391
    %2022 = vmatmul.bf16.gmra.mxu0 %v1984
    %v2023 = vpop.f32.mrf.mxu0
    %v2024 = vadd.f32 0.0, %v2023
    %v2025 = vpop.f32.mrf.mxu0
    %v2026 = vadd.f32 0.0, %v2025
    %2027 = vdwg.mxu0
    %2028 = vmatpush.bf16.msra.mxu0 %v1511
    %2029 = vmatpush.bf16.msra.mxu0 %v1503
    %2030 = vmatpush.bf16.msra.mxu0 %v1495
    %2031 = vmatpush.bf16.msra.mxu0 %v1487
    %2032 = vmatpush.bf16.msra.mxu0 %v1479
    %2033 = vmatpush.bf16.msra.mxu0 %v1471
    %2034 = vmatpush.bf16.msra.mxu0 %v1463
    %2035 = vmatpush.bf16.msra.mxu0 %v1455
    %2036 = vmatmul.bf16.gmra.mxu0 %v1985
    %v2037 = vpop.f32.mrf.mxu0
    %v2038 = vadd.f32 %v2024, %v2037
    %v2039 = vpop.f32.mrf.mxu0
    %v2040 = vadd.f32 %v2026, %v2039
    %2041 = vdwg.mxu0
    %2042 = vmatpush.bf16.msra.mxu0 %v1448
    %2043 = vmatpush.bf16.msra.mxu0 %v1440
    %2044 = vmatpush.bf16.msra.mxu0 %v1432
    %2045 = vmatpush.bf16.msra.mxu0 %v1424
    %2046 = vmatpush.bf16.msra.mxu0 %v1416
    %2047 = vmatpush.bf16.msra.mxu0 %v1408
    %2048 = vmatpush.bf16.msra.mxu0 %v1400
    %2049 = vmatpush.bf16.msra.mxu0 %v1392
    %2050 = vmatmul.bf16.gmra.mxu0 %v1984
    %v2051 = vpop.f32.mrf.mxu0
    %v2052 = vadd.f32 0.0, %v2051
    %v2053 = vpop.f32.mrf.mxu0
    %v2054 = vadd.f32 0.0, %v2053
    %2055 = vdwg.mxu0
    %2056 = vmatpush.bf16.msra.mxu0 %v1512
    %2057 = vmatpush.bf16.msra.mxu0 %v1504
    %2058 = vmatpush.bf16.msra.mxu0 %v1496
    %2059 = vmatpush.bf16.msra.mxu0 %v1488
    %2060 = vmatpush.bf16.msra.mxu0 %v1480
    %2061 = vmatpush.bf16.msra.mxu0 %v1472
    %2062 = vmatpush.bf16.msra.mxu0 %v1464
    %2063 = vmatpush.bf16.msra.mxu0 %v1456
    %2064 = vmatmul.bf16.gmra.mxu0 %v1985
    %v2065 = vpop.f32.mrf.mxu0
    %v2066 = vadd.f32 %v2052, %v2065
    %v2067 = vpop.f32.mrf.mxu0
    %v2068 = vadd.f32 %v2054, %v2067
    %2069 = vdwg.mxu0
    %2070 = vmatpush.bf16.msra.mxu0 %v1449
    %2071 = vmatpush.bf16.msra.mxu0 %v1441
    %2072 = vmatpush.bf16.msra.mxu0 %v1433
    %2073 = vmatpush.bf16.msra.mxu0 %v1425
    %2074 = vmatpush.bf16.msra.mxu0 %v1417
    %2075 = vmatpush.bf16.msra.mxu0 %v1409
    %2076 = vmatpush.bf16.msra.mxu0 %v1401
    %2077 = vmatpush.bf16.msra.mxu0 %v1393
    %2078 = vmatmul.bf16.gmra.mxu0 %v1984
    %v2079 = vpop.f32.mrf.mxu0
    %v2080 = vadd.f32 0.0, %v2079
    %v2081 = vpop.f32.mrf.mxu0
    %v2082 = vadd.f32 0.0, %v2081
    %2083 = vdwg.mxu0
    %2084 = vmatpush.bf16.msra.mxu0 %v1513
    %2085 = vmatpush.bf16.msra.mxu0 %v1505
    %2086 = vmatpush.bf16.msra.mxu0 %v1497
    %2087 = vmatpush.bf16.msra.mxu0 %v1489
    %2088 = vmatpush.bf16.msra.mxu0 %v1481
    %2089 = vmatpush.bf16.msra.mxu0 %v1473
    %2090 = vmatpush.bf16.msra.mxu0 %v1465
    %2091 = vmatpush.bf16.msra.mxu0 %v1457
    %2092 = vmatmul.bf16.gmra.mxu0 %v1985
    %v2093 = vpop.f32.mrf.mxu0
    %v2094 = vadd.f32 %v2080, %v2093
    %v2095 = vpop.f32.mrf.mxu0
    %v2096 = vadd.f32 %v2082, %v2095
    %2097 = vdwg.mxu0
    %2098 = vmatpush.bf16.msra.mxu0 %v1450
    %2099 = vmatpush.bf16.msra.mxu0 %v1442
    %2100 = vmatpush.bf16.msra.mxu0 %v1434
    %2101 = vmatpush.bf16.msra.mxu0 %v1426
    %2102 = vmatpush.bf16.msra.mxu0 %v1418
    %2103 = vmatpush.bf16.msra.mxu0 %v1410
    %2104 = vmatpush.bf16.msra.mxu0 %v1402
    %2105 = vmatpush.bf16.msra.mxu0 %v1394
    %2106 = vmatmul.bf16.gmra.mxu0 %v1984
    %v2107 = vpop.f32.mrf.mxu0
    %v2108 = vadd.f32 0.0, %v2107
    %v2109 = vpop.f32.mrf.mxu0
    %v2110 = vadd.f32 0.0, %v2109
    %2111 = vdwg.mxu0
    %2112 = vmatpush.bf16.msra.mxu0 %v1514
    %2113 = vmatpush.bf16.msra.mxu0 %v1506
    %2114 = vmatpush.bf16.msra.mxu0 %v1498
    %2115 = vmatpush.bf16.msra.mxu0 %v1490
    %2116 = vmatpush.bf16.msra.mxu0 %v1482
    %2117 = vmatpush.bf16.msra.mxu0 %v1474
    %2118 = vmatpush.bf16.msra.mxu0 %v1466
    %2119 = vmatpush.bf16.msra.mxu0 %v1458
    %2120 = vmatmul.bf16.gmra.mxu0 %v1985
    %v2121 = vpop.f32.mrf.mxu0
    %v2122 = vadd.f32 %v2108, %v2121
    %v2123 = vpop.f32.mrf.mxu0
    %v2124 = vadd.f32 %v2110, %v2123
    %2125 = vdwg.mxu0
    %2126 = vmatpush.bf16.msra.mxu0 %v1451
    %2127 = vmatpush.bf16.msra.mxu0 %v1443
    %2128 = vmatpush.bf16.msra.mxu0 %v1435
    %2129 = vmatpush.bf16.msra.mxu0 %v1427
    %2130 = vmatpush.bf16.msra.mxu0 %v1419
    %2131 = vmatpush.bf16.msra.mxu0 %v1411
    %2132 = vmatpush.bf16.msra.mxu0 %v1403
    %2133 = vmatpush.bf16.msra.mxu0 %v1395
    %2134 = vmatmul.bf16.gmra.mxu0 %v1984
    %v2135 = vpop.f32.mrf.mxu0
    %v2136 = vadd.f32 0.0, %v2135
    %v2137 = vpop.f32.mrf.mxu0
    %v2138 = vadd.f32 0.0, %v2137
    %2139 = vdwg.mxu0
    %2140 = vmatpush.bf16.msra.mxu0 %v1515
    %2141 = vmatpush.bf16.msra.mxu0 %v1507
    %2142 = vmatpush.bf16.msra.mxu0 %v1499
    %2143 = vmatpush.bf16.msra.mxu0 %v1491
    %2144 = vmatpush.bf16.msra.mxu0 %v1483
    %2145 = vmatpush.bf16.msra.mxu0 %v1475
    %2146 = vmatpush.bf16.msra.mxu0 %v1467
    %2147 = vmatpush.bf16.msra.mxu0 %v1459
    %2148 = vmatmul.bf16.gmra.mxu0 %v1985
    %v2149 = vpop.f32.mrf.mxu0
    %v2150 = vadd.f32 %v2136, %v2149
    %v2151 = vpop.f32.mrf.mxu0
    %v2152 = vadd.f32 %v2138, %v2151
    %2153 = vdwg.mxu0
    %2154 = vmatpush.bf16.msra.mxu0 %v1452
    %2155 = vmatpush.bf16.msra.mxu0 %v1444
    %2156 = vmatpush.bf16.msra.mxu0 %v1436
    %2157 = vmatpush.bf16.msra.mxu0 %v1428
    %2158 = vmatpush.bf16.msra.mxu0 %v1420
    %2159 = vmatpush.bf16.msra.mxu0 %v1412
    %2160 = vmatpush.bf16.msra.mxu0 %v1404
    %2161 = vmatpush.bf16.msra.mxu0 %v1396
    %2162 = vmatmul.bf16.gmra.mxu0 %v1984
    %v2163 = vpop.f32.mrf.mxu0
    %v2164 = vadd.f32 0.0, %v2163
    %v2165 = vpop.f32.mrf.mxu0
    %v2166 = vadd.f32 0.0, %v2165
    %2167 = vdwg.mxu0
    %2168 = vmatpush.bf16.msra.mxu0 %v1516
    %2169 = vmatpush.bf16.msra.mxu0 %v1508
    %2170 = vmatpush.bf16.msra.mxu0 %v1500
    %2171 = vmatpush.bf16.msra.mxu0 %v1492
    %2172 = vmatpush.bf16.msra.mxu0 %v1484
    %2173 = vmatpush.bf16.msra.mxu0 %v1476
    %2174 = vmatpush.bf16.msra.mxu0 %v1468
    %2175 = vmatpush.bf16.msra.mxu0 %v1460
    %2176 = vmatmul.bf16.gmra.mxu0 %v1985
    %v2177 = vpop.f32.mrf.mxu0
    %v2178 = vadd.f32 %v2164, %v2177
    %v2179 = vpop.f32.mrf.mxu0
    %v2180 = vadd.f32 %v2166, %v2179
    %2181 = vdwg.mxu0
    %2182 = vmatpush.bf16.msra.mxu0 %v1453
    %2183 = vmatpush.bf16.msra.mxu0 %v1445
    %2184 = vmatpush.bf16.msra.mxu0 %v1437
    %2185 = vmatpush.bf16.msra.mxu0 %v1429
    %2186 = vmatpush.bf16.msra.mxu0 %v1421
    %2187 = vmatpush.bf16.msra.mxu0 %v1413
    %2188 = vmatpush.bf16.msra.mxu0 %v1405
    %2189 = vmatpush.bf16.msra.mxu0 %v1397
    %2190 = vmatmul.bf16.gmra.mxu0 %v1984
    %v2191 = vpop.f32.mrf.mxu0
    %v2192 = vadd.f32 0.0, %v2191
    %v2193 = vpop.f32.mrf.mxu0
    %v2194 = vadd.f32 0.0, %v2193
    %2195 = vdwg.mxu0
    %2196 = vmatpush.bf16.msra.mxu0 %v1517
    %2197 = vmatpush.bf16.msra.mxu0 %v1509
    %2198 = vmatpush.bf16.msra.mxu0 %v1501
    %2199 = vmatpush.bf16.msra.mxu0 %v1493
    %2200 = vmatpush.bf16.msra.mxu0 %v1485
    %2201 = vmatpush.bf16.msra.mxu0 %v1477
    %2202 = vmatpush.bf16.msra.mxu0 %v1469
    %2203 = vmatpush.bf16.msra.mxu0 %v1461
    %2204 = vmatmul.bf16.gmra.mxu0 %v1985
    %v2205 = vpop.f32.mrf.mxu0
    %v2206 = vadd.f32 %v2192, %v2205
    %v2207 = vpop.f32.mrf.mxu0
    %v2208 = vadd.f32 %v2194, %v2207
    %2209 = vdwg.mxu0
    %s2210 = scalar_lea.vmem [#allocation2], 128
    %v2211 = vld [vmem:[%s2210] sm:$0xff]
    %v2212 = vld [vmem:[%s2210 + $0x8] sm:$0xff]
    %v2213 = vld [vmem:[%s2210 + $0x10] sm:$0xff]
    %v2214 = vld [vmem:[%s2210 + $0x18] sm:$0xff]
    %v2215 = vld [vmem:[%s2210 + $0x40] sm:$0xff]
    %v2216 = vld [vmem:[%s2210 + $0x48] sm:$0xff]
    %v2217 = vld [vmem:[%s2210 + $0x50] sm:$0xff]
    %v2218 = vld [vmem:[%s2210 + $0x58] sm:$0xff]
    %v2219 = vadd.f32 %v2211, %v2010
    %v2220 = vadd.f32 %v2212, %v2038
    %v2221 = vadd.f32 %v2213, %v2066
    %v2222 = vadd.f32 %v2214, %v2094
    %v2223 = vadd.f32 %v2215, %v2012
    %v2224 = vadd.f32 %v2216, %v2040
    %v2225 = vadd.f32 %v2217, %v2068
    %v2226 = vadd.f32 %v2218, %v2096
    %s2227 = scalar_lea.vmem [#allocation2], 768
    %v2228 = vld [vmem:[%s2227 + $0x20] sm:$0xff]
    %v2229 = vld [vmem:[%s2227 + $0x28] sm:$0xff]
    %v2230 = vld [vmem:[%s2227 + $0x30] sm:$0xff]
    %v2231 = vld [vmem:[%s2227 + $0x38] sm:$0xff]
    %v2232 = vld [vmem:[%s2227 + $0x60] sm:$0xff]
    %v2233 = vld [vmem:[%s2227 + $0x68] sm:$0xff]
    %v2234 = vld [vmem:[%s2227 + $0x70] sm:$0xff]
    %v2235 = vld [vmem:[%s2227 + $0x78] sm:$0xff]
    %v2236 = vadd.f32 %v2228, %v2122
    %v2237 = vadd.f32 %v2229, %v2150
    %v2238 = vadd.f32 %v2230, %v2178
    %v2239 = vadd.f32 %v2231, %v2206
    %v2240 = vadd.f32 %v2232, %v2124
    %v2241 = vadd.f32 %v2233, %v2152
    %v2242 = vadd.f32 %v2234, %v2180
    %v2243 = vadd.f32 %v2235, %v2208
    %v2244 = vmul.f32 %v2219, 0.5
    %v2245 = vmul.f32 %v2220, 0.5
    %v2246 = vmul.f32 %v2221, 0.5
    %v2247 = vmul.f32 %v2223, 0.5
    %v2248 = vmul.f32 %v2224, 0.5
    %v2249 = vmul.f32 %v2225, 0.5
    %v2250 = vtanh.pop %v2244
    %v2251 = vtanh.pop %v2245
    %v2252 = vtanh.pop %v2246
    %v2253 = vtanh.pop %v2247
    %v2254 = vtanh.pop %v2248
    %v2255 = vtanh.pop %v2249
    %v2256 = vmul.f32 %v2250, 0.5
    %v2257 = vmul.f32 %v2251, 0.5
    %v2258 = vmul.f32 %v2252, 0.5
    %v2259 = vmul.f32 %v2253, 0.5
    %v2260 = vmul.f32 %v2254, 0.5
    %v2261 = vmul.f32 %v2255, 0.5
    %v2262 = vadd.f32 %v2256, 0.5
    %v2263 = vadd.f32 %v2257, 0.5
    %v2264 = vadd.f32 %v2258, 0.5
    %v2265 = vadd.f32 %v2259, 0.5
    %v2266 = vadd.f32 %v2260, 0.5
    %v2267 = vadd.f32 %v2261, 0.5
    %v2268 = vtanh.pop %v2222
    %v2269 = vtanh.pop %v2226
    %v2270 = vmul.f32 %v2263, %v1933
    %v2271 = vmul.f32 %v2266, %v1934
    %v2272 = vmul.f32 %v2262, %v2268
    %v2273 = vmul.f32 %v2265, %v2269
    %v2274 = vadd.f32 %v2270, %v2272
    %v2275 = vadd.f32 %v2271, %v2273
    %v2276 = vtanh.pop %v2274
    %v2277 = vtanh.pop %v2275
    %v2278 = vmul.f32 %v2264, %v2276
    %v2279 = vmul.f32 %v2267, %v2277
    %v2280 = vmul.f32 %v2236, 0.5
    %v2281 = vmul.f32 %v2237, 0.5
    %v2282 = vmul.f32 %v2238, 0.5
    %v2283 = vmul.f32 %v2240, 0.5
    %v2284 = vmul.f32 %v2241, 0.5
    %v2285 = vmul.f32 %v2242, 0.5
    %v2286 = vtanh.pop %v2280
    %v2287 = vtanh.pop %v2281
    %v2288 = vtanh.pop %v2282
    %v2289 = vtanh.pop %v2283
    %v2290 = vtanh.pop %v2284
    %v2291 = vtanh.pop %v2285
    %v2292 = vmul.f32 %v2286, 0.5
    %v2293 = vmul.f32 %v2287, 0.5
    %v2294 = vmul.f32 %v2288, 0.5
    %v2295 = vmul.f32 %v2289, 0.5
    %v2296 = vmul.f32 %v2290, 0.5
    %v2297 = vmul.f32 %v2291, 0.5
    %v2298 = vadd.f32 %v2292, 0.5
    %v2299 = vadd.f32 %v2293, 0.5
    %v2300 = vadd.f32 %v2294, 0.5
    %v2301 = vadd.f32 %v2295, 0.5
    %v2302 = vadd.f32 %v2296, 0.5
    %v2303 = vadd.f32 %v2297, 0.5
    %v2304 = vtanh.pop %v2239
    %v2305 = vtanh.pop %v2243
    %v2306 = vmul.f32 %v2299, %v1969
    %v2307 = vmul.f32 %v2302, %v1970
    %v2308 = vmul.f32 %v2298, %v2304
    %v2309 = vmul.f32 %v2301, %v2305
    %v2310 = vadd.f32 %v2306, %v2308
    %v2311 = vadd.f32 %v2307, %v2309
    %v2312 = vtanh.pop %v2310
    %v2313 = vtanh.pop %v2311
    %v2314 = vmul.f32 %v2300, %v2312
    %v2315 = vmul.f32 %v2303, %v2313
    %v2316 = vpack.c.bf16 %v2278, %v2278
    %v2317 = vpack.c.bf16 %v2279, %v2279
    %s2318 = scalar_lea.vmem %s4, 8
    %2319 = vst [vmem:[%s2318] sm:$0xf] %v2316
    %2320 = vst [vmem:[%s2318 + $0x4] sm:$0xf] %v2317
    %v2321 = vpack.c.bf16 %v2314, %v2314
    %v2322 = vpack.c.bf16 %v2315, %v2315
    %s2323 = scalar_lea.vmem %s4, 112
    %2324 = vst [vmem:[%s2323] sm:$0xf] %v2321
    %2325 = vst [vmem:[%s2323 + $0x4] sm:$0xf] %v2322
    %v2326 = vpack.c.bf16 %v2279, %v2278
    %v2327 = vpack.c.bf16 %v2315, %v2314
    %2328 = vmatpush.bf16.msra.mxu0 %v1446
    %2329 = vmatpush.bf16.msra.mxu0 %v1438
    %2330 = vmatpush.bf16.msra.mxu0 %v1430
    %2331 = vmatpush.bf16.msra.mxu0 %v1422
    %2332 = vmatpush.bf16.msra.mxu0 %v1414
    %2333 = vmatpush.bf16.msra.mxu0 %v1406
    %2334 = vmatpush.bf16.msra.mxu0 %v1398
    %2335 = vmatpush.bf16.msra.mxu0 %v1390
    %2336 = vmatmul.bf16.gmra.mxu0 %v2326
    %v2337 = vpop.f32.mrf.mxu0
    %v2338 = vadd.f32 0.0, %v2337
    %v2339 = vpop.f32.mrf.mxu0
    %v2340 = vadd.f32 0.0, %v2339
    %2341 = vdwg.mxu0
    %2342 = vmatpush.bf16.msra.mxu0 %v1510
    %2343 = vmatpush.bf16.msra.mxu0 %v1502
    %2344 = vmatpush.bf16.msra.mxu0 %v1494
    %2345 = vmatpush.bf16.msra.mxu0 %v1486
    %2346 = vmatpush.bf16.msra.mxu0 %v1478
    %2347 = vmatpush.bf16.msra.mxu0 %v1470
    %2348 = vmatpush.bf16.msra.mxu0 %v1462
    %2349 = vmatpush.bf16.msra.mxu0 %v1454
    %2350 = vmatmul.bf16.gmra.mxu0 %v2327
    %v2351 = vpop.f32.mrf.mxu0
    %v2352 = vadd.f32 %v2338, %v2351
    %v2353 = vpop.f32.mrf.mxu0
    %v2354 = vadd.f32 %v2340, %v2353
    %2355 = vdwg.mxu0
    %2356 = vmatpush.bf16.msra.mxu0 %v1447
    %2357 = vmatpush.bf16.msra.mxu0 %v1439
    %2358 = vmatpush.bf16.msra.mxu0 %v1431
    %2359 = vmatpush.bf16.msra.mxu0 %v1423
    %2360 = vmatpush.bf16.msra.mxu0 %v1415
    %2361 = vmatpush.bf16.msra.mxu0 %v1407
    %2362 = vmatpush.bf16.msra.mxu0 %v1399
    %2363 = vmatpush.bf16.msra.mxu0 %v1391
    %2364 = vmatmul.bf16.gmra.mxu0 %v2326
    %v2365 = vpop.f32.mrf.mxu0
    %v2366 = vadd.f32 0.0, %v2365
    %v2367 = vpop.f32.mrf.mxu0
    %v2368 = vadd.f32 0.0, %v2367
    %2369 = vdwg.mxu0
    %2370 = vmatpush.bf16.msra.mxu0 %v1511
    %2371 = vmatpush.bf16.msra.mxu0 %v1503
    %2372 = vmatpush.bf16.msra.mxu0 %v1495
    %2373 = vmatpush.bf16.msra.mxu0 %v1487
    %2374 = vmatpush.bf16.msra.mxu0 %v1479
    %2375 = vmatpush.bf16.msra.mxu0 %v1471
    %2376 = vmatpush.bf16.msra.mxu0 %v1463
    %2377 = vmatpush.bf16.msra.mxu0 %v1455
    %2378 = vmatmul.bf16.gmra.mxu0 %v2327
    %v2379 = vpop.f32.mrf.mxu0
    %v2380 = vadd.f32 %v2366, %v2379
    %v2381 = vpop.f32.mrf.mxu0
    %v2382 = vadd.f32 %v2368, %v2381
    %2383 = vdwg.mxu0
    %2384 = vmatpush.bf16.msra.mxu0 %v1448
    %2385 = vmatpush.bf16.msra.mxu0 %v1440
    %2386 = vmatpush.bf16.msra.mxu0 %v1432
    %2387 = vmatpush.bf16.msra.mxu0 %v1424
    %2388 = vmatpush.bf16.msra.mxu0 %v1416
    %2389 = vmatpush.bf16.msra.mxu0 %v1408
    %2390 = vmatpush.bf16.msra.mxu0 %v1400
    %2391 = vmatpush.bf16.msra.mxu0 %v1392
    %2392 = vmatmul.bf16.gmra.mxu0 %v2326
    %v2393 = vpop.f32.mrf.mxu0
    %v2394 = vadd.f32 0.0, %v2393
    %v2395 = vpop.f32.mrf.mxu0
    %v2396 = vadd.f32 0.0, %v2395
    %2397 = vdwg.mxu0
    %2398 = vmatpush.bf16.msra.mxu0 %v1512
    %2399 = vmatpush.bf16.msra.mxu0 %v1504
    %2400 = vmatpush.bf16.msra.mxu0 %v1496
    %2401 = vmatpush.bf16.msra.mxu0 %v1488
    %2402 = vmatpush.bf16.msra.mxu0 %v1480
    %2403 = vmatpush.bf16.msra.mxu0 %v1472
    %2404 = vmatpush.bf16.msra.mxu0 %v1464
    %2405 = vmatpush.bf16.msra.mxu0 %v1456
    %2406 = vmatmul.bf16.gmra.mxu0 %v2327
    %v2407 = vpop.f32.mrf.mxu0
    %v2408 = vadd.f32 %v2394, %v2407
    %v2409 = vpop.f32.mrf.mxu0
    %v2410 = vadd.f32 %v2396, %v2409
    %2411 = vdwg.mxu0
    %2412 = vmatpush.bf16.msra.mxu0 %v1449
    %2413 = vmatpush.bf16.msra.mxu0 %v1441
    %2414 = vmatpush.bf16.msra.mxu0 %v1433
    %2415 = vmatpush.bf16.msra.mxu0 %v1425
    %2416 = vmatpush.bf16.msra.mxu0 %v1417
    %2417 = vmatpush.bf16.msra.mxu0 %v1409
    %2418 = vmatpush.bf16.msra.mxu0 %v1401
    %2419 = vmatpush.bf16.msra.mxu0 %v1393
    %2420 = vmatmul.bf16.gmra.mxu0 %v2326
    %v2421 = vpop.f32.mrf.mxu0
    %v2422 = vadd.f32 0.0, %v2421
    %v2423 = vpop.f32.mrf.mxu0
    %v2424 = vadd.f32 0.0, %v2423
    %2425 = vdwg.mxu0
    %2426 = vmatpush.bf16.msra.mxu0 %v1513
    %2427 = vmatpush.bf16.msra.mxu0 %v1505
    %2428 = vmatpush.bf16.msra.mxu0 %v1497
    %2429 = vmatpush.bf16.msra.mxu0 %v1489
    %2430 = vmatpush.bf16.msra.mxu0 %v1481
    %2431 = vmatpush.bf16.msra.mxu0 %v1473
    %2432 = vmatpush.bf16.msra.mxu0 %v1465
    %2433 = vmatpush.bf16.msra.mxu0 %v1457
    %2434 = vmatmul.bf16.gmra.mxu0 %v2327
    %v2435 = vpop.f32.mrf.mxu0
    %v2436 = vadd.f32 %v2422, %v2435
    %v2437 = vpop.f32.mrf.mxu0
    %v2438 = vadd.f32 %v2424, %v2437
    %2439 = vdwg.mxu0
    %2440 = vmatpush.bf16.msra.mxu0 %v1450
    %2441 = vmatpush.bf16.msra.mxu0 %v1442
    %2442 = vmatpush.bf16.msra.mxu0 %v1434
    %2443 = vmatpush.bf16.msra.mxu0 %v1426
    %2444 = vmatpush.bf16.msra.mxu0 %v1418
    %2445 = vmatpush.bf16.msra.mxu0 %v1410
    %2446 = vmatpush.bf16.msra.mxu0 %v1402
    %2447 = vmatpush.bf16.msra.mxu0 %v1394
    %2448 = vmatmul.bf16.gmra.mxu0 %v2326
    %v2449 = vpop.f32.mrf.mxu0
    %v2450 = vadd.f32 0.0, %v2449
    %v2451 = vpop.f32.mrf.mxu0
    %v2452 = vadd.f32 0.0, %v2451
    %2453 = vdwg.mxu0
    %2454 = vmatpush.bf16.msra.mxu0 %v1514
    %2455 = vmatpush.bf16.msra.mxu0 %v1506
    %2456 = vmatpush.bf16.msra.mxu0 %v1498
    %2457 = vmatpush.bf16.msra.mxu0 %v1490
    %2458 = vmatpush.bf16.msra.mxu0 %v1482
    %2459 = vmatpush.bf16.msra.mxu0 %v1474
    %2460 = vmatpush.bf16.msra.mxu0 %v1466
    %2461 = vmatpush.bf16.msra.mxu0 %v1458
    %2462 = vmatmul.bf16.gmra.mxu0 %v2327
    %v2463 = vpop.f32.mrf.mxu0
    %v2464 = vadd.f32 %v2450, %v2463
    %v2465 = vpop.f32.mrf.mxu0
    %v2466 = vadd.f32 %v2452, %v2465
    %2467 = vdwg.mxu0
    %2468 = vmatpush.bf16.msra.mxu0 %v1451
    %2469 = vmatpush.bf16.msra.mxu0 %v1443
    %2470 = vmatpush.bf16.msra.mxu0 %v1435
    %2471 = vmatpush.bf16.msra.mxu0 %v1427
    %2472 = vmatpush.bf16.msra.mxu0 %v1419
    %2473 = vmatpush.bf16.msra.mxu0 %v1411
    %2474 = vmatpush.bf16.msra.mxu0 %v1403
    %2475 = vmatpush.bf16.msra.mxu0 %v1395
    %2476 = vmatmul.bf16.gmra.mxu0 %v2326
    %v2477 = vpop.f32.mrf.mxu0
    %v2478 = vadd.f32 0.0, %v2477
    %v2479 = vpop.f32.mrf.mxu0
    %v2480 = vadd.f32 0.0, %v2479
    %2481 = vdwg.mxu0
    %2482 = vmatpush.bf16.msra.mxu0 %v1515
    %2483 = vmatpush.bf16.msra.mxu0 %v1507
    %2484 = vmatpush.bf16.msra.mxu0 %v1499
    %2485 = vmatpush.bf16.msra.mxu0 %v1491
    %2486 = vmatpush.bf16.msra.mxu0 %v1483
    %2487 = vmatpush.bf16.msra.mxu0 %v1475
    %2488 = vmatpush.bf16.msra.mxu0 %v1467
    %2489 = vmatpush.bf16.msra.mxu0 %v1459
    %2490 = vmatmul.bf16.gmra.mxu0 %v2327
    %v2491 = vpop.f32.mrf.mxu0
    %v2492 = vadd.f32 %v2478, %v2491
    %v2493 = vpop.f32.mrf.mxu0
    %v2494 = vadd.f32 %v2480, %v2493
    %2495 = vdwg.mxu0
    %2496 = vmatpush.bf16.msra.mxu0 %v1452
    %2497 = vmatpush.bf16.msra.mxu0 %v1444
    %2498 = vmatpush.bf16.msra.mxu0 %v1436
    %2499 = vmatpush.bf16.msra.mxu0 %v1428
    %2500 = vmatpush.bf16.msra.mxu0 %v1420
    %2501 = vmatpush.bf16.msra.mxu0 %v1412
    %2502 = vmatpush.bf16.msra.mxu0 %v1404
    %2503 = vmatpush.bf16.msra.mxu0 %v1396
    %2504 = vmatmul.bf16.gmra.mxu0 %v2326
    %v2505 = vpop.f32.mrf.mxu0
    %v2506 = vadd.f32 0.0, %v2505
    %v2507 = vpop.f32.mrf.mxu0
    %v2508 = vadd.f32 0.0, %v2507
    %2509 = vdwg.mxu0
    %2510 = vmatpush.bf16.msra.mxu0 %v1516
    %2511 = vmatpush.bf16.msra.mxu0 %v1508
    %2512 = vmatpush.bf16.msra.mxu0 %v1500
    %2513 = vmatpush.bf16.msra.mxu0 %v1492
    %2514 = vmatpush.bf16.msra.mxu0 %v1484
    %2515 = vmatpush.bf16.msra.mxu0 %v1476
    %2516 = vmatpush.bf16.msra.mxu0 %v1468
    %2517 = vmatpush.bf16.msra.mxu0 %v1460
    %2518 = vmatmul.bf16.gmra.mxu0 %v2327
    %v2519 = vpop.f32.mrf.mxu0
    %v2520 = vadd.f32 %v2506, %v2519
    %v2521 = vpop.f32.mrf.mxu0
    %v2522 = vadd.f32 %v2508, %v2521
    %2523 = vdwg.mxu0
    %2524 = vmatpush.bf16.msra.mxu0 %v1453
    %2525 = vmatpush.bf16.msra.mxu0 %v1445
    %2526 = vmatpush.bf16.msra.mxu0 %v1437
    %2527 = vmatpush.bf16.msra.mxu0 %v1429
    %2528 = vmatpush.bf16.msra.mxu0 %v1421
    %2529 = vmatpush.bf16.msra.mxu0 %v1413
    %2530 = vmatpush.bf16.msra.mxu0 %v1405
    %2531 = vmatpush.bf16.msra.mxu0 %v1397
    %2532 = vmatmul.bf16.gmra.mxu0 %v2326
    %v2533 = vpop.f32.mrf.mxu0
    %v2534 = vadd.f32 0.0, %v2533
    %v2535 = vpop.f32.mrf.mxu0
    %v2536 = vadd.f32 0.0, %v2535
    %2537 = vdwg.mxu0
    %2538 = vmatpush.bf16.msra.mxu0 %v1517
    %2539 = vmatpush.bf16.msra.mxu0 %v1509
    %2540 = vmatpush.bf16.msra.mxu0 %v1501
    %2541 = vmatpush.bf16.msra.mxu0 %v1493
    %2542 = vmatpush.bf16.msra.mxu0 %v1485
    %2543 = vmatpush.bf16.msra.mxu0 %v1477
    %2544 = vmatpush.bf16.msra.mxu0 %v1469
    %2545 = vmatpush.bf16.msra.mxu0 %v1461
    %2546 = vmatmul.bf16.gmra.mxu0 %v2327
    %v2547 = vpop.f32.mrf.mxu0
    %v2548 = vadd.f32 %v2534, %v2547
    %v2549 = vpop.f32.mrf.mxu0
    %v2550 = vadd.f32 %v2536, %v2549
    %2551 = vdwg.mxu0
    %s2552 = scalar_lea.vmem [#allocation2], 256
    %v2553 = vld [vmem:[%s2552] sm:$0xff]
    %v2554 = vld [vmem:[%s2552 + $0x8] sm:$0xff]
    %v2555 = vld [vmem:[%s2552 + $0x10] sm:$0xff]
    %v2556 = vld [vmem:[%s2552 + $0x18] sm:$0xff]
    %v2557 = vld [vmem:[%s2552 + $0x40] sm:$0xff]
    %v2558 = vld [vmem:[%s2552 + $0x48] sm:$0xff]
    %v2559 = vld [vmem:[%s2552 + $0x50] sm:$0xff]
    %v2560 = vld [vmem:[%s2552 + $0x58] sm:$0xff]
    %v2561 = vadd.f32 %v2553, %v2352
    %v2562 = vadd.f32 %v2554, %v2380
    %v2563 = vadd.f32 %v2555, %v2408
    %v2564 = vadd.f32 %v2556, %v2436
    %v2565 = vadd.f32 %v2557, %v2354
    %v2566 = vadd.f32 %v2558, %v2382
    %v2567 = vadd.f32 %v2559, %v2410
    %v2568 = vadd.f32 %v2560, %v2438
    %s2569 = scalar_lea.vmem [#allocation2], 640
    %v2570 = vld [vmem:[%s2569 + $0x20] sm:$0xff]
    %v2571 = vld [vmem:[%s2569 + $0x28] sm:$0xff]
    %v2572 = vld [vmem:[%s2569 + $0x30] sm:$0xff]
    %v2573 = vld [vmem:[%s2569 + $0x38] sm:$0xff]
    %v2574 = vld [vmem:[%s2569 + $0x60] sm:$0xff]
    %v2575 = vld [vmem:[%s2569 + $0x68] sm:$0xff]
    %v2576 = vld [vmem:[%s2569 + $0x70] sm:$0xff]
    %v2577 = vld [vmem:[%s2569 + $0x78] sm:$0xff]
    %v2578 = vadd.f32 %v2570, %v2464
    %v2579 = vadd.f32 %v2571, %v2492
    %v2580 = vadd.f32 %v2572, %v2520
    %v2581 = vadd.f32 %v2573, %v2548
    %v2582 = vadd.f32 %v2574, %v2466
    %v2583 = vadd.f32 %v2575, %v2494
    %v2584 = vadd.f32 %v2576, %v2522
    %v2585 = vadd.f32 %v2577, %v2550
    %v2586 = vmul.f32 %v2561, 0.5
    %v2587 = vmul.f32 %v2562, 0.5
    %v2588 = vmul.f32 %v2563, 0.5
    %v2589 = vmul.f32 %v2565, 0.5
    %v2590 = vmul.f32 %v2566, 0.5
    %v2591 = vmul.f32 %v2567, 0.5
    %v2592 = vtanh.pop %v2586
    %v2593 = vtanh.pop %v2587
    %v2594 = vtanh.pop %v2588
    %v2595 = vtanh.pop %v2589
    %v2596 = vtanh.pop %v2590
    %v2597 = vtanh.pop %v2591
    %v2598 = vmul.f32 %v2592, 0.5
    %v2599 = vmul.f32 %v2593, 0.5
    %v2600 = vmul.f32 %v2594, 0.5
    %v2601 = vmul.f32 %v2595, 0.5
    %v2602 = vmul.f32 %v2596, 0.5
    %v2603 = vmul.f32 %v2597, 0.5
    %v2604 = vadd.f32 %v2598, 0.5
    %v2605 = vadd.f32 %v2599, 0.5
    %v2606 = vadd.f32 %v2600, 0.5
    %v2607 = vadd.f32 %v2601, 0.5
    %v2608 = vadd.f32 %v2602, 0.5
    %v2609 = vadd.f32 %v2603, 0.5
    %v2610 = vtanh.pop %v2564
    %v2611 = vtanh.pop %v2568
    %v2612 = vmul.f32 %v2605, %v2274
    %v2613 = vmul.f32 %v2608, %v2275
    %v2614 = vmul.f32 %v2604, %v2610
    %v2615 = vmul.f32 %v2607, %v2611
    %v2616 = vadd.f32 %v2612, %v2614
    %v2617 = vadd.f32 %v2613, %v2615
    %v2618 = vtanh.pop %v2616
    %v2619 = vtanh.pop %v2617
    %v2620 = vmul.f32 %v2606, %v2618
    %v2621 = vmul.f32 %v2609, %v2619
    %v2622 = vmul.f32 %v2578, 0.5
    %v2623 = vmul.f32 %v2579, 0.5
    %v2624 = vmul.f32 %v2580, 0.5
    %v2625 = vmul.f32 %v2582, 0.5
    %v2626 = vmul.f32 %v2583, 0.5
    %v2627 = vmul.f32 %v2584, 0.5
    %v2628 = vtanh.pop %v2622
    %v2629 = vtanh.pop %v2623
    %v2630 = vtanh.pop %v2624
    %v2631 = vtanh.pop %v2625
    %v2632 = vtanh.pop %v2626
    %v2633 = vtanh.pop %v2627
    %v2634 = vmul.f32 %v2628, 0.5
    %v2635 = vmul.f32 %v2629, 0.5
    %v2636 = vmul.f32 %v2630, 0.5
    %v2637 = vmul.f32 %v2631, 0.5
    %v2638 = vmul.f32 %v2632, 0.5
    %v2639 = vmul.f32 %v2633, 0.5
    %v2640 = vadd.f32 %v2634, 0.5
    %v2641 = vadd.f32 %v2635, 0.5
    %v2642 = vadd.f32 %v2636, 0.5
    %v2643 = vadd.f32 %v2637, 0.5
    %v2644 = vadd.f32 %v2638, 0.5
    %v2645 = vadd.f32 %v2639, 0.5
    %v2646 = vtanh.pop %v2581
    %v2647 = vtanh.pop %v2585
    %v2648 = vmul.f32 %v2641, %v2310
    %v2649 = vmul.f32 %v2644, %v2311
    %v2650 = vmul.f32 %v2640, %v2646
    %v2651 = vmul.f32 %v2643, %v2647
    %v2652 = vadd.f32 %v2648, %v2650
    %v2653 = vadd.f32 %v2649, %v2651
    %v2654 = vtanh.pop %v2652
    %v2655 = vtanh.pop %v2653
    %v2656 = vmul.f32 %v2642, %v2654
    %v2657 = vmul.f32 %v2645, %v2655
    %v2658 = vpack.c.bf16 %v2620, %v2620
    %v2659 = vpack.c.bf16 %v2621, %v2621
    %s2660 = scalar_lea.vmem %s4, 16
    %2661 = vst [vmem:[%s2660] sm:$0xf] %v2658
    %2662 = vst [vmem:[%s2660 + $0x4] sm:$0xf] %v2659
    %v2663 = vpack.c.bf16 %v2656, %v2656
    %v2664 = vpack.c.bf16 %v2657, %v2657
    %s2665 = scalar_lea.vmem %s4, 104
    %2666 = vst [vmem:[%s2665] sm:$0xf] %v2663
    %2667 = vst [vmem:[%s2665 + $0x4] sm:$0xf] %v2664
    %v2668 = vpack.c.bf16 %v2621, %v2620
    %v2669 = vpack.c.bf16 %v2657, %v2656
    %2670 = vmatpush.bf16.msra.mxu0 %v1446
    %2671 = vmatpush.bf16.msra.mxu0 %v1438
    %2672 = vmatpush.bf16.msra.mxu0 %v1430
    %2673 = vmatpush.bf16.msra.mxu0 %v1422
    %2674 = vmatpush.bf16.msra.mxu0 %v1414
    %2675 = vmatpush.bf16.msra.mxu0 %v1406
    %2676 = vmatpush.bf16.msra.mxu0 %v1398
    %2677 = vmatpush.bf16.msra.mxu0 %v1390
    %2678 = vmatmul.bf16.gmra.mxu0 %v2668
    %v2679 = vpop.f32.mrf.mxu0
    %v2680 = vadd.f32 0.0, %v2679
    %v2681 = vpop.f32.mrf.mxu0
    %v2682 = vadd.f32 0.0, %v2681
    %2683 = vdwg.mxu0
    %2684 = vmatpush.bf16.msra.mxu0 %v1510
    %2685 = vmatpush.bf16.msra.mxu0 %v1502
    %2686 = vmatpush.bf16.msra.mxu0 %v1494
    %2687 = vmatpush.bf16.msra.mxu0 %v1486
    %2688 = vmatpush.bf16.msra.mxu0 %v1478
    %2689 = vmatpush.bf16.msra.mxu0 %v1470
    %2690 = vmatpush.bf16.msra.mxu0 %v1462
    %2691 = vmatpush.bf16.msra.mxu0 %v1454
    %2692 = vmatmul.bf16.gmra.mxu0 %v2669
    %v2693 = vpop.f32.mrf.mxu0
    %v2694 = vadd.f32 %v2680, %v2693
    %v2695 = vpop.f32.mrf.mxu0
    %v2696 = vadd.f32 %v2682, %v2695
    %2697 = vdwg.mxu0
    %2698 = vmatpush.bf16.msra.mxu0 %v1447
    %2699 = vmatpush.bf16.msra.mxu0 %v1439
    %2700 = vmatpush.bf16.msra.mxu0 %v1431
    %2701 = vmatpush.bf16.msra.mxu0 %v1423
    %2702 = vmatpush.bf16.msra.mxu0 %v1415
    %2703 = vmatpush.bf16.msra.mxu0 %v1407
    %2704 = vmatpush.bf16.msra.mxu0 %v1399
    %2705 = vmatpush.bf16.msra.mxu0 %v1391
    %2706 = vmatmul.bf16.gmra.mxu0 %v2668
    %v2707 = vpop.f32.mrf.mxu0
    %v2708 = vadd.f32 0.0, %v2707
    %v2709 = vpop.f32.mrf.mxu0
    %v2710 = vadd.f32 0.0, %v2709
    %2711 = vdwg.mxu0
    %2712 = vmatpush.bf16.msra.mxu0 %v1511
    %2713 = vmatpush.bf16.msra.mxu0 %v1503
    %2714 = vmatpush.bf16.msra.mxu0 %v1495
    %2715 = vmatpush.bf16.msra.mxu0 %v1487
    %2716 = vmatpush.bf16.msra.mxu0 %v1479
    %2717 = vmatpush.bf16.msra.mxu0 %v1471
    %2718 = vmatpush.bf16.msra.mxu0 %v1463
    %2719 = vmatpush.bf16.msra.mxu0 %v1455
    %2720 = vmatmul.bf16.gmra.mxu0 %v2669
    %v2721 = vpop.f32.mrf.mxu0
    %v2722 = vadd.f32 %v2708, %v2721
    %v2723 = vpop.f32.mrf.mxu0
    %v2724 = vadd.f32 %v2710, %v2723
    %2725 = vdwg.mxu0
    %2726 = vmatpush.bf16.msra.mxu0 %v1448
    %2727 = vmatpush.bf16.msra.mxu0 %v1440
    %2728 = vmatpush.bf16.msra.mxu0 %v1432
    %2729 = vmatpush.bf16.msra.mxu0 %v1424
    %2730 = vmatpush.bf16.msra.mxu0 %v1416
    %2731 = vmatpush.bf16.msra.mxu0 %v1408
    %2732 = vmatpush.bf16.msra.mxu0 %v1400
    %2733 = vmatpush.bf16.msra.mxu0 %v1392
    %2734 = vmatmul.bf16.gmra.mxu0 %v2668
    %v2735 = vpop.f32.mrf.mxu0
    %v2736 = vadd.f32 0.0, %v2735
    %v2737 = vpop.f32.mrf.mxu0
    %v2738 = vadd.f32 0.0, %v2737
    %2739 = vdwg.mxu0
    %2740 = vmatpush.bf16.msra.mxu0 %v1512
    %2741 = vmatpush.bf16.msra.mxu0 %v1504
    %2742 = vmatpush.bf16.msra.mxu0 %v1496
    %2743 = vmatpush.bf16.msra.mxu0 %v1488
    %2744 = vmatpush.bf16.msra.mxu0 %v1480
    %2745 = vmatpush.bf16.msra.mxu0 %v1472
    %2746 = vmatpush.bf16.msra.mxu0 %v1464
    %2747 = vmatpush.bf16.msra.mxu0 %v1456
    %2748 = vmatmul.bf16.gmra.mxu0 %v2669
    %v2749 = vpop.f32.mrf.mxu0
    %v2750 = vadd.f32 %v2736, %v2749
    %v2751 = vpop.f32.mrf.mxu0
    %v2752 = vadd.f32 %v2738, %v2751
    %2753 = vdwg.mxu0
    %2754 = vmatpush.bf16.msra.mxu0 %v1449
    %2755 = vmatpush.bf16.msra.mxu0 %v1441
    %2756 = vmatpush.bf16.msra.mxu0 %v1433
    %2757 = vmatpush.bf16.msra.mxu0 %v1425
    %2758 = vmatpush.bf16.msra.mxu0 %v1417
    %2759 = vmatpush.bf16.msra.mxu0 %v1409
    %2760 = vmatpush.bf16.msra.mxu0 %v1401
    %2761 = vmatpush.bf16.msra.mxu0 %v1393
    %2762 = vmatmul.bf16.gmra.mxu0 %v2668
    %v2763 = vpop.f32.mrf.mxu0
    %v2764 = vadd.f32 0.0, %v2763
    %v2765 = vpop.f32.mrf.mxu0
    %v2766 = vadd.f32 0.0, %v2765
    %2767 = vdwg.mxu0
    %2768 = vmatpush.bf16.msra.mxu0 %v1513
    %2769 = vmatpush.bf16.msra.mxu0 %v1505
    %2770 = vmatpush.bf16.msra.mxu0 %v1497
    %2771 = vmatpush.bf16.msra.mxu0 %v1489
    %2772 = vmatpush.bf16.msra.mxu0 %v1481
    %2773 = vmatpush.bf16.msra.mxu0 %v1473
    %2774 = vmatpush.bf16.msra.mxu0 %v1465
    %2775 = vmatpush.bf16.msra.mxu0 %v1457
    %2776 = vmatmul.bf16.gmra.mxu0 %v2669
    %v2777 = vpop.f32.mrf.mxu0
    %v2778 = vadd.f32 %v2764, %v2777
    %v2779 = vpop.f32.mrf.mxu0
    %v2780 = vadd.f32 %v2766, %v2779
    %2781 = vdwg.mxu0
    %2782 = vmatpush.bf16.msra.mxu0 %v1450
    %2783 = vmatpush.bf16.msra.mxu0 %v1442
    %2784 = vmatpush.bf16.msra.mxu0 %v1434
    %2785 = vmatpush.bf16.msra.mxu0 %v1426
    %2786 = vmatpush.bf16.msra.mxu0 %v1418
    %2787 = vmatpush.bf16.msra.mxu0 %v1410
    %2788 = vmatpush.bf16.msra.mxu0 %v1402
    %2789 = vmatpush.bf16.msra.mxu0 %v1394
    %2790 = vmatmul.bf16.gmra.mxu0 %v2668
    %v2791 = vpop.f32.mrf.mxu0
    %v2792 = vadd.f32 0.0, %v2791
    %v2793 = vpop.f32.mrf.mxu0
    %v2794 = vadd.f32 0.0, %v2793
    %2795 = vdwg.mxu0
    %2796 = vmatpush.bf16.msra.mxu0 %v1514
    %2797 = vmatpush.bf16.msra.mxu0 %v1506
    %2798 = vmatpush.bf16.msra.mxu0 %v1498
    %2799 = vmatpush.bf16.msra.mxu0 %v1490
    %2800 = vmatpush.bf16.msra.mxu0 %v1482
    %2801 = vmatpush.bf16.msra.mxu0 %v1474
    %2802 = vmatpush.bf16.msra.mxu0 %v1466
    %2803 = vmatpush.bf16.msra.mxu0 %v1458
    %2804 = vmatmul.bf16.gmra.mxu0 %v2669
    %v2805 = vpop.f32.mrf.mxu0
    %v2806 = vadd.f32 %v2792, %v2805
    %v2807 = vpop.f32.mrf.mxu0
    %v2808 = vadd.f32 %v2794, %v2807
    %2809 = vdwg.mxu0
    %2810 = vmatpush.bf16.msra.mxu0 %v1451
    %2811 = vmatpush.bf16.msra.mxu0 %v1443
    %2812 = vmatpush.bf16.msra.mxu0 %v1435
    %2813 = vmatpush.bf16.msra.mxu0 %v1427
    %2814 = vmatpush.bf16.msra.mxu0 %v1419
    %2815 = vmatpush.bf16.msra.mxu0 %v1411
    %2816 = vmatpush.bf16.msra.mxu0 %v1403
    %2817 = vmatpush.bf16.msra.mxu0 %v1395
    %2818 = vmatmul.bf16.gmra.mxu0 %v2668
    %v2819 = vpop.f32.mrf.mxu0
    %v2820 = vadd.f32 0.0, %v2819
    %v2821 = vpop.f32.mrf.mxu0
    %v2822 = vadd.f32 0.0, %v2821
    %2823 = vdwg.mxu0
    %2824 = vmatpush.bf16.msra.mxu0 %v1515
    %2825 = vmatpush.bf16.msra.mxu0 %v1507
    %2826 = vmatpush.bf16.msra.mxu0 %v1499
    %2827 = vmatpush.bf16.msra.mxu0 %v1491
    %2828 = vmatpush.bf16.msra.mxu0 %v1483
    %2829 = vmatpush.bf16.msra.mxu0 %v1475
    %2830 = vmatpush.bf16.msra.mxu0 %v1467
    %2831 = vmatpush.bf16.msra.mxu0 %v1459
    %2832 = vmatmul.bf16.gmra.mxu0 %v2669
    %v2833 = vpop.f32.mrf.mxu0
    %v2834 = vadd.f32 %v2820, %v2833
    %v2835 = vpop.f32.mrf.mxu0
    %v2836 = vadd.f32 %v2822, %v2835
    %2837 = vdwg.mxu0
    %2838 = vmatpush.bf16.msra.mxu0 %v1452
    %2839 = vmatpush.bf16.msra.mxu0 %v1444
    %2840 = vmatpush.bf16.msra.mxu0 %v1436
    %2841 = vmatpush.bf16.msra.mxu0 %v1428
    %2842 = vmatpush.bf16.msra.mxu0 %v1420
    %2843 = vmatpush.bf16.msra.mxu0 %v1412
    %2844 = vmatpush.bf16.msra.mxu0 %v1404
    %2845 = vmatpush.bf16.msra.mxu0 %v1396
    %2846 = vmatmul.bf16.gmra.mxu0 %v2668
    %v2847 = vpop.f32.mrf.mxu0
    %v2848 = vadd.f32 0.0, %v2847
    %v2849 = vpop.f32.mrf.mxu0
    %v2850 = vadd.f32 0.0, %v2849
    %2851 = vdwg.mxu0
    %2852 = vmatpush.bf16.msra.mxu0 %v1516
    %2853 = vmatpush.bf16.msra.mxu0 %v1508
    %2854 = vmatpush.bf16.msra.mxu0 %v1500
    %2855 = vmatpush.bf16.msra.mxu0 %v1492
    %2856 = vmatpush.bf16.msra.mxu0 %v1484
    %2857 = vmatpush.bf16.msra.mxu0 %v1476
    %2858 = vmatpush.bf16.msra.mxu0 %v1468
    %2859 = vmatpush.bf16.msra.mxu0 %v1460
    %2860 = vmatmul.bf16.gmra.mxu0 %v2669
    %v2861 = vpop.f32.mrf.mxu0
    %v2862 = vadd.f32 %v2848, %v2861
    %v2863 = vpop.f32.mrf.mxu0
    %v2864 = vadd.f32 %v2850, %v2863
    %2865 = vdwg.mxu0
    %2866 = vmatpush.bf16.msra.mxu0 %v1453
    %2867 = vmatpush.bf16.msra.mxu0 %v1445
    %2868 = vmatpush.bf16.msra.mxu0 %v1437
    %2869 = vmatpush.bf16.msra.mxu0 %v1429
    %2870 = vmatpush.bf16.msra.mxu0 %v1421
    %2871 = vmatpush.bf16.msra.mxu0 %v1413
    %2872 = vmatpush.bf16.msra.mxu0 %v1405
    %2873 = vmatpush.bf16.msra.mxu0 %v1397
    %2874 = vmatmul.bf16.gmra.mxu0 %v2668
    %v2875 = vpop.f32.mrf.mxu0
    %v2876 = vadd.f32 0.0, %v2875
    %v2877 = vpop.f32.mrf.mxu0
    %v2878 = vadd.f32 0.0, %v2877
    %2879 = vdwg.mxu0
    %2880 = vmatpush.bf16.msra.mxu0 %v1517
    %2881 = vmatpush.bf16.msra.mxu0 %v1509
    %2882 = vmatpush.bf16.msra.mxu0 %v1501
    %2883 = vmatpush.bf16.msra.mxu0 %v1493
    %2884 = vmatpush.bf16.msra.mxu0 %v1485
    %2885 = vmatpush.bf16.msra.mxu0 %v1477
    %2886 = vmatpush.bf16.msra.mxu0 %v1469
    %2887 = vmatpush.bf16.msra.mxu0 %v1461
    %2888 = vmatmul.bf16.gmra.mxu0 %v2669
    %v2889 = vpop.f32.mrf.mxu0
    %v2890 = vadd.f32 %v2876, %v2889
    %v2891 = vpop.f32.mrf.mxu0
    %v2892 = vadd.f32 %v2878, %v2891
    %2893 = vdwg.mxu0
    %s2894 = scalar_lea.vmem [#allocation2], 384
    %v2895 = vld [vmem:[%s2894] sm:$0xff]
    %v2896 = vld [vmem:[%s2894 + $0x8] sm:$0xff]
    %v2897 = vld [vmem:[%s2894 + $0x10] sm:$0xff]
    %v2898 = vld [vmem:[%s2894 + $0x18] sm:$0xff]
    %v2899 = vld [vmem:[%s2894 + $0x40] sm:$0xff]
    %v2900 = vld [vmem:[%s2894 + $0x48] sm:$0xff]
    %v2901 = vld [vmem:[%s2894 + $0x50] sm:$0xff]
    %v2902 = vld [vmem:[%s2894 + $0x58] sm:$0xff]
    %v2903 = vadd.f32 %v2895, %v2694
    %v2904 = vadd.f32 %v2896, %v2722
    %v2905 = vadd.f32 %v2897, %v2750
    %v2906 = vadd.f32 %v2898, %v2778
    %v2907 = vadd.f32 %v2899, %v2696
    %v2908 = vadd.f32 %v2900, %v2724
    %v2909 = vadd.f32 %v2901, %v2752
    %v2910 = vadd.f32 %v2902, %v2780
    %s2911 = scalar_lea.vmem [#allocation2], 512
    %v2912 = vld [vmem:[%s2911 + $0x20] sm:$0xff]
    %v2913 = vld [vmem:[%s2911 + $0x28] sm:$0xff]
    %v2914 = vld [vmem:[%s2911 + $0x30] sm:$0xff]
    %v2915 = vld [vmem:[%s2911 + $0x38] sm:$0xff]
    %v2916 = vld [vmem:[%s2911 + $0x60] sm:$0xff]
    %v2917 = vld [vmem:[%s2911 + $0x68] sm:$0xff]
    %v2918 = vld [vmem:[%s2911 + $0x70] sm:$0xff]
    %v2919 = vld [vmem:[%s2911 + $0x78] sm:$0xff]
    %v2920 = vadd.f32 %v2912, %v2806
    %v2921 = vadd.f32 %v2913, %v2834
    %v2922 = vadd.f32 %v2914, %v2862
    %v2923 = vadd.f32 %v2915, %v2890
    %v2924 = vadd.f32 %v2916, %v2808
    %v2925 = vadd.f32 %v2917, %v2836
    %v2926 = vadd.f32 %v2918, %v2864
    %v2927 = vadd.f32 %v2919, %v2892
    %v2928 = vmul.f32 %v2903, 0.5
    %v2929 = vmul.f32 %v2904, 0.5
    %v2930 = vmul.f32 %v2905, 0.5
    %v2931 = vmul.f32 %v2907, 0.5
    %v2932 = vmul.f32 %v2908, 0.5
    %v2933 = vmul.f32 %v2909, 0.5
    %v2934 = vtanh.pop %v2928
    %v2935 = vtanh.pop %v2929
    %v2936 = vtanh.pop %v2930
    %v2937 = vtanh.pop %v2931
    %v2938 = vtanh.pop %v2932
    %v2939 = vtanh.pop %v2933
    %v2940 = vmul.f32 %v2934, 0.5
    %v2941 = vmul.f32 %v2935, 0.5
    %v2942 = vmul.f32 %v2936, 0.5
    %v2943 = vmul.f32 %v2937, 0.5
    %v2944 = vmul.f32 %v2938, 0.5
    %v2945 = vmul.f32 %v2939, 0.5
    %v2946 = vadd.f32 %v2940, 0.5
    %v2947 = vadd.f32 %v2941, 0.5
    %v2948 = vadd.f32 %v2942, 0.5
    %v2949 = vadd.f32 %v2943, 0.5
    %v2950 = vadd.f32 %v2944, 0.5
    %v2951 = vadd.f32 %v2945, 0.5
    %v2952 = vtanh.pop %v2906
    %v2953 = vtanh.pop %v2910
    %v2954 = vmul.f32 %v2947, %v2616
    %v2955 = vmul.f32 %v2950, %v2617
    %v2956 = vmul.f32 %v2946, %v2952
    %v2957 = vmul.f32 %v2949, %v2953
    %v2958 = vadd.f32 %v2954, %v2956
    %v2959 = vadd.f32 %v2955, %v2957
    %v2960 = vtanh.pop %v2958
    %v2961 = vtanh.pop %v2959
    %v2962 = vmul.f32 %v2948, %v2960
    %v2963 = vmul.f32 %v2951, %v2961
    %v2964 = vmul.f32 %v2920, 0.5
    %v2965 = vmul.f32 %v2921, 0.5
    %v2966 = vmul.f32 %v2922, 0.5
    %v2967 = vmul.f32 %v2924, 0.5
    %v2968 = vmul.f32 %v2925, 0.5
    %v2969 = vmul.f32 %v2926, 0.5
    %v2970 = vtanh.pop %v2964
    %v2971 = vtanh.pop %v2965
    %v2972 = vtanh.pop %v2966
    %v2973 = vtanh.pop %v2967
    %v2974 = vtanh.pop %v2968
    %v2975 = vtanh.pop %v2969
    %v2976 = vmul.f32 %v2970, 0.5
    %v2977 = vmul.f32 %v2971, 0.5
    %v2978 = vmul.f32 %v2972, 0.5
    %v2979 = vmul.f32 %v2973, 0.5
    %v2980 = vmul.f32 %v2974, 0.5
    %v2981 = vmul.f32 %v2975, 0.5
    %v2982 = vadd.f32 %v2976, 0.5
    %v2983 = vadd.f32 %v2977, 0.5
    %v2984 = vadd.f32 %v2978, 0.5
    %v2985 = vadd.f32 %v2979, 0.5
    %v2986 = vadd.f32 %v2980, 0.5
    %v2987 = vadd.f32 %v2981, 0.5
    %v2988 = vtanh.pop %v2923
    %v2989 = vtanh.pop %v2927
    %v2990 = vmul.f32 %v2983, %v2652
    %v2991 = vmul.f32 %v2986, %v2653
    %v2992 = vmul.f32 %v2982, %v2988
    %v2993 = vmul.f32 %v2985, %v2989
    %v2994 = vadd.f32 %v2990, %v2992
    %v2995 = vadd.f32 %v2991, %v2993
    %v2996 = vtanh.pop %v2994
    %v2997 = vtanh.pop %v2995
    %v2998 = vmul.f32 %v2984, %v2996
    %v2999 = vmul.f32 %v2987, %v2997
    %v3000 = vpack.c.bf16 %v2962, %v2962
    %v3001 = vpack.c.bf16 %v2963, %v2963
    %s3002 = scalar_lea.vmem %s4, 24
    %3003 = vst [vmem:[%s3002] sm:$0xf] %v3000
    %3004 = vst [vmem:[%s3002 + $0x4] sm:$0xf] %v3001
    %v3005 = vpack.c.bf16 %v2998, %v2998
    %v3006 = vpack.c.bf16 %v2999, %v2999
    %s3007 = scalar_lea.vmem %s4, 96
    %3008 = vst [vmem:[%s3007] sm:$0xf] %v3005
    %3009 = vst [vmem:[%s3007 + $0x4] sm:$0xf] %v3006
    %v3010 = vpack.c.bf16 %v2963, %v2962
    %v3011 = vpack.c.bf16 %v2999, %v2998
    %3012 = vmatpush.bf16.msra.mxu0 %v1446
    %3013 = vmatpush.bf16.msra.mxu0 %v1438
    %3014 = vmatpush.bf16.msra.mxu0 %v1430
    %3015 = vmatpush.bf16.msra.mxu0 %v1422
    %3016 = vmatpush.bf16.msra.mxu0 %v1414
    %3017 = vmatpush.bf16.msra.mxu0 %v1406
    %3018 = vmatpush.bf16.msra.mxu0 %v1398
    %3019 = vmatpush.bf16.msra.mxu0 %v1390
    %3020 = vmatmul.bf16.gmra.mxu0 %v3010
    %v3021 = vpop.f32.mrf.mxu0
    %v3022 = vadd.f32 0.0, %v3021
    %v3023 = vpop.f32.mrf.mxu0
    %v3024 = vadd.f32 0.0, %v3023
    %3025 = vdwg.mxu0
    %3026 = vmatpush.bf16.msra.mxu0 %v1510
    %3027 = vmatpush.bf16.msra.mxu0 %v1502
    %3028 = vmatpush.bf16.msra.mxu0 %v1494
    %3029 = vmatpush.bf16.msra.mxu0 %v1486
    %3030 = vmatpush.bf16.msra.mxu0 %v1478
    %3031 = vmatpush.bf16.msra.mxu0 %v1470
    %3032 = vmatpush.bf16.msra.mxu0 %v1462
    %3033 = vmatpush.bf16.msra.mxu0 %v1454
    %3034 = vmatmul.bf16.gmra.mxu0 %v3011
    %v3035 = vpop.f32.mrf.mxu0
    %v3036 = vadd.f32 %v3022, %v3035
    %v3037 = vpop.f32.mrf.mxu0
    %v3038 = vadd.f32 %v3024, %v3037
    %3039 = vdwg.mxu0
    %3040 = vmatpush.bf16.msra.mxu0 %v1447
    %3041 = vmatpush.bf16.msra.mxu0 %v1439
    %3042 = vmatpush.bf16.msra.mxu0 %v1431
    %3043 = vmatpush.bf16.msra.mxu0 %v1423
    %3044 = vmatpush.bf16.msra.mxu0 %v1415
    %3045 = vmatpush.bf16.msra.mxu0 %v1407
    %3046 = vmatpush.bf16.msra.mxu0 %v1399
    %3047 = vmatpush.bf16.msra.mxu0 %v1391
    %3048 = vmatmul.bf16.gmra.mxu0 %v3010
    %v3049 = vpop.f32.mrf.mxu0
    %v3050 = vadd.f32 0.0, %v3049
    %v3051 = vpop.f32.mrf.mxu0
    %v3052 = vadd.f32 0.0, %v3051
    %3053 = vdwg.mxu0
    %3054 = vmatpush.bf16.msra.mxu0 %v1511
    %3055 = vmatpush.bf16.msra.mxu0 %v1503
    %3056 = vmatpush.bf16.msra.mxu0 %v1495
    %3057 = vmatpush.bf16.msra.mxu0 %v1487
    %3058 = vmatpush.bf16.msra.mxu0 %v1479
    %3059 = vmatpush.bf16.msra.mxu0 %v1471
    %3060 = vmatpush.bf16.msra.mxu0 %v1463
    %3061 = vmatpush.bf16.msra.mxu0 %v1455
    %3062 = vmatmul.bf16.gmra.mxu0 %v3011
    %v3063 = vpop.f32.mrf.mxu0
    %v3064 = vadd.f32 %v3050, %v3063
    %v3065 = vpop.f32.mrf.mxu0
    %v3066 = vadd.f32 %v3052, %v3065
    %3067 = vdwg.mxu0
    %3068 = vmatpush.bf16.msra.mxu0 %v1448
    %3069 = vmatpush.bf16.msra.mxu0 %v1440
    %3070 = vmatpush.bf16.msra.mxu0 %v1432
    %3071 = vmatpush.bf16.msra.mxu0 %v1424
    %3072 = vmatpush.bf16.msra.mxu0 %v1416
    %3073 = vmatpush.bf16.msra.mxu0 %v1408
    %3074 = vmatpush.bf16.msra.mxu0 %v1400
    %3075 = vmatpush.bf16.msra.mxu0 %v1392
    %3076 = vmatmul.bf16.gmra.mxu0 %v3010
    %v3077 = vpop.f32.mrf.mxu0
    %v3078 = vadd.f32 0.0, %v3077
    %v3079 = vpop.f32.mrf.mxu0
    %v3080 = vadd.f32 0.0, %v3079
    %3081 = vdwg.mxu0
    %3082 = vmatpush.bf16.msra.mxu0 %v1512
    %3083 = vmatpush.bf16.msra.mxu0 %v1504
    %3084 = vmatpush.bf16.msra.mxu0 %v1496
    %3085 = vmatpush.bf16.msra.mxu0 %v1488
    %3086 = vmatpush.bf16.msra.mxu0 %v1480
    %3087 = vmatpush.bf16.msra.mxu0 %v1472
    %3088 = vmatpush.bf16.msra.mxu0 %v1464
    %3089 = vmatpush.bf16.msra.mxu0 %v1456
    %3090 = vmatmul.bf16.gmra.mxu0 %v3011
    %v3091 = vpop.f32.mrf.mxu0
    %v3092 = vadd.f32 %v3078, %v3091
    %v3093 = vpop.f32.mrf.mxu0
    %v3094 = vadd.f32 %v3080, %v3093
    %3095 = vdwg.mxu0
    %3096 = vmatpush.bf16.msra.mxu0 %v1449
    %3097 = vmatpush.bf16.msra.mxu0 %v1441
    %3098 = vmatpush.bf16.msra.mxu0 %v1433
    %3099 = vmatpush.bf16.msra.mxu0 %v1425
    %3100 = vmatpush.bf16.msra.mxu0 %v1417
    %3101 = vmatpush.bf16.msra.mxu0 %v1409
    %3102 = vmatpush.bf16.msra.mxu0 %v1401
    %3103 = vmatpush.bf16.msra.mxu0 %v1393
    %3104 = vmatmul.bf16.gmra.mxu0 %v3010
    %v3105 = vpop.f32.mrf.mxu0
    %v3106 = vadd.f32 0.0, %v3105
    %v3107 = vpop.f32.mrf.mxu0
    %v3108 = vadd.f32 0.0, %v3107
    %3109 = vdwg.mxu0
    %3110 = vmatpush.bf16.msra.mxu0 %v1513
    %3111 = vmatpush.bf16.msra.mxu0 %v1505
    %3112 = vmatpush.bf16.msra.mxu0 %v1497
    %3113 = vmatpush.bf16.msra.mxu0 %v1489
    %3114 = vmatpush.bf16.msra.mxu0 %v1481
    %3115 = vmatpush.bf16.msra.mxu0 %v1473
    %3116 = vmatpush.bf16.msra.mxu0 %v1465
    %3117 = vmatpush.bf16.msra.mxu0 %v1457
    %3118 = vmatmul.bf16.gmra.mxu0 %v3011
    %v3119 = vpop.f32.mrf.mxu0
    %v3120 = vadd.f32 %v3106, %v3119
    %v3121 = vpop.f32.mrf.mxu0
    %v3122 = vadd.f32 %v3108, %v3121
    %3123 = vdwg.mxu0
    %3124 = vmatpush.bf16.msra.mxu0 %v1450
    %3125 = vmatpush.bf16.msra.mxu0 %v1442
    %3126 = vmatpush.bf16.msra.mxu0 %v1434
    %3127 = vmatpush.bf16.msra.mxu0 %v1426
    %3128 = vmatpush.bf16.msra.mxu0 %v1418
    %3129 = vmatpush.bf16.msra.mxu0 %v1410
    %3130 = vmatpush.bf16.msra.mxu0 %v1402
    %3131 = vmatpush.bf16.msra.mxu0 %v1394
    %3132 = vmatmul.bf16.gmra.mxu0 %v3010
    %v3133 = vpop.f32.mrf.mxu0
    %v3134 = vadd.f32 0.0, %v3133
    %v3135 = vpop.f32.mrf.mxu0
    %v3136 = vadd.f32 0.0, %v3135
    %3137 = vdwg.mxu0
    %3138 = vmatpush.bf16.msra.mxu0 %v1514
    %3139 = vmatpush.bf16.msra.mxu0 %v1506
    %3140 = vmatpush.bf16.msra.mxu0 %v1498
    %3141 = vmatpush.bf16.msra.mxu0 %v1490
    %3142 = vmatpush.bf16.msra.mxu0 %v1482
    %3143 = vmatpush.bf16.msra.mxu0 %v1474
    %3144 = vmatpush.bf16.msra.mxu0 %v1466
    %3145 = vmatpush.bf16.msra.mxu0 %v1458
    %3146 = vmatmul.bf16.gmra.mxu0 %v3011
    %v3147 = vpop.f32.mrf.mxu0
    %v3148 = vadd.f32 %v3134, %v3147
    %v3149 = vpop.f32.mrf.mxu0
    %v3150 = vadd.f32 %v3136, %v3149
    %3151 = vdwg.mxu0
    %3152 = vmatpush.bf16.msra.mxu0 %v1451
    %3153 = vmatpush.bf16.msra.mxu0 %v1443
    %3154 = vmatpush.bf16.msra.mxu0 %v1435
    %3155 = vmatpush.bf16.msra.mxu0 %v1427
    %3156 = vmatpush.bf16.msra.mxu0 %v1419
    %3157 = vmatpush.bf16.msra.mxu0 %v1411
    %3158 = vmatpush.bf16.msra.mxu0 %v1403
    %3159 = vmatpush.bf16.msra.mxu0 %v1395
    %3160 = vmatmul.bf16.gmra.mxu0 %v3010
    %v3161 = vpop.f32.mrf.mxu0
    %v3162 = vadd.f32 0.0, %v3161
    %v3163 = vpop.f32.mrf.mxu0
    %v3164 = vadd.f32 0.0, %v3163
    %3165 = vdwg.mxu0
    %3166 = vmatpush.bf16.msra.mxu0 %v1515
    %3167 = vmatpush.bf16.msra.mxu0 %v1507
    %3168 = vmatpush.bf16.msra.mxu0 %v1499
    %3169 = vmatpush.bf16.msra.mxu0 %v1491
    %3170 = vmatpush.bf16.msra.mxu0 %v1483
    %3171 = vmatpush.bf16.msra.mxu0 %v1475
    %3172 = vmatpush.bf16.msra.mxu0 %v1467
    %3173 = vmatpush.bf16.msra.mxu0 %v1459
    %3174 = vmatmul.bf16.gmra.mxu0 %v3011
    %v3175 = vpop.f32.mrf.mxu0
    %v3176 = vadd.f32 %v3162, %v3175
    %v3177 = vpop.f32.mrf.mxu0
    %v3178 = vadd.f32 %v3164, %v3177
    %3179 = vdwg.mxu0
    %3180 = vmatpush.bf16.msra.mxu0 %v1452
    %3181 = vmatpush.bf16.msra.mxu0 %v1444
    %3182 = vmatpush.bf16.msra.mxu0 %v1436
    %3183 = vmatpush.bf16.msra.mxu0 %v1428
    %3184 = vmatpush.bf16.msra.mxu0 %v1420
    %3185 = vmatpush.bf16.msra.mxu0 %v1412
    %3186 = vmatpush.bf16.msra.mxu0 %v1404
    %3187 = vmatpush.bf16.msra.mxu0 %v1396
    %3188 = vmatmul.bf16.gmra.mxu0 %v3010
    %v3189 = vpop.f32.mrf.mxu0
    %v3190 = vadd.f32 0.0, %v3189
    %v3191 = vpop.f32.mrf.mxu0
    %v3192 = vadd.f32 0.0, %v3191
    %3193 = vdwg.mxu0
    %3194 = vmatpush.bf16.msra.mxu0 %v1516
    %3195 = vmatpush.bf16.msra.mxu0 %v1508
    %3196 = vmatpush.bf16.msra.mxu0 %v1500
    %3197 = vmatpush.bf16.msra.mxu0 %v1492
    %3198 = vmatpush.bf16.msra.mxu0 %v1484
    %3199 = vmatpush.bf16.msra.mxu0 %v1476
    %3200 = vmatpush.bf16.msra.mxu0 %v1468
    %3201 = vmatpush.bf16.msra.mxu0 %v1460
    %3202 = vmatmul.bf16.gmra.mxu0 %v3011
    %v3203 = vpop.f32.mrf.mxu0
    %v3204 = vadd.f32 %v3190, %v3203
    %v3205 = vpop.f32.mrf.mxu0
    %v3206 = vadd.f32 %v3192, %v3205
    %3207 = vdwg.mxu0
    %3208 = vmatpush.bf16.msra.mxu0 %v1453
    %3209 = vmatpush.bf16.msra.mxu0 %v1445
    %3210 = vmatpush.bf16.msra.mxu0 %v1437
    %3211 = vmatpush.bf16.msra.mxu0 %v1429
    %3212 = vmatpush.bf16.msra.mxu0 %v1421
    %3213 = vmatpush.bf16.msra.mxu0 %v1413
    %3214 = vmatpush.bf16.msra.mxu0 %v1405
    %3215 = vmatpush.bf16.msra.mxu0 %v1397
    %3216 = vmatmul.bf16.gmra.mxu0 %v3010
    %v3217 = vpop.f32.mrf.mxu0
    %v3218 = vadd.f32 0.0, %v3217
    %v3219 = vpop.f32.mrf.mxu0
    %v3220 = vadd.f32 0.0, %v3219
    %3221 = vdwg.mxu0
    %3222 = vmatpush.bf16.msra.mxu0 %v1517
    %3223 = vmatpush.bf16.msra.mxu0 %v1509
    %3224 = vmatpush.bf16.msra.mxu0 %v1501
    %3225 = vmatpush.bf16.msra.mxu0 %v1493
    %3226 = vmatpush.bf16.msra.mxu0 %v1485
    %3227 = vmatpush.bf16.msra.mxu0 %v1477
    %3228 = vmatpush.bf16.msra.mxu0 %v1469
    %3229 = vmatpush.bf16.msra.mxu0 %v1461
    %3230 = vmatmul.bf16.gmra.mxu0 %v3011
    %v3231 = vpop.f32.mrf.mxu0
    %v3232 = vadd.f32 %v3218, %v3231
    %v3233 = vpop.f32.mrf.mxu0
    %v3234 = vadd.f32 %v3220, %v3233
    %3235 = vdwg.mxu0
    %v3236 = vld [vmem:[%s2911] sm:$0xff]
    %v3237 = vld [vmem:[%s2911 + $0x8] sm:$0xff]
    %v3238 = vld [vmem:[%s2911 + $0x10] sm:$0xff]
    %v3239 = vld [vmem:[%s2911 + $0x18] sm:$0xff]
    %v3240 = vld [vmem:[%s2911 + $0x40] sm:$0xff]
    %v3241 = vld [vmem:[%s2911 + $0x48] sm:$0xff]
    %v3242 = vld [vmem:[%s2911 + $0x50] sm:$0xff]
    %v3243 = vld [vmem:[%s2911 + $0x58] sm:$0xff]
    %v3244 = vadd.f32 %v3236, %v3036
    %v3245 = vadd.f32 %v3237, %v3064
    %v3246 = vadd.f32 %v3238, %v3092
    %v3247 = vadd.f32 %v3239, %v3120
    %v3248 = vadd.f32 %v3240, %v3038
    %v3249 = vadd.f32 %v3241, %v3066
    %v3250 = vadd.f32 %v3242, %v3094
    %v3251 = vadd.f32 %v3243, %v3122
    %v3252 = vld [vmem:[%s2894 + $0x20] sm:$0xff]
    %v3253 = vld [vmem:[%s2894 + $0x28] sm:$0xff]
    %v3254 = vld [vmem:[%s2894 + $0x30] sm:$0xff]
    %v3255 = vld [vmem:[%s2894 + $0x38] sm:$0xff]
    %v3256 = vld [vmem:[%s2894 + $0x60] sm:$0xff]
    %v3257 = vld [vmem:[%s2894 + $0x68] sm:$0xff]
    %v3258 = vld [vmem:[%s2894 + $0x70] sm:$0xff]
    %v3259 = vld [vmem:[%s2894 + $0x78] sm:$0xff]
    %v3260 = vadd.f32 %v3252, %v3148
    %v3261 = vadd.f32 %v3253, %v3176
    %v3262 = vadd.f32 %v3254, %v3204
    %v3263 = vadd.f32 %v3255, %v3232
    %v3264 = vadd.f32 %v3256, %v3150
    %v3265 = vadd.f32 %v3257, %v3178
    %v3266 = vadd.f32 %v3258, %v3206
    %v3267 = vadd.f32 %v3259, %v3234
    %v3268 = vmul.f32 %v3244, 0.5
    %v3269 = vmul.f32 %v3245, 0.5
    %v3270 = vmul.f32 %v3246, 0.5
    %v3271 = vmul.f32 %v3248, 0.5
    %v3272 = vmul.f32 %v3249, 0.5
    %v3273 = vmul.f32 %v3250, 0.5
    %v3274 = vtanh.pop %v3268
    %v3275 = vtanh.pop %v3269
    %v3276 = vtanh.pop %v3270
    %v3277 = vtanh.pop %v3271
    %v3278 = vtanh.pop %v3272
    %v3279 = vtanh.pop %v3273
    %v3280 = vmul.f32 %v3274, 0.5
    %v3281 = vmul.f32 %v3275, 0.5
    %v3282 = vmul.f32 %v3276, 0.5
    %v3283 = vmul.f32 %v3277, 0.5
    %v3284 = vmul.f32 %v3278, 0.5
    %v3285 = vmul.f32 %v3279, 0.5
    %v3286 = vadd.f32 %v3280, 0.5
    %v3287 = vadd.f32 %v3281, 0.5
    %v3288 = vadd.f32 %v3282, 0.5
    %v3289 = vadd.f32 %v3283, 0.5
    %v3290 = vadd.f32 %v3284, 0.5
    %v3291 = vadd.f32 %v3285, 0.5
    %v3292 = vtanh.pop %v3247
    %v3293 = vtanh.pop %v3251
    %v3294 = vmul.f32 %v3287, %v2958
    %v3295 = vmul.f32 %v3290, %v2959
    %v3296 = vmul.f32 %v3286, %v3292
    %v3297 = vmul.f32 %v3289, %v3293
    %v3298 = vadd.f32 %v3294, %v3296
    %v3299 = vadd.f32 %v3295, %v3297
    %v3300 = vtanh.pop %v3298
    %v3301 = vtanh.pop %v3299
    %v3302 = vmul.f32 %v3288, %v3300
    %v3303 = vmul.f32 %v3291, %v3301
    %v3304 = vmul.f32 %v3260, 0.5
    %v3305 = vmul.f32 %v3261, 0.5
    %v3306 = vmul.f32 %v3262, 0.5
    %v3307 = vmul.f32 %v3264, 0.5
    %v3308 = vmul.f32 %v3265, 0.5
    %v3309 = vmul.f32 %v3266, 0.5
    %v3310 = vtanh.pop %v3304
    %v3311 = vtanh.pop %v3305
    %v3312 = vtanh.pop %v3306
    %v3313 = vtanh.pop %v3307
    %v3314 = vtanh.pop %v3308
    %v3315 = vtanh.pop %v3309
    %v3316 = vmul.f32 %v3310, 0.5
    %v3317 = vmul.f32 %v3311, 0.5
    %v3318 = vmul.f32 %v3312, 0.5
    %v3319 = vmul.f32 %v3313, 0.5
    %v3320 = vmul.f32 %v3314, 0.5
    %v3321 = vmul.f32 %v3315, 0.5
    %v3322 = vadd.f32 %v3316, 0.5
    %v3323 = vadd.f32 %v3317, 0.5
    %v3324 = vadd.f32 %v3318, 0.5
    %v3325 = vadd.f32 %v3319, 0.5
    %v3326 = vadd.f32 %v3320, 0.5
    %v3327 = vadd.f32 %v3321, 0.5
    %v3328 = vtanh.pop %v3263
    %v3329 = vtanh.pop %v3267
    %v3330 = vmul.f32 %v3323, %v2994
    %v3331 = vmul.f32 %v3326, %v2995
    %v3332 = vmul.f32 %v3322, %v3328
    %v3333 = vmul.f32 %v3325, %v3329
    %v3334 = vadd.f32 %v3330, %v3332
    %v3335 = vadd.f32 %v3331, %v3333
    %v3336 = vtanh.pop %v3334
    %v3337 = vtanh.pop %v3335
    %v3338 = vmul.f32 %v3324, %v3336
    %v3339 = vmul.f32 %v3327, %v3337
    %v3340 = vpack.c.bf16 %v3302, %v3302
    %v3341 = vpack.c.bf16 %v3303, %v3303
    %s3342 = scalar_lea.vmem %s4, 32
    %3343 = vst [vmem:[%s3342] sm:$0xf] %v3340
    %3344 = vst [vmem:[%s3342 + $0x4] sm:$0xf] %v3341
    %v3345 = vpack.c.bf16 %v3338, %v3338
    %v3346 = vpack.c.bf16 %v3339, %v3339
    %s3347 = scalar_lea.vmem %s4, 88
    %3348 = vst [vmem:[%s3347] sm:$0xf] %v3345
    %3349 = vst [vmem:[%s3347 + $0x4] sm:$0xf] %v3346
    %v3350 = vpack.c.bf16 %v3303, %v3302
    %v3351 = vpack.c.bf16 %v3339, %v3338
    %3352 = vmatpush.bf16.msra.mxu0 %v1446
    %3353 = vmatpush.bf16.msra.mxu0 %v1438
    %3354 = vmatpush.bf16.msra.mxu0 %v1430
    %3355 = vmatpush.bf16.msra.mxu0 %v1422
    %3356 = vmatpush.bf16.msra.mxu0 %v1414
    %3357 = vmatpush.bf16.msra.mxu0 %v1406
    %3358 = vmatpush.bf16.msra.mxu0 %v1398
    %3359 = vmatpush.bf16.msra.mxu0 %v1390
    %3360 = vmatmul.bf16.gmra.mxu0 %v3350
    %v3361 = vpop.f32.mrf.mxu0
    %v3362 = vadd.f32 0.0, %v3361
    %v3363 = vpop.f32.mrf.mxu0
    %v3364 = vadd.f32 0.0, %v3363
    %3365 = vdwg.mxu0
    %3366 = vmatpush.bf16.msra.mxu0 %v1510
    %3367 = vmatpush.bf16.msra.mxu0 %v1502
    %3368 = vmatpush.bf16.msra.mxu0 %v1494
    %3369 = vmatpush.bf16.msra.mxu0 %v1486
    %3370 = vmatpush.bf16.msra.mxu0 %v1478
    %3371 = vmatpush.bf16.msra.mxu0 %v1470
    %3372 = vmatpush.bf16.msra.mxu0 %v1462
    %3373 = vmatpush.bf16.msra.mxu0 %v1454
    %3374 = vmatmul.bf16.gmra.mxu0 %v3351
    %v3375 = vpop.f32.mrf.mxu0
    %v3376 = vadd.f32 %v3362, %v3375
    %v3377 = vpop.f32.mrf.mxu0
    %v3378 = vadd.f32 %v3364, %v3377
    %3379 = vdwg.mxu0
    %3380 = vmatpush.bf16.msra.mxu0 %v1447
    %3381 = vmatpush.bf16.msra.mxu0 %v1439
    %3382 = vmatpush.bf16.msra.mxu0 %v1431
    %3383 = vmatpush.bf16.msra.mxu0 %v1423
    %3384 = vmatpush.bf16.msra.mxu0 %v1415
    %3385 = vmatpush.bf16.msra.mxu0 %v1407
    %3386 = vmatpush.bf16.msra.mxu0 %v1399
    %3387 = vmatpush.bf16.msra.mxu0 %v1391
    %3388 = vmatmul.bf16.gmra.mxu0 %v3350
    %v3389 = vpop.f32.mrf.mxu0
    %v3390 = vadd.f32 0.0, %v3389
    %v3391 = vpop.f32.mrf.mxu0
    %v3392 = vadd.f32 0.0, %v3391
    %3393 = vdwg.mxu0
    %3394 = vmatpush.bf16.msra.mxu0 %v1511
    %3395 = vmatpush.bf16.msra.mxu0 %v1503
    %3396 = vmatpush.bf16.msra.mxu0 %v1495
    %3397 = vmatpush.bf16.msra.mxu0 %v1487
    %3398 = vmatpush.bf16.msra.mxu0 %v1479
    %3399 = vmatpush.bf16.msra.mxu0 %v1471
    %3400 = vmatpush.bf16.msra.mxu0 %v1463
    %3401 = vmatpush.bf16.msra.mxu0 %v1455
    %3402 = vmatmul.bf16.gmra.mxu0 %v3351
    %v3403 = vpop.f32.mrf.mxu0
    %v3404 = vadd.f32 %v3390, %v3403
    %v3405 = vpop.f32.mrf.mxu0
    %v3406 = vadd.f32 %v3392, %v3405
    %3407 = vdwg.mxu0
    %3408 = vmatpush.bf16.msra.mxu0 %v1448
    %3409 = vmatpush.bf16.msra.mxu0 %v1440
    %3410 = vmatpush.bf16.msra.mxu0 %v1432
    %3411 = vmatpush.bf16.msra.mxu0 %v1424
    %3412 = vmatpush.bf16.msra.mxu0 %v1416
    %3413 = vmatpush.bf16.msra.mxu0 %v1408
    %3414 = vmatpush.bf16.msra.mxu0 %v1400
    %3415 = vmatpush.bf16.msra.mxu0 %v1392
    %3416 = vmatmul.bf16.gmra.mxu0 %v3350
    %v3417 = vpop.f32.mrf.mxu0
    %v3418 = vadd.f32 0.0, %v3417
    %v3419 = vpop.f32.mrf.mxu0
    %v3420 = vadd.f32 0.0, %v3419
    %3421 = vdwg.mxu0
    %3422 = vmatpush.bf16.msra.mxu0 %v1512
    %3423 = vmatpush.bf16.msra.mxu0 %v1504
    %3424 = vmatpush.bf16.msra.mxu0 %v1496
    %3425 = vmatpush.bf16.msra.mxu0 %v1488
    %3426 = vmatpush.bf16.msra.mxu0 %v1480
    %3427 = vmatpush.bf16.msra.mxu0 %v1472
    %3428 = vmatpush.bf16.msra.mxu0 %v1464
    %3429 = vmatpush.bf16.msra.mxu0 %v1456
    %3430 = vmatmul.bf16.gmra.mxu0 %v3351
    %v3431 = vpop.f32.mrf.mxu0
    %v3432 = vadd.f32 %v3418, %v3431
    %v3433 = vpop.f32.mrf.mxu0
    %v3434 = vadd.f32 %v3420, %v3433
    %3435 = vdwg.mxu0
    %3436 = vmatpush.bf16.msra.mxu0 %v1449
    %3437 = vmatpush.bf16.msra.mxu0 %v1441
    %3438 = vmatpush.bf16.msra.mxu0 %v1433
    %3439 = vmatpush.bf16.msra.mxu0 %v1425
    %3440 = vmatpush.bf16.msra.mxu0 %v1417
    %3441 = vmatpush.bf16.msra.mxu0 %v1409
    %3442 = vmatpush.bf16.msra.mxu0 %v1401
    %3443 = vmatpush.bf16.msra.mxu0 %v1393
    %3444 = vmatmul.bf16.gmra.mxu0 %v3350
    %v3445 = vpop.f32.mrf.mxu0
    %v3446 = vadd.f32 0.0, %v3445
    %v3447 = vpop.f32.mrf.mxu0
    %v3448 = vadd.f32 0.0, %v3447
    %3449 = vdwg.mxu0
    %3450 = vmatpush.bf16.msra.mxu0 %v1513
    %3451 = vmatpush.bf16.msra.mxu0 %v1505
    %3452 = vmatpush.bf16.msra.mxu0 %v1497
    %3453 = vmatpush.bf16.msra.mxu0 %v1489
    %3454 = vmatpush.bf16.msra.mxu0 %v1481
    %3455 = vmatpush.bf16.msra.mxu0 %v1473
    %3456 = vmatpush.bf16.msra.mxu0 %v1465
    %3457 = vmatpush.bf16.msra.mxu0 %v1457
    %3458 = vmatmul.bf16.gmra.mxu0 %v3351
    %v3459 = vpop.f32.mrf.mxu0
    %v3460 = vadd.f32 %v3446, %v3459
    %v3461 = vpop.f32.mrf.mxu0
    %v3462 = vadd.f32 %v3448, %v3461
    %3463 = vdwg.mxu0
    %3464 = vmatpush.bf16.msra.mxu0 %v1450
    %3465 = vmatpush.bf16.msra.mxu0 %v1442
    %3466 = vmatpush.bf16.msra.mxu0 %v1434
    %3467 = vmatpush.bf16.msra.mxu0 %v1426
    %3468 = vmatpush.bf16.msra.mxu0 %v1418
    %3469 = vmatpush.bf16.msra.mxu0 %v1410
    %3470 = vmatpush.bf16.msra.mxu0 %v1402
    %3471 = vmatpush.bf16.msra.mxu0 %v1394
    %3472 = vmatmul.bf16.gmra.mxu0 %v3350
    %v3473 = vpop.f32.mrf.mxu0
    %v3474 = vadd.f32 0.0, %v3473
    %v3475 = vpop.f32.mrf.mxu0
    %v3476 = vadd.f32 0.0, %v3475
    %3477 = vdwg.mxu0
    %3478 = vmatpush.bf16.msra.mxu0 %v1514
    %3479 = vmatpush.bf16.msra.mxu0 %v1506
    %3480 = vmatpush.bf16.msra.mxu0 %v1498
    %3481 = vmatpush.bf16.msra.mxu0 %v1490
    %3482 = vmatpush.bf16.msra.mxu0 %v1482
    %3483 = vmatpush.bf16.msra.mxu0 %v1474
    %3484 = vmatpush.bf16.msra.mxu0 %v1466
    %3485 = vmatpush.bf16.msra.mxu0 %v1458
    %3486 = vmatmul.bf16.gmra.mxu0 %v3351
    %v3487 = vpop.f32.mrf.mxu0
    %v3488 = vadd.f32 %v3474, %v3487
    %v3489 = vpop.f32.mrf.mxu0
    %v3490 = vadd.f32 %v3476, %v3489
    %3491 = vdwg.mxu0
    %3492 = vmatpush.bf16.msra.mxu0 %v1451
    %3493 = vmatpush.bf16.msra.mxu0 %v1443
    %3494 = vmatpush.bf16.msra.mxu0 %v1435
    %3495 = vmatpush.bf16.msra.mxu0 %v1427
    %3496 = vmatpush.bf16.msra.mxu0 %v1419
    %3497 = vmatpush.bf16.msra.mxu0 %v1411
    %3498 = vmatpush.bf16.msra.mxu0 %v1403
    %3499 = vmatpush.bf16.msra.mxu0 %v1395
    %3500 = vmatmul.bf16.gmra.mxu0 %v3350
    %v3501 = vpop.f32.mrf.mxu0
    %v3502 = vadd.f32 0.0, %v3501
    %v3503 = vpop.f32.mrf.mxu0
    %v3504 = vadd.f32 0.0, %v3503
    %3505 = vdwg.mxu0
    %3506 = vmatpush.bf16.msra.mxu0 %v1515
    %3507 = vmatpush.bf16.msra.mxu0 %v1507
    %3508 = vmatpush.bf16.msra.mxu0 %v1499
    %3509 = vmatpush.bf16.msra.mxu0 %v1491
    %3510 = vmatpush.bf16.msra.mxu0 %v1483
    %3511 = vmatpush.bf16.msra.mxu0 %v1475
    %3512 = vmatpush.bf16.msra.mxu0 %v1467
    %3513 = vmatpush.bf16.msra.mxu0 %v1459
    %3514 = vmatmul.bf16.gmra.mxu0 %v3351
    %v3515 = vpop.f32.mrf.mxu0
    %v3516 = vadd.f32 %v3502, %v3515
    %v3517 = vpop.f32.mrf.mxu0
    %v3518 = vadd.f32 %v3504, %v3517
    %3519 = vdwg.mxu0
    %3520 = vmatpush.bf16.msra.mxu0 %v1452
    %3521 = vmatpush.bf16.msra.mxu0 %v1444
    %3522 = vmatpush.bf16.msra.mxu0 %v1436
    %3523 = vmatpush.bf16.msra.mxu0 %v1428
    %3524 = vmatpush.bf16.msra.mxu0 %v1420
    %3525 = vmatpush.bf16.msra.mxu0 %v1412
    %3526 = vmatpush.bf16.msra.mxu0 %v1404
    %3527 = vmatpush.bf16.msra.mxu0 %v1396
    %3528 = vmatmul.bf16.gmra.mxu0 %v3350
    %v3529 = vpop.f32.mrf.mxu0
    %v3530 = vadd.f32 0.0, %v3529
    %v3531 = vpop.f32.mrf.mxu0
    %v3532 = vadd.f32 0.0, %v3531
    %3533 = vdwg.mxu0
    %3534 = vmatpush.bf16.msra.mxu0 %v1516
    %3535 = vmatpush.bf16.msra.mxu0 %v1508
    %3536 = vmatpush.bf16.msra.mxu0 %v1500
    %3537 = vmatpush.bf16.msra.mxu0 %v1492
    %3538 = vmatpush.bf16.msra.mxu0 %v1484
    %3539 = vmatpush.bf16.msra.mxu0 %v1476
    %3540 = vmatpush.bf16.msra.mxu0 %v1468
    %3541 = vmatpush.bf16.msra.mxu0 %v1460
    %3542 = vmatmul.bf16.gmra.mxu0 %v3351
    %v3543 = vpop.f32.mrf.mxu0
    %v3544 = vadd.f32 %v3530, %v3543
    %v3545 = vpop.f32.mrf.mxu0
    %v3546 = vadd.f32 %v3532, %v3545
    %3547 = vdwg.mxu0
    %3548 = vmatpush.bf16.msra.mxu0 %v1453
    %3549 = vmatpush.bf16.msra.mxu0 %v1445
    %3550 = vmatpush.bf16.msra.mxu0 %v1437
    %3551 = vmatpush.bf16.msra.mxu0 %v1429
    %3552 = vmatpush.bf16.msra.mxu0 %v1421
    %3553 = vmatpush.bf16.msra.mxu0 %v1413
    %3554 = vmatpush.bf16.msra.mxu0 %v1405
    %3555 = vmatpush.bf16.msra.mxu0 %v1397
    %3556 = vmatmul.bf16.gmra.mxu0 %v3350
    %v3557 = vpop.f32.mrf.mxu0
    %v3558 = vadd.f32 0.0, %v3557
    %v3559 = vpop.f32.mrf.mxu0
    %v3560 = vadd.f32 0.0, %v3559
    %3561 = vdwg.mxu0
    %3562 = vmatpush.bf16.msra.mxu0 %v1517
    %3563 = vmatpush.bf16.msra.mxu0 %v1509
    %3564 = vmatpush.bf16.msra.mxu0 %v1501
    %3565 = vmatpush.bf16.msra.mxu0 %v1493
    %3566 = vmatpush.bf16.msra.mxu0 %v1485
    %3567 = vmatpush.bf16.msra.mxu0 %v1477
    %3568 = vmatpush.bf16.msra.mxu0 %v1469
    %3569 = vmatpush.bf16.msra.mxu0 %v1461
    %3570 = vmatmul.bf16.gmra.mxu0 %v3351
    %v3571 = vpop.f32.mrf.mxu0
    %v3572 = vadd.f32 %v3558, %v3571
    %v3573 = vpop.f32.mrf.mxu0
    %v3574 = vadd.f32 %v3560, %v3573
    %3575 = vdwg.mxu0
    %v3576 = vld [vmem:[%s2569] sm:$0xff]
    %v3577 = vld [vmem:[%s2569 + $0x8] sm:$0xff]
    %v3578 = vld [vmem:[%s2569 + $0x10] sm:$0xff]
    %v3579 = vld [vmem:[%s2569 + $0x18] sm:$0xff]
    %v3580 = vld [vmem:[%s2569 + $0x40] sm:$0xff]
    %v3581 = vld [vmem:[%s2569 + $0x48] sm:$0xff]
    %v3582 = vld [vmem:[%s2569 + $0x50] sm:$0xff]
    %v3583 = vld [vmem:[%s2569 + $0x58] sm:$0xff]
    %v3584 = vadd.f32 %v3576, %v3376
    %v3585 = vadd.f32 %v3577, %v3404
    %v3586 = vadd.f32 %v3578, %v3432
    %v3587 = vadd.f32 %v3579, %v3460
    %v3588 = vadd.f32 %v3580, %v3378
    %v3589 = vadd.f32 %v3581, %v3406
    %v3590 = vadd.f32 %v3582, %v3434
    %v3591 = vadd.f32 %v3583, %v3462
    %v3592 = vld [vmem:[%s2552 + $0x20] sm:$0xff]
    %v3593 = vld [vmem:[%s2552 + $0x28] sm:$0xff]
    %v3594 = vld [vmem:[%s2552 + $0x30] sm:$0xff]
    %v3595 = vld [vmem:[%s2552 + $0x38] sm:$0xff]
    %v3596 = vld [vmem:[%s2552 + $0x60] sm:$0xff]
    %v3597 = vld [vmem:[%s2552 + $0x68] sm:$0xff]
    %v3598 = vld [vmem:[%s2552 + $0x70] sm:$0xff]
    %v3599 = vld [vmem:[%s2552 + $0x78] sm:$0xff]
    %v3600 = vadd.f32 %v3592, %v3488
    %v3601 = vadd.f32 %v3593, %v3516
    %v3602 = vadd.f32 %v3594, %v3544
    %v3603 = vadd.f32 %v3595, %v3572
    %v3604 = vadd.f32 %v3596, %v3490
    %v3605 = vadd.f32 %v3597, %v3518
    %v3606 = vadd.f32 %v3598, %v3546
    %v3607 = vadd.f32 %v3599, %v3574
    %v3608 = vmul.f32 %v3584, 0.5
    %v3609 = vmul.f32 %v3585, 0.5
    %v3610 = vmul.f32 %v3586, 0.5
    %v3611 = vmul.f32 %v3588, 0.5
    %v3612 = vmul.f32 %v3589, 0.5
    %v3613 = vmul.f32 %v3590, 0.5
    %v3614 = vtanh.pop %v3608
    %v3615 = vtanh.pop %v3609
    %v3616 = vtanh.pop %v3610
    %v3617 = vtanh.pop %v3611
    %v3618 = vtanh.pop %v3612
    %v3619 = vtanh.pop %v3613
    %v3620 = vmul.f32 %v3614, 0.5
    %v3621 = vmul.f32 %v3615, 0.5
    %v3622 = vmul.f32 %v3616, 0.5
    %v3623 = vmul.f32 %v3617, 0.5
    %v3624 = vmul.f32 %v3618, 0.5
    %v3625 = vmul.f32 %v3619, 0.5
    %v3626 = vadd.f32 %v3620, 0.5
    %v3627 = vadd.f32 %v3621, 0.5
    %v3628 = vadd.f32 %v3622, 0.5
    %v3629 = vadd.f32 %v3623, 0.5
    %v3630 = vadd.f32 %v3624, 0.5
    %v3631 = vadd.f32 %v3625, 0.5
    %v3632 = vtanh.pop %v3587
    %v3633 = vtanh.pop %v3591
    %v3634 = vmul.f32 %v3627, %v3298
    %v3635 = vmul.f32 %v3630, %v3299
    %v3636 = vmul.f32 %v3626, %v3632
    %v3637 = vmul.f32 %v3629, %v3633
    %v3638 = vadd.f32 %v3634, %v3636
    %v3639 = vadd.f32 %v3635, %v3637
    %v3640 = vtanh.pop %v3638
    %v3641 = vtanh.pop %v3639
    %v3642 = vmul.f32 %v3628, %v3640
    %v3643 = vmul.f32 %v3631, %v3641
    %v3644 = vmul.f32 %v3600, 0.5
    %v3645 = vmul.f32 %v3601, 0.5
    %v3646 = vmul.f32 %v3602, 0.5
    %v3647 = vmul.f32 %v3604, 0.5
    %v3648 = vmul.f32 %v3605, 0.5
    %v3649 = vmul.f32 %v3606, 0.5
    %v3650 = vtanh.pop %v3644
    %v3651 = vtanh.pop %v3645
    %v3652 = vtanh.pop %v3646
    %v3653 = vtanh.pop %v3647
    %v3654 = vtanh.pop %v3648
    %v3655 = vtanh.pop %v3649
    %v3656 = vmul.f32 %v3650, 0.5
    %v3657 = vmul.f32 %v3651, 0.5
    %v3658 = vmul.f32 %v3652, 0.5
    %v3659 = vmul.f32 %v3653, 0.5
    %v3660 = vmul.f32 %v3654, 0.5
    %v3661 = vmul.f32 %v3655, 0.5
    %v3662 = vadd.f32 %v3656, 0.5
    %v3663 = vadd.f32 %v3657, 0.5
    %v3664 = vadd.f32 %v3658, 0.5
    %v3665 = vadd.f32 %v3659, 0.5
    %v3666 = vadd.f32 %v3660, 0.5
    %v3667 = vadd.f32 %v3661, 0.5
    %v3668 = vtanh.pop %v3603
    %v3669 = vtanh.pop %v3607
    %v3670 = vmul.f32 %v3663, %v3334
    %v3671 = vmul.f32 %v3666, %v3335
    %v3672 = vmul.f32 %v3662, %v3668
    %v3673 = vmul.f32 %v3665, %v3669
    %v3674 = vadd.f32 %v3670, %v3672
    %v3675 = vadd.f32 %v3671, %v3673
    %v3676 = vtanh.pop %v3674
    %v3677 = vtanh.pop %v3675
    %v3678 = vmul.f32 %v3664, %v3676
    %v3679 = vmul.f32 %v3667, %v3677
    %v3680 = vpack.c.bf16 %v3642, %v3642
    %v3681 = vpack.c.bf16 %v3643, %v3643
    %s3682 = scalar_lea.vmem %s4, 40
    %3683 = vst [vmem:[%s3682] sm:$0xf] %v3680
    %3684 = vst [vmem:[%s3682 + $0x4] sm:$0xf] %v3681
    %v3685 = vpack.c.bf16 %v3678, %v3678
    %v3686 = vpack.c.bf16 %v3679, %v3679
    %s3687 = scalar_lea.vmem %s4, 80
    %3688 = vst [vmem:[%s3687] sm:$0xf] %v3685
    %3689 = vst [vmem:[%s3687 + $0x4] sm:$0xf] %v3686
    %v3690 = vpack.c.bf16 %v3643, %v3642
    %v3691 = vpack.c.bf16 %v3679, %v3678
    %3692 = vmatpush.bf16.msra.mxu0 %v1446
    %3693 = vmatpush.bf16.msra.mxu0 %v1438
    %3694 = vmatpush.bf16.msra.mxu0 %v1430
    %3695 = vmatpush.bf16.msra.mxu0 %v1422
    %3696 = vmatpush.bf16.msra.mxu0 %v1414
    %3697 = vmatpush.bf16.msra.mxu0 %v1406
    %3698 = vmatpush.bf16.msra.mxu0 %v1398
    %3699 = vmatpush.bf16.msra.mxu0 %v1390
    %3700 = vmatmul.bf16.gmra.mxu0 %v3690
    %v3701 = vpop.f32.mrf.mxu0
    %v3702 = vadd.f32 0.0, %v3701
    %v3703 = vpop.f32.mrf.mxu0
    %v3704 = vadd.f32 0.0, %v3703
    %3705 = vdwg.mxu0
    %3706 = vmatpush.bf16.msra.mxu0 %v1510
    %3707 = vmatpush.bf16.msra.mxu0 %v1502
    %3708 = vmatpush.bf16.msra.mxu0 %v1494
    %3709 = vmatpush.bf16.msra.mxu0 %v1486
    %3710 = vmatpush.bf16.msra.mxu0 %v1478
    %3711 = vmatpush.bf16.msra.mxu0 %v1470
    %3712 = vmatpush.bf16.msra.mxu0 %v1462
    %3713 = vmatpush.bf16.msra.mxu0 %v1454
    %3714 = vmatmul.bf16.gmra.mxu0 %v3691
    %v3715 = vpop.f32.mrf.mxu0
    %v3716 = vadd.f32 %v3702, %v3715
    %v3717 = vpop.f32.mrf.mxu0
    %v3718 = vadd.f32 %v3704, %v3717
    %3719 = vdwg.mxu0
    %3720 = vmatpush.bf16.msra.mxu0 %v1447
    %3721 = vmatpush.bf16.msra.mxu0 %v1439
    %3722 = vmatpush.bf16.msra.mxu0 %v1431
    %3723 = vmatpush.bf16.msra.mxu0 %v1423
    %3724 = vmatpush.bf16.msra.mxu0 %v1415
    %3725 = vmatpush.bf16.msra.mxu0 %v1407
    %3726 = vmatpush.bf16.msra.mxu0 %v1399
    %3727 = vmatpush.bf16.msra.mxu0 %v1391
    %3728 = vmatmul.bf16.gmra.mxu0 %v3690
    %v3729 = vpop.f32.mrf.mxu0
    %v3730 = vadd.f32 0.0, %v3729
    %v3731 = vpop.f32.mrf.mxu0
    %v3732 = vadd.f32 0.0, %v3731
    %3733 = vdwg.mxu0
    %3734 = vmatpush.bf16.msra.mxu0 %v1511
    %3735 = vmatpush.bf16.msra.mxu0 %v1503
    %3736 = vmatpush.bf16.msra.mxu0 %v1495
    %3737 = vmatpush.bf16.msra.mxu0 %v1487
    %3738 = vmatpush.bf16.msra.mxu0 %v1479
    %3739 = vmatpush.bf16.msra.mxu0 %v1471
    %3740 = vmatpush.bf16.msra.mxu0 %v1463
    %3741 = vmatpush.bf16.msra.mxu0 %v1455
    %3742 = vmatmul.bf16.gmra.mxu0 %v3691
    %v3743 = vpop.f32.mrf.mxu0
    %v3744 = vadd.f32 %v3730, %v3743
    %v3745 = vpop.f32.mrf.mxu0
    %v3746 = vadd.f32 %v3732, %v3745
    %3747 = vdwg.mxu0
    %3748 = vmatpush.bf16.msra.mxu0 %v1448
    %3749 = vmatpush.bf16.msra.mxu0 %v1440
    %3750 = vmatpush.bf16.msra.mxu0 %v1432
    %3751 = vmatpush.bf16.msra.mxu0 %v1424
    %3752 = vmatpush.bf16.msra.mxu0 %v1416
    %3753 = vmatpush.bf16.msra.mxu0 %v1408
    %3754 = vmatpush.bf16.msra.mxu0 %v1400
    %3755 = vmatpush.bf16.msra.mxu0 %v1392
    %3756 = vmatmul.bf16.gmra.mxu0 %v3690
    %v3757 = vpop.f32.mrf.mxu0
    %v3758 = vadd.f32 0.0, %v3757
    %v3759 = vpop.f32.mrf.mxu0
    %v3760 = vadd.f32 0.0, %v3759
    %3761 = vdwg.mxu0
    %3762 = vmatpush.bf16.msra.mxu0 %v1512
    %3763 = vmatpush.bf16.msra.mxu0 %v1504
    %3764 = vmatpush.bf16.msra.mxu0 %v1496
    %3765 = vmatpush.bf16.msra.mxu0 %v1488
    %3766 = vmatpush.bf16.msra.mxu0 %v1480
    %3767 = vmatpush.bf16.msra.mxu0 %v1472
    %3768 = vmatpush.bf16.msra.mxu0 %v1464
    %3769 = vmatpush.bf16.msra.mxu0 %v1456
    %3770 = vmatmul.bf16.gmra.mxu0 %v3691
    %v3771 = vpop.f32.mrf.mxu0
    %v3772 = vadd.f32 %v3758, %v3771
    %v3773 = vpop.f32.mrf.mxu0
    %v3774 = vadd.f32 %v3760, %v3773
    %3775 = vdwg.mxu0
    %3776 = vmatpush.bf16.msra.mxu0 %v1449
    %3777 = vmatpush.bf16.msra.mxu0 %v1441
    %3778 = vmatpush.bf16.msra.mxu0 %v1433
    %3779 = vmatpush.bf16.msra.mxu0 %v1425
    %3780 = vmatpush.bf16.msra.mxu0 %v1417
    %3781 = vmatpush.bf16.msra.mxu0 %v1409
    %3782 = vmatpush.bf16.msra.mxu0 %v1401
    %3783 = vmatpush.bf16.msra.mxu0 %v1393
    %3784 = vmatmul.bf16.gmra.mxu0 %v3690
    %v3785 = vpop.f32.mrf.mxu0
    %v3786 = vadd.f32 0.0, %v3785
    %v3787 = vpop.f32.mrf.mxu0
    %v3788 = vadd.f32 0.0, %v3787
    %3789 = vdwg.mxu0
    %3790 = vmatpush.bf16.msra.mxu0 %v1513
    %3791 = vmatpush.bf16.msra.mxu0 %v1505
    %3792 = vmatpush.bf16.msra.mxu0 %v1497
    %3793 = vmatpush.bf16.msra.mxu0 %v1489
    %3794 = vmatpush.bf16.msra.mxu0 %v1481
    %3795 = vmatpush.bf16.msra.mxu0 %v1473
    %3796 = vmatpush.bf16.msra.mxu0 %v1465
    %3797 = vmatpush.bf16.msra.mxu0 %v1457
    %3798 = vmatmul.bf16.gmra.mxu0 %v3691
    %v3799 = vpop.f32.mrf.mxu0
    %v3800 = vadd.f32 %v3786, %v3799
    %v3801 = vpop.f32.mrf.mxu0
    %v3802 = vadd.f32 %v3788, %v3801
    %3803 = vdwg.mxu0
    %3804 = vmatpush.bf16.msra.mxu0 %v1450
    %3805 = vmatpush.bf16.msra.mxu0 %v1442
    %3806 = vmatpush.bf16.msra.mxu0 %v1434
    %3807 = vmatpush.bf16.msra.mxu0 %v1426
    %3808 = vmatpush.bf16.msra.mxu0 %v1418
    %3809 = vmatpush.bf16.msra.mxu0 %v1410
    %3810 = vmatpush.bf16.msra.mxu0 %v1402
    %3811 = vmatpush.bf16.msra.mxu0 %v1394
    %3812 = vmatmul.bf16.gmra.mxu0 %v3690
    %v3813 = vpop.f32.mrf.mxu0
    %v3814 = vadd.f32 0.0, %v3813
    %v3815 = vpop.f32.mrf.mxu0
    %v3816 = vadd.f32 0.0, %v3815
    %3817 = vdwg.mxu0
    %3818 = vmatpush.bf16.msra.mxu0 %v1514
    %3819 = vmatpush.bf16.msra.mxu0 %v1506
    %3820 = vmatpush.bf16.msra.mxu0 %v1498
    %3821 = vmatpush.bf16.msra.mxu0 %v1490
    %3822 = vmatpush.bf16.msra.mxu0 %v1482
    %3823 = vmatpush.bf16.msra.mxu0 %v1474
    %3824 = vmatpush.bf16.msra.mxu0 %v1466
    %3825 = vmatpush.bf16.msra.mxu0 %v1458
    %3826 = vmatmul.bf16.gmra.mxu0 %v3691
    %v3827 = vpop.f32.mrf.mxu0
    %v3828 = vadd.f32 %v3814, %v3827
    %v3829 = vpop.f32.mrf.mxu0
    %v3830 = vadd.f32 %v3816, %v3829
    %3831 = vdwg.mxu0
    %3832 = vmatpush.bf16.msra.mxu0 %v1451
    %3833 = vmatpush.bf16.msra.mxu0 %v1443
    %3834 = vmatpush.bf16.msra.mxu0 %v1435
    %3835 = vmatpush.bf16.msra.mxu0 %v1427
    %3836 = vmatpush.bf16.msra.mxu0 %v1419
    %3837 = vmatpush.bf16.msra.mxu0 %v1411
    %3838 = vmatpush.bf16.msra.mxu0 %v1403
    %3839 = vmatpush.bf16.msra.mxu0 %v1395
    %3840 = vmatmul.bf16.gmra.mxu0 %v3690
    %v3841 = vpop.f32.mrf.mxu0
    %v3842 = vadd.f32 0.0, %v3841
    %v3843 = vpop.f32.mrf.mxu0
    %v3844 = vadd.f32 0.0, %v3843
    %3845 = vdwg.mxu0
    %3846 = vmatpush.bf16.msra.mxu0 %v1515
    %3847 = vmatpush.bf16.msra.mxu0 %v1507
    %3848 = vmatpush.bf16.msra.mxu0 %v1499
    %3849 = vmatpush.bf16.msra.mxu0 %v1491
    %3850 = vmatpush.bf16.msra.mxu0 %v1483
    %3851 = vmatpush.bf16.msra.mxu0 %v1475
    %3852 = vmatpush.bf16.msra.mxu0 %v1467
    %3853 = vmatpush.bf16.msra.mxu0 %v1459
    %3854 = vmatmul.bf16.gmra.mxu0 %v3691
    %v3855 = vpop.f32.mrf.mxu0
    %v3856 = vadd.f32 %v3842, %v3855
    %v3857 = vpop.f32.mrf.mxu0
    %v3858 = vadd.f32 %v3844, %v3857
    %3859 = vdwg.mxu0
    %3860 = vmatpush.bf16.msra.mxu0 %v1452
    %3861 = vmatpush.bf16.msra.mxu0 %v1444
    %3862 = vmatpush.bf16.msra.mxu0 %v1436
    %3863 = vmatpush.bf16.msra.mxu0 %v1428
    %3864 = vmatpush.bf16.msra.mxu0 %v1420
    %3865 = vmatpush.bf16.msra.mxu0 %v1412
    %3866 = vmatpush.bf16.msra.mxu0 %v1404
    %3867 = vmatpush.bf16.msra.mxu0 %v1396
    %3868 = vmatmul.bf16.gmra.mxu0 %v3690
    %v3869 = vpop.f32.mrf.mxu0
    %v3870 = vadd.f32 0.0, %v3869
    %v3871 = vpop.f32.mrf.mxu0
    %v3872 = vadd.f32 0.0, %v3871
    %3873 = vdwg.mxu0
    %3874 = vmatpush.bf16.msra.mxu0 %v1516
    %3875 = vmatpush.bf16.msra.mxu0 %v1508
    %3876 = vmatpush.bf16.msra.mxu0 %v1500
    %3877 = vmatpush.bf16.msra.mxu0 %v1492
    %3878 = vmatpush.bf16.msra.mxu0 %v1484
    %3879 = vmatpush.bf16.msra.mxu0 %v1476
    %3880 = vmatpush.bf16.msra.mxu0 %v1468
    %3881 = vmatpush.bf16.msra.mxu0 %v1460
    %3882 = vmatmul.bf16.gmra.mxu0 %v3691
    %v3883 = vpop.f32.mrf.mxu0
    %v3884 = vadd.f32 %v3870, %v3883
    %v3885 = vpop.f32.mrf.mxu0
    %v3886 = vadd.f32 %v3872, %v3885
    %3887 = vdwg.mxu0
    %3888 = vmatpush.bf16.msra.mxu0 %v1453
    %3889 = vmatpush.bf16.msra.mxu0 %v1445
    %3890 = vmatpush.bf16.msra.mxu0 %v1437
    %3891 = vmatpush.bf16.msra.mxu0 %v1429
    %3892 = vmatpush.bf16.msra.mxu0 %v1421
    %3893 = vmatpush.bf16.msra.mxu0 %v1413
    %3894 = vmatpush.bf16.msra.mxu0 %v1405
    %3895 = vmatpush.bf16.msra.mxu0 %v1397
    %3896 = vmatmul.bf16.gmra.mxu0 %v3690
    %v3897 = vpop.f32.mrf.mxu0
    %v3898 = vadd.f32 0.0, %v3897
    %v3899 = vpop.f32.mrf.mxu0
    %v3900 = vadd.f32 0.0, %v3899
    %3901 = vdwg.mxu0
    %3902 = vmatpush.bf16.msra.mxu0 %v1517
    %3903 = vmatpush.bf16.msra.mxu0 %v1509
    %3904 = vmatpush.bf16.msra.mxu0 %v1501
    %3905 = vmatpush.bf16.msra.mxu0 %v1493
    %3906 = vmatpush.bf16.msra.mxu0 %v1485
    %3907 = vmatpush.bf16.msra.mxu0 %v1477
    %3908 = vmatpush.bf16.msra.mxu0 %v1469
    %3909 = vmatpush.bf16.msra.mxu0 %v1461
    %3910 = vmatmul.bf16.gmra.mxu0 %v3691
    %v3911 = vpop.f32.mrf.mxu0
    %v3912 = vadd.f32 %v3898, %v3911
    %v3913 = vpop.f32.mrf.mxu0
    %v3914 = vadd.f32 %v3900, %v3913
    %3915 = vdwg.mxu0
    %v3916 = vld [vmem:[%s2227] sm:$0xff]
    %v3917 = vld [vmem:[%s2227 + $0x8] sm:$0xff]
    %v3918 = vld [vmem:[%s2227 + $0x10] sm:$0xff]
    %v3919 = vld [vmem:[%s2227 + $0x18] sm:$0xff]
    %v3920 = vld [vmem:[%s2227 + $0x40] sm:$0xff]
    %v3921 = vld [vmem:[%s2227 + $0x48] sm:$0xff]
    %v3922 = vld [vmem:[%s2227 + $0x50] sm:$0xff]
    %v3923 = vld [vmem:[%s2227 + $0x58] sm:$0xff]
    %v3924 = vadd.f32 %v3916, %v3716
    %v3925 = vadd.f32 %v3917, %v3744
    %v3926 = vadd.f32 %v3918, %v3772
    %v3927 = vadd.f32 %v3919, %v3800
    %v3928 = vadd.f32 %v3920, %v3718
    %v3929 = vadd.f32 %v3921, %v3746
    %v3930 = vadd.f32 %v3922, %v3774
    %v3931 = vadd.f32 %v3923, %v3802
    %v3932 = vld [vmem:[%s2210 + $0x20] sm:$0xff]
    %v3933 = vld [vmem:[%s2210 + $0x28] sm:$0xff]
    %v3934 = vld [vmem:[%s2210 + $0x30] sm:$0xff]
    %v3935 = vld [vmem:[%s2210 + $0x38] sm:$0xff]
    %v3936 = vld [vmem:[%s2210 + $0x60] sm:$0xff]
    %v3937 = vld [vmem:[%s2210 + $0x68] sm:$0xff]
    %v3938 = vld [vmem:[%s2210 + $0x70] sm:$0xff]
    %v3939 = vld [vmem:[%s2210 + $0x78] sm:$0xff]
    %v3940 = vadd.f32 %v3932, %v3828
    %v3941 = vadd.f32 %v3933, %v3856
    %v3942 = vadd.f32 %v3934, %v3884
    %v3943 = vadd.f32 %v3935, %v3912
    %v3944 = vadd.f32 %v3936, %v3830
    %v3945 = vadd.f32 %v3937, %v3858
    %v3946 = vadd.f32 %v3938, %v3886
    %v3947 = vadd.f32 %v3939, %v3914
    %v3948 = vmul.f32 %v3924, 0.5
    %v3949 = vmul.f32 %v3925, 0.5
    %v3950 = vmul.f32 %v3926, 0.5
    %v3951 = vmul.f32 %v3928, 0.5
    %v3952 = vmul.f32 %v3929, 0.5
    %v3953 = vmul.f32 %v3930, 0.5
    %v3954 = vtanh.pop %v3948
    %v3955 = vtanh.pop %v3949
    %v3956 = vtanh.pop %v3950
    %v3957 = vtanh.pop %v3951
    %v3958 = vtanh.pop %v3952
    %v3959 = vtanh.pop %v3953
    %v3960 = vmul.f32 %v3954, 0.5
    %v3961 = vmul.f32 %v3955, 0.5
    %v3962 = vmul.f32 %v3956, 0.5
    %v3963 = vmul.f32 %v3957, 0.5
    %v3964 = vmul.f32 %v3958, 0.5
    %v3965 = vmul.f32 %v3959, 0.5
    %v3966 = vadd.f32 %v3960, 0.5
    %v3967 = vadd.f32 %v3961, 0.5
    %v3968 = vadd.f32 %v3962, 0.5
    %v3969 = vadd.f32 %v3963, 0.5
    %v3970 = vadd.f32 %v3964, 0.5
    %v3971 = vadd.f32 %v3965, 0.5
    %v3972 = vtanh.pop %v3927
    %v3973 = vtanh.pop %v3931
    %v3974 = vmul.f32 %v3967, %v3638
    %v3975 = vmul.f32 %v3970, %v3639
    %v3976 = vmul.f32 %v3966, %v3972
    %v3977 = vmul.f32 %v3969, %v3973
    %v3978 = vadd.f32 %v3974, %v3976
    %v3979 = vadd.f32 %v3975, %v3977
    %v3980 = vtanh.pop %v3978
    %v3981 = vtanh.pop %v3979
    %v3982 = vmul.f32 %v3968, %v3980
    %v3983 = vmul.f32 %v3971, %v3981
    %v3984 = vmul.f32 %v3940, 0.5
    %v3985 = vmul.f32 %v3941, 0.5
    %v3986 = vmul.f32 %v3942, 0.5
    %v3987 = vmul.f32 %v3944, 0.5
    %v3988 = vmul.f32 %v3945, 0.5
    %v3989 = vmul.f32 %v3946, 0.5
    %v3990 = vtanh.pop %v3984
    %v3991 = vtanh.pop %v3985
    %v3992 = vtanh.pop %v3986
    %v3993 = vtanh.pop %v3987
    %v3994 = vtanh.pop %v3988
    %v3995 = vtanh.pop %v3989
    %v3996 = vmul.f32 %v3990, 0.5
    %v3997 = vmul.f32 %v3991, 0.5
    %v3998 = vmul.f32 %v3992, 0.5
    %v3999 = vmul.f32 %v3993, 0.5
    %v4000 = vmul.f32 %v3994, 0.5
    %v4001 = vmul.f32 %v3995, 0.5
    %v4002 = vadd.f32 %v3996, 0.5
    %v4003 = vadd.f32 %v3997, 0.5
    %v4004 = vadd.f32 %v3998, 0.5
    %v4005 = vadd.f32 %v3999, 0.5
    %v4006 = vadd.f32 %v4000, 0.5
    %v4007 = vadd.f32 %v4001, 0.5
    %v4008 = vtanh.pop %v3943
    %v4009 = vtanh.pop %v3947
    %v4010 = vmul.f32 %v4003, %v3674
    %v4011 = vmul.f32 %v4006, %v3675
    %v4012 = vmul.f32 %v4002, %v4008
    %v4013 = vmul.f32 %v4005, %v4009
    %v4014 = vadd.f32 %v4010, %v4012
    %v4015 = vadd.f32 %v4011, %v4013
    %v4016 = vtanh.pop %v4014
    %v4017 = vtanh.pop %v4015
    %v4018 = vmul.f32 %v4004, %v4016
    %v4019 = vmul.f32 %v4007, %v4017
    %v4020 = vpack.c.bf16 %v3982, %v3982
    %v4021 = vpack.c.bf16 %v3983, %v3983
    %s4022 = scalar_lea.vmem %s4, 48
    %4023 = vst [vmem:[%s4022] sm:$0xf] %v4020
    %4024 = vst [vmem:[%s4022 + $0x4] sm:$0xf] %v4021
    %v4025 = vpack.c.bf16 %v4018, %v4018
    %v4026 = vpack.c.bf16 %v4019, %v4019
    %s4027 = scalar_lea.vmem %s4, 72
    %4028 = vst [vmem:[%s4027] sm:$0xf] %v4025
    %4029 = vst [vmem:[%s4027 + $0x4] sm:$0xf] %v4026
    %v4030 = vpack.c.bf16 %v3983, %v3982
    %v4031 = vpack.c.bf16 %v4019, %v4018
    %4032 = vmatpush.bf16.msra.mxu0 %v1446
    %4033 = vmatpush.bf16.msra.mxu0 %v1438
    %4034 = vmatpush.bf16.msra.mxu0 %v1430
    %4035 = vmatpush.bf16.msra.mxu0 %v1422
    %4036 = vmatpush.bf16.msra.mxu0 %v1414
    %4037 = vmatpush.bf16.msra.mxu0 %v1406
    %4038 = vmatpush.bf16.msra.mxu0 %v1398
    %4039 = vmatpush.bf16.msra.mxu0 %v1390
    %4040 = vmatmul.bf16.gmra.mxu0 %v4030
    %v4041 = vpop.f32.mrf.mxu0
    %v4042 = vadd.f32 0.0, %v4041
    %v4043 = vpop.f32.mrf.mxu0
    %v4044 = vadd.f32 0.0, %v4043
    %4045 = vdwg.mxu0
    %4046 = vmatpush.bf16.msra.mxu0 %v1510
    %4047 = vmatpush.bf16.msra.mxu0 %v1502
    %4048 = vmatpush.bf16.msra.mxu0 %v1494
    %4049 = vmatpush.bf16.msra.mxu0 %v1486
    %4050 = vmatpush.bf16.msra.mxu0 %v1478
    %4051 = vmatpush.bf16.msra.mxu0 %v1470
    %4052 = vmatpush.bf16.msra.mxu0 %v1462
    %4053 = vmatpush.bf16.msra.mxu0 %v1454
    %4054 = vmatmul.bf16.gmra.mxu0 %v4031
    %v4055 = vpop.f32.mrf.mxu0
    %v4056 = vadd.f32 %v4042, %v4055
    %v4057 = vpop.f32.mrf.mxu0
    %v4058 = vadd.f32 %v4044, %v4057
    %4059 = vdwg.mxu0
    %4060 = vmatpush.bf16.msra.mxu0 %v1447
    %4061 = vmatpush.bf16.msra.mxu0 %v1439
    %4062 = vmatpush.bf16.msra.mxu0 %v1431
    %4063 = vmatpush.bf16.msra.mxu0 %v1423
    %4064 = vmatpush.bf16.msra.mxu0 %v1415
    %4065 = vmatpush.bf16.msra.mxu0 %v1407
    %4066 = vmatpush.bf16.msra.mxu0 %v1399
    %4067 = vmatpush.bf16.msra.mxu0 %v1391
    %4068 = vmatmul.bf16.gmra.mxu0 %v4030
    %v4069 = vpop.f32.mrf.mxu0
    %v4070 = vadd.f32 0.0, %v4069
    %v4071 = vpop.f32.mrf.mxu0
    %v4072 = vadd.f32 0.0, %v4071
    %4073 = vdwg.mxu0
    %4074 = vmatpush.bf16.msra.mxu0 %v1511
    %4075 = vmatpush.bf16.msra.mxu0 %v1503
    %4076 = vmatpush.bf16.msra.mxu0 %v1495
    %4077 = vmatpush.bf16.msra.mxu0 %v1487
    %4078 = vmatpush.bf16.msra.mxu0 %v1479
    %4079 = vmatpush.bf16.msra.mxu0 %v1471
    %4080 = vmatpush.bf16.msra.mxu0 %v1463
    %4081 = vmatpush.bf16.msra.mxu0 %v1455
    %4082 = vmatmul.bf16.gmra.mxu0 %v4031
    %v4083 = vpop.f32.mrf.mxu0
    %v4084 = vadd.f32 %v4070, %v4083
    %v4085 = vpop.f32.mrf.mxu0
    %v4086 = vadd.f32 %v4072, %v4085
    %4087 = vdwg.mxu0
    %4088 = vmatpush.bf16.msra.mxu0 %v1448
    %4089 = vmatpush.bf16.msra.mxu0 %v1440
    %4090 = vmatpush.bf16.msra.mxu0 %v1432
    %4091 = vmatpush.bf16.msra.mxu0 %v1424
    %4092 = vmatpush.bf16.msra.mxu0 %v1416
    %4093 = vmatpush.bf16.msra.mxu0 %v1408
    %4094 = vmatpush.bf16.msra.mxu0 %v1400
    %4095 = vmatpush.bf16.msra.mxu0 %v1392
    %4096 = vmatmul.bf16.gmra.mxu0 %v4030
    %v4097 = vpop.f32.mrf.mxu0
    %v4098 = vadd.f32 0.0, %v4097
    %v4099 = vpop.f32.mrf.mxu0
    %v4100 = vadd.f32 0.0, %v4099
    %4101 = vdwg.mxu0
    %4102 = vmatpush.bf16.msra.mxu0 %v1512
    %4103 = vmatpush.bf16.msra.mxu0 %v1504
    %4104 = vmatpush.bf16.msra.mxu0 %v1496
    %4105 = vmatpush.bf16.msra.mxu0 %v1488
    %4106 = vmatpush.bf16.msra.mxu0 %v1480
    %4107 = vmatpush.bf16.msra.mxu0 %v1472
    %4108 = vmatpush.bf16.msra.mxu0 %v1464
    %4109 = vmatpush.bf16.msra.mxu0 %v1456
    %4110 = vmatmul.bf16.gmra.mxu0 %v4031
    %v4111 = vpop.f32.mrf.mxu0
    %v4112 = vadd.f32 %v4098, %v4111
    %v4113 = vpop.f32.mrf.mxu0
    %v4114 = vadd.f32 %v4100, %v4113
    %4115 = vdwg.mxu0
    %4116 = vmatpush.bf16.msra.mxu0 %v1449
    %4117 = vmatpush.bf16.msra.mxu0 %v1441
    %4118 = vmatpush.bf16.msra.mxu0 %v1433
    %4119 = vmatpush.bf16.msra.mxu0 %v1425
    %4120 = vmatpush.bf16.msra.mxu0 %v1417
    %4121 = vmatpush.bf16.msra.mxu0 %v1409
    %4122 = vmatpush.bf16.msra.mxu0 %v1401
    %4123 = vmatpush.bf16.msra.mxu0 %v1393
    %4124 = vmatmul.bf16.gmra.mxu0 %v4030
    %v4125 = vpop.f32.mrf.mxu0
    %v4126 = vadd.f32 0.0, %v4125
    %v4127 = vpop.f32.mrf.mxu0
    %v4128 = vadd.f32 0.0, %v4127
    %4129 = vdwg.mxu0
    %4130 = vmatpush.bf16.msra.mxu0 %v1513
    %4131 = vmatpush.bf16.msra.mxu0 %v1505
    %4132 = vmatpush.bf16.msra.mxu0 %v1497
    %4133 = vmatpush.bf16.msra.mxu0 %v1489
    %4134 = vmatpush.bf16.msra.mxu0 %v1481
    %4135 = vmatpush.bf16.msra.mxu0 %v1473
    %4136 = vmatpush.bf16.msra.mxu0 %v1465
    %4137 = vmatpush.bf16.msra.mxu0 %v1457
    %4138 = vmatmul.bf16.gmra.mxu0 %v4031
    %v4139 = vpop.f32.mrf.mxu0
    %v4140 = vadd.f32 %v4126, %v4139
    %v4141 = vpop.f32.mrf.mxu0
    %v4142 = vadd.f32 %v4128, %v4141
    %4143 = vdwg.mxu0
    %4144 = vmatpush.bf16.msra.mxu0 %v1450
    %4145 = vmatpush.bf16.msra.mxu0 %v1442
    %4146 = vmatpush.bf16.msra.mxu0 %v1434
    %4147 = vmatpush.bf16.msra.mxu0 %v1426
    %4148 = vmatpush.bf16.msra.mxu0 %v1418
    %4149 = vmatpush.bf16.msra.mxu0 %v1410
    %4150 = vmatpush.bf16.msra.mxu0 %v1402
    %4151 = vmatpush.bf16.msra.mxu0 %v1394
    %4152 = vmatmul.bf16.gmra.mxu0 %v4030
    %v4153 = vpop.f32.mrf.mxu0
    %v4154 = vadd.f32 0.0, %v4153
    %v4155 = vpop.f32.mrf.mxu0
    %v4156 = vadd.f32 0.0, %v4155
    %4157 = vdwg.mxu0
    %4158 = vmatpush.bf16.msra.mxu0 %v1514
    %4159 = vmatpush.bf16.msra.mxu0 %v1506
    %4160 = vmatpush.bf16.msra.mxu0 %v1498
    %4161 = vmatpush.bf16.msra.mxu0 %v1490
    %4162 = vmatpush.bf16.msra.mxu0 %v1482
    %4163 = vmatpush.bf16.msra.mxu0 %v1474
    %4164 = vmatpush.bf16.msra.mxu0 %v1466
    %4165 = vmatpush.bf16.msra.mxu0 %v1458
    %4166 = vmatmul.bf16.gmra.mxu0 %v4031
    %v4167 = vpop.f32.mrf.mxu0
    %v4168 = vadd.f32 %v4154, %v4167
    %v4169 = vpop.f32.mrf.mxu0
    %v4170 = vadd.f32 %v4156, %v4169
    %4171 = vdwg.mxu0
    %4172 = vmatpush.bf16.msra.mxu0 %v1451
    %4173 = vmatpush.bf16.msra.mxu0 %v1443
    %4174 = vmatpush.bf16.msra.mxu0 %v1435
    %4175 = vmatpush.bf16.msra.mxu0 %v1427
    %4176 = vmatpush.bf16.msra.mxu0 %v1419
    %4177 = vmatpush.bf16.msra.mxu0 %v1411
    %4178 = vmatpush.bf16.msra.mxu0 %v1403
    %4179 = vmatpush.bf16.msra.mxu0 %v1395
    %4180 = vmatmul.bf16.gmra.mxu0 %v4030
    %v4181 = vpop.f32.mrf.mxu0
    %v4182 = vadd.f32 0.0, %v4181
    %v4183 = vpop.f32.mrf.mxu0
    %v4184 = vadd.f32 0.0, %v4183
    %4185 = vdwg.mxu0
    %4186 = vmatpush.bf16.msra.mxu0 %v1515
    %4187 = vmatpush.bf16.msra.mxu0 %v1507
    %4188 = vmatpush.bf16.msra.mxu0 %v1499
    %4189 = vmatpush.bf16.msra.mxu0 %v1491
    %4190 = vmatpush.bf16.msra.mxu0 %v1483
    %4191 = vmatpush.bf16.msra.mxu0 %v1475
    %4192 = vmatpush.bf16.msra.mxu0 %v1467
    %4193 = vmatpush.bf16.msra.mxu0 %v1459
    %4194 = vmatmul.bf16.gmra.mxu0 %v4031
    %v4195 = vpop.f32.mrf.mxu0
    %v4196 = vadd.f32 %v4182, %v4195
    %v4197 = vpop.f32.mrf.mxu0
    %v4198 = vadd.f32 %v4184, %v4197
    %4199 = vdwg.mxu0
    %4200 = vmatpush.bf16.msra.mxu0 %v1452
    %4201 = vmatpush.bf16.msra.mxu0 %v1444
    %4202 = vmatpush.bf16.msra.mxu0 %v1436
    %4203 = vmatpush.bf16.msra.mxu0 %v1428
    %4204 = vmatpush.bf16.msra.mxu0 %v1420
    %4205 = vmatpush.bf16.msra.mxu0 %v1412
    %4206 = vmatpush.bf16.msra.mxu0 %v1404
    %4207 = vmatpush.bf16.msra.mxu0 %v1396
    %4208 = vmatmul.bf16.gmra.mxu0 %v4030
    %v4209 = vpop.f32.mrf.mxu0
    %v4210 = vadd.f32 0.0, %v4209
    %v4211 = vpop.f32.mrf.mxu0
    %v4212 = vadd.f32 0.0, %v4211
    %4213 = vdwg.mxu0
    %4214 = vmatpush.bf16.msra.mxu0 %v1516
    %4215 = vmatpush.bf16.msra.mxu0 %v1508
    %4216 = vmatpush.bf16.msra.mxu0 %v1500
    %4217 = vmatpush.bf16.msra.mxu0 %v1492
    %4218 = vmatpush.bf16.msra.mxu0 %v1484
    %4219 = vmatpush.bf16.msra.mxu0 %v1476
    %4220 = vmatpush.bf16.msra.mxu0 %v1468
    %4221 = vmatpush.bf16.msra.mxu0 %v1460
    %4222 = vmatmul.bf16.gmra.mxu0 %v4031
    %v4223 = vpop.f32.mrf.mxu0
    %v4224 = vadd.f32 %v4210, %v4223
    %v4225 = vpop.f32.mrf.mxu0
    %v4226 = vadd.f32 %v4212, %v4225
    %4227 = vdwg.mxu0
    %4228 = vmatpush.bf16.msra.mxu0 %v1453
    %4229 = vmatpush.bf16.msra.mxu0 %v1445
    %4230 = vmatpush.bf16.msra.mxu0 %v1437
    %4231 = vmatpush.bf16.msra.mxu0 %v1429
    %4232 = vmatpush.bf16.msra.mxu0 %v1421
    %4233 = vmatpush.bf16.msra.mxu0 %v1413
    %4234 = vmatpush.bf16.msra.mxu0 %v1405
    %4235 = vmatpush.bf16.msra.mxu0 %v1397
    %4236 = vmatmul.bf16.gmra.mxu0 %v4030
    %v4237 = vpop.f32.mrf.mxu0
    %v4238 = vadd.f32 0.0, %v4237
    %v4239 = vpop.f32.mrf.mxu0
    %v4240 = vadd.f32 0.0, %v4239
    %4241 = vdwg.mxu0
    %4242 = vmatpush.bf16.msra.mxu0 %v1517
    %4243 = vmatpush.bf16.msra.mxu0 %v1509
    %4244 = vmatpush.bf16.msra.mxu0 %v1501
    %4245 = vmatpush.bf16.msra.mxu0 %v1493
    %4246 = vmatpush.bf16.msra.mxu0 %v1485
    %4247 = vmatpush.bf16.msra.mxu0 %v1477
    %4248 = vmatpush.bf16.msra.mxu0 %v1469
    %4249 = vmatpush.bf16.msra.mxu0 %v1461
    %4250 = vmatmul.bf16.gmra.mxu0 %v4031
    %v4251 = vpop.f32.mrf.mxu0
    %v4252 = vadd.f32 %v4238, %v4251
    %v4253 = vpop.f32.mrf.mxu0
    %v4254 = vadd.f32 %v4240, %v4253
    %4255 = vdwg.mxu0
    %v4256 = vld [vmem:[%s1886] sm:$0xff]
    %v4257 = vld [vmem:[%s1886 + $0x8] sm:$0xff]
    %v4258 = vld [vmem:[%s1886 + $0x10] sm:$0xff]
    %v4259 = vld [vmem:[%s1886 + $0x18] sm:$0xff]
    %v4260 = vld [vmem:[%s1886 + $0x40] sm:$0xff]
    %v4261 = vld [vmem:[%s1886 + $0x48] sm:$0xff]
    %v4262 = vld [vmem:[%s1886 + $0x50] sm:$0xff]
    %v4263 = vld [vmem:[%s1886 + $0x58] sm:$0xff]
    %v4264 = vadd.f32 %v4256, %v4056
    %v4265 = vadd.f32 %v4257, %v4084
    %v4266 = vadd.f32 %v4258, %v4112
    %v4267 = vadd.f32 %v4259, %v4140
    %v4268 = vadd.f32 %v4260, %v4058
    %v4269 = vadd.f32 %v4261, %v4086
    %v4270 = vadd.f32 %v4262, %v4114
    %v4271 = vadd.f32 %v4263, %v4142
    %v4272 = vld [vmem:[#allocation2 + $0x20] sm:$0xff]
    %v4273 = vld [vmem:[#allocation2 + $0x28] sm:$0xff]
    %v4274 = vld [vmem:[#allocation2 + $0x30] sm:$0xff]
    %v4275 = vld [vmem:[#allocation2 + $0x38] sm:$0xff]
    %v4276 = vld [vmem:[#allocation2 + $0x60] sm:$0xff]
    %v4277 = vld [vmem:[#allocation2 + $0x68] sm:$0xff]
    %v4278 = vld [vmem:[#allocation2 + $0x70] sm:$0xff]
    %v4279 = vld [vmem:[#allocation2 + $0x78] sm:$0xff]
    %v4280 = vadd.f32 %v4272, %v4168
    %v4281 = vadd.f32 %v4273, %v4196
    %v4282 = vadd.f32 %v4274, %v4224
    %v4283 = vadd.f32 %v4275, %v4252
    %v4284 = vadd.f32 %v4276, %v4170
    %v4285 = vadd.f32 %v4277, %v4198
    %v4286 = vadd.f32 %v4278, %v4226
    %v4287 = vadd.f32 %v4279, %v4254
    %v4288 = vmul.f32 %v4264, 0.5
    %v4289 = vmul.f32 %v4265, 0.5
    %v4290 = vmul.f32 %v4266, 0.5
    %v4291 = vmul.f32 %v4268, 0.5
    %v4292 = vmul.f32 %v4269, 0.5
    %v4293 = vmul.f32 %v4270, 0.5
    %v4294 = vtanh.pop %v4288
    %v4295 = vtanh.pop %v4289
    %v4296 = vtanh.pop %v4290
    %v4297 = vtanh.pop %v4291
    %v4298 = vtanh.pop %v4292
    %v4299 = vtanh.pop %v4293
    %v4300 = vmul.f32 %v4294, 0.5
    %v4301 = vmul.f32 %v4295, 0.5
    %v4302 = vmul.f32 %v4296, 0.5
    %v4303 = vmul.f32 %v4297, 0.5
    %v4304 = vmul.f32 %v4298, 0.5
    %v4305 = vmul.f32 %v4299, 0.5
    %v4306 = vadd.f32 %v4300, 0.5
    %v4307 = vadd.f32 %v4301, 0.5
    %v4308 = vadd.f32 %v4302, 0.5
    %v4309 = vadd.f32 %v4303, 0.5
    %v4310 = vadd.f32 %v4304, 0.5
    %v4311 = vadd.f32 %v4305, 0.5
    %v4312 = vtanh.pop %v4267
    %v4313 = vtanh.pop %v4271
    %v4314 = vmul.f32 %v4307, %v3978
    %v4315 = vmul.f32 %v4310, %v3979
    %v4316 = vmul.f32 %v4306, %v4312
    %v4317 = vmul.f32 %v4309, %v4313
    %v4318 = vadd.f32 %v4314, %v4316
    %v4319 = vadd.f32 %v4315, %v4317
    %v4320 = vtanh.pop %v4318
    %v4321 = vtanh.pop %v4319
    %v4322 = vmul.f32 %v4308, %v4320
    %v4323 = vmul.f32 %v4311, %v4321
    %v4324 = vmul.f32 %v4280, 0.5
    %v4325 = vmul.f32 %v4281, 0.5
    %v4326 = vmul.f32 %v4282, 0.5
    %v4327 = vmul.f32 %v4284, 0.5
    %v4328 = vmul.f32 %v4285, 0.5
    %v4329 = vmul.f32 %v4286, 0.5
    %v4330 = vtanh.pop %v4324
    %v4331 = vtanh.pop %v4325
    %v4332 = vtanh.pop %v4326
    %v4333 = vtanh.pop %v4327
    %v4334 = vtanh.pop %v4328
    %v4335 = vtanh.pop %v4329
    %v4336 = vmul.f32 %v4330, 0.5
    %v4337 = vmul.f32 %v4331, 0.5
    %v4338 = vmul.f32 %v4332, 0.5
    %v4339 = vmul.f32 %v4333, 0.5
    %v4340 = vmul.f32 %v4334, 0.5
    %v4341 = vmul.f32 %v4335, 0.5
    %v4342 = vadd.f32 %v4336, 0.5
    %v4343 = vadd.f32 %v4337, 0.5
    %v4344 = vadd.f32 %v4338, 0.5
    %v4345 = vadd.f32 %v4339, 0.5
    %v4346 = vadd.f32 %v4340, 0.5
    %v4347 = vadd.f32 %v4341, 0.5
    %v4348 = vtanh.pop %v4283
    %v4349 = vtanh.pop %v4287
    %v4350 = vmul.f32 %v4343, %v4014
    %v4351 = vmul.f32 %v4346, %v4015
    %v4352 = vmul.f32 %v4342, %v4348
    %v4353 = vmul.f32 %v4345, %v4349
    %v4354 = vadd.f32 %v4350, %v4352
    %v4355 = vadd.f32 %v4351, %v4353
    %v4356 = vtanh.pop %v4354
    %v4357 = vtanh.pop %v4355
    %v4358 = vmul.f32 %v4344, %v4356
    %v4359 = vmul.f32 %v4347, %v4357
    %v4360 = vpack.c.bf16 %v4322, %v4322
    %v4361 = vpack.c.bf16 %v4323, %v4323
    %s4362 = scalar_lea.vmem %s4, 56
    %4363 = vst [vmem:[%s4362] sm:$0xf] %v4360
    %4364 = vst [vmem:[%s4362 + $0x4] sm:$0xf] %v4361
    %v4365 = vpack.c.bf16 %v4358, %v4358
    %v4366 = vpack.c.bf16 %v4359, %v4359
    %s4367 = scalar_lea.vmem %s4, 64
    %4368 = vst [vmem:[%s4367] sm:$0xf] %v4365
    %4369 = vst [vmem:[%s4367 + $0x4] sm:$0xf] %v4366
    // Predicated region
    $region22: #{sentiment_lstm_forward.2} parent=1 // pred_check
      _
    $region23: #{sentiment_lstm_forward.2} parent=1 // pred_check_branch
      %4371 = sbr.rel (0) target = $region25
    $region24: #{sentiment_lstm_forward.2} parent=1 // pred_region
      _
    $region25: #{sentiment_lstm_forward.2} parent=1 // pred_fallthru
      _
    // Predicated region
    $region26: #{sentiment_lstm_forward.2} parent=1 // pred_check
      _
    $region27: #{sentiment_lstm_forward.2} parent=1 // pred_check_branch
      %4373 = sbr.rel (0) target = $region29
    $region28: #{sentiment_lstm_forward.2} parent=1 // pred_region
      _
    $region29: #{sentiment_lstm_forward.2} parent=1 // pred_fallthru
      _
    %4374 = vsyncpa [#allocation4], 1

// kernel: sentiment_lstm_forward.3
$region0: #{sentiment_lstm_forward.3}
  #allocation0 [shape = 'u32[]', space=smem, size = 0x4, offset = 0x4, fixed_abs, tag = 'smem constant byte address 0x4 - core index']
  #allocation1 [shape = 'u32[72,128]{1,0:T(1,128)}', space=vmem, size = 0x9000, scoped, tag = 'internal scratch']
  #allocation2 [shape = 'f32[8,16,1024]{2,1,0:T(8,128)}', space=vmem, size = 0x80000, scoped, tag = 'scratch operand']
  %s0 = inlined_call_operand.vmem [shape: bf16[2,8,16,128], index: 0, kind: input, shape index: {}]
  %s1 = inlined_call_operand.hbm [shape: bf16[128,1024], index: 1, kind: input, shape index: {}]
  %s2 = inlined_call_operand.hbm [shape: bf16[128,1024], index: 2, kind: input, shape index: {}]
  %s3 = inlined_call_operand.hbm [shape: bf16[256,1024], index: 3, kind: input, shape index: {}]
  %s4 = inlined_call_operand.vmem [shape: f32[1,1024], index: 4, kind: input, shape index: {}]
  %s5 = inlined_call_operand.vmem [shape: bf16[128,128], index: 5, kind: input, shape index: {}]
  %s6 = inlined_call_operand.hbm [shape: bf16[128,128], index: 6, kind: input, shape index: {}]
  %s7 = inlined_call_operand.vmem [shape: f32[1,128], index: 7, kind: input, shape index: {}]
  %s8 = inlined_call_operand.vmem [shape: f32[16,128], index: 8, kind: output, shape index: {}]
  %s9 = sld [smem:[#allocation0]]
  $region58: #{sentiment_lstm_forward.3} parent=0
    _
  %s11 = ssub.s32 1, %s9
  %s12 = scalar_select 0, %s11, %s9
  $region1: #{sentiment_lstm_forward.3} parent=0
    #allocation3 [shape = 'u8[262144]{0}', space=vmem, size = 0x40000, scoped, tag = 'input window, operand 1, single buffered']
    #allocation4 [shape = 's32[1]{0}', space=sflag, size = 0x4, scoped, tag = 'scoped memory for sentiment_lstm_forward.3']
    #allocation5 [shape = 'u8[262144]{0}', space=vmem, size = 0x40000, scoped, tag = 'input window, operand 2, single buffered']
    #allocation6 [shape = 's32[1]{0}', space=sflag, size = 0x4, scoped, tag = 'scoped memory for sentiment_lstm_forward.3']
    #allocation7 [shape = 'u8[524288]{0}', space=vmem, size = 0x80000, scoped, tag = 'input window, operand 3, single buffered']
    #allocation8 [shape = 'u8[32768]{0}', space=vmem, size = 0x8000, scoped, tag = 'input window, operand 6, single buffered']
    #allocation9 [shape = 's32[1]{0}', space=sflag, size = 0x4, scoped, tag = 'scoped memory for sentiment_lstm_forward.3']
    %13 = vsyncpa [#allocation4], 0
    %14 = vsyncpa [#allocation6], 0
    %15 = vsyncpa [#allocation9], 0
    // Predicated region
    $region2: #{sentiment_lstm_forward.3} parent=1 // pred_check
      _
    $region3: #{sentiment_lstm_forward.3} parent=1 // pred_check_branch
      %17 = sbr.rel (0) target = $region5
    $region4: #{sentiment_lstm_forward.3} parent=1 // pred_region
      _
    $region5: #{sentiment_lstm_forward.3} parent=1 // pred_fallthru
      _
    // Predicated region
    $region6: #{sentiment_lstm_forward.3} parent=1 // pred_check
      _
    $region7: #{sentiment_lstm_forward.3} parent=1 // pred_check_branch
      %19 = sbr.rel (0) target = $region9
    $region8: #{sentiment_lstm_forward.3} parent=1 // pred_region
      %21 = vsyncadd [#allocation4], 0
      %s22 = sshll.u32 %s1, 4
      %s23 = int_to_ptr.hbm [resolvable:$true] %s22
      %s24 = sshll.u32 [#allocation3], 4
      %s25 = int_to_ptr.vmem [resolvable:$true] %s24
      %30 = dma.hbm_to_vmem [thread:$0]  %s23, 8192, %s25, [#allocation4], 512, 512, 32
    $region9: #{sentiment_lstm_forward.3} parent=1 // pred_fallthru
      _
    // Predicated region
    $region10: #{sentiment_lstm_forward.3} parent=1 // pred_check
      _
    $region11: #{sentiment_lstm_forward.3} parent=1 // pred_check_branch
      %32 = sbr.rel (0) target = $region13
    $region12: #{sentiment_lstm_forward.3} parent=1 // pred_region
      %34 = vsyncadd [#allocation6], 0
      %s35 = sshll.u32 %s2, 4
      %s36 = int_to_ptr.hbm [resolvable:$true] %s35
      %s37 = sshll.u32 [#allocation5], 4
      %s38 = int_to_ptr.vmem [resolvable:$true] %s37
      %43 = dma.hbm_to_vmem [thread:$0]  %s36, 8192, %s38, [#allocation6], 512, 512, 32
    $region13: #{sentiment_lstm_forward.3} parent=1 // pred_fallthru
      _
    // Predicated region
    $region14: #{sentiment_lstm_forward.3} parent=1 // pred_check
      _
    $region15: #{sentiment_lstm_forward.3} parent=1 // pred_check_branch
      %45 = sbr.rel (0) target = $region17
    $region16: #{sentiment_lstm_forward.3} parent=1 // pred_region
      %47 = vsyncadd [#allocation6], 0
      %s48 = sshll.u32 %s3, 4
      %s49 = int_to_ptr.hbm [resolvable:$true] %s48
      %s50 = sshll.u32 [#allocation7], 4
      %s51 = int_to_ptr.vmem [resolvable:$true] %s50
      %56 = dma.hbm_to_vmem [thread:$0]  %s49, 16384, %s51, [#allocation6], 512, 512, 32
    $region17: #{sentiment_lstm_forward.3} parent=1 // pred_fallthru
      _
    // Predicated region
    $region18: #{sentiment_lstm_forward.3} parent=1 // pred_check
      _
    $region19: #{sentiment_lstm_forward.3} parent=1 // pred_check_branch
      %58 = sbr.rel (0) target = $region21
    $region20: #{sentiment_lstm_forward.3} parent=1 // pred_region
      _
    $region21: #{sentiment_lstm_forward.3} parent=1 // pred_fallthru
      _
    // Predicated region
    $region22: #{sentiment_lstm_forward.3} parent=1 // pred_check
      _
    $region23: #{sentiment_lstm_forward.3} parent=1 // pred_check_branch
      %60 = sbr.rel (0) target = $region25
    $region24: #{sentiment_lstm_forward.3} parent=1 // pred_region
      _
    $region25: #{sentiment_lstm_forward.3} parent=1 // pred_fallthru
      _
    // Predicated region
    $region26: #{sentiment_lstm_forward.3} parent=1 // pred_check
      _
    $region27: #{sentiment_lstm_forward.3} parent=1 // pred_check_branch
      %62 = sbr.rel (0) target = $region29
    $region28: #{sentiment_lstm_forward.3} parent=1 // pred_region
      %64 = vsyncadd [#allocation9], 0
      %s65 = sshll.u32 %s6, 4
      %s66 = int_to_ptr.hbm [resolvable:$true] %s65
      %s67 = sshll.u32 [#allocation8], 4
      %s68 = int_to_ptr.vmem [resolvable:$true] %s67
      %73 = dma.hbm_to_vmem [thread:$0]  %s66, 1024, %s68, [#allocation9], 64, 64, 4
    $region29: #{sentiment_lstm_forward.3} parent=1 // pred_fallthru
      _
    // Predicated region
    $region30: #{sentiment_lstm_forward.3} parent=1 // pred_check
      _
    $region31: #{sentiment_lstm_forward.3} parent=1 // pred_check_branch
      %75 = sbr.rel (0) target = $region33
    $region32: #{sentiment_lstm_forward.3} parent=1 // pred_region
      _
    $region33: #{sentiment_lstm_forward.3} parent=1 // pred_fallthru
      _
    // Predicated region
    $region34: #{sentiment_lstm_forward.3} parent=1 // pred_check
      _
    $region35: #{sentiment_lstm_forward.3} parent=1 // pred_check_branch
      %77 = sbr.rel (0) target = $region37
    $region36: #{sentiment_lstm_forward.3} parent=1 // pred_region
      %79 = dma.done [#allocation4], 8192
    $region37: #{sentiment_lstm_forward.3} parent=1 // pred_fallthru
      _
    // Predicated region
    $region38: #{sentiment_lstm_forward.3} parent=1 // pred_check
      _
    $region39: #{sentiment_lstm_forward.3} parent=1 // pred_check_branch
      %81 = sbr.rel (0) target = $region41
    $region40: #{sentiment_lstm_forward.3} parent=1 // pred_region
      %83 = dma.done [#allocation6], 8192
    $region41: #{sentiment_lstm_forward.3} parent=1 // pred_fallthru
      _
    // Predicated region
    $region42: #{sentiment_lstm_forward.3} parent=1 // pred_check
      _
    $region43: #{sentiment_lstm_forward.3} parent=1 // pred_check_branch
      %85 = sbr.rel (0) target = $region45
    $region44: #{sentiment_lstm_forward.3} parent=1 // pred_region
      %87 = dma.done [#allocation6], 16384
    $region45: #{sentiment_lstm_forward.3} parent=1 // pred_fallthru
      _
    // Predicated region
    $region46: #{sentiment_lstm_forward.3} parent=1 // pred_check
      _
    $region47: #{sentiment_lstm_forward.3} parent=1 // pred_check_branch
      %89 = sbr.rel (0) target = $region49
    $region48: #{sentiment_lstm_forward.3} parent=1 // pred_region
      %91 = dma.done [#allocation9], 1024
    $region49: #{sentiment_lstm_forward.3} parent=1 // pred_fallthru
      _
    %v92 = vld [vmem:[%s0] sm:$0xf]
    %v93 = vld [vmem:[%s0 + $0x4] sm:$0xf]
    %v94 = vld [vmem:[%s0 + $0x8] sm:$0xf]
    %v95 = vld [vmem:[%s0 + $0xc] sm:$0xf]
    %v96 = vld [vmem:[%s0 + $0x10] sm:$0xf]
    %v97 = vld [vmem:[%s0 + $0x14] sm:$0xf]
    %v98 = vld [vmem:[%s0 + $0x18] sm:$0xf]
    %v99 = vld [vmem:[%s0 + $0x1c] sm:$0xf]
    %v100 = vld [vmem:[%s0 + $0x20] sm:$0xf]
    %v101 = vld [vmem:[%s0 + $0x24] sm:$0xf]
    %v102 = vld [vmem:[%s0 + $0x28] sm:$0xf]
    %v103 = vld [vmem:[%s0 + $0x2c] sm:$0xf]
    %v104 = vld [vmem:[%s0 + $0x30] sm:$0xf]
    %v105 = vld [vmem:[%s0 + $0x34] sm:$0xf]
    %v106 = vld [vmem:[%s0 + $0x38] sm:$0xf]
    %v107 = vld [vmem:[%s0 + $0x3c] sm:$0xf]
    %s108 = scalar_lea.vmem %s0, 64
    %v109 = vld [vmem:[%s108] sm:$0xf]
    %v110 = vld [vmem:[%s108 + $0x4] sm:$0xf]
    %v111 = vld [vmem:[%s108 + $0x8] sm:$0xf]
    %v112 = vld [vmem:[%s108 + $0xc] sm:$0xf]
    %v113 = vld [vmem:[%s108 + $0x10] sm:$0xf]
    %v114 = vld [vmem:[%s108 + $0x14] sm:$0xf]
    %v115 = vld [vmem:[%s108 + $0x18] sm:$0xf]
    %v116 = vld [vmem:[%s108 + $0x1c] sm:$0xf]
    %v117 = vld [vmem:[%s108 + $0x20] sm:$0xf]
    %v118 = vld [vmem:[%s108 + $0x24] sm:$0xf]
    %v119 = vld [vmem:[%s108 + $0x28] sm:$0xf]
    %v120 = vld [vmem:[%s108 + $0x2c] sm:$0xf]
    %v121 = vld [vmem:[%s108 + $0x30] sm:$0xf]
    %v122 = vld [vmem:[%s108 + $0x34] sm:$0xf]
    %v123 = vld [vmem:[%s108 + $0x38] sm:$0xf]
    %v124 = vld [vmem:[%s108 + $0x3c] sm:$0xf]
    %v125 = vld [vmem:[#allocation3] sm:$0xff]
    %v126 = vld [vmem:[#allocation3 + $0x8] sm:$0xff]
    %v127 = vld [vmem:[#allocation3 + $0x10] sm:$0xff]
    %v128 = vld [vmem:[#allocation3 + $0x18] sm:$0xff]
    %v129 = vld [vmem:[#allocation3 + $0x20] sm:$0xff]
    %v130 = vld [vmem:[#allocation3 + $0x28] sm:$0xff]
    %v131 = vld [vmem:[#allocation3 + $0x30] sm:$0xff]
    %v132 = vld [vmem:[#allocation3 + $0x38] sm:$0xff]
    %v133 = vld [vmem:[#allocation3 + $0x40] sm:$0xff]
    %v134 = vld [vmem:[#allocation3 + $0x48] sm:$0xff]
    %v135 = vld [vmem:[#allocation3 + $0x50] sm:$0xff]
    %v136 = vld [vmem:[#allocation3 + $0x58] sm:$0xff]
    %v137 = vld [vmem:[#allocation3 + $0x60] sm:$0xff]
    %v138 = vld [vmem:[#allocation3 + $0x68] sm:$0xff]
    %v139 = vld [vmem:[#allocation3 + $0x70] sm:$0xff]
    %v140 = vld [vmem:[#allocation3 + $0x78] sm:$0xff]
    %v141 = vld [vmem:[#allocation3 + $0x80] sm:$0xff]
    %v142 = vld [vmem:[#allocation3 + $0x88] sm:$0xff]
    %v143 = vld [vmem:[#allocation3 + $0x90] sm:$0xff]
    %v144 = vld [vmem:[#allocation3 + $0x98] sm:$0xff]
    %v145 = vld [vmem:[#allocation3 + $0xa0] sm:$0xff]
    %v146 = vld [vmem:[#allocation3 + $0xa8] sm:$0xff]
    %v147 = vld [vmem:[#allocation3 + $0xb0] sm:$0xff]
    %v148 = vld [vmem:[#allocation3 + $0xb8] sm:$0xff]
    %v149 = vld [vmem:[#allocation3 + $0xc0] sm:$0xff]
    %v150 = vld [vmem:[#allocation3 + $0xc8] sm:$0xff]
    %v151 = vld [vmem:[#allocation3 + $0xd0] sm:$0xff]
    %v152 = vld [vmem:[#allocation3 + $0xd8] sm:$0xff]
    %v153 = vld [vmem:[#allocation3 + $0xe0] sm:$0xff]
    %v154 = vld [vmem:[#allocation3 + $0xe8] sm:$0xff]
    %v155 = vld [vmem:[#allocation3 + $0xf0] sm:$0xff]
    %v156 = vld [vmem:[#allocation3 + $0xf8] sm:$0xff]
    %v157 = vld [vmem:[#allocation3 + $0x100] sm:$0xff]
    %v158 = vld [vmem:[#allocation3 + $0x108] sm:$0xff]
    %v159 = vld [vmem:[#allocation3 + $0x110] sm:$0xff]
    %v160 = vld [vmem:[#allocation3 + $0x118] sm:$0xff]
    %v161 = vld [vmem:[#allocation3 + $0x120] sm:$0xff]
    %v162 = vld [vmem:[#allocation3 + $0x128] sm:$0xff]
    %v163 = vld [vmem:[#allocation3 + $0x130] sm:$0xff]
    %v164 = vld [vmem:[#allocation3 + $0x138] sm:$0xff]
    %v165 = vld [vmem:[#allocation3 + $0x140] sm:$0xff]
    %v166 = vld [vmem:[#allocation3 + $0x148] sm:$0xff]
    %v167 = vld [vmem:[#allocation3 + $0x150] sm:$0xff]
    %v168 = vld [vmem:[#allocation3 + $0x158] sm:$0xff]
    %v169 = vld [vmem:[#allocation3 + $0x160] sm:$0xff]
    %v170 = vld [vmem:[#allocation3 + $0x168] sm:$0xff]
    %v171 = vld [vmem:[#allocation3 + $0x170] sm:$0xff]
    %v172 = vld [vmem:[#allocation3 + $0x178] sm:$0xff]
    %v173 = vld [vmem:[#allocation3 + $0x180] sm:$0xff]
    %v174 = vld [vmem:[#allocation3 + $0x188] sm:$0xff]
    %v175 = vld [vmem:[#allocation3 + $0x190] sm:$0xff]
    %v176 = vld [vmem:[#allocation3 + $0x198] sm:$0xff]
    %v177 = vld [vmem:[#allocation3 + $0x1a0] sm:$0xff]
    %v178 = vld [vmem:[#allocation3 + $0x1a8] sm:$0xff]
    %v179 = vld [vmem:[#allocation3 + $0x1b0] sm:$0xff]
    %v180 = vld [vmem:[#allocation3 + $0x1b8] sm:$0xff]
    %v181 = vld [vmem:[#allocation3 + $0x1c0] sm:$0xff]
    %v182 = vld [vmem:[#allocation3 + $0x1c8] sm:$0xff]
    %v183 = vld [vmem:[#allocation3 + $0x1d0] sm:$0xff]
    %v184 = vld [vmem:[#allocation3 + $0x1d8] sm:$0xff]
    %v185 = vld [vmem:[#allocation3 + $0x1e0] sm:$0xff]
    %v186 = vld [vmem:[#allocation3 + $0x1e8] sm:$0xff]
    %v187 = vld [vmem:[#allocation3 + $0x1f0] sm:$0xff]
    %v188 = vld [vmem:[#allocation3 + $0x1f8] sm:$0xff]
    %v189 = vld [vmem:[#allocation5] sm:$0xff]
    %v190 = vld [vmem:[#allocation5 + $0x8] sm:$0xff]
    %v191 = vld [vmem:[#allocation5 + $0x10] sm:$0xff]
    %v192 = vld [vmem:[#allocation5 + $0x18] sm:$0xff]
    %v193 = vld [vmem:[#allocation5 + $0x20] sm:$0xff]
    %v194 = vld [vmem:[#allocation5 + $0x28] sm:$0xff]
    %v195 = vld [vmem:[#allocation5 + $0x30] sm:$0xff]
    %v196 = vld [vmem:[#allocation5 + $0x38] sm:$0xff]
    %v197 = vld [vmem:[#allocation5 + $0x40] sm:$0xff]
    %v198 = vld [vmem:[#allocation5 + $0x48] sm:$0xff]
    %v199 = vld [vmem:[#allocation5 + $0x50] sm:$0xff]
    %v200 = vld [vmem:[#allocation5 + $0x58] sm:$0xff]
    %v201 = vld [vmem:[#allocation5 + $0x60] sm:$0xff]
    %v202 = vld [vmem:[#allocation5 + $0x68] sm:$0xff]
    %v203 = vld [vmem:[#allocation5 + $0x70] sm:$0xff]
    %v204 = vld [vmem:[#allocation5 + $0x78] sm:$0xff]
    %v205 = vld [vmem:[#allocation5 + $0x80] sm:$0xff]
    %v206 = vld [vmem:[#allocation5 + $0x88] sm:$0xff]
    %v207 = vld [vmem:[#allocation5 + $0x90] sm:$0xff]
    %v208 = vld [vmem:[#allocation5 + $0x98] sm:$0xff]
    %v209 = vld [vmem:[#allocation5 + $0xa0] sm:$0xff]
    %v210 = vld [vmem:[#allocation5 + $0xa8] sm:$0xff]
    %v211 = vld [vmem:[#allocation5 + $0xb0] sm:$0xff]
    %v212 = vld [vmem:[#allocation5 + $0xb8] sm:$0xff]
    %v213 = vld [vmem:[#allocation5 + $0xc0] sm:$0xff]
    %v214 = vld [vmem:[#allocation5 + $0xc8] sm:$0xff]
    %v215 = vld [vmem:[#allocation5 + $0xd0] sm:$0xff]
    %v216 = vld [vmem:[#allocation5 + $0xd8] sm:$0xff]
    %v217 = vld [vmem:[#allocation5 + $0xe0] sm:$0xff]
    %v218 = vld [vmem:[#allocation5 + $0xe8] sm:$0xff]
    %v219 = vld [vmem:[#allocation5 + $0xf0] sm:$0xff]
    %v220 = vld [vmem:[#allocation5 + $0xf8] sm:$0xff]
    %v221 = vld [vmem:[#allocation5 + $0x100] sm:$0xff]
    %v222 = vld [vmem:[#allocation5 + $0x108] sm:$0xff]
    %v223 = vld [vmem:[#allocation5 + $0x110] sm:$0xff]
    %v224 = vld [vmem:[#allocation5 + $0x118] sm:$0xff]
    %v225 = vld [vmem:[#allocation5 + $0x120] sm:$0xff]
    %v226 = vld [vmem:[#allocation5 + $0x128] sm:$0xff]
    %v227 = vld [vmem:[#allocation5 + $0x130] sm:$0xff]
    %v228 = vld [vmem:[#allocation5 + $0x138] sm:$0xff]
    %v229 = vld [vmem:[#allocation5 + $0x140] sm:$0xff]
    %v230 = vld [vmem:[#allocation5 + $0x148] sm:$0xff]
    %v231 = vld [vmem:[#allocation5 + $0x150] sm:$0xff]
    %v232 = vld [vmem:[#allocation5 + $0x158] sm:$0xff]
    %v233 = vld [vmem:[#allocation5 + $0x160] sm:$0xff]
    %v234 = vld [vmem:[#allocation5 + $0x168] sm:$0xff]
    %v235 = vld [vmem:[#allocation5 + $0x170] sm:$0xff]
    %v236 = vld [vmem:[#allocation5 + $0x178] sm:$0xff]
    %v237 = vld [vmem:[#allocation5 + $0x180] sm:$0xff]
    %v238 = vld [vmem:[#allocation5 + $0x188] sm:$0xff]
    %v239 = vld [vmem:[#allocation5 + $0x190] sm:$0xff]
    %v240 = vld [vmem:[#allocation5 + $0x198] sm:$0xff]
    %v241 = vld [vmem:[#allocation5 + $0x1a0] sm:$0xff]
    %v242 = vld [vmem:[#allocation5 + $0x1a8] sm:$0xff]
    %v243 = vld [vmem:[#allocation5 + $0x1b0] sm:$0xff]
    %v244 = vld [vmem:[#allocation5 + $0x1b8] sm:$0xff]
    %v245 = vld [vmem:[#allocation5 + $0x1c0] sm:$0xff]
    %v246 = vld [vmem:[#allocation5 + $0x1c8] sm:$0xff]
    %v247 = vld [vmem:[#allocation5 + $0x1d0] sm:$0xff]
    %v248 = vld [vmem:[#allocation5 + $0x1d8] sm:$0xff]
    %v249 = vld [vmem:[#allocation5 + $0x1e0] sm:$0xff]
    %v250 = vld [vmem:[#allocation5 + $0x1e8] sm:$0xff]
    %v251 = vld [vmem:[#allocation5 + $0x1f0] sm:$0xff]
    %v252 = vld [vmem:[#allocation5 + $0x1f8] sm:$0xff]
    %v253 = vld [vmem:[#allocation7] sm:$0xff]
    %v254 = vld [vmem:[#allocation7 + $0x8] sm:$0xff]
    %v255 = vld [vmem:[#allocation7 + $0x10] sm:$0xff]
    %v256 = vld [vmem:[#allocation7 + $0x18] sm:$0xff]
    %v257 = vld [vmem:[#allocation7 + $0x20] sm:$0xff]
    %v258 = vld [vmem:[#allocation7 + $0x28] sm:$0xff]
    %v259 = vld [vmem:[#allocation7 + $0x30] sm:$0xff]
    %v260 = vld [vmem:[#allocation7 + $0x38] sm:$0xff]
    %v261 = vld [vmem:[#allocation7 + $0x40] sm:$0xff]
    %v262 = vld [vmem:[#allocation7 + $0x48] sm:$0xff]
    %v263 = vld [vmem:[#allocation7 + $0x50] sm:$0xff]
    %v264 = vld [vmem:[#allocation7 + $0x58] sm:$0xff]
    %v265 = vld [vmem:[#allocation7 + $0x60] sm:$0xff]
    %v266 = vld [vmem:[#allocation7 + $0x68] sm:$0xff]
    %v267 = vld [vmem:[#allocation7 + $0x70] sm:$0xff]
    %v268 = vld [vmem:[#allocation7 + $0x78] sm:$0xff]
    %v269 = vld [vmem:[#allocation7 + $0x80] sm:$0xff]
    %v270 = vld [vmem:[#allocation7 + $0x88] sm:$0xff]
    %v271 = vld [vmem:[#allocation7 + $0x90] sm:$0xff]
    %v272 = vld [vmem:[#allocation7 + $0x98] sm:$0xff]
    %v273 = vld [vmem:[#allocation7 + $0xa0] sm:$0xff]
    %v274 = vld [vmem:[#allocation7 + $0xa8] sm:$0xff]
    %v275 = vld [vmem:[#allocation7 + $0xb0] sm:$0xff]
    %v276 = vld [vmem:[#allocation7 + $0xb8] sm:$0xff]
    %v277 = vld [vmem:[#allocation7 + $0xc0] sm:$0xff]
    %v278 = vld [vmem:[#allocation7 + $0xc8] sm:$0xff]
    %v279 = vld [vmem:[#allocation7 + $0xd0] sm:$0xff]
    %v280 = vld [vmem:[#allocation7 + $0xd8] sm:$0xff]
    %v281 = vld [vmem:[#allocation7 + $0xe0] sm:$0xff]
    %v282 = vld [vmem:[#allocation7 + $0xe8] sm:$0xff]
    %v283 = vld [vmem:[#allocation7 + $0xf0] sm:$0xff]
    %v284 = vld [vmem:[#allocation7 + $0xf8] sm:$0xff]
    %v285 = vld [vmem:[#allocation7 + $0x100] sm:$0xff]
    %v286 = vld [vmem:[#allocation7 + $0x108] sm:$0xff]
    %v287 = vld [vmem:[#allocation7 + $0x110] sm:$0xff]
    %v288 = vld [vmem:[#allocation7 + $0x118] sm:$0xff]
    %v289 = vld [vmem:[#allocation7 + $0x120] sm:$0xff]
    %v290 = vld [vmem:[#allocation7 + $0x128] sm:$0xff]
    %v291 = vld [vmem:[#allocation7 + $0x130] sm:$0xff]
    %v292 = vld [vmem:[#allocation7 + $0x138] sm:$0xff]
    %v293 = vld [vmem:[#allocation7 + $0x140] sm:$0xff]
    %v294 = vld [vmem:[#allocation7 + $0x148] sm:$0xff]
    %v295 = vld [vmem:[#allocation7 + $0x150] sm:$0xff]
    %v296 = vld [vmem:[#allocation7 + $0x158] sm:$0xff]
    %v297 = vld [vmem:[#allocation7 + $0x160] sm:$0xff]
    %v298 = vld [vmem:[#allocation7 + $0x168] sm:$0xff]
    %v299 = vld [vmem:[#allocation7 + $0x170] sm:$0xff]
    %v300 = vld [vmem:[#allocation7 + $0x178] sm:$0xff]
    %v301 = vld [vmem:[#allocation7 + $0x180] sm:$0xff]
    %v302 = vld [vmem:[#allocation7 + $0x188] sm:$0xff]
    %v303 = vld [vmem:[#allocation7 + $0x190] sm:$0xff]
    %v304 = vld [vmem:[#allocation7 + $0x198] sm:$0xff]
    %v305 = vld [vmem:[#allocation7 + $0x1a0] sm:$0xff]
    %v306 = vld [vmem:[#allocation7 + $0x1a8] sm:$0xff]
    %v307 = vld [vmem:[#allocation7 + $0x1b0] sm:$0xff]
    %v308 = vld [vmem:[#allocation7 + $0x1b8] sm:$0xff]
    %v309 = vld [vmem:[#allocation7 + $0x1c0] sm:$0xff]
    %v310 = vld [vmem:[#allocation7 + $0x1c8] sm:$0xff]
    %v311 = vld [vmem:[#allocation7 + $0x1d0] sm:$0xff]
    %v312 = vld [vmem:[#allocation7 + $0x1d8] sm:$0xff]
    %v313 = vld [vmem:[#allocation7 + $0x1e0] sm:$0xff]
    %v314 = vld [vmem:[#allocation7 + $0x1e8] sm:$0xff]
    %v315 = vld [vmem:[#allocation7 + $0x1f0] sm:$0xff]
    %v316 = vld [vmem:[#allocation7 + $0x1f8] sm:$0xff]
    %v317 = vld [vmem:[#allocation7 + $0x200] sm:$0xff]
    %v318 = vld [vmem:[#allocation7 + $0x208] sm:$0xff]
    %v319 = vld [vmem:[#allocation7 + $0x210] sm:$0xff]
    %v320 = vld [vmem:[#allocation7 + $0x218] sm:$0xff]
    %v321 = vld [vmem:[#allocation7 + $0x220] sm:$0xff]
    %v322 = vld [vmem:[#allocation7 + $0x228] sm:$0xff]
    %v323 = vld [vmem:[#allocation7 + $0x230] sm:$0xff]
    %v324 = vld [vmem:[#allocation7 + $0x238] sm:$0xff]
    %v325 = vld [vmem:[#allocation7 + $0x240] sm:$0xff]
    %v326 = vld [vmem:[#allocation7 + $0x248] sm:$0xff]
    %v327 = vld [vmem:[#allocation7 + $0x250] sm:$0xff]
    %v328 = vld [vmem:[#allocation7 + $0x258] sm:$0xff]
    %v329 = vld [vmem:[#allocation7 + $0x260] sm:$0xff]
    %v330 = vld [vmem:[#allocation7 + $0x268] sm:$0xff]
    %v331 = vld [vmem:[#allocation7 + $0x270] sm:$0xff]
    %v332 = vld [vmem:[#allocation7 + $0x278] sm:$0xff]
    %v333 = vld [vmem:[#allocation7 + $0x280] sm:$0xff]
    %v334 = vld [vmem:[#allocation7 + $0x288] sm:$0xff]
    %v335 = vld [vmem:[#allocation7 + $0x290] sm:$0xff]
    %v336 = vld [vmem:[#allocation7 + $0x298] sm:$0xff]
    %v337 = vld [vmem:[#allocation7 + $0x2a0] sm:$0xff]
    %v338 = vld [vmem:[#allocation7 + $0x2a8] sm:$0xff]
    %v339 = vld [vmem:[#allocation7 + $0x2b0] sm:$0xff]
    %v340 = vld [vmem:[#allocation7 + $0x2b8] sm:$0xff]
    %v341 = vld [vmem:[#allocation7 + $0x2c0] sm:$0xff]
    %v342 = vld [vmem:[#allocation7 + $0x2c8] sm:$0xff]
    %v343 = vld [vmem:[#allocation7 + $0x2d0] sm:$0xff]
    %v344 = vld [vmem:[#allocation7 + $0x2d8] sm:$0xff]
    %v345 = vld [vmem:[#allocation7 + $0x2e0] sm:$0xff]
    %v346 = vld [vmem:[#allocation7 + $0x2e8] sm:$0xff]
    %v347 = vld [vmem:[#allocation7 + $0x2f0] sm:$0xff]
    %v348 = vld [vmem:[#allocation7 + $0x2f8] sm:$0xff]
    %v349 = vld [vmem:[#allocation7 + $0x300] sm:$0xff]
    %v350 = vld [vmem:[#allocation7 + $0x308] sm:$0xff]
    %v351 = vld [vmem:[#allocation7 + $0x310] sm:$0xff]
    %v352 = vld [vmem:[#allocation7 + $0x318] sm:$0xff]
    %v353 = vld [vmem:[#allocation7 + $0x320] sm:$0xff]
    %v354 = vld [vmem:[#allocation7 + $0x328] sm:$0xff]
    %v355 = vld [vmem:[#allocation7 + $0x330] sm:$0xff]
    %v356 = vld [vmem:[#allocation7 + $0x338] sm:$0xff]
    %v357 = vld [vmem:[#allocation7 + $0x340] sm:$0xff]
    %v358 = vld [vmem:[#allocation7 + $0x348] sm:$0xff]
    %v359 = vld [vmem:[#allocation7 + $0x350] sm:$0xff]
    %v360 = vld [vmem:[#allocation7 + $0x358] sm:$0xff]
    %v361 = vld [vmem:[#allocation7 + $0x360] sm:$0xff]
    %v362 = vld [vmem:[#allocation7 + $0x368] sm:$0xff]
    %v363 = vld [vmem:[#allocation7 + $0x370] sm:$0xff]
    %v364 = vld [vmem:[#allocation7 + $0x378] sm:$0xff]
    %v365 = vld [vmem:[#allocation7 + $0x380] sm:$0xff]
    %v366 = vld [vmem:[#allocation7 + $0x388] sm:$0xff]
    %v367 = vld [vmem:[#allocation7 + $0x390] sm:$0xff]
    %v368 = vld [vmem:[#allocation7 + $0x398] sm:$0xff]
    %v369 = vld [vmem:[#allocation7 + $0x3a0] sm:$0xff]
    %v370 = vld [vmem:[#allocation7 + $0x3a8] sm:$0xff]
    %v371 = vld [vmem:[#allocation7 + $0x3b0] sm:$0xff]
    %v372 = vld [vmem:[#allocation7 + $0x3b8] sm:$0xff]
    %v373 = vld [vmem:[#allocation7 + $0x3c0] sm:$0xff]
    %v374 = vld [vmem:[#allocation7 + $0x3c8] sm:$0xff]
    %v375 = vld [vmem:[#allocation7 + $0x3d0] sm:$0xff]
    %v376 = vld [vmem:[#allocation7 + $0x3d8] sm:$0xff]
    %v377 = vld [vmem:[#allocation7 + $0x3e0] sm:$0xff]
    %v378 = vld [vmem:[#allocation7 + $0x3e8] sm:$0xff]
    %v379 = vld [vmem:[#allocation7 + $0x3f0] sm:$0xff]
    %v380 = vld [vmem:[#allocation7 + $0x3f8] sm:$0xff]
    %v381 = vld [vmem:[%s4] sm:$0xff]
    %v398 = vunpack.c.l.b16 %v92
    %v399 = vunpack.c.l.b16 %v93
    %v400 = vunpack.c.l.b16 %v94
    %v401 = vunpack.c.l.b16 %v95
    %v402 = vunpack.c.l.b16 %v96
    %v403 = vunpack.c.l.b16 %v97
    %v404 = vunpack.c.l.b16 %v98
    %v405 = vunpack.c.l.b16 %v99
    %v406 = vunpack.c.l.b16 %v100
    %v407 = vunpack.c.l.b16 %v101
    %v408 = vunpack.c.l.b16 %v102
    %v409 = vunpack.c.l.b16 %v103
    %v410 = vunpack.c.l.b16 %v104
    %v411 = vunpack.c.l.b16 %v105
    %v412 = vunpack.c.l.b16 %v106
    %v413 = vunpack.c.l.b16 %v107
    %v414 = vpack.c.b16 %v399, %v398
    %v415 = vpack.c.b16 %v401, %v400
    %v416 = vpack.c.b16 %v403, %v402
    %v417 = vpack.c.b16 %v405, %v404
    %v418 = vpack.c.b16 %v407, %v406
    %v419 = vpack.c.b16 %v409, %v408
    %v420 = vpack.c.b16 %v411, %v410
    %v421 = vpack.c.b16 %v413, %v412
    %v494 = vunpack.c.l.b16 %v125
    %v495 = vunpack.c.h.b16 %v125
    %v496 = vunpack.c.l.b16 %v126
    %v497 = vunpack.c.h.b16 %v126
    %v498 = vunpack.c.l.b16 %v127
    %v499 = vunpack.c.h.b16 %v127
    %v500 = vunpack.c.l.b16 %v128
    %v501 = vunpack.c.h.b16 %v128
    %v502 = vunpack.c.l.b16 %v129
    %v503 = vunpack.c.h.b16 %v129
    %v504 = vunpack.c.l.b16 %v130
    %v505 = vunpack.c.h.b16 %v130
    %v506 = vunpack.c.l.b16 %v131
    %v507 = vunpack.c.h.b16 %v131
    %v508 = vunpack.c.l.b16 %v132
    %v509 = vunpack.c.h.b16 %v132
    %v510 = vunpack.c.l.b16 %v133
    %v511 = vunpack.c.h.b16 %v133
    %v512 = vunpack.c.l.b16 %v134
    %v513 = vunpack.c.h.b16 %v134
    %v514 = vunpack.c.l.b16 %v135
    %v515 = vunpack.c.h.b16 %v135
    %v516 = vunpack.c.l.b16 %v136
    %v517 = vunpack.c.h.b16 %v136
    %v518 = vunpack.c.l.b16 %v137
    %v519 = vunpack.c.h.b16 %v137
    %v520 = vunpack.c.l.b16 %v138
    %v521 = vunpack.c.h.b16 %v138
    %v522 = vunpack.c.l.b16 %v139
    %v523 = vunpack.c.h.b16 %v139
    %v524 = vunpack.c.l.b16 %v140
    %v525 = vunpack.c.h.b16 %v140
    %v526 = vunpack.c.l.b16 %v141
    %v527 = vunpack.c.h.b16 %v141
    %v528 = vunpack.c.l.b16 %v142
    %v529 = vunpack.c.h.b16 %v142
    %v530 = vunpack.c.l.b16 %v143
    %v531 = vunpack.c.h.b16 %v143
    %v532 = vunpack.c.l.b16 %v144
    %v533 = vunpack.c.h.b16 %v144
    %v534 = vunpack.c.l.b16 %v145
    %v535 = vunpack.c.h.b16 %v145
    %v536 = vunpack.c.l.b16 %v146
    %v537 = vunpack.c.h.b16 %v146
    %v538 = vunpack.c.l.b16 %v147
    %v539 = vunpack.c.h.b16 %v147
    %v540 = vunpack.c.l.b16 %v148
    %v541 = vunpack.c.h.b16 %v148
    %v542 = vunpack.c.l.b16 %v149
    %v543 = vunpack.c.h.b16 %v149
    %v544 = vunpack.c.l.b16 %v150
    %v545 = vunpack.c.h.b16 %v150
    %v546 = vunpack.c.l.b16 %v151
    %v547 = vunpack.c.h.b16 %v151
    %v548 = vunpack.c.l.b16 %v152
    %v549 = vunpack.c.h.b16 %v152
    %v550 = vunpack.c.l.b16 %v153
    %v551 = vunpack.c.h.b16 %v153
    %v552 = vunpack.c.l.b16 %v154
    %v553 = vunpack.c.h.b16 %v154
    %v554 = vunpack.c.l.b16 %v155
    %v555 = vunpack.c.h.b16 %v155
    %v556 = vunpack.c.l.b16 %v156
    %v557 = vunpack.c.h.b16 %v156
    %v558 = vunpack.c.l.b16 %v157
    %v559 = vunpack.c.h.b16 %v157
    %v560 = vunpack.c.l.b16 %v158
    %v561 = vunpack.c.h.b16 %v158
    %v562 = vunpack.c.l.b16 %v159
    %v563 = vunpack.c.h.b16 %v159
    %v564 = vunpack.c.l.b16 %v160
    %v565 = vunpack.c.h.b16 %v160
    %v566 = vunpack.c.l.b16 %v161
    %v567 = vunpack.c.h.b16 %v161
    %v568 = vunpack.c.l.b16 %v162
    %v569 = vunpack.c.h.b16 %v162
    %v570 = vunpack.c.l.b16 %v163
    %v571 = vunpack.c.h.b16 %v163
    %v572 = vunpack.c.l.b16 %v164
    %v573 = vunpack.c.h.b16 %v164
    %v574 = vunpack.c.l.b16 %v165
    %v575 = vunpack.c.h.b16 %v165
    %v576 = vunpack.c.l.b16 %v166
    %v577 = vunpack.c.h.b16 %v166
    %v578 = vunpack.c.l.b16 %v167
    %v579 = vunpack.c.h.b16 %v167
    %v580 = vunpack.c.l.b16 %v168
    %v581 = vunpack.c.h.b16 %v168
    %v582 = vunpack.c.l.b16 %v169
    %v583 = vunpack.c.h.b16 %v169
    %v584 = vunpack.c.l.b16 %v170
    %v585 = vunpack.c.h.b16 %v170
    %v586 = vunpack.c.l.b16 %v171
    %v587 = vunpack.c.h.b16 %v171
    %v588 = vunpack.c.l.b16 %v172
    %v589 = vunpack.c.h.b16 %v172
    %v590 = vunpack.c.l.b16 %v173
    %v591 = vunpack.c.h.b16 %v173
    %v592 = vunpack.c.l.b16 %v174
    %v593 = vunpack.c.h.b16 %v174
    %v594 = vunpack.c.l.b16 %v175
    %v595 = vunpack.c.h.b16 %v175
    %v596 = vunpack.c.l.b16 %v176
    %v597 = vunpack.c.h.b16 %v176
    %v598 = vunpack.c.l.b16 %v177
    %v599 = vunpack.c.h.b16 %v177
    %v600 = vunpack.c.l.b16 %v178
    %v601 = vunpack.c.h.b16 %v178
    %v602 = vunpack.c.l.b16 %v179
    %v603 = vunpack.c.h.b16 %v179
    %v604 = vunpack.c.l.b16 %v180
    %v605 = vunpack.c.h.b16 %v180
    %v606 = vunpack.c.l.b16 %v181
    %v607 = vunpack.c.h.b16 %v181
    %v608 = vunpack.c.l.b16 %v182
    %v609 = vunpack.c.h.b16 %v182
    %v610 = vunpack.c.l.b16 %v183
    %v611 = vunpack.c.h.b16 %v183
    %v612 = vunpack.c.l.b16 %v184
    %v613 = vunpack.c.h.b16 %v184
    %v614 = vunpack.c.l.b16 %v185
    %v615 = vunpack.c.h.b16 %v185
    %v616 = vunpack.c.l.b16 %v186
    %v617 = vunpack.c.h.b16 %v186
    %v618 = vunpack.c.l.b16 %v187
    %v619 = vunpack.c.h.b16 %v187
    %v620 = vunpack.c.l.b16 %v188
    %v621 = vunpack.c.h.b16 %v188
    %v622 = vpack.c.b16 %v502, %v494
    %v623 = vpack.c.b16 %v503, %v495
    %v624 = vpack.c.b16 %v504, %v496
    %v625 = vpack.c.b16 %v505, %v497
    %v626 = vpack.c.b16 %v506, %v498
    %v627 = vpack.c.b16 %v507, %v499
    %v628 = vpack.c.b16 %v508, %v500
    %v629 = vpack.c.b16 %v509, %v501
    %v630 = vpack.c.b16 %v518, %v510
    %v631 = vpack.c.b16 %v519, %v511
    %v632 = vpack.c.b16 %v520, %v512
    %v633 = vpack.c.b16 %v521, %v513
    %v634 = vpack.c.b16 %v522, %v514
    %v635 = vpack.c.b16 %v523, %v515
    %v636 = vpack.c.b16 %v524, %v516
    %v637 = vpack.c.b16 %v525, %v517
    %v638 = vpack.c.b16 %v534, %v526
    %v639 = vpack.c.b16 %v535, %v527
    %v640 = vpack.c.b16 %v536, %v528
    %v641 = vpack.c.b16 %v537, %v529
    %v642 = vpack.c.b16 %v538, %v530
    %v643 = vpack.c.b16 %v539, %v531
    %v644 = vpack.c.b16 %v540, %v532
    %v645 = vpack.c.b16 %v541, %v533
    %v646 = vpack.c.b16 %v550, %v542
    %v647 = vpack.c.b16 %v551, %v543
    %v648 = vpack.c.b16 %v552, %v544
    %v649 = vpack.c.b16 %v553, %v545
    %v650 = vpack.c.b16 %v554, %v546
    %v651 = vpack.c.b16 %v555, %v547
    %v652 = vpack.c.b16 %v556, %v548
    %v653 = vpack.c.b16 %v557, %v549
    %v654 = vpack.c.b16 %v566, %v558
    %v655 = vpack.c.b16 %v567, %v559
    %v656 = vpack.c.b16 %v568, %v560
    %v657 = vpack.c.b16 %v569, %v561
    %v658 = vpack.c.b16 %v570, %v562
    %v659 = vpack.c.b16 %v571, %v563
    %v660 = vpack.c.b16 %v572, %v564
    %v661 = vpack.c.b16 %v573, %v565
    %v662 = vpack.c.b16 %v582, %v574
    %v663 = vpack.c.b16 %v583, %v575
    %v664 = vpack.c.b16 %v584, %v576
    %v665 = vpack.c.b16 %v585, %v577
    %v666 = vpack.c.b16 %v586, %v578
    %v667 = vpack.c.b16 %v587, %v579
    %v668 = vpack.c.b16 %v588, %v580
    %v669 = vpack.c.b16 %v589, %v581
    %v670 = vpack.c.b16 %v598, %v590
    %v671 = vpack.c.b16 %v599, %v591
    %v672 = vpack.c.b16 %v600, %v592
    %v673 = vpack.c.b16 %v601, %v593
    %v674 = vpack.c.b16 %v602, %v594
    %v675 = vpack.c.b16 %v603, %v595
    %v676 = vpack.c.b16 %v604, %v596
    %v677 = vpack.c.b16 %v605, %v597
    %v678 = vpack.c.b16 %v614, %v606
    %v679 = vpack.c.b16 %v615, %v607
    %v680 = vpack.c.b16 %v616, %v608
    %v681 = vpack.c.b16 %v617, %v609
    %v682 = vpack.c.b16 %v618, %v610
    %v683 = vpack.c.b16 %v619, %v611
    %v684 = vpack.c.b16 %v620, %v612
    %v685 = vpack.c.b16 %v621, %v613
    %750 = vmatpush.bf16.msra.mxu0 %v678
    %751 = vmatpush.bf16.msra.mxu0 %v670
    %752 = vmatpush.bf16.msra.mxu0 %v662
    %753 = vmatpush.bf16.msra.mxu0 %v654
    %754 = vmatpush.bf16.msra.mxu0 %v646
    %755 = vmatpush.bf16.msra.mxu0 %v638
    %756 = vmatpush.bf16.msra.mxu0 %v630
    %757 = vmatpush.bf16.msra.mxu0 %v622
    %758 = vmatmul.bf16.gmra.mxu0 %v414
    %v759 = vpop.f32.mrf.mxu0
    %v760 = vadd.f32 0.0, %v759
    %v761 = vpop.f32.mrf.mxu0
    %v762 = vadd.f32 0.0, %v761
    %763 = vmatmul.bf16.gmra.mxu0 %v415
    %v764 = vpop.f32.mrf.mxu0
    %v765 = vadd.f32 0.0, %v764
    %v766 = vpop.f32.mrf.mxu0
    %v767 = vadd.f32 0.0, %v766
    %768 = vmatmul.bf16.gmra.mxu0 %v416
    %v769 = vpop.f32.mrf.mxu0
    %v770 = vadd.f32 0.0, %v769
    %v771 = vpop.f32.mrf.mxu0
    %v772 = vadd.f32 0.0, %v771
    %773 = vmatmul.bf16.gmra.mxu0 %v417
    %v774 = vpop.f32.mrf.mxu0
    %v775 = vadd.f32 0.0, %v774
    %v776 = vpop.f32.mrf.mxu0
    %v777 = vadd.f32 0.0, %v776
    %778 = vmatmul.bf16.gmra.mxu0 %v418
    %v779 = vpop.f32.mrf.mxu0
    %v780 = vadd.f32 0.0, %v779
    %v781 = vpop.f32.mrf.mxu0
    %v782 = vadd.f32 0.0, %v781
    %783 = vmatmul.bf16.gmra.mxu0 %v419
    %v784 = vpop.f32.mrf.mxu0
    %v785 = vadd.f32 0.0, %v784
    %v786 = vpop.f32.mrf.mxu0
    %v787 = vadd.f32 0.0, %v786
    %788 = vmatmul.bf16.gmra.mxu0 %v420
    %v789 = vpop.f32.mrf.mxu0
    %v790 = vadd.f32 0.0, %v789
    %v791 = vpop.f32.mrf.mxu0
    %v792 = vadd.f32 0.0, %v791
    %793 = vmatmul.bf16.gmra.mxu0 %v421
    %v794 = vpop.f32.mrf.mxu0
    %v795 = vadd.f32 0.0, %v794
    %v796 = vpop.f32.mrf.mxu0
    %v797 = vadd.f32 0.0, %v796
    %798 = vdwg.mxu0
    %799 = vmatpush.bf16.msra.mxu0 %v679
    %800 = vmatpush.bf16.msra.mxu0 %v671
    %801 = vmatpush.bf16.msra.mxu0 %v663
    %802 = vmatpush.bf16.msra.mxu0 %v655
    %803 = vmatpush.bf16.msra.mxu0 %v647
    %804 = vmatpush.bf16.msra.mxu0 %v639
    %805 = vmatpush.bf16.msra.mxu0 %v631
    %806 = vmatpush.bf16.msra.mxu0 %v623
    %807 = vmatmul.bf16.gmra.mxu0 %v414
    %v808 = vpop.f32.mrf.mxu0
    %v809 = vadd.f32 0.0, %v808
    %v810 = vpop.f32.mrf.mxu0
    %v811 = vadd.f32 0.0, %v810
    %812 = vmatmul.bf16.gmra.mxu0 %v415
    %v813 = vpop.f32.mrf.mxu0
    %v814 = vadd.f32 0.0, %v813
    %v815 = vpop.f32.mrf.mxu0
    %v816 = vadd.f32 0.0, %v815
    %817 = vmatmul.bf16.gmra.mxu0 %v416
    %v818 = vpop.f32.mrf.mxu0
    %v819 = vadd.f32 0.0, %v818
    %v820 = vpop.f32.mrf.mxu0
    %v821 = vadd.f32 0.0, %v820
    %822 = vmatmul.bf16.gmra.mxu0 %v417
    %v823 = vpop.f32.mrf.mxu0
    %v824 = vadd.f32 0.0, %v823
    %v825 = vpop.f32.mrf.mxu0
    %v826 = vadd.f32 0.0, %v825
    %827 = vmatmul.bf16.gmra.mxu0 %v418
    %v828 = vpop.f32.mrf.mxu0
    %v829 = vadd.f32 0.0, %v828
    %v830 = vpop.f32.mrf.mxu0
    %v831 = vadd.f32 0.0, %v830
    %832 = vmatmul.bf16.gmra.mxu0 %v419
    %v833 = vpop.f32.mrf.mxu0
    %v834 = vadd.f32 0.0, %v833
    %v835 = vpop.f32.mrf.mxu0
    %v836 = vadd.f32 0.0, %v835
    %837 = vmatmul.bf16.gmra.mxu0 %v420
    %v838 = vpop.f32.mrf.mxu0
    %v839 = vadd.f32 0.0, %v838
    %v840 = vpop.f32.mrf.mxu0
    %v841 = vadd.f32 0.0, %v840
    %842 = vmatmul.bf16.gmra.mxu0 %v421
    %v843 = vpop.f32.mrf.mxu0
    %v844 = vadd.f32 0.0, %v843
    %v845 = vpop.f32.mrf.mxu0
    %v846 = vadd.f32 0.0, %v845
    %847 = vdwg.mxu0
    %848 = vmatpush.bf16.msra.mxu0 %v680
    %849 = vmatpush.bf16.msra.mxu0 %v672
    %850 = vmatpush.bf16.msra.mxu0 %v664
    %851 = vmatpush.bf16.msra.mxu0 %v656
    %852 = vmatpush.bf16.msra.mxu0 %v648
    %853 = vmatpush.bf16.msra.mxu0 %v640
    %854 = vmatpush.bf16.msra.mxu0 %v632
    %855 = vmatpush.bf16.msra.mxu0 %v624
    %856 = vmatmul.bf16.gmra.mxu0 %v414
    %v857 = vpop.f32.mrf.mxu0
    %v858 = vadd.f32 0.0, %v857
    %v859 = vpop.f32.mrf.mxu0
    %v860 = vadd.f32 0.0, %v859
    %861 = vmatmul.bf16.gmra.mxu0 %v415
    %v862 = vpop.f32.mrf.mxu0
    %v863 = vadd.f32 0.0, %v862
    %v864 = vpop.f32.mrf.mxu0
    %v865 = vadd.f32 0.0, %v864
    %866 = vmatmul.bf16.gmra.mxu0 %v416
    %v867 = vpop.f32.mrf.mxu0
    %v868 = vadd.f32 0.0, %v867
    %v869 = vpop.f32.mrf.mxu0
    %v870 = vadd.f32 0.0, %v869
    %871 = vmatmul.bf16.gmra.mxu0 %v417
    %v872 = vpop.f32.mrf.mxu0
    %v873 = vadd.f32 0.0, %v872
    %v874 = vpop.f32.mrf.mxu0
    %v875 = vadd.f32 0.0, %v874
    %876 = vmatmul.bf16.gmra.mxu0 %v418
    %v877 = vpop.f32.mrf.mxu0
    %v878 = vadd.f32 0.0, %v877
    %v879 = vpop.f32.mrf.mxu0
    %v880 = vadd.f32 0.0, %v879
    %881 = vmatmul.bf16.gmra.mxu0 %v419
    %v882 = vpop.f32.mrf.mxu0
    %v883 = vadd.f32 0.0, %v882
    %v884 = vpop.f32.mrf.mxu0
    %v885 = vadd.f32 0.0, %v884
    %886 = vmatmul.bf16.gmra.mxu0 %v420
    %v887 = vpop.f32.mrf.mxu0
    %v888 = vadd.f32 0.0, %v887
    %v889 = vpop.f32.mrf.mxu0
    %v890 = vadd.f32 0.0, %v889
    %891 = vmatmul.bf16.gmra.mxu0 %v421
    %v892 = vpop.f32.mrf.mxu0
    %v893 = vadd.f32 0.0, %v892
    %v894 = vpop.f32.mrf.mxu0
    %v895 = vadd.f32 0.0, %v894
    %896 = vdwg.mxu0
    %897 = vmatpush.bf16.msra.mxu0 %v681
    %898 = vmatpush.bf16.msra.mxu0 %v673
    %899 = vmatpush.bf16.msra.mxu0 %v665
    %900 = vmatpush.bf16.msra.mxu0 %v657
    %901 = vmatpush.bf16.msra.mxu0 %v649
    %902 = vmatpush.bf16.msra.mxu0 %v641
    %903 = vmatpush.bf16.msra.mxu0 %v633
    %904 = vmatpush.bf16.msra.mxu0 %v625
    %905 = vmatmul.bf16.gmra.mxu0 %v414
    %v906 = vpop.f32.mrf.mxu0
    %v907 = vadd.f32 0.0, %v906
    %v908 = vpop.f32.mrf.mxu0
    %v909 = vadd.f32 0.0, %v908
    %910 = vmatmul.bf16.gmra.mxu0 %v415
    %v911 = vpop.f32.mrf.mxu0
    %v912 = vadd.f32 0.0, %v911
    %v913 = vpop.f32.mrf.mxu0
    %v914 = vadd.f32 0.0, %v913
    %915 = vmatmul.bf16.gmra.mxu0 %v416
    %v916 = vpop.f32.mrf.mxu0
    %v917 = vadd.f32 0.0, %v916
    %v918 = vpop.f32.mrf.mxu0
    %v919 = vadd.f32 0.0, %v918
    %920 = vmatmul.bf16.gmra.mxu0 %v417
    %v921 = vpop.f32.mrf.mxu0
    %v922 = vadd.f32 0.0, %v921
    %v923 = vpop.f32.mrf.mxu0
    %v924 = vadd.f32 0.0, %v923
    %925 = vmatmul.bf16.gmra.mxu0 %v418
    %v926 = vpop.f32.mrf.mxu0
    %v927 = vadd.f32 0.0, %v926
    %v928 = vpop.f32.mrf.mxu0
    %v929 = vadd.f32 0.0, %v928
    %930 = vmatmul.bf16.gmra.mxu0 %v419
    %v931 = vpop.f32.mrf.mxu0
    %v932 = vadd.f32 0.0, %v931
    %v933 = vpop.f32.mrf.mxu0
    %v934 = vadd.f32 0.0, %v933
    %935 = vmatmul.bf16.gmra.mxu0 %v420
    %v936 = vpop.f32.mrf.mxu0
    %v937 = vadd.f32 0.0, %v936
    %v938 = vpop.f32.mrf.mxu0
    %v939 = vadd.f32 0.0, %v938
    %940 = vmatmul.bf16.gmra.mxu0 %v421
    %v941 = vpop.f32.mrf.mxu0
    %v942 = vadd.f32 0.0, %v941
    %v943 = vpop.f32.mrf.mxu0
    %v944 = vadd.f32 0.0, %v943
    %945 = vdwg.mxu0
    %946 = vmatpush.bf16.msra.mxu0 %v682
    %947 = vmatpush.bf16.msra.mxu0 %v674
    %948 = vmatpush.bf16.msra.mxu0 %v666
    %949 = vmatpush.bf16.msra.mxu0 %v658
    %950 = vmatpush.bf16.msra.mxu0 %v650
    %951 = vmatpush.bf16.msra.mxu0 %v642
    %952 = vmatpush.bf16.msra.mxu0 %v634
    %953 = vmatpush.bf16.msra.mxu0 %v626
    %954 = vmatmul.bf16.gmra.mxu0 %v414
    %v955 = vpop.f32.mrf.mxu0
    %v956 = vadd.f32 0.0, %v955
    %v957 = vpop.f32.mrf.mxu0
    %v958 = vadd.f32 0.0, %v957
    %959 = vmatmul.bf16.gmra.mxu0 %v415
    %v960 = vpop.f32.mrf.mxu0
    %v961 = vadd.f32 0.0, %v960
    %v962 = vpop.f32.mrf.mxu0
    %v963 = vadd.f32 0.0, %v962
    %964 = vmatmul.bf16.gmra.mxu0 %v416
    %v965 = vpop.f32.mrf.mxu0
    %v966 = vadd.f32 0.0, %v965
    %v967 = vpop.f32.mrf.mxu0
    %v968 = vadd.f32 0.0, %v967
    %969 = vmatmul.bf16.gmra.mxu0 %v417
    %v970 = vpop.f32.mrf.mxu0
    %v971 = vadd.f32 0.0, %v970
    %v972 = vpop.f32.mrf.mxu0
    %v973 = vadd.f32 0.0, %v972
    %974 = vmatmul.bf16.gmra.mxu0 %v418
    %v975 = vpop.f32.mrf.mxu0
    %v976 = vadd.f32 0.0, %v975
    %v977 = vpop.f32.mrf.mxu0
    %v978 = vadd.f32 0.0, %v977
    %979 = vmatmul.bf16.gmra.mxu0 %v419
    %v980 = vpop.f32.mrf.mxu0
    %v981 = vadd.f32 0.0, %v980
    %v982 = vpop.f32.mrf.mxu0
    %v983 = vadd.f32 0.0, %v982
    %984 = vmatmul.bf16.gmra.mxu0 %v420
    %v985 = vpop.f32.mrf.mxu0
    %v986 = vadd.f32 0.0, %v985
    %v987 = vpop.f32.mrf.mxu0
    %v988 = vadd.f32 0.0, %v987
    %989 = vmatmul.bf16.gmra.mxu0 %v421
    %v990 = vpop.f32.mrf.mxu0
    %v991 = vadd.f32 0.0, %v990
    %v992 = vpop.f32.mrf.mxu0
    %v993 = vadd.f32 0.0, %v992
    %994 = vdwg.mxu0
    %995 = vmatpush.bf16.msra.mxu0 %v683
    %996 = vmatpush.bf16.msra.mxu0 %v675
    %997 = vmatpush.bf16.msra.mxu0 %v667
    %998 = vmatpush.bf16.msra.mxu0 %v659
    %999 = vmatpush.bf16.msra.mxu0 %v651
    %1000 = vmatpush.bf16.msra.mxu0 %v643
    %1001 = vmatpush.bf16.msra.mxu0 %v635
    %1002 = vmatpush.bf16.msra.mxu0 %v627
    %1003 = vmatmul.bf16.gmra.mxu0 %v414
    %v1004 = vpop.f32.mrf.mxu0
    %v1005 = vadd.f32 0.0, %v1004
    %v1006 = vpop.f32.mrf.mxu0
    %v1007 = vadd.f32 0.0, %v1006
    %1008 = vmatmul.bf16.gmra.mxu0 %v415
    %v1009 = vpop.f32.mrf.mxu0
    %v1010 = vadd.f32 0.0, %v1009
    %v1011 = vpop.f32.mrf.mxu0
    %v1012 = vadd.f32 0.0, %v1011
    %1013 = vmatmul.bf16.gmra.mxu0 %v416
    %v1014 = vpop.f32.mrf.mxu0
    %v1015 = vadd.f32 0.0, %v1014
    %v1016 = vpop.f32.mrf.mxu0
    %v1017 = vadd.f32 0.0, %v1016
    %1018 = vmatmul.bf16.gmra.mxu0 %v417
    %v1019 = vpop.f32.mrf.mxu0
    %v1020 = vadd.f32 0.0, %v1019
    %v1021 = vpop.f32.mrf.mxu0
    %v1022 = vadd.f32 0.0, %v1021
    %1023 = vmatmul.bf16.gmra.mxu0 %v418
    %v1024 = vpop.f32.mrf.mxu0
    %v1025 = vadd.f32 0.0, %v1024
    %v1026 = vpop.f32.mrf.mxu0
    %v1027 = vadd.f32 0.0, %v1026
    %1028 = vmatmul.bf16.gmra.mxu0 %v419
    %v1029 = vpop.f32.mrf.mxu0
    %v1030 = vadd.f32 0.0, %v1029
    %v1031 = vpop.f32.mrf.mxu0
    %v1032 = vadd.f32 0.0, %v1031
    %1033 = vmatmul.bf16.gmra.mxu0 %v420
    %v1034 = vpop.f32.mrf.mxu0
    %v1035 = vadd.f32 0.0, %v1034
    %v1036 = vpop.f32.mrf.mxu0
    %v1037 = vadd.f32 0.0, %v1036
    %1038 = vmatmul.bf16.gmra.mxu0 %v421
    %v1039 = vpop.f32.mrf.mxu0
    %v1040 = vadd.f32 0.0, %v1039
    %v1041 = vpop.f32.mrf.mxu0
    %v1042 = vadd.f32 0.0, %v1041
    %1043 = vdwg.mxu0
    %1044 = vmatpush.bf16.msra.mxu0 %v684
    %1045 = vmatpush.bf16.msra.mxu0 %v676
    %1046 = vmatpush.bf16.msra.mxu0 %v668
    %1047 = vmatpush.bf16.msra.mxu0 %v660
    %1048 = vmatpush.bf16.msra.mxu0 %v652
    %1049 = vmatpush.bf16.msra.mxu0 %v644
    %1050 = vmatpush.bf16.msra.mxu0 %v636
    %1051 = vmatpush.bf16.msra.mxu0 %v628
    %1052 = vmatmul.bf16.gmra.mxu0 %v414
    %v1053 = vpop.f32.mrf.mxu0
    %v1054 = vadd.f32 0.0, %v1053
    %v1055 = vpop.f32.mrf.mxu0
    %v1056 = vadd.f32 0.0, %v1055
    %1057 = vmatmul.bf16.gmra.mxu0 %v415
    %v1058 = vpop.f32.mrf.mxu0
    %v1059 = vadd.f32 0.0, %v1058
    %v1060 = vpop.f32.mrf.mxu0
    %v1061 = vadd.f32 0.0, %v1060
    %1062 = vmatmul.bf16.gmra.mxu0 %v416
    %v1063 = vpop.f32.mrf.mxu0
    %v1064 = vadd.f32 0.0, %v1063
    %v1065 = vpop.f32.mrf.mxu0
    %v1066 = vadd.f32 0.0, %v1065
    %1067 = vmatmul.bf16.gmra.mxu0 %v417
    %v1068 = vpop.f32.mrf.mxu0
    %v1069 = vadd.f32 0.0, %v1068
    %v1070 = vpop.f32.mrf.mxu0
    %v1071 = vadd.f32 0.0, %v1070
    %1072 = vmatmul.bf16.gmra.mxu0 %v418
    %v1073 = vpop.f32.mrf.mxu0
    %v1074 = vadd.f32 0.0, %v1073
    %v1075 = vpop.f32.mrf.mxu0
    %v1076 = vadd.f32 0.0, %v1075
    %1077 = vmatmul.bf16.gmra.mxu0 %v419
    %v1078 = vpop.f32.mrf.mxu0
    %v1079 = vadd.f32 0.0, %v1078
    %v1080 = vpop.f32.mrf.mxu0
    %v1081 = vadd.f32 0.0, %v1080
    %1082 = vmatmul.bf16.gmra.mxu0 %v420
    %v1083 = vpop.f32.mrf.mxu0
    %v1084 = vadd.f32 0.0, %v1083
    %v1085 = vpop.f32.mrf.mxu0
    %v1086 = vadd.f32 0.0, %v1085
    %1087 = vmatmul.bf16.gmra.mxu0 %v421
    %v1088 = vpop.f32.mrf.mxu0
    %v1089 = vadd.f32 0.0, %v1088
    %v1090 = vpop.f32.mrf.mxu0
    %v1091 = vadd.f32 0.0, %v1090
    %1092 = vdwg.mxu0
    %1093 = vmatpush.bf16.msra.mxu0 %v685
    %1094 = vmatpush.bf16.msra.mxu0 %v677
    %1095 = vmatpush.bf16.msra.mxu0 %v669
    %1096 = vmatpush.bf16.msra.mxu0 %v661
    %1097 = vmatpush.bf16.msra.mxu0 %v653
    %1098 = vmatpush.bf16.msra.mxu0 %v645
    %1099 = vmatpush.bf16.msra.mxu0 %v637
    %1100 = vmatpush.bf16.msra.mxu0 %v629
    %1101 = vmatmul.bf16.gmra.mxu0 %v414
    %v1102 = vpop.f32.mrf.mxu0
    %v1103 = vadd.f32 0.0, %v1102
    %v1104 = vpop.f32.mrf.mxu0
    %v1105 = vadd.f32 0.0, %v1104
    %1106 = vmatmul.bf16.gmra.mxu0 %v415
    %v1107 = vpop.f32.mrf.mxu0
    %v1108 = vadd.f32 0.0, %v1107
    %v1109 = vpop.f32.mrf.mxu0
    %v1110 = vadd.f32 0.0, %v1109
    %1111 = vmatmul.bf16.gmra.mxu0 %v416
    %v1112 = vpop.f32.mrf.mxu0
    %v1113 = vadd.f32 0.0, %v1112
    %v1114 = vpop.f32.mrf.mxu0
    %v1115 = vadd.f32 0.0, %v1114
    %1116 = vmatmul.bf16.gmra.mxu0 %v417
    %v1117 = vpop.f32.mrf.mxu0
    %v1118 = vadd.f32 0.0, %v1117
    %v1119 = vpop.f32.mrf.mxu0
    %v1120 = vadd.f32 0.0, %v1119
    %1121 = vmatmul.bf16.gmra.mxu0 %v418
    %v1122 = vpop.f32.mrf.mxu0
    %v1123 = vadd.f32 0.0, %v1122
    %v1124 = vpop.f32.mrf.mxu0
    %v1125 = vadd.f32 0.0, %v1124
    %1126 = vmatmul.bf16.gmra.mxu0 %v419
    %v1127 = vpop.f32.mrf.mxu0
    %v1128 = vadd.f32 0.0, %v1127
    %v1129 = vpop.f32.mrf.mxu0
    %v1130 = vadd.f32 0.0, %v1129
    %1131 = vmatmul.bf16.gmra.mxu0 %v420
    %v1132 = vpop.f32.mrf.mxu0
    %v1133 = vadd.f32 0.0, %v1132
    %v1134 = vpop.f32.mrf.mxu0
    %v1135 = vadd.f32 0.0, %v1134
    %1136 = vmatmul.bf16.gmra.mxu0 %v421
    %v1137 = vpop.f32.mrf.mxu0
    %v1138 = vadd.f32 0.0, %v1137
    %v1139 = vpop.f32.mrf.mxu0
    %v1140 = vadd.f32 0.0, %v1139
    %1141 = vdwg.mxu0
    %v1143 = vperm.slane %v381, 0
    %v1144 = vperm.slane %v381, 1
    %v1145 = vperm.slane %v381, 2
    %v1146 = vperm.slane %v381, 3
    %v1147 = vperm.slane %v381, 4
    %v1148 = vperm.slane %v381, 5
    %v1149 = vperm.slane %v381, 6
    %v1150 = vperm.slane %v381, 7
    %v1159 = vadd.f32 %v1143, %v760
    %v1160 = vadd.f32 %v1144, %v809
    %v1161 = vadd.f32 %v1145, %v858
    %v1162 = vadd.f32 %v1146, %v907
    %v1163 = vadd.f32 %v1147, %v956
    %v1164 = vadd.f32 %v1148, %v1005
    %v1165 = vadd.f32 %v1149, %v1054
    %v1166 = vadd.f32 %v1150, %v1103
    %v1167 = vadd.f32 %v1143, %v762
    %v1168 = vadd.f32 %v1144, %v811
    %v1169 = vadd.f32 %v1145, %v860
    %v1170 = vadd.f32 %v1146, %v909
    %v1171 = vadd.f32 %v1147, %v958
    %v1172 = vadd.f32 %v1148, %v1007
    %v1173 = vadd.f32 %v1149, %v1056
    %v1174 = vadd.f32 %v1150, %v1105
    %v1175 = vadd.f32 %v1143, %v765
    %v1176 = vadd.f32 %v1144, %v814
    %v1177 = vadd.f32 %v1145, %v863
    %v1178 = vadd.f32 %v1146, %v912
    %v1179 = vadd.f32 %v1147, %v961
    %v1180 = vadd.f32 %v1148, %v1010
    %v1181 = vadd.f32 %v1149, %v1059
    %v1182 = vadd.f32 %v1150, %v1108
    %v1183 = vadd.f32 %v1143, %v767
    %v1184 = vadd.f32 %v1144, %v816
    %v1185 = vadd.f32 %v1145, %v865
    %v1186 = vadd.f32 %v1146, %v914
    %v1187 = vadd.f32 %v1147, %v963
    %v1188 = vadd.f32 %v1148, %v1012
    %v1189 = vadd.f32 %v1149, %v1061
    %v1190 = vadd.f32 %v1150, %v1110
    %v1191 = vadd.f32 %v1143, %v770
    %v1192 = vadd.f32 %v1144, %v819
    %v1193 = vadd.f32 %v1145, %v868
    %v1194 = vadd.f32 %v1146, %v917
    %v1195 = vadd.f32 %v1147, %v966
    %v1196 = vadd.f32 %v1148, %v1015
    %v1197 = vadd.f32 %v1149, %v1064
    %v1198 = vadd.f32 %v1150, %v1113
    %v1199 = vadd.f32 %v1143, %v772
    %v1200 = vadd.f32 %v1144, %v821
    %v1201 = vadd.f32 %v1145, %v870
    %v1202 = vadd.f32 %v1146, %v919
    %v1203 = vadd.f32 %v1147, %v968
    %v1204 = vadd.f32 %v1148, %v1017
    %v1205 = vadd.f32 %v1149, %v1066
    %v1206 = vadd.f32 %v1150, %v1115
    %v1207 = vadd.f32 %v1143, %v775
    %v1208 = vadd.f32 %v1144, %v824
    %v1209 = vadd.f32 %v1145, %v873
    %v1210 = vadd.f32 %v1146, %v922
    %v1211 = vadd.f32 %v1147, %v971
    %v1212 = vadd.f32 %v1148, %v1020
    %v1213 = vadd.f32 %v1149, %v1069
    %v1214 = vadd.f32 %v1150, %v1118
    %v1215 = vadd.f32 %v1143, %v777
    %v1216 = vadd.f32 %v1144, %v826
    %v1217 = vadd.f32 %v1145, %v875
    %v1218 = vadd.f32 %v1146, %v924
    %v1219 = vadd.f32 %v1147, %v973
    %v1220 = vadd.f32 %v1148, %v1022
    %v1221 = vadd.f32 %v1149, %v1071
    %v1222 = vadd.f32 %v1150, %v1120
    %v1223 = vadd.f32 %v1143, %v780
    %v1224 = vadd.f32 %v1144, %v829
    %v1225 = vadd.f32 %v1145, %v878
    %v1226 = vadd.f32 %v1146, %v927
    %v1227 = vadd.f32 %v1147, %v976
    %v1228 = vadd.f32 %v1148, %v1025
    %v1229 = vadd.f32 %v1149, %v1074
    %v1230 = vadd.f32 %v1150, %v1123
    %v1231 = vadd.f32 %v1143, %v782
    %v1232 = vadd.f32 %v1144, %v831
    %v1233 = vadd.f32 %v1145, %v880
    %v1234 = vadd.f32 %v1146, %v929
    %v1235 = vadd.f32 %v1147, %v978
    %v1236 = vadd.f32 %v1148, %v1027
    %v1237 = vadd.f32 %v1149, %v1076
    %v1238 = vadd.f32 %v1150, %v1125
    %v1239 = vadd.f32 %v1143, %v785
    %v1240 = vadd.f32 %v1144, %v834
    %v1241 = vadd.f32 %v1145, %v883
    %v1242 = vadd.f32 %v1146, %v932
    %v1243 = vadd.f32 %v1147, %v981
    %v1244 = vadd.f32 %v1148, %v1030
    %v1245 = vadd.f32 %v1149, %v1079
    %v1246 = vadd.f32 %v1150, %v1128
    %v1247 = vadd.f32 %v1143, %v787
    %v1248 = vadd.f32 %v1144, %v836
    %v1249 = vadd.f32 %v1145, %v885
    %v1250 = vadd.f32 %v1146, %v934
    %v1251 = vadd.f32 %v1147, %v983
    %v1252 = vadd.f32 %v1148, %v1032
    %v1253 = vadd.f32 %v1149, %v1081
    %v1254 = vadd.f32 %v1150, %v1130
    %v1255 = vadd.f32 %v1143, %v790
    %v1256 = vadd.f32 %v1144, %v839
    %v1257 = vadd.f32 %v1145, %v888
    %v1258 = vadd.f32 %v1146, %v937
    %v1259 = vadd.f32 %v1147, %v986
    %v1260 = vadd.f32 %v1148, %v1035
    %v1261 = vadd.f32 %v1149, %v1084
    %v1262 = vadd.f32 %v1150, %v1133
    %v1263 = vadd.f32 %v1143, %v792
    %v1264 = vadd.f32 %v1144, %v841
    %v1265 = vadd.f32 %v1145, %v890
    %v1266 = vadd.f32 %v1146, %v939
    %v1267 = vadd.f32 %v1147, %v988
    %v1268 = vadd.f32 %v1148, %v1037
    %v1269 = vadd.f32 %v1149, %v1086
    %v1270 = vadd.f32 %v1150, %v1135
    %v1271 = vadd.f32 %v1143, %v795
    %v1272 = vadd.f32 %v1144, %v844
    %v1273 = vadd.f32 %v1145, %v893
    %v1274 = vadd.f32 %v1146, %v942
    %v1275 = vadd.f32 %v1147, %v991
    %v1276 = vadd.f32 %v1148, %v1040
    %v1277 = vadd.f32 %v1149, %v1089
    %v1278 = vadd.f32 %v1150, %v1138
    %v1279 = vadd.f32 %v1143, %v797
    %v1280 = vadd.f32 %v1144, %v846
    %v1281 = vadd.f32 %v1145, %v895
    %v1282 = vadd.f32 %v1146, %v944
    %v1283 = vadd.f32 %v1147, %v993
    %v1284 = vadd.f32 %v1148, %v1042
    %v1285 = vadd.f32 %v1149, %v1091
    %v1286 = vadd.f32 %v1150, %v1140
    %v1303 = vunpack.c.l.b16 %v109
    %v1304 = vunpack.c.l.b16 %v110
    %v1305 = vunpack.c.l.b16 %v111
    %v1306 = vunpack.c.l.b16 %v112
    %v1307 = vunpack.c.l.b16 %v113
    %v1308 = vunpack.c.l.b16 %v114
    %v1309 = vunpack.c.l.b16 %v115
    %v1310 = vunpack.c.l.b16 %v116
    %v1311 = vunpack.c.l.b16 %v117
    %v1312 = vunpack.c.l.b16 %v118
    %v1313 = vunpack.c.l.b16 %v119
    %v1314 = vunpack.c.l.b16 %v120
    %v1315 = vunpack.c.l.b16 %v121
    %v1316 = vunpack.c.l.b16 %v122
    %v1317 = vunpack.c.l.b16 %v123
    %v1318 = vunpack.c.l.b16 %v124
    %v1319 = vpack.c.b16 %v1304, %v1303
    %v1320 = vpack.c.b16 %v1306, %v1305
    %v1321 = vpack.c.b16 %v1308, %v1307
    %v1322 = vpack.c.b16 %v1310, %v1309
    %v1323 = vpack.c.b16 %v1312, %v1311
    %v1324 = vpack.c.b16 %v1314, %v1313
    %v1325 = vpack.c.b16 %v1316, %v1315
    %v1326 = vpack.c.b16 %v1318, %v1317
    %v1399 = vunpack.c.l.b16 %v189
    %v1400 = vunpack.c.h.b16 %v189
    %v1401 = vunpack.c.l.b16 %v190
    %v1402 = vunpack.c.h.b16 %v190
    %v1403 = vunpack.c.l.b16 %v191
    %v1404 = vunpack.c.h.b16 %v191
    %v1405 = vunpack.c.l.b16 %v192
    %v1406 = vunpack.c.h.b16 %v192
    %v1407 = vunpack.c.l.b16 %v193
    %v1408 = vunpack.c.h.b16 %v193
    %v1409 = vunpack.c.l.b16 %v194
    %v1410 = vunpack.c.h.b16 %v194
    %v1411 = vunpack.c.l.b16 %v195
    %v1412 = vunpack.c.h.b16 %v195
    %v1413 = vunpack.c.l.b16 %v196
    %v1414 = vunpack.c.h.b16 %v196
    %v1415 = vunpack.c.l.b16 %v197
    %v1416 = vunpack.c.h.b16 %v197
    %v1417 = vunpack.c.l.b16 %v198
    %v1418 = vunpack.c.h.b16 %v198
    %v1419 = vunpack.c.l.b16 %v199
    %v1420 = vunpack.c.h.b16 %v199
    %v1421 = vunpack.c.l.b16 %v200
    %v1422 = vunpack.c.h.b16 %v200
    %v1423 = vunpack.c.l.b16 %v201
    %v1424 = vunpack.c.h.b16 %v201
    %v1425 = vunpack.c.l.b16 %v202
    %v1426 = vunpack.c.h.b16 %v202
    %v1427 = vunpack.c.l.b16 %v203
    %v1428 = vunpack.c.h.b16 %v203
    %v1429 = vunpack.c.l.b16 %v204
    %v1430 = vunpack.c.h.b16 %v204
    %v1431 = vunpack.c.l.b16 %v205
    %v1432 = vunpack.c.h.b16 %v205
    %v1433 = vunpack.c.l.b16 %v206
    %v1434 = vunpack.c.h.b16 %v206
    %v1435 = vunpack.c.l.b16 %v207
    %v1436 = vunpack.c.h.b16 %v207
    %v1437 = vunpack.c.l.b16 %v208
    %v1438 = vunpack.c.h.b16 %v208
    %v1439 = vunpack.c.l.b16 %v209
    %v1440 = vunpack.c.h.b16 %v209
    %v1441 = vunpack.c.l.b16 %v210
    %v1442 = vunpack.c.h.b16 %v210
    %v1443 = vunpack.c.l.b16 %v211
    %v1444 = vunpack.c.h.b16 %v211
    %v1445 = vunpack.c.l.b16 %v212
    %v1446 = vunpack.c.h.b16 %v212
    %v1447 = vunpack.c.l.b16 %v213
    %v1448 = vunpack.c.h.b16 %v213
    %v1449 = vunpack.c.l.b16 %v214
    %v1450 = vunpack.c.h.b16 %v214
    %v1451 = vunpack.c.l.b16 %v215
    %v1452 = vunpack.c.h.b16 %v215
    %v1453 = vunpack.c.l.b16 %v216
    %v1454 = vunpack.c.h.b16 %v216
    %v1455 = vunpack.c.l.b16 %v217
    %v1456 = vunpack.c.h.b16 %v217
    %v1457 = vunpack.c.l.b16 %v218
    %v1458 = vunpack.c.h.b16 %v218
    %v1459 = vunpack.c.l.b16 %v219
    %v1460 = vunpack.c.h.b16 %v219
    %v1461 = vunpack.c.l.b16 %v220
    %v1462 = vunpack.c.h.b16 %v220
    %v1463 = vunpack.c.l.b16 %v221
    %v1464 = vunpack.c.h.b16 %v221
    %v1465 = vunpack.c.l.b16 %v222
    %v1466 = vunpack.c.h.b16 %v222
    %v1467 = vunpack.c.l.b16 %v223
    %v1468 = vunpack.c.h.b16 %v223
    %v1469 = vunpack.c.l.b16 %v224
    %v1470 = vunpack.c.h.b16 %v224
    %v1471 = vunpack.c.l.b16 %v225
    %v1472 = vunpack.c.h.b16 %v225
    %v1473 = vunpack.c.l.b16 %v226
    %v1474 = vunpack.c.h.b16 %v226
    %v1475 = vunpack.c.l.b16 %v227
    %v1476 = vunpack.c.h.b16 %v227
    %v1477 = vunpack.c.l.b16 %v228
    %v1478 = vunpack.c.h.b16 %v228
    %v1479 = vunpack.c.l.b16 %v229
    %v1480 = vunpack.c.h.b16 %v229
    %v1481 = vunpack.c.l.b16 %v230
    %v1482 = vunpack.c.h.b16 %v230
    %v1483 = vunpack.c.l.b16 %v231
    %v1484 = vunpack.c.h.b16 %v231
    %v1485 = vunpack.c.l.b16 %v232
    %v1486 = vunpack.c.h.b16 %v232
    %v1487 = vunpack.c.l.b16 %v233
    %v1488 = vunpack.c.h.b16 %v233
    %v1489 = vunpack.c.l.b16 %v234
    %v1490 = vunpack.c.h.b16 %v234
    %v1491 = vunpack.c.l.b16 %v235
    %v1492 = vunpack.c.h.b16 %v235
    %v1493 = vunpack.c.l.b16 %v236
    %v1494 = vunpack.c.h.b16 %v236
    %v1495 = vunpack.c.l.b16 %v237
    %v1496 = vunpack.c.h.b16 %v237
    %v1497 = vunpack.c.l.b16 %v238
    %v1498 = vunpack.c.h.b16 %v238
    %v1499 = vunpack.c.l.b16 %v239
    %v1500 = vunpack.c.h.b16 %v239
    %v1501 = vunpack.c.l.b16 %v240
    %v1502 = vunpack.c.h.b16 %v240
    %v1503 = vunpack.c.l.b16 %v241
    %v1504 = vunpack.c.h.b16 %v241
    %v1505 = vunpack.c.l.b16 %v242
    %v1506 = vunpack.c.h.b16 %v242
    %v1507 = vunpack.c.l.b16 %v243
    %v1508 = vunpack.c.h.b16 %v243
    %v1509 = vunpack.c.l.b16 %v244
    %v1510 = vunpack.c.h.b16 %v244
    %v1511 = vunpack.c.l.b16 %v245
    %v1512 = vunpack.c.h.b16 %v245
    %v1513 = vunpack.c.l.b16 %v246
    %v1514 = vunpack.c.h.b16 %v246
    %v1515 = vunpack.c.l.b16 %v247
    %v1516 = vunpack.c.h.b16 %v247
    %v1517 = vunpack.c.l.b16 %v248
    %v1518 = vunpack.c.h.b16 %v248
    %v1519 = vunpack.c.l.b16 %v249
    %v1520 = vunpack.c.h.b16 %v249
    %v1521 = vunpack.c.l.b16 %v250
    %v1522 = vunpack.c.h.b16 %v250
    %v1523 = vunpack.c.l.b16 %v251
    %v1524 = vunpack.c.h.b16 %v251
    %v1525 = vunpack.c.l.b16 %v252
    %v1526 = vunpack.c.h.b16 %v252
    %v1527 = vpack.c.b16 %v1407, %v1399
    %v1528 = vpack.c.b16 %v1408, %v1400
    %v1529 = vpack.c.b16 %v1409, %v1401
    %v1530 = vpack.c.b16 %v1410, %v1402
    %v1531 = vpack.c.b16 %v1411, %v1403
    %v1532 = vpack.c.b16 %v1412, %v1404
    %v1533 = vpack.c.b16 %v1413, %v1405
    %v1534 = vpack.c.b16 %v1414, %v1406
    %v1535 = vpack.c.b16 %v1423, %v1415
    %v1536 = vpack.c.b16 %v1424, %v1416
    %v1537 = vpack.c.b16 %v1425, %v1417
    %v1538 = vpack.c.b16 %v1426, %v1418
    %v1539 = vpack.c.b16 %v1427, %v1419
    %v1540 = vpack.c.b16 %v1428, %v1420
    %v1541 = vpack.c.b16 %v1429, %v1421
    %v1542 = vpack.c.b16 %v1430, %v1422
    %v1543 = vpack.c.b16 %v1439, %v1431
    %v1544 = vpack.c.b16 %v1440, %v1432
    %v1545 = vpack.c.b16 %v1441, %v1433
    %v1546 = vpack.c.b16 %v1442, %v1434
    %v1547 = vpack.c.b16 %v1443, %v1435
    %v1548 = vpack.c.b16 %v1444, %v1436
    %v1549 = vpack.c.b16 %v1445, %v1437
    %v1550 = vpack.c.b16 %v1446, %v1438
    %v1551 = vpack.c.b16 %v1455, %v1447
    %v1552 = vpack.c.b16 %v1456, %v1448
    %v1553 = vpack.c.b16 %v1457, %v1449
    %v1554 = vpack.c.b16 %v1458, %v1450
    %v1555 = vpack.c.b16 %v1459, %v1451
    %v1556 = vpack.c.b16 %v1460, %v1452
    %v1557 = vpack.c.b16 %v1461, %v1453
    %v1558 = vpack.c.b16 %v1462, %v1454
    %v1559 = vpack.c.b16 %v1471, %v1463
    %v1560 = vpack.c.b16 %v1472, %v1464
    %v1561 = vpack.c.b16 %v1473, %v1465
    %v1562 = vpack.c.b16 %v1474, %v1466
    %v1563 = vpack.c.b16 %v1475, %v1467
    %v1564 = vpack.c.b16 %v1476, %v1468
    %v1565 = vpack.c.b16 %v1477, %v1469
    %v1566 = vpack.c.b16 %v1478, %v1470
    %v1567 = vpack.c.b16 %v1487, %v1479
    %v1568 = vpack.c.b16 %v1488, %v1480
    %v1569 = vpack.c.b16 %v1489, %v1481
    %v1570 = vpack.c.b16 %v1490, %v1482
    %v1571 = vpack.c.b16 %v1491, %v1483
    %v1572 = vpack.c.b16 %v1492, %v1484
    %v1573 = vpack.c.b16 %v1493, %v1485
    %v1574 = vpack.c.b16 %v1494, %v1486
    %v1575 = vpack.c.b16 %v1503, %v1495
    %v1576 = vpack.c.b16 %v1504, %v1496
    %v1577 = vpack.c.b16 %v1505, %v1497
    %v1578 = vpack.c.b16 %v1506, %v1498
    %v1579 = vpack.c.b16 %v1507, %v1499
    %v1580 = vpack.c.b16 %v1508, %v1500
    %v1581 = vpack.c.b16 %v1509, %v1501
    %v1582 = vpack.c.b16 %v1510, %v1502
    %v1583 = vpack.c.b16 %v1519, %v1511
    %v1584 = vpack.c.b16 %v1520, %v1512
    %v1585 = vpack.c.b16 %v1521, %v1513
    %v1586 = vpack.c.b16 %v1522, %v1514
    %v1587 = vpack.c.b16 %v1523, %v1515
    %v1588 = vpack.c.b16 %v1524, %v1516
    %v1589 = vpack.c.b16 %v1525, %v1517
    %v1590 = vpack.c.b16 %v1526, %v1518
    %1655 = vmatpush.bf16.msra.mxu0 %v1583
    %1656 = vmatpush.bf16.msra.mxu0 %v1575
    %1657 = vmatpush.bf16.msra.mxu0 %v1567
    %1658 = vmatpush.bf16.msra.mxu0 %v1559
    %1659 = vmatpush.bf16.msra.mxu0 %v1551
    %1660 = vmatpush.bf16.msra.mxu0 %v1543
    %1661 = vmatpush.bf16.msra.mxu0 %v1535
    %1662 = vmatpush.bf16.msra.mxu0 %v1527
    %1663 = vmatmul.bf16.gmra.mxu0 %v1319
    %v1664 = vpop.f32.mrf.mxu0
    %v1665 = vadd.f32 0.0, %v1664
    %v1666 = vpop.f32.mrf.mxu0
    %v1667 = vadd.f32 0.0, %v1666
    %1668 = vmatmul.bf16.gmra.mxu0 %v1320
    %v1669 = vpop.f32.mrf.mxu0
    %v1670 = vadd.f32 0.0, %v1669
    %v1671 = vpop.f32.mrf.mxu0
    %v1672 = vadd.f32 0.0, %v1671
    %1673 = vmatmul.bf16.gmra.mxu0 %v1321
    %v1674 = vpop.f32.mrf.mxu0
    %v1675 = vadd.f32 0.0, %v1674
    %v1676 = vpop.f32.mrf.mxu0
    %v1677 = vadd.f32 0.0, %v1676
    %1678 = vmatmul.bf16.gmra.mxu0 %v1322
    %v1679 = vpop.f32.mrf.mxu0
    %v1680 = vadd.f32 0.0, %v1679
    %v1681 = vpop.f32.mrf.mxu0
    %v1682 = vadd.f32 0.0, %v1681
    %1683 = vmatmul.bf16.gmra.mxu0 %v1323
    %v1684 = vpop.f32.mrf.mxu0
    %v1685 = vadd.f32 0.0, %v1684
    %v1686 = vpop.f32.mrf.mxu0
    %v1687 = vadd.f32 0.0, %v1686
    %1688 = vmatmul.bf16.gmra.mxu0 %v1324
    %v1689 = vpop.f32.mrf.mxu0
    %v1690 = vadd.f32 0.0, %v1689
    %v1691 = vpop.f32.mrf.mxu0
    %v1692 = vadd.f32 0.0, %v1691
    %1693 = vmatmul.bf16.gmra.mxu0 %v1325
    %v1694 = vpop.f32.mrf.mxu0
    %v1695 = vadd.f32 0.0, %v1694
    %v1696 = vpop.f32.mrf.mxu0
    %v1697 = vadd.f32 0.0, %v1696
    %1698 = vmatmul.bf16.gmra.mxu0 %v1326
    %v1699 = vpop.f32.mrf.mxu0
    %v1700 = vadd.f32 0.0, %v1699
    %v1701 = vpop.f32.mrf.mxu0
    %v1702 = vadd.f32 0.0, %v1701
    %1703 = vdwg.mxu0
    %1704 = vmatpush.bf16.msra.mxu0 %v1584
    %1705 = vmatpush.bf16.msra.mxu0 %v1576
    %1706 = vmatpush.bf16.msra.mxu0 %v1568
    %1707 = vmatpush.bf16.msra.mxu0 %v1560
    %1708 = vmatpush.bf16.msra.mxu0 %v1552
    %1709 = vmatpush.bf16.msra.mxu0 %v1544
    %1710 = vmatpush.bf16.msra.mxu0 %v1536
    %1711 = vmatpush.bf16.msra.mxu0 %v1528
    %1712 = vmatmul.bf16.gmra.mxu0 %v1319
    %v1713 = vpop.f32.mrf.mxu0
    %v1714 = vadd.f32 0.0, %v1713
    %v1715 = vpop.f32.mrf.mxu0
    %v1716 = vadd.f32 0.0, %v1715
    %1717 = vmatmul.bf16.gmra.mxu0 %v1320
    %v1718 = vpop.f32.mrf.mxu0
    %v1719 = vadd.f32 0.0, %v1718
    %v1720 = vpop.f32.mrf.mxu0
    %v1721 = vadd.f32 0.0, %v1720
    %1722 = vmatmul.bf16.gmra.mxu0 %v1321
    %v1723 = vpop.f32.mrf.mxu0
    %v1724 = vadd.f32 0.0, %v1723
    %v1725 = vpop.f32.mrf.mxu0
    %v1726 = vadd.f32 0.0, %v1725
    %1727 = vmatmul.bf16.gmra.mxu0 %v1322
    %v1728 = vpop.f32.mrf.mxu0
    %v1729 = vadd.f32 0.0, %v1728
    %v1730 = vpop.f32.mrf.mxu0
    %v1731 = vadd.f32 0.0, %v1730
    %1732 = vmatmul.bf16.gmra.mxu0 %v1323
    %v1733 = vpop.f32.mrf.mxu0
    %v1734 = vadd.f32 0.0, %v1733
    %v1735 = vpop.f32.mrf.mxu0
    %v1736 = vadd.f32 0.0, %v1735
    %1737 = vmatmul.bf16.gmra.mxu0 %v1324
    %v1738 = vpop.f32.mrf.mxu0
    %v1739 = vadd.f32 0.0, %v1738
    %v1740 = vpop.f32.mrf.mxu0
    %v1741 = vadd.f32 0.0, %v1740
    %1742 = vmatmul.bf16.gmra.mxu0 %v1325
    %v1743 = vpop.f32.mrf.mxu0
    %v1744 = vadd.f32 0.0, %v1743
    %v1745 = vpop.f32.mrf.mxu0
    %v1746 = vadd.f32 0.0, %v1745
    %1747 = vmatmul.bf16.gmra.mxu0 %v1326
    %v1748 = vpop.f32.mrf.mxu0
    %v1749 = vadd.f32 0.0, %v1748
    %v1750 = vpop.f32.mrf.mxu0
    %v1751 = vadd.f32 0.0, %v1750
    %1752 = vdwg.mxu0
    %1753 = vmatpush.bf16.msra.mxu0 %v1585
    %1754 = vmatpush.bf16.msra.mxu0 %v1577
    %1755 = vmatpush.bf16.msra.mxu0 %v1569
    %1756 = vmatpush.bf16.msra.mxu0 %v1561
    %1757 = vmatpush.bf16.msra.mxu0 %v1553
    %1758 = vmatpush.bf16.msra.mxu0 %v1545
    %1759 = vmatpush.bf16.msra.mxu0 %v1537
    %1760 = vmatpush.bf16.msra.mxu0 %v1529
    %1761 = vmatmul.bf16.gmra.mxu0 %v1319
    %v1762 = vpop.f32.mrf.mxu0
    %v1763 = vadd.f32 0.0, %v1762
    %v1764 = vpop.f32.mrf.mxu0
    %v1765 = vadd.f32 0.0, %v1764
    %1766 = vmatmul.bf16.gmra.mxu0 %v1320
    %v1767 = vpop.f32.mrf.mxu0
    %v1768 = vadd.f32 0.0, %v1767
    %v1769 = vpop.f32.mrf.mxu0
    %v1770 = vadd.f32 0.0, %v1769
    %1771 = vmatmul.bf16.gmra.mxu0 %v1321
    %v1772 = vpop.f32.mrf.mxu0
    %v1773 = vadd.f32 0.0, %v1772
    %v1774 = vpop.f32.mrf.mxu0
    %v1775 = vadd.f32 0.0, %v1774
    %1776 = vmatmul.bf16.gmra.mxu0 %v1322
    %v1777 = vpop.f32.mrf.mxu0
    %v1778 = vadd.f32 0.0, %v1777
    %v1779 = vpop.f32.mrf.mxu0
    %v1780 = vadd.f32 0.0, %v1779
    %1781 = vmatmul.bf16.gmra.mxu0 %v1323
    %v1782 = vpop.f32.mrf.mxu0
    %v1783 = vadd.f32 0.0, %v1782
    %v1784 = vpop.f32.mrf.mxu0
    %v1785 = vadd.f32 0.0, %v1784
    %1786 = vmatmul.bf16.gmra.mxu0 %v1324
    %v1787 = vpop.f32.mrf.mxu0
    %v1788 = vadd.f32 0.0, %v1787
    %v1789 = vpop.f32.mrf.mxu0
    %v1790 = vadd.f32 0.0, %v1789
    %1791 = vmatmul.bf16.gmra.mxu0 %v1325
    %v1792 = vpop.f32.mrf.mxu0
    %v1793 = vadd.f32 0.0, %v1792
    %v1794 = vpop.f32.mrf.mxu0
    %v1795 = vadd.f32 0.0, %v1794
    %1796 = vmatmul.bf16.gmra.mxu0 %v1326
    %v1797 = vpop.f32.mrf.mxu0
    %v1798 = vadd.f32 0.0, %v1797
    %v1799 = vpop.f32.mrf.mxu0
    %v1800 = vadd.f32 0.0, %v1799
    %1801 = vdwg.mxu0
    %1802 = vmatpush.bf16.msra.mxu0 %v1586
    %1803 = vmatpush.bf16.msra.mxu0 %v1578
    %1804 = vmatpush.bf16.msra.mxu0 %v1570
    %1805 = vmatpush.bf16.msra.mxu0 %v1562
    %1806 = vmatpush.bf16.msra.mxu0 %v1554
    %1807 = vmatpush.bf16.msra.mxu0 %v1546
    %1808 = vmatpush.bf16.msra.mxu0 %v1538
    %1809 = vmatpush.bf16.msra.mxu0 %v1530
    %1810 = vmatmul.bf16.gmra.mxu0 %v1319
    %v1811 = vpop.f32.mrf.mxu0
    %v1812 = vadd.f32 0.0, %v1811
    %v1813 = vpop.f32.mrf.mxu0
    %v1814 = vadd.f32 0.0, %v1813
    %1815 = vmatmul.bf16.gmra.mxu0 %v1320
    %v1816 = vpop.f32.mrf.mxu0
    %v1817 = vadd.f32 0.0, %v1816
    %v1818 = vpop.f32.mrf.mxu0
    %v1819 = vadd.f32 0.0, %v1818
    %1820 = vmatmul.bf16.gmra.mxu0 %v1321
    %v1821 = vpop.f32.mrf.mxu0
    %v1822 = vadd.f32 0.0, %v1821
    %v1823 = vpop.f32.mrf.mxu0
    %v1824 = vadd.f32 0.0, %v1823
    %1825 = vmatmul.bf16.gmra.mxu0 %v1322
    %v1826 = vpop.f32.mrf.mxu0
    %v1827 = vadd.f32 0.0, %v1826
    %v1828 = vpop.f32.mrf.mxu0
    %v1829 = vadd.f32 0.0, %v1828
    %1830 = vmatmul.bf16.gmra.mxu0 %v1323
    %v1831 = vpop.f32.mrf.mxu0
    %v1832 = vadd.f32 0.0, %v1831
    %v1833 = vpop.f32.mrf.mxu0
    %v1834 = vadd.f32 0.0, %v1833
    %1835 = vmatmul.bf16.gmra.mxu0 %v1324
    %v1836 = vpop.f32.mrf.mxu0
    %v1837 = vadd.f32 0.0, %v1836
    %v1838 = vpop.f32.mrf.mxu0
    %v1839 = vadd.f32 0.0, %v1838
    %1840 = vmatmul.bf16.gmra.mxu0 %v1325
    %v1841 = vpop.f32.mrf.mxu0
    %v1842 = vadd.f32 0.0, %v1841
    %v1843 = vpop.f32.mrf.mxu0
    %v1844 = vadd.f32 0.0, %v1843
    %1845 = vmatmul.bf16.gmra.mxu0 %v1326
    %v1846 = vpop.f32.mrf.mxu0
    %v1847 = vadd.f32 0.0, %v1846
    %v1848 = vpop.f32.mrf.mxu0
    %v1849 = vadd.f32 0.0, %v1848
    %1850 = vdwg.mxu0
    %1851 = vmatpush.bf16.msra.mxu0 %v1587
    %1852 = vmatpush.bf16.msra.mxu0 %v1579
    %1853 = vmatpush.bf16.msra.mxu0 %v1571
    %1854 = vmatpush.bf16.msra.mxu0 %v1563
    %1855 = vmatpush.bf16.msra.mxu0 %v1555
    %1856 = vmatpush.bf16.msra.mxu0 %v1547
    %1857 = vmatpush.bf16.msra.mxu0 %v1539
    %1858 = vmatpush.bf16.msra.mxu0 %v1531
    %1859 = vmatmul.bf16.gmra.mxu0 %v1319
    %v1860 = vpop.f32.mrf.mxu0
    %v1861 = vadd.f32 0.0, %v1860
    %v1862 = vpop.f32.mrf.mxu0
    %v1863 = vadd.f32 0.0, %v1862
    %1864 = vmatmul.bf16.gmra.mxu0 %v1320
    %v1865 = vpop.f32.mrf.mxu0
    %v1866 = vadd.f32 0.0, %v1865
    %v1867 = vpop.f32.mrf.mxu0
    %v1868 = vadd.f32 0.0, %v1867
    %1869 = vmatmul.bf16.gmra.mxu0 %v1321
    %v1870 = vpop.f32.mrf.mxu0
    %v1871 = vadd.f32 0.0, %v1870
    %v1872 = vpop.f32.mrf.mxu0
    %v1873 = vadd.f32 0.0, %v1872
    %1874 = vmatmul.bf16.gmra.mxu0 %v1322
    %v1875 = vpop.f32.mrf.mxu0
    %v1876 = vadd.f32 0.0, %v1875
    %v1877 = vpop.f32.mrf.mxu0
    %v1878 = vadd.f32 0.0, %v1877
    %1879 = vmatmul.bf16.gmra.mxu0 %v1323
    %v1880 = vpop.f32.mrf.mxu0
    %v1881 = vadd.f32 0.0, %v1880
    %v1882 = vpop.f32.mrf.mxu0
    %v1883 = vadd.f32 0.0, %v1882
    %1884 = vmatmul.bf16.gmra.mxu0 %v1324
    %v1885 = vpop.f32.mrf.mxu0
    %v1886 = vadd.f32 0.0, %v1885
    %v1887 = vpop.f32.mrf.mxu0
    %v1888 = vadd.f32 0.0, %v1887
    %1889 = vmatmul.bf16.gmra.mxu0 %v1325
    %v1890 = vpop.f32.mrf.mxu0
    %v1891 = vadd.f32 0.0, %v1890
    %v1892 = vpop.f32.mrf.mxu0
    %v1893 = vadd.f32 0.0, %v1892
    %1894 = vmatmul.bf16.gmra.mxu0 %v1326
    %v1895 = vpop.f32.mrf.mxu0
    %v1896 = vadd.f32 0.0, %v1895
    %v1897 = vpop.f32.mrf.mxu0
    %v1898 = vadd.f32 0.0, %v1897
    %1899 = vdwg.mxu0
    %1900 = vmatpush.bf16.msra.mxu0 %v1588
    %1901 = vmatpush.bf16.msra.mxu0 %v1580
    %1902 = vmatpush.bf16.msra.mxu0 %v1572
    %1903 = vmatpush.bf16.msra.mxu0 %v1564
    %1904 = vmatpush.bf16.msra.mxu0 %v1556
    %1905 = vmatpush.bf16.msra.mxu0 %v1548
    %1906 = vmatpush.bf16.msra.mxu0 %v1540
    %1907 = vmatpush.bf16.msra.mxu0 %v1532
    %1908 = vmatmul.bf16.gmra.mxu0 %v1319
    %v1909 = vpop.f32.mrf.mxu0
    %v1910 = vadd.f32 0.0, %v1909
    %v1911 = vpop.f32.mrf.mxu0
    %v1912 = vadd.f32 0.0, %v1911
    %1913 = vmatmul.bf16.gmra.mxu0 %v1320
    %v1914 = vpop.f32.mrf.mxu0
    %v1915 = vadd.f32 0.0, %v1914
    %v1916 = vpop.f32.mrf.mxu0
    %v1917 = vadd.f32 0.0, %v1916
    %1918 = vmatmul.bf16.gmra.mxu0 %v1321
    %v1919 = vpop.f32.mrf.mxu0
    %v1920 = vadd.f32 0.0, %v1919
    %v1921 = vpop.f32.mrf.mxu0
    %v1922 = vadd.f32 0.0, %v1921
    %1923 = vmatmul.bf16.gmra.mxu0 %v1322
    %v1924 = vpop.f32.mrf.mxu0
    %v1925 = vadd.f32 0.0, %v1924
    %v1926 = vpop.f32.mrf.mxu0
    %v1927 = vadd.f32 0.0, %v1926
    %1928 = vmatmul.bf16.gmra.mxu0 %v1323
    %v1929 = vpop.f32.mrf.mxu0
    %v1930 = vadd.f32 0.0, %v1929
    %v1931 = vpop.f32.mrf.mxu0
    %v1932 = vadd.f32 0.0, %v1931
    %1933 = vmatmul.bf16.gmra.mxu0 %v1324
    %v1934 = vpop.f32.mrf.mxu0
    %v1935 = vadd.f32 0.0, %v1934
    %v1936 = vpop.f32.mrf.mxu0
    %v1937 = vadd.f32 0.0, %v1936
    %1938 = vmatmul.bf16.gmra.mxu0 %v1325
    %v1939 = vpop.f32.mrf.mxu0
    %v1940 = vadd.f32 0.0, %v1939
    %v1941 = vpop.f32.mrf.mxu0
    %v1942 = vadd.f32 0.0, %v1941
    %1943 = vmatmul.bf16.gmra.mxu0 %v1326
    %v1944 = vpop.f32.mrf.mxu0
    %v1945 = vadd.f32 0.0, %v1944
    %v1946 = vpop.f32.mrf.mxu0
    %v1947 = vadd.f32 0.0, %v1946
    %1948 = vdwg.mxu0
    %1949 = vmatpush.bf16.msra.mxu0 %v1589
    %1950 = vmatpush.bf16.msra.mxu0 %v1581
    %1951 = vmatpush.bf16.msra.mxu0 %v1573
    %1952 = vmatpush.bf16.msra.mxu0 %v1565
    %1953 = vmatpush.bf16.msra.mxu0 %v1557
    %1954 = vmatpush.bf16.msra.mxu0 %v1549
    %1955 = vmatpush.bf16.msra.mxu0 %v1541
    %1956 = vmatpush.bf16.msra.mxu0 %v1533
    %1957 = vmatmul.bf16.gmra.mxu0 %v1319
    %v1958 = vpop.f32.mrf.mxu0
    %v1959 = vadd.f32 0.0, %v1958
    %v1960 = vpop.f32.mrf.mxu0
    %v1961 = vadd.f32 0.0, %v1960
    %1962 = vmatmul.bf16.gmra.mxu0 %v1320
    %v1963 = vpop.f32.mrf.mxu0
    %v1964 = vadd.f32 0.0, %v1963
    %v1965 = vpop.f32.mrf.mxu0
    %v1966 = vadd.f32 0.0, %v1965
    %1967 = vmatmul.bf16.gmra.mxu0 %v1321
    %v1968 = vpop.f32.mrf.mxu0
    %v1969 = vadd.f32 0.0, %v1968
    %v1970 = vpop.f32.mrf.mxu0
    %v1971 = vadd.f32 0.0, %v1970
    %1972 = vmatmul.bf16.gmra.mxu0 %v1322
    %v1973 = vpop.f32.mrf.mxu0
    %v1974 = vadd.f32 0.0, %v1973
    %v1975 = vpop.f32.mrf.mxu0
    %v1976 = vadd.f32 0.0, %v1975
    %1977 = vmatmul.bf16.gmra.mxu0 %v1323
    %v1978 = vpop.f32.mrf.mxu0
    %v1979 = vadd.f32 0.0, %v1978
    %v1980 = vpop.f32.mrf.mxu0
    %v1981 = vadd.f32 0.0, %v1980
    %1982 = vmatmul.bf16.gmra.mxu0 %v1324
    %v1983 = vpop.f32.mrf.mxu0
    %v1984 = vadd.f32 0.0, %v1983
    %v1985 = vpop.f32.mrf.mxu0
    %v1986 = vadd.f32 0.0, %v1985
    %1987 = vmatmul.bf16.gmra.mxu0 %v1325
    %v1988 = vpop.f32.mrf.mxu0
    %v1989 = vadd.f32 0.0, %v1988
    %v1990 = vpop.f32.mrf.mxu0
    %v1991 = vadd.f32 0.0, %v1990
    %1992 = vmatmul.bf16.gmra.mxu0 %v1326
    %v1993 = vpop.f32.mrf.mxu0
    %v1994 = vadd.f32 0.0, %v1993
    %v1995 = vpop.f32.mrf.mxu0
    %v1996 = vadd.f32 0.0, %v1995
    %1997 = vdwg.mxu0
    %1998 = vmatpush.bf16.msra.mxu0 %v1590
    %1999 = vmatpush.bf16.msra.mxu0 %v1582
    %2000 = vmatpush.bf16.msra.mxu0 %v1574
    %2001 = vmatpush.bf16.msra.mxu0 %v1566
    %2002 = vmatpush.bf16.msra.mxu0 %v1558
    %2003 = vmatpush.bf16.msra.mxu0 %v1550
    %2004 = vmatpush.bf16.msra.mxu0 %v1542
    %2005 = vmatpush.bf16.msra.mxu0 %v1534
    %2006 = vmatmul.bf16.gmra.mxu0 %v1319
    %v2007 = vpop.f32.mrf.mxu0
    %v2008 = vadd.f32 0.0, %v2007
    %v2009 = vpop.f32.mrf.mxu0
    %v2010 = vadd.f32 0.0, %v2009
    %2011 = vmatmul.bf16.gmra.mxu0 %v1320
    %v2012 = vpop.f32.mrf.mxu0
    %v2013 = vadd.f32 0.0, %v2012
    %v2014 = vpop.f32.mrf.mxu0
    %v2015 = vadd.f32 0.0, %v2014
    %2016 = vmatmul.bf16.gmra.mxu0 %v1321
    %v2017 = vpop.f32.mrf.mxu0
    %v2018 = vadd.f32 0.0, %v2017
    %v2019 = vpop.f32.mrf.mxu0
    %v2020 = vadd.f32 0.0, %v2019
    %2021 = vmatmul.bf16.gmra.mxu0 %v1322
    %v2022 = vpop.f32.mrf.mxu0
    %v2023 = vadd.f32 0.0, %v2022
    %v2024 = vpop.f32.mrf.mxu0
    %v2025 = vadd.f32 0.0, %v2024
    %2026 = vmatmul.bf16.gmra.mxu0 %v1323
    %v2027 = vpop.f32.mrf.mxu0
    %v2028 = vadd.f32 0.0, %v2027
    %v2029 = vpop.f32.mrf.mxu0
    %v2030 = vadd.f32 0.0, %v2029
    %2031 = vmatmul.bf16.gmra.mxu0 %v1324
    %v2032 = vpop.f32.mrf.mxu0
    %v2033 = vadd.f32 0.0, %v2032
    %v2034 = vpop.f32.mrf.mxu0
    %v2035 = vadd.f32 0.0, %v2034
    %2036 = vmatmul.bf16.gmra.mxu0 %v1325
    %v2037 = vpop.f32.mrf.mxu0
    %v2038 = vadd.f32 0.0, %v2037
    %v2039 = vpop.f32.mrf.mxu0
    %v2040 = vadd.f32 0.0, %v2039
    %2041 = vmatmul.bf16.gmra.mxu0 %v1326
    %v2042 = vpop.f32.mrf.mxu0
    %v2043 = vadd.f32 0.0, %v2042
    %v2044 = vpop.f32.mrf.mxu0
    %v2045 = vadd.f32 0.0, %v2044
    %2046 = vdwg.mxu0
    %v2047 = vadd.f32 %v1159, %v1665
    %v2048 = vadd.f32 %v1160, %v1714
    %v2049 = vadd.f32 %v1161, %v1763
    %v2050 = vadd.f32 %v1162, %v1812
    %v2051 = vadd.f32 %v1163, %v1861
    %v2052 = vadd.f32 %v1164, %v1910
    %v2053 = vadd.f32 %v1165, %v1959
    %v2054 = vadd.f32 %v1166, %v2008
    %v2055 = vadd.f32 %v1167, %v1667
    %v2056 = vadd.f32 %v1168, %v1716
    %v2057 = vadd.f32 %v1169, %v1765
    %v2058 = vadd.f32 %v1170, %v1814
    %v2059 = vadd.f32 %v1171, %v1863
    %v2060 = vadd.f32 %v1172, %v1912
    %v2061 = vadd.f32 %v1173, %v1961
    %v2062 = vadd.f32 %v1174, %v2010
    %v2063 = vadd.f32 %v1175, %v1670
    %v2064 = vadd.f32 %v1176, %v1719
    %v2065 = vadd.f32 %v1177, %v1768
    %v2066 = vadd.f32 %v1178, %v1817
    %v2067 = vadd.f32 %v1179, %v1866
    %v2068 = vadd.f32 %v1180, %v1915
    %v2069 = vadd.f32 %v1181, %v1964
    %v2070 = vadd.f32 %v1182, %v2013
    %v2071 = vadd.f32 %v1183, %v1672
    %v2072 = vadd.f32 %v1184, %v1721
    %v2073 = vadd.f32 %v1185, %v1770
    %v2074 = vadd.f32 %v1186, %v1819
    %v2075 = vadd.f32 %v1187, %v1868
    %v2076 = vadd.f32 %v1188, %v1917
    %v2077 = vadd.f32 %v1189, %v1966
    %v2078 = vadd.f32 %v1190, %v2015
    %v2079 = vadd.f32 %v1191, %v1675
    %v2080 = vadd.f32 %v1192, %v1724
    %v2081 = vadd.f32 %v1193, %v1773
    %v2082 = vadd.f32 %v1194, %v1822
    %v2083 = vadd.f32 %v1195, %v1871
    %v2084 = vadd.f32 %v1196, %v1920
    %v2085 = vadd.f32 %v1197, %v1969
    %v2086 = vadd.f32 %v1198, %v2018
    %v2087 = vadd.f32 %v1199, %v1677
    %v2088 = vadd.f32 %v1200, %v1726
    %v2089 = vadd.f32 %v1201, %v1775
    %v2090 = vadd.f32 %v1202, %v1824
    %v2091 = vadd.f32 %v1203, %v1873
    %v2092 = vadd.f32 %v1204, %v1922
    %v2093 = vadd.f32 %v1205, %v1971
    %v2094 = vadd.f32 %v1206, %v2020
    %v2095 = vadd.f32 %v1207, %v1680
    %v2096 = vadd.f32 %v1208, %v1729
    %v2097 = vadd.f32 %v1209, %v1778
    %v2098 = vadd.f32 %v1210, %v1827
    %v2099 = vadd.f32 %v1211, %v1876
    %v2100 = vadd.f32 %v1212, %v1925
    %v2101 = vadd.f32 %v1213, %v1974
    %v2102 = vadd.f32 %v1214, %v2023
    %v2103 = vadd.f32 %v1215, %v1682
    %v2104 = vadd.f32 %v1216, %v1731
    %v2105 = vadd.f32 %v1217, %v1780
    %v2106 = vadd.f32 %v1218, %v1829
    %v2107 = vadd.f32 %v1219, %v1878
    %v2108 = vadd.f32 %v1220, %v1927
    %v2109 = vadd.f32 %v1221, %v1976
    %v2110 = vadd.f32 %v1222, %v2025
    %v2111 = vadd.f32 %v1223, %v1685
    %v2112 = vadd.f32 %v1224, %v1734
    %v2113 = vadd.f32 %v1225, %v1783
    %v2114 = vadd.f32 %v1226, %v1832
    %v2115 = vadd.f32 %v1227, %v1881
    %v2116 = vadd.f32 %v1228, %v1930
    %v2117 = vadd.f32 %v1229, %v1979
    %v2118 = vadd.f32 %v1230, %v2028
    %v2119 = vadd.f32 %v1231, %v1687
    %v2120 = vadd.f32 %v1232, %v1736
    %v2121 = vadd.f32 %v1233, %v1785
    %v2122 = vadd.f32 %v1234, %v1834
    %v2123 = vadd.f32 %v1235, %v1883
    %v2124 = vadd.f32 %v1236, %v1932
    %v2125 = vadd.f32 %v1237, %v1981
    %v2126 = vadd.f32 %v1238, %v2030
    %v2127 = vadd.f32 %v1239, %v1690
    %v2128 = vadd.f32 %v1240, %v1739
    %v2129 = vadd.f32 %v1241, %v1788
    %v2130 = vadd.f32 %v1242, %v1837
    %v2131 = vadd.f32 %v1243, %v1886
    %v2132 = vadd.f32 %v1244, %v1935
    %v2133 = vadd.f32 %v1245, %v1984
    %v2134 = vadd.f32 %v1246, %v2033
    %v2135 = vadd.f32 %v1247, %v1692
    %v2136 = vadd.f32 %v1248, %v1741
    %v2137 = vadd.f32 %v1249, %v1790
    %v2138 = vadd.f32 %v1250, %v1839
    %v2139 = vadd.f32 %v1251, %v1888
    %v2140 = vadd.f32 %v1252, %v1937
    %v2141 = vadd.f32 %v1253, %v1986
    %v2142 = vadd.f32 %v1254, %v2035
    %v2143 = vadd.f32 %v1255, %v1695
    %v2144 = vadd.f32 %v1256, %v1744
    %v2145 = vadd.f32 %v1257, %v1793
    %v2146 = vadd.f32 %v1258, %v1842
    %v2147 = vadd.f32 %v1259, %v1891
    %v2148 = vadd.f32 %v1260, %v1940
    %v2149 = vadd.f32 %v1261, %v1989
    %v2150 = vadd.f32 %v1262, %v2038
    %v2151 = vadd.f32 %v1263, %v1697
    %v2152 = vadd.f32 %v1264, %v1746
    %v2153 = vadd.f32 %v1265, %v1795
    %v2154 = vadd.f32 %v1266, %v1844
    %v2155 = vadd.f32 %v1267, %v1893
    %v2156 = vadd.f32 %v1268, %v1942
    %v2157 = vadd.f32 %v1269, %v1991
    %v2158 = vadd.f32 %v1270, %v2040
    %v2159 = vadd.f32 %v1271, %v1700
    %v2160 = vadd.f32 %v1272, %v1749
    %v2161 = vadd.f32 %v1273, %v1798
    %v2162 = vadd.f32 %v1274, %v1847
    %v2163 = vadd.f32 %v1275, %v1896
    %v2164 = vadd.f32 %v1276, %v1945
    %v2165 = vadd.f32 %v1277, %v1994
    %v2166 = vadd.f32 %v1278, %v2043
    %v2167 = vadd.f32 %v1279, %v1702
    %v2168 = vadd.f32 %v1280, %v1751
    %v2169 = vadd.f32 %v1281, %v1800
    %v2170 = vadd.f32 %v1282, %v1849
    %v2171 = vadd.f32 %v1283, %v1898
    %v2172 = vadd.f32 %v1284, %v1947
    %v2173 = vadd.f32 %v1285, %v1996
    %v2174 = vadd.f32 %v1286, %v2045
    %2175 = vst [vmem:[#allocation2] sm:$0xff] %v2047
    %2176 = vst [vmem:[#allocation2 + $0x8] sm:$0xff] %v2048
    %2177 = vst [vmem:[#allocation2 + $0x10] sm:$0xff] %v2049
    %2178 = vst [vmem:[#allocation2 + $0x18] sm:$0xff] %v2050
    %2179 = vst [vmem:[#allocation2 + $0x20] sm:$0xff] %v2051
    %2180 = vst [vmem:[#allocation2 + $0x28] sm:$0xff] %v2052
    %2181 = vst [vmem:[#allocation2 + $0x30] sm:$0xff] %v2053
    %2182 = vst [vmem:[#allocation2 + $0x38] sm:$0xff] %v2054
    %2183 = vst [vmem:[#allocation2 + $0x40] sm:$0xff] %v2055
    %2184 = vst [vmem:[#allocation2 + $0x48] sm:$0xff] %v2056
    %2185 = vst [vmem:[#allocation2 + $0x50] sm:$0xff] %v2057
    %2186 = vst [vmem:[#allocation2 + $0x58] sm:$0xff] %v2058
    %2187 = vst [vmem:[#allocation2 + $0x60] sm:$0xff] %v2059
    %2188 = vst [vmem:[#allocation2 + $0x68] sm:$0xff] %v2060
    %2189 = vst [vmem:[#allocation2 + $0x70] sm:$0xff] %v2061
    %2190 = vst [vmem:[#allocation2 + $0x78] sm:$0xff] %v2062
    %2191 = vst [vmem:[#allocation2 + $0x80] sm:$0xff] %v2063
    %2192 = vst [vmem:[#allocation2 + $0x88] sm:$0xff] %v2064
    %2193 = vst [vmem:[#allocation2 + $0x90] sm:$0xff] %v2065
    %2194 = vst [vmem:[#allocation2 + $0x98] sm:$0xff] %v2066
    %2195 = vst [vmem:[#allocation2 + $0xa0] sm:$0xff] %v2067
    %2196 = vst [vmem:[#allocation2 + $0xa8] sm:$0xff] %v2068
    %2197 = vst [vmem:[#allocation2 + $0xb0] sm:$0xff] %v2069
    %2198 = vst [vmem:[#allocation2 + $0xb8] sm:$0xff] %v2070
    %2199 = vst [vmem:[#allocation2 + $0xc0] sm:$0xff] %v2071
    %2200 = vst [vmem:[#allocation2 + $0xc8] sm:$0xff] %v2072
    %2201 = vst [vmem:[#allocation2 + $0xd0] sm:$0xff] %v2073
    %2202 = vst [vmem:[#allocation2 + $0xd8] sm:$0xff] %v2074
    %2203 = vst [vmem:[#allocation2 + $0xe0] sm:$0xff] %v2075
    %2204 = vst [vmem:[#allocation2 + $0xe8] sm:$0xff] %v2076
    %2205 = vst [vmem:[#allocation2 + $0xf0] sm:$0xff] %v2077
    %2206 = vst [vmem:[#allocation2 + $0xf8] sm:$0xff] %v2078
    %2207 = vst [vmem:[#allocation2 + $0x100] sm:$0xff] %v2079
    %2208 = vst [vmem:[#allocation2 + $0x108] sm:$0xff] %v2080
    %2209 = vst [vmem:[#allocation2 + $0x110] sm:$0xff] %v2081
    %2210 = vst [vmem:[#allocation2 + $0x118] sm:$0xff] %v2082
    %2211 = vst [vmem:[#allocation2 + $0x120] sm:$0xff] %v2083
    %2212 = vst [vmem:[#allocation2 + $0x128] sm:$0xff] %v2084
    %2213 = vst [vmem:[#allocation2 + $0x130] sm:$0xff] %v2085
    %2214 = vst [vmem:[#allocation2 + $0x138] sm:$0xff] %v2086
    %2215 = vst [vmem:[#allocation2 + $0x140] sm:$0xff] %v2087
    %2216 = vst [vmem:[#allocation2 + $0x148] sm:$0xff] %v2088
    %2217 = vst [vmem:[#allocation2 + $0x150] sm:$0xff] %v2089
    %2218 = vst [vmem:[#allocation2 + $0x158] sm:$0xff] %v2090
    %2219 = vst [vmem:[#allocation2 + $0x160] sm:$0xff] %v2091
    %2220 = vst [vmem:[#allocation2 + $0x168] sm:$0xff] %v2092
    %2221 = vst [vmem:[#allocation2 + $0x170] sm:$0xff] %v2093
    %2222 = vst [vmem:[#allocation2 + $0x178] sm:$0xff] %v2094
    %2223 = vst [vmem:[#allocation2 + $0x180] sm:$0xff] %v2095
    %2224 = vst [vmem:[#allocation2 + $0x188] sm:$0xff] %v2096
    %2225 = vst [vmem:[#allocation2 + $0x190] sm:$0xff] %v2097
    %2226 = vst [vmem:[#allocation2 + $0x198] sm:$0xff] %v2098
    %2227 = vst [vmem:[#allocation2 + $0x1a0] sm:$0xff] %v2099
    %2228 = vst [vmem:[#allocation2 + $0x1a8] sm:$0xff] %v2100
    %2229 = vst [vmem:[#allocation2 + $0x1b0] sm:$0xff] %v2101
    %2230 = vst [vmem:[#allocation2 + $0x1b8] sm:$0xff] %v2102
    %2231 = vst [vmem:[#allocation2 + $0x1c0] sm:$0xff] %v2103
    %2232 = vst [vmem:[#allocation2 + $0x1c8] sm:$0xff] %v2104
    %2233 = vst [vmem:[#allocation2 + $0x1d0] sm:$0xff] %v2105
    %2234 = vst [vmem:[#allocation2 + $0x1d8] sm:$0xff] %v2106
    %2235 = vst [vmem:[#allocation2 + $0x1e0] sm:$0xff] %v2107
    %2236 = vst [vmem:[#allocation2 + $0x1e8] sm:$0xff] %v2108
    %2237 = vst [vmem:[#allocation2 + $0x1f0] sm:$0xff] %v2109
    %2238 = vst [vmem:[#allocation2 + $0x1f8] sm:$0xff] %v2110
    %2239 = vst [vmem:[#allocation2 + $0x200] sm:$0xff] %v2111
    %2240 = vst [vmem:[#allocation2 + $0x208] sm:$0xff] %v2112
    %2241 = vst [vmem:[#allocation2 + $0x210] sm:$0xff] %v2113
    %2242 = vst [vmem:[#allocation2 + $0x218] sm:$0xff] %v2114
    %2243 = vst [vmem:[#allocation2 + $0x220] sm:$0xff] %v2115
    %2244 = vst [vmem:[#allocation2 + $0x228] sm:$0xff] %v2116
    %2245 = vst [vmem:[#allocation2 + $0x230] sm:$0xff] %v2117
    %2246 = vst [vmem:[#allocation2 + $0x238] sm:$0xff] %v2118
    %2247 = vst [vmem:[#allocation2 + $0x240] sm:$0xff] %v2119
    %2248 = vst [vmem:[#allocation2 + $0x248] sm:$0xff] %v2120
    %2249 = vst [vmem:[#allocation2 + $0x250] sm:$0xff] %v2121
    %2250 = vst [vmem:[#allocation2 + $0x258] sm:$0xff] %v2122
    %2251 = vst [vmem:[#allocation2 + $0x260] sm:$0xff] %v2123
    %2252 = vst [vmem:[#allocation2 + $0x268] sm:$0xff] %v2124
    %2253 = vst [vmem:[#allocation2 + $0x270] sm:$0xff] %v2125
    %2254 = vst [vmem:[#allocation2 + $0x278] sm:$0xff] %v2126
    %2255 = vst [vmem:[#allocation2 + $0x280] sm:$0xff] %v2127
    %2256 = vst [vmem:[#allocation2 + $0x288] sm:$0xff] %v2128
    %2257 = vst [vmem:[#allocation2 + $0x290] sm:$0xff] %v2129
    %2258 = vst [vmem:[#allocation2 + $0x298] sm:$0xff] %v2130
    %2259 = vst [vmem:[#allocation2 + $0x2a0] sm:$0xff] %v2131
    %2260 = vst [vmem:[#allocation2 + $0x2a8] sm:$0xff] %v2132
    %2261 = vst [vmem:[#allocation2 + $0x2b0] sm:$0xff] %v2133
    %2262 = vst [vmem:[#allocation2 + $0x2b8] sm:$0xff] %v2134
    %2263 = vst [vmem:[#allocation2 + $0x2c0] sm:$0xff] %v2135
    %2264 = vst [vmem:[#allocation2 + $0x2c8] sm:$0xff] %v2136
    %2265 = vst [vmem:[#allocation2 + $0x2d0] sm:$0xff] %v2137
    %2266 = vst [vmem:[#allocation2 + $0x2d8] sm:$0xff] %v2138
    %2267 = vst [vmem:[#allocation2 + $0x2e0] sm:$0xff] %v2139
    %2268 = vst [vmem:[#allocation2 + $0x2e8] sm:$0xff] %v2140
    %2269 = vst [vmem:[#allocation2 + $0x2f0] sm:$0xff] %v2141
    %2270 = vst [vmem:[#allocation2 + $0x2f8] sm:$0xff] %v2142
    %2271 = vst [vmem:[#allocation2 + $0x300] sm:$0xff] %v2143
    %2272 = vst [vmem:[#allocation2 + $0x308] sm:$0xff] %v2144
    %2273 = vst [vmem:[#allocation2 + $0x310] sm:$0xff] %v2145
    %2274 = vst [vmem:[#allocation2 + $0x318] sm:$0xff] %v2146
    %2275 = vst [vmem:[#allocation2 + $0x320] sm:$0xff] %v2147
    %2276 = vst [vmem:[#allocation2 + $0x328] sm:$0xff] %v2148
    %2277 = vst [vmem:[#allocation2 + $0x330] sm:$0xff] %v2149
    %2278 = vst [vmem:[#allocation2 + $0x338] sm:$0xff] %v2150
    %2279 = vst [vmem:[#allocation2 + $0x340] sm:$0xff] %v2151
    %2280 = vst [vmem:[#allocation2 + $0x348] sm:$0xff] %v2152
    %2281 = vst [vmem:[#allocation2 + $0x350] sm:$0xff] %v2153
    %2282 = vst [vmem:[#allocation2 + $0x358] sm:$0xff] %v2154
    %2283 = vst [vmem:[#allocation2 + $0x360] sm:$0xff] %v2155
    %2284 = vst [vmem:[#allocation2 + $0x368] sm:$0xff] %v2156
    %2285 = vst [vmem:[#allocation2 + $0x370] sm:$0xff] %v2157
    %2286 = vst [vmem:[#allocation2 + $0x378] sm:$0xff] %v2158
    %2287 = vst [vmem:[#allocation2 + $0x380] sm:$0xff] %v2159
    %2288 = vst [vmem:[#allocation2 + $0x388] sm:$0xff] %v2160
    %2289 = vst [vmem:[#allocation2 + $0x390] sm:$0xff] %v2161
    %2290 = vst [vmem:[#allocation2 + $0x398] sm:$0xff] %v2162
    %2291 = vst [vmem:[#allocation2 + $0x3a0] sm:$0xff] %v2163
    %2292 = vst [vmem:[#allocation2 + $0x3a8] sm:$0xff] %v2164
    %2293 = vst [vmem:[#allocation2 + $0x3b0] sm:$0xff] %v2165
    %2294 = vst [vmem:[#allocation2 + $0x3b8] sm:$0xff] %v2166
    %2295 = vst [vmem:[#allocation2 + $0x3c0] sm:$0xff] %v2167
    %2296 = vst [vmem:[#allocation2 + $0x3c8] sm:$0xff] %v2168
    %2297 = vst [vmem:[#allocation2 + $0x3d0] sm:$0xff] %v2169
    %2298 = vst [vmem:[#allocation2 + $0x3d8] sm:$0xff] %v2170
    %2299 = vst [vmem:[#allocation2 + $0x3e0] sm:$0xff] %v2171
    %2300 = vst [vmem:[#allocation2 + $0x3e8] sm:$0xff] %v2172
    %2301 = vst [vmem:[#allocation2 + $0x3f0] sm:$0xff] %v2173
    %2302 = vst [vmem:[#allocation2 + $0x3f8] sm:$0xff] %v2174
    %v2303 = vpack.c.bf16 0.0, 0.0
    %v2432 = vunpack.c.l.b16 %v253
    %v2433 = vunpack.c.h.b16 %v253
    %v2434 = vunpack.c.l.b16 %v254
    %v2435 = vunpack.c.h.b16 %v254
    %v2436 = vunpack.c.l.b16 %v255
    %v2437 = vunpack.c.h.b16 %v255
    %v2438 = vunpack.c.l.b16 %v256
    %v2439 = vunpack.c.h.b16 %v256
    %v2440 = vunpack.c.l.b16 %v257
    %v2441 = vunpack.c.h.b16 %v257
    %v2442 = vunpack.c.l.b16 %v258
    %v2443 = vunpack.c.h.b16 %v258
    %v2444 = vunpack.c.l.b16 %v259
    %v2445 = vunpack.c.h.b16 %v259
    %v2446 = vunpack.c.l.b16 %v260
    %v2447 = vunpack.c.h.b16 %v260
    %v2448 = vunpack.c.l.b16 %v261
    %v2449 = vunpack.c.h.b16 %v261
    %v2450 = vunpack.c.l.b16 %v262
    %v2451 = vunpack.c.h.b16 %v262
    %v2452 = vunpack.c.l.b16 %v263
    %v2453 = vunpack.c.h.b16 %v263
    %v2454 = vunpack.c.l.b16 %v264
    %v2455 = vunpack.c.h.b16 %v264
    %v2456 = vunpack.c.l.b16 %v265
    %v2457 = vunpack.c.h.b16 %v265
    %v2458 = vunpack.c.l.b16 %v266
    %v2459 = vunpack.c.h.b16 %v266
    %v2460 = vunpack.c.l.b16 %v267
    %v2461 = vunpack.c.h.b16 %v267
    %v2462 = vunpack.c.l.b16 %v268
    %v2463 = vunpack.c.h.b16 %v268
    %v2464 = vunpack.c.l.b16 %v269
    %v2465 = vunpack.c.h.b16 %v269
    %v2466 = vunpack.c.l.b16 %v270
    %v2467 = vunpack.c.h.b16 %v270
    %v2468 = vunpack.c.l.b16 %v271
    %v2469 = vunpack.c.h.b16 %v271
    %v2470 = vunpack.c.l.b16 %v272
    %v2471 = vunpack.c.h.b16 %v272
    %v2472 = vunpack.c.l.b16 %v273
    %v2473 = vunpack.c.h.b16 %v273
    %v2474 = vunpack.c.l.b16 %v274
    %v2475 = vunpack.c.h.b16 %v274
    %v2476 = vunpack.c.l.b16 %v275
    %v2477 = vunpack.c.h.b16 %v275
    %v2478 = vunpack.c.l.b16 %v276
    %v2479 = vunpack.c.h.b16 %v276
    %v2480 = vunpack.c.l.b16 %v277
    %v2481 = vunpack.c.h.b16 %v277
    %v2482 = vunpack.c.l.b16 %v278
    %v2483 = vunpack.c.h.b16 %v278
    %v2484 = vunpack.c.l.b16 %v279
    %v2485 = vunpack.c.h.b16 %v279
    %v2486 = vunpack.c.l.b16 %v280
    %v2487 = vunpack.c.h.b16 %v280
    %v2488 = vunpack.c.l.b16 %v281
    %v2489 = vunpack.c.h.b16 %v281
    %v2490 = vunpack.c.l.b16 %v282
    %v2491 = vunpack.c.h.b16 %v282
    %v2492 = vunpack.c.l.b16 %v283
    %v2493 = vunpack.c.h.b16 %v283
    %v2494 = vunpack.c.l.b16 %v284
    %v2495 = vunpack.c.h.b16 %v284
    %v2496 = vunpack.c.l.b16 %v285
    %v2497 = vunpack.c.h.b16 %v285
    %v2498 = vunpack.c.l.b16 %v286
    %v2499 = vunpack.c.h.b16 %v286
    %v2500 = vunpack.c.l.b16 %v287
    %v2501 = vunpack.c.h.b16 %v287
    %v2502 = vunpack.c.l.b16 %v288
    %v2503 = vunpack.c.h.b16 %v288
    %v2504 = vunpack.c.l.b16 %v289
    %v2505 = vunpack.c.h.b16 %v289
    %v2506 = vunpack.c.l.b16 %v290
    %v2507 = vunpack.c.h.b16 %v290
    %v2508 = vunpack.c.l.b16 %v291
    %v2509 = vunpack.c.h.b16 %v291
    %v2510 = vunpack.c.l.b16 %v292
    %v2511 = vunpack.c.h.b16 %v292
    %v2512 = vunpack.c.l.b16 %v293
    %v2513 = vunpack.c.h.b16 %v293
    %v2514 = vunpack.c.l.b16 %v294
    %v2515 = vunpack.c.h.b16 %v294
    %v2516 = vunpack.c.l.b16 %v295
    %v2517 = vunpack.c.h.b16 %v295
    %v2518 = vunpack.c.l.b16 %v296
    %v2519 = vunpack.c.h.b16 %v296
    %v2520 = vunpack.c.l.b16 %v297
    %v2521 = vunpack.c.h.b16 %v297
    %v2522 = vunpack.c.l.b16 %v298
    %v2523 = vunpack.c.h.b16 %v298
    %v2524 = vunpack.c.l.b16 %v299
    %v2525 = vunpack.c.h.b16 %v299
    %v2526 = vunpack.c.l.b16 %v300
    %v2527 = vunpack.c.h.b16 %v300
    %v2528 = vunpack.c.l.b16 %v301
    %v2529 = vunpack.c.h.b16 %v301
    %v2530 = vunpack.c.l.b16 %v302
    %v2531 = vunpack.c.h.b16 %v302
    %v2532 = vunpack.c.l.b16 %v303
    %v2533 = vunpack.c.h.b16 %v303
    %v2534 = vunpack.c.l.b16 %v304
    %v2535 = vunpack.c.h.b16 %v304
    %v2536 = vunpack.c.l.b16 %v305
    %v2537 = vunpack.c.h.b16 %v305
    %v2538 = vunpack.c.l.b16 %v306
    %v2539 = vunpack.c.h.b16 %v306
    %v2540 = vunpack.c.l.b16 %v307
    %v2541 = vunpack.c.h.b16 %v307
    %v2542 = vunpack.c.l.b16 %v308
    %v2543 = vunpack.c.h.b16 %v308
    %v2544 = vunpack.c.l.b16 %v309
    %v2545 = vunpack.c.h.b16 %v309
    %v2546 = vunpack.c.l.b16 %v310
    %v2547 = vunpack.c.h.b16 %v310
    %v2548 = vunpack.c.l.b16 %v311
    %v2549 = vunpack.c.h.b16 %v311
    %v2550 = vunpack.c.l.b16 %v312
    %v2551 = vunpack.c.h.b16 %v312
    %v2552 = vunpack.c.l.b16 %v313
    %v2553 = vunpack.c.h.b16 %v313
    %v2554 = vunpack.c.l.b16 %v314
    %v2555 = vunpack.c.h.b16 %v314
    %v2556 = vunpack.c.l.b16 %v315
    %v2557 = vunpack.c.h.b16 %v315
    %v2558 = vunpack.c.l.b16 %v316
    %v2559 = vunpack.c.h.b16 %v316
    %v2560 = vunpack.c.l.b16 %v317
    %v2561 = vunpack.c.h.b16 %v317
    %v2562 = vunpack.c.l.b16 %v318
    %v2563 = vunpack.c.h.b16 %v318
    %v2564 = vunpack.c.l.b16 %v319
    %v2565 = vunpack.c.h.b16 %v319
    %v2566 = vunpack.c.l.b16 %v320
    %v2567 = vunpack.c.h.b16 %v320
    %v2568 = vunpack.c.l.b16 %v321
    %v2569 = vunpack.c.h.b16 %v321
    %v2570 = vunpack.c.l.b16 %v322
    %v2571 = vunpack.c.h.b16 %v322
    %v2572 = vunpack.c.l.b16 %v323
    %v2573 = vunpack.c.h.b16 %v323
    %v2574 = vunpack.c.l.b16 %v324
    %v2575 = vunpack.c.h.b16 %v324
    %v2576 = vunpack.c.l.b16 %v325
    %v2577 = vunpack.c.h.b16 %v325
    %v2578 = vunpack.c.l.b16 %v326
    %v2579 = vunpack.c.h.b16 %v326
    %v2580 = vunpack.c.l.b16 %v327
    %v2581 = vunpack.c.h.b16 %v327
    %v2582 = vunpack.c.l.b16 %v328
    %v2583 = vunpack.c.h.b16 %v328
    %v2584 = vunpack.c.l.b16 %v329
    %v2585 = vunpack.c.h.b16 %v329
    %v2586 = vunpack.c.l.b16 %v330
    %v2587 = vunpack.c.h.b16 %v330
    %v2588 = vunpack.c.l.b16 %v331
    %v2589 = vunpack.c.h.b16 %v331
    %v2590 = vunpack.c.l.b16 %v332
    %v2591 = vunpack.c.h.b16 %v332
    %v2592 = vunpack.c.l.b16 %v333
    %v2593 = vunpack.c.h.b16 %v333
    %v2594 = vunpack.c.l.b16 %v334
    %v2595 = vunpack.c.h.b16 %v334
    %v2596 = vunpack.c.l.b16 %v335
    %v2597 = vunpack.c.h.b16 %v335
    %v2598 = vunpack.c.l.b16 %v336
    %v2599 = vunpack.c.h.b16 %v336
    %v2600 = vunpack.c.l.b16 %v337
    %v2601 = vunpack.c.h.b16 %v337
    %v2602 = vunpack.c.l.b16 %v338
    %v2603 = vunpack.c.h.b16 %v338
    %v2604 = vunpack.c.l.b16 %v339
    %v2605 = vunpack.c.h.b16 %v339
    %v2606 = vunpack.c.l.b16 %v340
    %v2607 = vunpack.c.h.b16 %v340
    %v2608 = vunpack.c.l.b16 %v341
    %v2609 = vunpack.c.h.b16 %v341
    %v2610 = vunpack.c.l.b16 %v342
    %v2611 = vunpack.c.h.b16 %v342
    %v2612 = vunpack.c.l.b16 %v343
    %v2613 = vunpack.c.h.b16 %v343
    %v2614 = vunpack.c.l.b16 %v344
    %v2615 = vunpack.c.h.b16 %v344
    %v2616 = vunpack.c.l.b16 %v345
    %v2617 = vunpack.c.h.b16 %v345
    %v2618 = vunpack.c.l.b16 %v346
    %v2619 = vunpack.c.h.b16 %v346
    %v2620 = vunpack.c.l.b16 %v347
    %v2621 = vunpack.c.h.b16 %v347
    %v2622 = vunpack.c.l.b16 %v348
    %v2623 = vunpack.c.h.b16 %v348
    %v2624 = vunpack.c.l.b16 %v349
    %v2625 = vunpack.c.h.b16 %v349
    %v2626 = vunpack.c.l.b16 %v350
    %v2627 = vunpack.c.h.b16 %v350
    %v2628 = vunpack.c.l.b16 %v351
    %v2629 = vunpack.c.h.b16 %v351
    %v2630 = vunpack.c.l.b16 %v352
    %v2631 = vunpack.c.h.b16 %v352
    %v2632 = vunpack.c.l.b16 %v353
    %v2633 = vunpack.c.h.b16 %v353
    %v2634 = vunpack.c.l.b16 %v354
    %v2635 = vunpack.c.h.b16 %v354
    %v2636 = vunpack.c.l.b16 %v355
    %v2637 = vunpack.c.h.b16 %v355
    %v2638 = vunpack.c.l.b16 %v356
    %v2639 = vunpack.c.h.b16 %v356
    %v2640 = vunpack.c.l.b16 %v357
    %v2641 = vunpack.c.h.b16 %v357
    %v2642 = vunpack.c.l.b16 %v358
    %v2643 = vunpack.c.h.b16 %v358
    %v2644 = vunpack.c.l.b16 %v359
    %v2645 = vunpack.c.h.b16 %v359
    %v2646 = vunpack.c.l.b16 %v360
    %v2647 = vunpack.c.h.b16 %v360
    %v2648 = vunpack.c.l.b16 %v361
    %v2649 = vunpack.c.h.b16 %v361
    %v2650 = vunpack.c.l.b16 %v362
    %v2651 = vunpack.c.h.b16 %v362
    %v2652 = vunpack.c.l.b16 %v363
    %v2653 = vunpack.c.h.b16 %v363
    %v2654 = vunpack.c.l.b16 %v364
    %v2655 = vunpack.c.h.b16 %v364
    %v2656 = vunpack.c.l.b16 %v365
    %v2657 = vunpack.c.h.b16 %v365
    %v2658 = vunpack.c.l.b16 %v366
    %v2659 = vunpack.c.h.b16 %v366
    %v2660 = vunpack.c.l.b16 %v367
    %v2661 = vunpack.c.h.b16 %v367
    %v2662 = vunpack.c.l.b16 %v368
    %v2663 = vunpack.c.h.b16 %v368
    %v2664 = vunpack.c.l.b16 %v369
    %v2665 = vunpack.c.h.b16 %v369
    %v2666 = vunpack.c.l.b16 %v370
    %v2667 = vunpack.c.h.b16 %v370
    %v2668 = vunpack.c.l.b16 %v371
    %v2669 = vunpack.c.h.b16 %v371
    %v2670 = vunpack.c.l.b16 %v372
    %v2671 = vunpack.c.h.b16 %v372
    %v2672 = vunpack.c.l.b16 %v373
    %v2673 = vunpack.c.h.b16 %v373
    %v2674 = vunpack.c.l.b16 %v374
    %v2675 = vunpack.c.h.b16 %v374
    %v2676 = vunpack.c.l.b16 %v375
    %v2677 = vunpack.c.h.b16 %v375
    %v2678 = vunpack.c.l.b16 %v376
    %v2679 = vunpack.c.h.b16 %v376
    %v2680 = vunpack.c.l.b16 %v377
    %v2681 = vunpack.c.h.b16 %v377
    %v2682 = vunpack.c.l.b16 %v378
    %v2683 = vunpack.c.h.b16 %v378
    %v2684 = vunpack.c.l.b16 %v379
    %v2685 = vunpack.c.h.b16 %v379
    %v2686 = vunpack.c.l.b16 %v380
    %v2687 = vunpack.c.h.b16 %v380
    %v2688 = vpack.c.b16 %v2440, %v2432
    %v2689 = vpack.c.b16 %v2441, %v2433
    %v2690 = vpack.c.b16 %v2442, %v2434
    %v2691 = vpack.c.b16 %v2443, %v2435
    %v2692 = vpack.c.b16 %v2444, %v2436
    %v2693 = vpack.c.b16 %v2445, %v2437
    %v2694 = vpack.c.b16 %v2446, %v2438
    %v2695 = vpack.c.b16 %v2447, %v2439
    %v2696 = vpack.c.b16 %v2456, %v2448
    %v2697 = vpack.c.b16 %v2457, %v2449
    %v2698 = vpack.c.b16 %v2458, %v2450
    %v2699 = vpack.c.b16 %v2459, %v2451
    %v2700 = vpack.c.b16 %v2460, %v2452
    %v2701 = vpack.c.b16 %v2461, %v2453
    %v2702 = vpack.c.b16 %v2462, %v2454
    %v2703 = vpack.c.b16 %v2463, %v2455
    %v2704 = vpack.c.b16 %v2472, %v2464
    %v2705 = vpack.c.b16 %v2473, %v2465
    %v2706 = vpack.c.b16 %v2474, %v2466
    %v2707 = vpack.c.b16 %v2475, %v2467
    %v2708 = vpack.c.b16 %v2476, %v2468
    %v2709 = vpack.c.b16 %v2477, %v2469
    %v2710 = vpack.c.b16 %v2478, %v2470
    %v2711 = vpack.c.b16 %v2479, %v2471
    %v2712 = vpack.c.b16 %v2488, %v2480
    %v2713 = vpack.c.b16 %v2489, %v2481
    %v2714 = vpack.c.b16 %v2490, %v2482
    %v2715 = vpack.c.b16 %v2491, %v2483
    %v2716 = vpack.c.b16 %v2492, %v2484
    %v2717 = vpack.c.b16 %v2493, %v2485
    %v2718 = vpack.c.b16 %v2494, %v2486
    %v2719 = vpack.c.b16 %v2495, %v2487
    %v2720 = vpack.c.b16 %v2504, %v2496
    %v2721 = vpack.c.b16 %v2505, %v2497
    %v2722 = vpack.c.b16 %v2506, %v2498
    %v2723 = vpack.c.b16 %v2507, %v2499
    %v2724 = vpack.c.b16 %v2508, %v2500
    %v2725 = vpack.c.b16 %v2509, %v2501
    %v2726 = vpack.c.b16 %v2510, %v2502
    %v2727 = vpack.c.b16 %v2511, %v2503
    %v2728 = vpack.c.b16 %v2520, %v2512
    %v2729 = vpack.c.b16 %v2521, %v2513
    %v2730 = vpack.c.b16 %v2522, %v2514
    %v2731 = vpack.c.b16 %v2523, %v2515
    %v2732 = vpack.c.b16 %v2524, %v2516
    %v2733 = vpack.c.b16 %v2525, %v2517
    %v2734 = vpack.c.b16 %v2526, %v2518
    %v2735 = vpack.c.b16 %v2527, %v2519
    %v2736 = vpack.c.b16 %v2536, %v2528
    %v2737 = vpack.c.b16 %v2537, %v2529
    %v2738 = vpack.c.b16 %v2538, %v2530
    %v2739 = vpack.c.b16 %v2539, %v2531
    %v2740 = vpack.c.b16 %v2540, %v2532
    %v2741 = vpack.c.b16 %v2541, %v2533
    %v2742 = vpack.c.b16 %v2542, %v2534
    %v2743 = vpack.c.b16 %v2543, %v2535
    %v2744 = vpack.c.b16 %v2552, %v2544
    %v2745 = vpack.c.b16 %v2553, %v2545
    %v2746 = vpack.c.b16 %v2554, %v2546
    %v2747 = vpack.c.b16 %v2555, %v2547
    %v2748 = vpack.c.b16 %v2556, %v2548
    %v2749 = vpack.c.b16 %v2557, %v2549
    %v2750 = vpack.c.b16 %v2558, %v2550
    %v2751 = vpack.c.b16 %v2559, %v2551
    %v2752 = vpack.c.b16 %v2568, %v2560
    %v2753 = vpack.c.b16 %v2569, %v2561
    %v2754 = vpack.c.b16 %v2570, %v2562
    %v2755 = vpack.c.b16 %v2571, %v2563
    %v2756 = vpack.c.b16 %v2572, %v2564
    %v2757 = vpack.c.b16 %v2573, %v2565
    %v2758 = vpack.c.b16 %v2574, %v2566
    %v2759 = vpack.c.b16 %v2575, %v2567
    %v2760 = vpack.c.b16 %v2584, %v2576
    %v2761 = vpack.c.b16 %v2585, %v2577
    %v2762 = vpack.c.b16 %v2586, %v2578
    %v2763 = vpack.c.b16 %v2587, %v2579
    %v2764 = vpack.c.b16 %v2588, %v2580
    %v2765 = vpack.c.b16 %v2589, %v2581
    %v2766 = vpack.c.b16 %v2590, %v2582
    %v2767 = vpack.c.b16 %v2591, %v2583
    %v2768 = vpack.c.b16 %v2600, %v2592
    %v2769 = vpack.c.b16 %v2601, %v2593
    %v2770 = vpack.c.b16 %v2602, %v2594
    %v2771 = vpack.c.b16 %v2603, %v2595
    %v2772 = vpack.c.b16 %v2604, %v2596
    %v2773 = vpack.c.b16 %v2605, %v2597
    %v2774 = vpack.c.b16 %v2606, %v2598
    %v2775 = vpack.c.b16 %v2607, %v2599
    %v2776 = vpack.c.b16 %v2616, %v2608
    %v2777 = vpack.c.b16 %v2617, %v2609
    %v2778 = vpack.c.b16 %v2618, %v2610
    %v2779 = vpack.c.b16 %v2619, %v2611
    %v2780 = vpack.c.b16 %v2620, %v2612
    %v2781 = vpack.c.b16 %v2621, %v2613
    %v2782 = vpack.c.b16 %v2622, %v2614
    %v2783 = vpack.c.b16 %v2623, %v2615
    %v2784 = vpack.c.b16 %v2632, %v2624
    %v2785 = vpack.c.b16 %v2633, %v2625
    %v2786 = vpack.c.b16 %v2634, %v2626
    %v2787 = vpack.c.b16 %v2635, %v2627
    %v2788 = vpack.c.b16 %v2636, %v2628
    %v2789 = vpack.c.b16 %v2637, %v2629
    %v2790 = vpack.c.b16 %v2638, %v2630
    %v2791 = vpack.c.b16 %v2639, %v2631
    %v2792 = vpack.c.b16 %v2648, %v2640
    %v2793 = vpack.c.b16 %v2649, %v2641
    %v2794 = vpack.c.b16 %v2650, %v2642
    %v2795 = vpack.c.b16 %v2651, %v2643
    %v2796 = vpack.c.b16 %v2652, %v2644
    %v2797 = vpack.c.b16 %v2653, %v2645
    %v2798 = vpack.c.b16 %v2654, %v2646
    %v2799 = vpack.c.b16 %v2655, %v2647
    %v2800 = vpack.c.b16 %v2664, %v2656
    %v2801 = vpack.c.b16 %v2665, %v2657
    %v2802 = vpack.c.b16 %v2666, %v2658
    %v2803 = vpack.c.b16 %v2667, %v2659
    %v2804 = vpack.c.b16 %v2668, %v2660
    %v2805 = vpack.c.b16 %v2669, %v2661
    %v2806 = vpack.c.b16 %v2670, %v2662
    %v2807 = vpack.c.b16 %v2671, %v2663
    %v2808 = vpack.c.b16 %v2680, %v2672
    %v2809 = vpack.c.b16 %v2681, %v2673
    %v2810 = vpack.c.b16 %v2682, %v2674
    %v2811 = vpack.c.b16 %v2683, %v2675
    %v2812 = vpack.c.b16 %v2684, %v2676
    %v2813 = vpack.c.b16 %v2685, %v2677
    %v2814 = vpack.c.b16 %v2686, %v2678
    %v2815 = vpack.c.b16 %v2687, %v2679
    %2944 = vmatpush.bf16.msra.mxu0 %v2744
    %2945 = vmatpush.bf16.msra.mxu0 %v2736
    %2946 = vmatpush.bf16.msra.mxu0 %v2728
    %2947 = vmatpush.bf16.msra.mxu0 %v2720
    %2948 = vmatpush.bf16.msra.mxu0 %v2712
    %2949 = vmatpush.bf16.msra.mxu0 %v2704
    %2950 = vmatpush.bf16.msra.mxu0 %v2696
    %2951 = vmatpush.bf16.msra.mxu0 %v2688
    %2952 = vmatmul.bf16.gmra.mxu0 %v2303
    %v2953 = vpop.f32.mrf.mxu0
    %v2954 = vadd.f32 0.0, %v2953
    %v2955 = vpop.f32.mrf.mxu0
    %v2956 = vadd.f32 0.0, %v2955
    %2957 = vdwg.mxu0
    %2958 = vmatpush.bf16.msra.mxu0 %v2808
    %2959 = vmatpush.bf16.msra.mxu0 %v2800
    %2960 = vmatpush.bf16.msra.mxu0 %v2792
    %2961 = vmatpush.bf16.msra.mxu0 %v2784
    %2962 = vmatpush.bf16.msra.mxu0 %v2776
    %2963 = vmatpush.bf16.msra.mxu0 %v2768
    %2964 = vmatpush.bf16.msra.mxu0 %v2760
    %2965 = vmatpush.bf16.msra.mxu0 %v2752
    %2966 = vmatmul.bf16.gmra.mxu0 %v2303
    %v2967 = vpop.f32.mrf.mxu0
    %v2968 = vadd.f32 %v2954, %v2967
    %v2969 = vpop.f32.mrf.mxu0
    %v2970 = vadd.f32 %v2956, %v2969
    %2971 = vdwg.mxu0
    %2972 = vmatpush.bf16.msra.mxu0 %v2745
    %2973 = vmatpush.bf16.msra.mxu0 %v2737
    %2974 = vmatpush.bf16.msra.mxu0 %v2729
    %2975 = vmatpush.bf16.msra.mxu0 %v2721
    %2976 = vmatpush.bf16.msra.mxu0 %v2713
    %2977 = vmatpush.bf16.msra.mxu0 %v2705
    %2978 = vmatpush.bf16.msra.mxu0 %v2697
    %2979 = vmatpush.bf16.msra.mxu0 %v2689
    %2980 = vmatmul.bf16.gmra.mxu0 %v2303
    %v2981 = vpop.f32.mrf.mxu0
    %v2982 = vadd.f32 0.0, %v2981
    %v2983 = vpop.f32.mrf.mxu0
    %v2984 = vadd.f32 0.0, %v2983
    %2985 = vdwg.mxu0
    %2986 = vmatpush.bf16.msra.mxu0 %v2809
    %2987 = vmatpush.bf16.msra.mxu0 %v2801
    %2988 = vmatpush.bf16.msra.mxu0 %v2793
    %2989 = vmatpush.bf16.msra.mxu0 %v2785
    %2990 = vmatpush.bf16.msra.mxu0 %v2777
    %2991 = vmatpush.bf16.msra.mxu0 %v2769
    %2992 = vmatpush.bf16.msra.mxu0 %v2761
    %2993 = vmatpush.bf16.msra.mxu0 %v2753
    %2994 = vmatmul.bf16.gmra.mxu0 %v2303
    %v2995 = vpop.f32.mrf.mxu0
    %v2996 = vadd.f32 %v2982, %v2995
    %v2997 = vpop.f32.mrf.mxu0
    %v2998 = vadd.f32 %v2984, %v2997
    %2999 = vdwg.mxu0
    %3000 = vmatpush.bf16.msra.mxu0 %v2746
    %3001 = vmatpush.bf16.msra.mxu0 %v2738
    %3002 = vmatpush.bf16.msra.mxu0 %v2730
    %3003 = vmatpush.bf16.msra.mxu0 %v2722
    %3004 = vmatpush.bf16.msra.mxu0 %v2714
    %3005 = vmatpush.bf16.msra.mxu0 %v2706
    %3006 = vmatpush.bf16.msra.mxu0 %v2698
    %3007 = vmatpush.bf16.msra.mxu0 %v2690
    %3008 = vmatmul.bf16.gmra.mxu0 %v2303
    %v3009 = vpop.f32.mrf.mxu0
    %v3010 = vadd.f32 0.0, %v3009
    %v3011 = vpop.f32.mrf.mxu0
    %v3012 = vadd.f32 0.0, %v3011
    %3013 = vdwg.mxu0
    %3014 = vmatpush.bf16.msra.mxu0 %v2810
    %3015 = vmatpush.bf16.msra.mxu0 %v2802
    %3016 = vmatpush.bf16.msra.mxu0 %v2794
    %3017 = vmatpush.bf16.msra.mxu0 %v2786
    %3018 = vmatpush.bf16.msra.mxu0 %v2778
    %3019 = vmatpush.bf16.msra.mxu0 %v2770
    %3020 = vmatpush.bf16.msra.mxu0 %v2762
    %3021 = vmatpush.bf16.msra.mxu0 %v2754
    %3022 = vmatmul.bf16.gmra.mxu0 %v2303
    %v3023 = vpop.f32.mrf.mxu0
    %v3024 = vadd.f32 %v3010, %v3023
    %v3025 = vpop.f32.mrf.mxu0
    %v3026 = vadd.f32 %v3012, %v3025
    %3027 = vdwg.mxu0
    %3028 = vmatpush.bf16.msra.mxu0 %v2747
    %3029 = vmatpush.bf16.msra.mxu0 %v2739
    %3030 = vmatpush.bf16.msra.mxu0 %v2731
    %3031 = vmatpush.bf16.msra.mxu0 %v2723
    %3032 = vmatpush.bf16.msra.mxu0 %v2715
    %3033 = vmatpush.bf16.msra.mxu0 %v2707
    %3034 = vmatpush.bf16.msra.mxu0 %v2699
    %3035 = vmatpush.bf16.msra.mxu0 %v2691
    %3036 = vmatmul.bf16.gmra.mxu0 %v2303
    %v3037 = vpop.f32.mrf.mxu0
    %v3038 = vadd.f32 0.0, %v3037
    %v3039 = vpop.f32.mrf.mxu0
    %v3040 = vadd.f32 0.0, %v3039
    %3041 = vdwg.mxu0
    %3042 = vmatpush.bf16.msra.mxu0 %v2811
    %3043 = vmatpush.bf16.msra.mxu0 %v2803
    %3044 = vmatpush.bf16.msra.mxu0 %v2795
    %3045 = vmatpush.bf16.msra.mxu0 %v2787
    %3046 = vmatpush.bf16.msra.mxu0 %v2779
    %3047 = vmatpush.bf16.msra.mxu0 %v2771
    %3048 = vmatpush.bf16.msra.mxu0 %v2763
    %3049 = vmatpush.bf16.msra.mxu0 %v2755
    %3050 = vmatmul.bf16.gmra.mxu0 %v2303
    %v3051 = vpop.f32.mrf.mxu0
    %v3052 = vadd.f32 %v3038, %v3051
    %v3053 = vpop.f32.mrf.mxu0
    %v3054 = vadd.f32 %v3040, %v3053
    %3055 = vdwg.mxu0
    %3056 = vmatpush.bf16.msra.mxu0 %v2748
    %3057 = vmatpush.bf16.msra.mxu0 %v2740
    %3058 = vmatpush.bf16.msra.mxu0 %v2732
    %3059 = vmatpush.bf16.msra.mxu0 %v2724
    %3060 = vmatpush.bf16.msra.mxu0 %v2716
    %3061 = vmatpush.bf16.msra.mxu0 %v2708
    %3062 = vmatpush.bf16.msra.mxu0 %v2700
    %3063 = vmatpush.bf16.msra.mxu0 %v2692
    %3064 = vmatmul.bf16.gmra.mxu0 %v2303
    %v3065 = vpop.f32.mrf.mxu0
    %v3066 = vadd.f32 0.0, %v3065
    %v3067 = vpop.f32.mrf.mxu0
    %v3068 = vadd.f32 0.0, %v3067
    %3069 = vdwg.mxu0
    %3070 = vmatpush.bf16.msra.mxu0 %v2812
    %3071 = vmatpush.bf16.msra.mxu0 %v2804
    %3072 = vmatpush.bf16.msra.mxu0 %v2796
    %3073 = vmatpush.bf16.msra.mxu0 %v2788
    %3074 = vmatpush.bf16.msra.mxu0 %v2780
    %3075 = vmatpush.bf16.msra.mxu0 %v2772
    %3076 = vmatpush.bf16.msra.mxu0 %v2764
    %3077 = vmatpush.bf16.msra.mxu0 %v2756
    %3078 = vmatmul.bf16.gmra.mxu0 %v2303
    %v3079 = vpop.f32.mrf.mxu0
    %v3080 = vadd.f32 %v3066, %v3079
    %v3081 = vpop.f32.mrf.mxu0
    %v3082 = vadd.f32 %v3068, %v3081
    %3083 = vdwg.mxu0
    %3084 = vmatpush.bf16.msra.mxu0 %v2749
    %3085 = vmatpush.bf16.msra.mxu0 %v2741
    %3086 = vmatpush.bf16.msra.mxu0 %v2733
    %3087 = vmatpush.bf16.msra.mxu0 %v2725
    %3088 = vmatpush.bf16.msra.mxu0 %v2717
    %3089 = vmatpush.bf16.msra.mxu0 %v2709
    %3090 = vmatpush.bf16.msra.mxu0 %v2701
    %3091 = vmatpush.bf16.msra.mxu0 %v2693
    %3092 = vmatmul.bf16.gmra.mxu0 %v2303
    %v3093 = vpop.f32.mrf.mxu0
    %v3094 = vadd.f32 0.0, %v3093
    %v3095 = vpop.f32.mrf.mxu0
    %v3096 = vadd.f32 0.0, %v3095
    %3097 = vdwg.mxu0
    %3098 = vmatpush.bf16.msra.mxu0 %v2813
    %3099 = vmatpush.bf16.msra.mxu0 %v2805
    %3100 = vmatpush.bf16.msra.mxu0 %v2797
    %3101 = vmatpush.bf16.msra.mxu0 %v2789
    %3102 = vmatpush.bf16.msra.mxu0 %v2781
    %3103 = vmatpush.bf16.msra.mxu0 %v2773
    %3104 = vmatpush.bf16.msra.mxu0 %v2765
    %3105 = vmatpush.bf16.msra.mxu0 %v2757
    %3106 = vmatmul.bf16.gmra.mxu0 %v2303
    %v3107 = vpop.f32.mrf.mxu0
    %v3108 = vadd.f32 %v3094, %v3107
    %v3109 = vpop.f32.mrf.mxu0
    %v3110 = vadd.f32 %v3096, %v3109
    %3111 = vdwg.mxu0
    %3112 = vmatpush.bf16.msra.mxu0 %v2750
    %3113 = vmatpush.bf16.msra.mxu0 %v2742
    %3114 = vmatpush.bf16.msra.mxu0 %v2734
    %3115 = vmatpush.bf16.msra.mxu0 %v2726
    %3116 = vmatpush.bf16.msra.mxu0 %v2718
    %3117 = vmatpush.bf16.msra.mxu0 %v2710
    %3118 = vmatpush.bf16.msra.mxu0 %v2702
    %3119 = vmatpush.bf16.msra.mxu0 %v2694
    %3120 = vmatmul.bf16.gmra.mxu0 %v2303
    %v3121 = vpop.f32.mrf.mxu0
    %v3122 = vadd.f32 0.0, %v3121
    %v3123 = vpop.f32.mrf.mxu0
    %v3124 = vadd.f32 0.0, %v3123
    %3125 = vdwg.mxu0
    %3126 = vmatpush.bf16.msra.mxu0 %v2814
    %3127 = vmatpush.bf16.msra.mxu0 %v2806
    %3128 = vmatpush.bf16.msra.mxu0 %v2798
    %3129 = vmatpush.bf16.msra.mxu0 %v2790
    %3130 = vmatpush.bf16.msra.mxu0 %v2782
    %3131 = vmatpush.bf16.msra.mxu0 %v2774
    %3132 = vmatpush.bf16.msra.mxu0 %v2766
    %3133 = vmatpush.bf16.msra.mxu0 %v2758
    %3134 = vmatmul.bf16.gmra.mxu0 %v2303
    %v3135 = vpop.f32.mrf.mxu0
    %v3136 = vadd.f32 %v3122, %v3135
    %v3137 = vpop.f32.mrf.mxu0
    %v3138 = vadd.f32 %v3124, %v3137
    %3139 = vdwg.mxu0
    %3140 = vmatpush.bf16.msra.mxu0 %v2751
    %3141 = vmatpush.bf16.msra.mxu0 %v2743
    %3142 = vmatpush.bf16.msra.mxu0 %v2735
    %3143 = vmatpush.bf16.msra.mxu0 %v2727
    %3144 = vmatpush.bf16.msra.mxu0 %v2719
    %3145 = vmatpush.bf16.msra.mxu0 %v2711
    %3146 = vmatpush.bf16.msra.mxu0 %v2703
    %3147 = vmatpush.bf16.msra.mxu0 %v2695
    %3148 = vmatmul.bf16.gmra.mxu0 %v2303
    %v3149 = vpop.f32.mrf.mxu0
    %v3150 = vadd.f32 0.0, %v3149
    %v3151 = vpop.f32.mrf.mxu0
    %v3152 = vadd.f32 0.0, %v3151
    %3153 = vdwg.mxu0
    %3154 = vmatpush.bf16.msra.mxu0 %v2815
    %3155 = vmatpush.bf16.msra.mxu0 %v2807
    %3156 = vmatpush.bf16.msra.mxu0 %v2799
    %3157 = vmatpush.bf16.msra.mxu0 %v2791
    %3158 = vmatpush.bf16.msra.mxu0 %v2783
    %3159 = vmatpush.bf16.msra.mxu0 %v2775
    %3160 = vmatpush.bf16.msra.mxu0 %v2767
    %3161 = vmatpush.bf16.msra.mxu0 %v2759
    %3162 = vmatmul.bf16.gmra.mxu0 %v2303
    %v3163 = vpop.f32.mrf.mxu0
    %v3164 = vadd.f32 %v3150, %v3163
    %v3165 = vpop.f32.mrf.mxu0
    %v3166 = vadd.f32 %v3152, %v3165
    %3167 = vdwg.mxu0
    %v3168 = vld [vmem:[#allocation2] sm:$0xff]
    %v3169 = vld [vmem:[#allocation2 + $0x8] sm:$0xff]
    %v3170 = vld [vmem:[#allocation2 + $0x10] sm:$0xff]
    %v3171 = vld [vmem:[#allocation2 + $0x18] sm:$0xff]
    %v3172 = vld [vmem:[#allocation2 + $0x40] sm:$0xff]
    %v3173 = vld [vmem:[#allocation2 + $0x48] sm:$0xff]
    %v3174 = vld [vmem:[#allocation2 + $0x50] sm:$0xff]
    %v3175 = vld [vmem:[#allocation2 + $0x58] sm:$0xff]
    %v3176 = vadd.f32 %v3168, %v2968
    %v3177 = vadd.f32 %v3169, %v2996
    %v3178 = vadd.f32 %v3170, %v3024
    %v3179 = vadd.f32 %v3171, %v3052
    %v3180 = vadd.f32 %v3172, %v2970
    %v3181 = vadd.f32 %v3173, %v2998
    %v3182 = vadd.f32 %v3174, %v3026
    %v3183 = vadd.f32 %v3175, %v3054
    %s3184 = scalar_lea.vmem [#allocation2], 896
    %v3185 = vld [vmem:[%s3184 + $0x20] sm:$0xff]
    %v3186 = vld [vmem:[%s3184 + $0x28] sm:$0xff]
    %v3187 = vld [vmem:[%s3184 + $0x30] sm:$0xff]
    %v3188 = vld [vmem:[%s3184 + $0x38] sm:$0xff]
    %v3189 = vld [vmem:[%s3184 + $0x60] sm:$0xff]
    %v3190 = vld [vmem:[%s3184 + $0x68] sm:$0xff]
    %v3191 = vld [vmem:[%s3184 + $0x70] sm:$0xff]
    %v3192 = vld [vmem:[%s3184 + $0x78] sm:$0xff]
    %v3193 = vadd.f32 %v3185, %v3080
    %v3194 = vadd.f32 %v3186, %v3108
    %v3195 = vadd.f32 %v3187, %v3136
    %v3196 = vadd.f32 %v3188, %v3164
    %v3197 = vadd.f32 %v3189, %v3082
    %v3198 = vadd.f32 %v3190, %v3110
    %v3199 = vadd.f32 %v3191, %v3138
    %v3200 = vadd.f32 %v3192, %v3166
    %v3201 = vmul.f32 %v3176, 0.5
    %v3202 = vmul.f32 %v3177, 0.5
    %v3203 = vmul.f32 %v3178, 0.5
    %v3204 = vmul.f32 %v3180, 0.5
    %v3205 = vmul.f32 %v3181, 0.5
    %v3206 = vmul.f32 %v3182, 0.5
    %v3207 = vtanh.pop %v3201
    %v3208 = vtanh.pop %v3202
    %v3209 = vtanh.pop %v3203
    %v3210 = vtanh.pop %v3204
    %v3211 = vtanh.pop %v3205
    %v3212 = vtanh.pop %v3206
    %v3213 = vmul.f32 %v3207, 0.5
    %v3214 = vmul.f32 %v3208, 0.5
    %v3215 = vmul.f32 %v3209, 0.5
    %v3216 = vmul.f32 %v3210, 0.5
    %v3217 = vmul.f32 %v3211, 0.5
    %v3218 = vmul.f32 %v3212, 0.5
    %v3219 = vadd.f32 %v3213, 0.5
    %v3220 = vadd.f32 %v3214, 0.5
    %v3221 = vadd.f32 %v3215, 0.5
    %v3222 = vadd.f32 %v3216, 0.5
    %v3223 = vadd.f32 %v3217, 0.5
    %v3224 = vadd.f32 %v3218, 0.5
    %v3225 = vtanh.pop %v3179
    %v3226 = vtanh.pop %v3183
    %v3227 = vmul.f32 %v3220, 0.0
    %v3228 = vmul.f32 %v3223, 0.0
    %v3229 = vmul.f32 %v3219, %v3225
    %v3230 = vmul.f32 %v3222, %v3226
    %v3231 = vadd.f32 %v3227, %v3229
    %v3232 = vadd.f32 %v3228, %v3230
    %v3233 = vtanh.pop %v3231
    %v3234 = vtanh.pop %v3232
    %v3235 = vmul.f32 %v3221, %v3233
    %v3236 = vmul.f32 %v3224, %v3234
    %v3237 = vmul.f32 %v3193, 0.5
    %v3238 = vmul.f32 %v3194, 0.5
    %v3239 = vmul.f32 %v3195, 0.5
    %v3240 = vmul.f32 %v3197, 0.5
    %v3241 = vmul.f32 %v3198, 0.5
    %v3242 = vmul.f32 %v3199, 0.5
    %v3243 = vtanh.pop %v3237
    %v3244 = vtanh.pop %v3238
    %v3245 = vtanh.pop %v3239
    %v3246 = vtanh.pop %v3240
    %v3247 = vtanh.pop %v3241
    %v3248 = vtanh.pop %v3242
    %v3249 = vmul.f32 %v3243, 0.5
    %v3250 = vmul.f32 %v3244, 0.5
    %v3251 = vmul.f32 %v3245, 0.5
    %v3252 = vmul.f32 %v3246, 0.5
    %v3253 = vmul.f32 %v3247, 0.5
    %v3254 = vmul.f32 %v3248, 0.5
    %v3255 = vadd.f32 %v3249, 0.5
    %v3256 = vadd.f32 %v3250, 0.5
    %v3257 = vadd.f32 %v3251, 0.5
    %v3258 = vadd.f32 %v3252, 0.5
    %v3259 = vadd.f32 %v3253, 0.5
    %v3260 = vadd.f32 %v3254, 0.5
    %v3261 = vtanh.pop %v3196
    %v3262 = vtanh.pop %v3200
    %v3263 = vmul.f32 %v3256, 0.0
    %v3264 = vmul.f32 %v3259, 0.0
    %v3265 = vmul.f32 %v3255, %v3261
    %v3266 = vmul.f32 %v3258, %v3262
    %v3267 = vadd.f32 %v3263, %v3265
    %v3268 = vadd.f32 %v3264, %v3266
    %v3269 = vtanh.pop %v3267
    %v3270 = vtanh.pop %v3268
    %v3271 = vmul.f32 %v3257, %v3269
    %v3272 = vmul.f32 %v3260, %v3270
    %v3273 = vpack.c.bf16 %v3236, %v3235
    %v3274 = vpack.c.bf16 %v3272, %v3271
    %3275 = vmatpush.bf16.msra.mxu0 %v2744
    %3276 = vmatpush.bf16.msra.mxu0 %v2736
    %3277 = vmatpush.bf16.msra.mxu0 %v2728
    %3278 = vmatpush.bf16.msra.mxu0 %v2720
    %3279 = vmatpush.bf16.msra.mxu0 %v2712
    %3280 = vmatpush.bf16.msra.mxu0 %v2704
    %3281 = vmatpush.bf16.msra.mxu0 %v2696
    %3282 = vmatpush.bf16.msra.mxu0 %v2688
    %3283 = vmatmul.bf16.gmra.mxu0 %v3273
    %v3284 = vpop.f32.mrf.mxu0
    %v3285 = vadd.f32 0.0, %v3284
    %v3286 = vpop.f32.mrf.mxu0
    %v3287 = vadd.f32 0.0, %v3286
    %3288 = vdwg.mxu0
    %3289 = vmatpush.bf16.msra.mxu0 %v2808
    %3290 = vmatpush.bf16.msra.mxu0 %v2800
    %3291 = vmatpush.bf16.msra.mxu0 %v2792
    %3292 = vmatpush.bf16.msra.mxu0 %v2784
    %3293 = vmatpush.bf16.msra.mxu0 %v2776
    %3294 = vmatpush.bf16.msra.mxu0 %v2768
    %3295 = vmatpush.bf16.msra.mxu0 %v2760
    %3296 = vmatpush.bf16.msra.mxu0 %v2752
    %3297 = vmatmul.bf16.gmra.mxu0 %v3274
    %v3298 = vpop.f32.mrf.mxu0
    %v3299 = vadd.f32 %v3285, %v3298
    %v3300 = vpop.f32.mrf.mxu0
    %v3301 = vadd.f32 %v3287, %v3300
    %3302 = vdwg.mxu0
    %3303 = vmatpush.bf16.msra.mxu0 %v2745
    %3304 = vmatpush.bf16.msra.mxu0 %v2737
    %3305 = vmatpush.bf16.msra.mxu0 %v2729
    %3306 = vmatpush.bf16.msra.mxu0 %v2721
    %3307 = vmatpush.bf16.msra.mxu0 %v2713
    %3308 = vmatpush.bf16.msra.mxu0 %v2705
    %3309 = vmatpush.bf16.msra.mxu0 %v2697
    %3310 = vmatpush.bf16.msra.mxu0 %v2689
    %3311 = vmatmul.bf16.gmra.mxu0 %v3273
    %v3312 = vpop.f32.mrf.mxu0
    %v3313 = vadd.f32 0.0, %v3312
    %v3314 = vpop.f32.mrf.mxu0
    %v3315 = vadd.f32 0.0, %v3314
    %3316 = vdwg.mxu0
    %3317 = vmatpush.bf16.msra.mxu0 %v2809
    %3318 = vmatpush.bf16.msra.mxu0 %v2801
    %3319 = vmatpush.bf16.msra.mxu0 %v2793
    %3320 = vmatpush.bf16.msra.mxu0 %v2785
    %3321 = vmatpush.bf16.msra.mxu0 %v2777
    %3322 = vmatpush.bf16.msra.mxu0 %v2769
    %3323 = vmatpush.bf16.msra.mxu0 %v2761
    %3324 = vmatpush.bf16.msra.mxu0 %v2753
    %3325 = vmatmul.bf16.gmra.mxu0 %v3274
    %v3326 = vpop.f32.mrf.mxu0
    %v3327 = vadd.f32 %v3313, %v3326
    %v3328 = vpop.f32.mrf.mxu0
    %v3329 = vadd.f32 %v3315, %v3328
    %3330 = vdwg.mxu0
    %3331 = vmatpush.bf16.msra.mxu0 %v2746
    %3332 = vmatpush.bf16.msra.mxu0 %v2738
    %3333 = vmatpush.bf16.msra.mxu0 %v2730
    %3334 = vmatpush.bf16.msra.mxu0 %v2722
    %3335 = vmatpush.bf16.msra.mxu0 %v2714
    %3336 = vmatpush.bf16.msra.mxu0 %v2706
    %3337 = vmatpush.bf16.msra.mxu0 %v2698
    %3338 = vmatpush.bf16.msra.mxu0 %v2690
    %3339 = vmatmul.bf16.gmra.mxu0 %v3273
    %v3340 = vpop.f32.mrf.mxu0
    %v3341 = vadd.f32 0.0, %v3340
    %v3342 = vpop.f32.mrf.mxu0
    %v3343 = vadd.f32 0.0, %v3342
    %3344 = vdwg.mxu0
    %3345 = vmatpush.bf16.msra.mxu0 %v2810
    %3346 = vmatpush.bf16.msra.mxu0 %v2802
    %3347 = vmatpush.bf16.msra.mxu0 %v2794
    %3348 = vmatpush.bf16.msra.mxu0 %v2786
    %3349 = vmatpush.bf16.msra.mxu0 %v2778
    %3350 = vmatpush.bf16.msra.mxu0 %v2770
    %3351 = vmatpush.bf16.msra.mxu0 %v2762
    %3352 = vmatpush.bf16.msra.mxu0 %v2754
    %3353 = vmatmul.bf16.gmra.mxu0 %v3274
    %v3354 = vpop.f32.mrf.mxu0
    %v3355 = vadd.f32 %v3341, %v3354
    %v3356 = vpop.f32.mrf.mxu0
    %v3357 = vadd.f32 %v3343, %v3356
    %3358 = vdwg.mxu0
    %3359 = vmatpush.bf16.msra.mxu0 %v2747
    %3360 = vmatpush.bf16.msra.mxu0 %v2739
    %3361 = vmatpush.bf16.msra.mxu0 %v2731
    %3362 = vmatpush.bf16.msra.mxu0 %v2723
    %3363 = vmatpush.bf16.msra.mxu0 %v2715
    %3364 = vmatpush.bf16.msra.mxu0 %v2707
    %3365 = vmatpush.bf16.msra.mxu0 %v2699
    %3366 = vmatpush.bf16.msra.mxu0 %v2691
    %3367 = vmatmul.bf16.gmra.mxu0 %v3273
    %v3368 = vpop.f32.mrf.mxu0
    %v3369 = vadd.f32 0.0, %v3368
    %v3370 = vpop.f32.mrf.mxu0
    %v3371 = vadd.f32 0.0, %v3370
    %3372 = vdwg.mxu0
    %3373 = vmatpush.bf16.msra.mxu0 %v2811
    %3374 = vmatpush.bf16.msra.mxu0 %v2803
    %3375 = vmatpush.bf16.msra.mxu0 %v2795
    %3376 = vmatpush.bf16.msra.mxu0 %v2787
    %3377 = vmatpush.bf16.msra.mxu0 %v2779
    %3378 = vmatpush.bf16.msra.mxu0 %v2771
    %3379 = vmatpush.bf16.msra.mxu0 %v2763
    %3380 = vmatpush.bf16.msra.mxu0 %v2755
    %3381 = vmatmul.bf16.gmra.mxu0 %v3274
    %v3382 = vpop.f32.mrf.mxu0
    %v3383 = vadd.f32 %v3369, %v3382
    %v3384 = vpop.f32.mrf.mxu0
    %v3385 = vadd.f32 %v3371, %v3384
    %3386 = vdwg.mxu0
    %3387 = vmatpush.bf16.msra.mxu0 %v2748
    %3388 = vmatpush.bf16.msra.mxu0 %v2740
    %3389 = vmatpush.bf16.msra.mxu0 %v2732
    %3390 = vmatpush.bf16.msra.mxu0 %v2724
    %3391 = vmatpush.bf16.msra.mxu0 %v2716
    %3392 = vmatpush.bf16.msra.mxu0 %v2708
    %3393 = vmatpush.bf16.msra.mxu0 %v2700
    %3394 = vmatpush.bf16.msra.mxu0 %v2692
    %3395 = vmatmul.bf16.gmra.mxu0 %v3273
    %v3396 = vpop.f32.mrf.mxu0
    %v3397 = vadd.f32 0.0, %v3396
    %v3398 = vpop.f32.mrf.mxu0
    %v3399 = vadd.f32 0.0, %v3398
    %3400 = vdwg.mxu0
    %3401 = vmatpush.bf16.msra.mxu0 %v2812
    %3402 = vmatpush.bf16.msra.mxu0 %v2804
    %3403 = vmatpush.bf16.msra.mxu0 %v2796
    %3404 = vmatpush.bf16.msra.mxu0 %v2788
    %3405 = vmatpush.bf16.msra.mxu0 %v2780
    %3406 = vmatpush.bf16.msra.mxu0 %v2772
    %3407 = vmatpush.bf16.msra.mxu0 %v2764
    %3408 = vmatpush.bf16.msra.mxu0 %v2756
    %3409 = vmatmul.bf16.gmra.mxu0 %v3274
    %v3410 = vpop.f32.mrf.mxu0
    %v3411 = vadd.f32 %v3397, %v3410
    %v3412 = vpop.f32.mrf.mxu0
    %v3413 = vadd.f32 %v3399, %v3412
    %3414 = vdwg.mxu0
    %3415 = vmatpush.bf16.msra.mxu0 %v2749
    %3416 = vmatpush.bf16.msra.mxu0 %v2741
    %3417 = vmatpush.bf16.msra.mxu0 %v2733
    %3418 = vmatpush.bf16.msra.mxu0 %v2725
    %3419 = vmatpush.bf16.msra.mxu0 %v2717
    %3420 = vmatpush.bf16.msra.mxu0 %v2709
    %3421 = vmatpush.bf16.msra.mxu0 %v2701
    %3422 = vmatpush.bf16.msra.mxu0 %v2693
    %3423 = vmatmul.bf16.gmra.mxu0 %v3273
    %v3424 = vpop.f32.mrf.mxu0
    %v3425 = vadd.f32 0.0, %v3424
    %v3426 = vpop.f32.mrf.mxu0
    %v3427 = vadd.f32 0.0, %v3426
    %3428 = vdwg.mxu0
    %3429 = vmatpush.bf16.msra.mxu0 %v2813
    %3430 = vmatpush.bf16.msra.mxu0 %v2805
    %3431 = vmatpush.bf16.msra.mxu0 %v2797
    %3432 = vmatpush.bf16.msra.mxu0 %v2789
    %3433 = vmatpush.bf16.msra.mxu0 %v2781
    %3434 = vmatpush.bf16.msra.mxu0 %v2773
    %3435 = vmatpush.bf16.msra.mxu0 %v2765
    %3436 = vmatpush.bf16.msra.mxu0 %v2757
    %3437 = vmatmul.bf16.gmra.mxu0 %v3274
    %v3438 = vpop.f32.mrf.mxu0
    %v3439 = vadd.f32 %v3425, %v3438
    %v3440 = vpop.f32.mrf.mxu0
    %v3441 = vadd.f32 %v3427, %v3440
    %3442 = vdwg.mxu0
    %3443 = vmatpush.bf16.msra.mxu0 %v2750
    %3444 = vmatpush.bf16.msra.mxu0 %v2742
    %3445 = vmatpush.bf16.msra.mxu0 %v2734
    %3446 = vmatpush.bf16.msra.mxu0 %v2726
    %3447 = vmatpush.bf16.msra.mxu0 %v2718
    %3448 = vmatpush.bf16.msra.mxu0 %v2710
    %3449 = vmatpush.bf16.msra.mxu0 %v2702
    %3450 = vmatpush.bf16.msra.mxu0 %v2694
    %3451 = vmatmul.bf16.gmra.mxu0 %v3273
    %v3452 = vpop.f32.mrf.mxu0
    %v3453 = vadd.f32 0.0, %v3452
    %v3454 = vpop.f32.mrf.mxu0
    %v3455 = vadd.f32 0.0, %v3454
    %3456 = vdwg.mxu0
    %3457 = vmatpush.bf16.msra.mxu0 %v2814
    %3458 = vmatpush.bf16.msra.mxu0 %v2806
    %3459 = vmatpush.bf16.msra.mxu0 %v2798
    %3460 = vmatpush.bf16.msra.mxu0 %v2790
    %3461 = vmatpush.bf16.msra.mxu0 %v2782
    %3462 = vmatpush.bf16.msra.mxu0 %v2774
    %3463 = vmatpush.bf16.msra.mxu0 %v2766
    %3464 = vmatpush.bf16.msra.mxu0 %v2758
    %3465 = vmatmul.bf16.gmra.mxu0 %v3274
    %v3466 = vpop.f32.mrf.mxu0
    %v3467 = vadd.f32 %v3453, %v3466
    %v3468 = vpop.f32.mrf.mxu0
    %v3469 = vadd.f32 %v3455, %v3468
    %3470 = vdwg.mxu0
    %3471 = vmatpush.bf16.msra.mxu0 %v2751
    %3472 = vmatpush.bf16.msra.mxu0 %v2743
    %3473 = vmatpush.bf16.msra.mxu0 %v2735
    %3474 = vmatpush.bf16.msra.mxu0 %v2727
    %3475 = vmatpush.bf16.msra.mxu0 %v2719
    %3476 = vmatpush.bf16.msra.mxu0 %v2711
    %3477 = vmatpush.bf16.msra.mxu0 %v2703
    %3478 = vmatpush.bf16.msra.mxu0 %v2695
    %3479 = vmatmul.bf16.gmra.mxu0 %v3273
    %v3480 = vpop.f32.mrf.mxu0
    %v3481 = vadd.f32 0.0, %v3480
    %v3482 = vpop.f32.mrf.mxu0
    %v3483 = vadd.f32 0.0, %v3482
    %3484 = vdwg.mxu0
    %3485 = vmatpush.bf16.msra.mxu0 %v2815
    %3486 = vmatpush.bf16.msra.mxu0 %v2807
    %3487 = vmatpush.bf16.msra.mxu0 %v2799
    %3488 = vmatpush.bf16.msra.mxu0 %v2791
    %3489 = vmatpush.bf16.msra.mxu0 %v2783
    %3490 = vmatpush.bf16.msra.mxu0 %v2775
    %3491 = vmatpush.bf16.msra.mxu0 %v2767
    %3492 = vmatpush.bf16.msra.mxu0 %v2759
    %3493 = vmatmul.bf16.gmra.mxu0 %v3274
    %v3494 = vpop.f32.mrf.mxu0
    %v3495 = vadd.f32 %v3481, %v3494
    %v3496 = vpop.f32.mrf.mxu0
    %v3497 = vadd.f32 %v3483, %v3496
    %3498 = vdwg.mxu0
    %s3499 = scalar_lea.vmem [#allocation2], 128
    %v3500 = vld [vmem:[%s3499] sm:$0xff]
    %v3501 = vld [vmem:[%s3499 + $0x8] sm:$0xff]
    %v3502 = vld [vmem:[%s3499 + $0x10] sm:$0xff]
    %v3503 = vld [vmem:[%s3499 + $0x18] sm:$0xff]
    %v3504 = vld [vmem:[%s3499 + $0x40] sm:$0xff]
    %v3505 = vld [vmem:[%s3499 + $0x48] sm:$0xff]
    %v3506 = vld [vmem:[%s3499 + $0x50] sm:$0xff]
    %v3507 = vld [vmem:[%s3499 + $0x58] sm:$0xff]
    %v3508 = vadd.f32 %v3500, %v3299
    %v3509 = vadd.f32 %v3501, %v3327
    %v3510 = vadd.f32 %v3502, %v3355
    %v3511 = vadd.f32 %v3503, %v3383
    %v3512 = vadd.f32 %v3504, %v3301
    %v3513 = vadd.f32 %v3505, %v3329
    %v3514 = vadd.f32 %v3506, %v3357
    %v3515 = vadd.f32 %v3507, %v3385
    %s3516 = scalar_lea.vmem [#allocation2], 768
    %v3517 = vld [vmem:[%s3516 + $0x20] sm:$0xff]
    %v3518 = vld [vmem:[%s3516 + $0x28] sm:$0xff]
    %v3519 = vld [vmem:[%s3516 + $0x30] sm:$0xff]
    %v3520 = vld [vmem:[%s3516 + $0x38] sm:$0xff]
    %v3521 = vld [vmem:[%s3516 + $0x60] sm:$0xff]
    %v3522 = vld [vmem:[%s3516 + $0x68] sm:$0xff]
    %v3523 = vld [vmem:[%s3516 + $0x70] sm:$0xff]
    %v3524 = vld [vmem:[%s3516 + $0x78] sm:$0xff]
    %v3525 = vadd.f32 %v3517, %v3411
    %v3526 = vadd.f32 %v3518, %v3439
    %v3527 = vadd.f32 %v3519, %v3467
    %v3528 = vadd.f32 %v3520, %v3495
    %v3529 = vadd.f32 %v3521, %v3413
    %v3530 = vadd.f32 %v3522, %v3441
    %v3531 = vadd.f32 %v3523, %v3469
    %v3532 = vadd.f32 %v3524, %v3497
    %v3533 = vmul.f32 %v3508, 0.5
    %v3534 = vmul.f32 %v3509, 0.5
    %v3535 = vmul.f32 %v3510, 0.5
    %v3536 = vmul.f32 %v3512, 0.5
    %v3537 = vmul.f32 %v3513, 0.5
    %v3538 = vmul.f32 %v3514, 0.5
    %v3539 = vtanh.pop %v3533
    %v3540 = vtanh.pop %v3534
    %v3541 = vtanh.pop %v3535
    %v3542 = vtanh.pop %v3536
    %v3543 = vtanh.pop %v3537
    %v3544 = vtanh.pop %v3538
    %v3545 = vmul.f32 %v3539, 0.5
    %v3546 = vmul.f32 %v3540, 0.5
    %v3547 = vmul.f32 %v3541, 0.5
    %v3548 = vmul.f32 %v3542, 0.5
    %v3549 = vmul.f32 %v3543, 0.5
    %v3550 = vmul.f32 %v3544, 0.5
    %v3551 = vadd.f32 %v3545, 0.5
    %v3552 = vadd.f32 %v3546, 0.5
    %v3553 = vadd.f32 %v3547, 0.5
    %v3554 = vadd.f32 %v3548, 0.5
    %v3555 = vadd.f32 %v3549, 0.5
    %v3556 = vadd.f32 %v3550, 0.5
    %v3557 = vtanh.pop %v3511
    %v3558 = vtanh.pop %v3515
    %v3559 = vmul.f32 %v3552, %v3231
    %v3560 = vmul.f32 %v3555, %v3232
    %v3561 = vmul.f32 %v3551, %v3557
    %v3562 = vmul.f32 %v3554, %v3558
    %v3563 = vadd.f32 %v3559, %v3561
    %v3564 = vadd.f32 %v3560, %v3562
    %v3565 = vtanh.pop %v3563
    %v3566 = vtanh.pop %v3564
    %v3567 = vmul.f32 %v3553, %v3565
    %v3568 = vmul.f32 %v3556, %v3566
    %v3569 = vmul.f32 %v3525, 0.5
    %v3570 = vmul.f32 %v3526, 0.5
    %v3571 = vmul.f32 %v3527, 0.5
    %v3572 = vmul.f32 %v3529, 0.5
    %v3573 = vmul.f32 %v3530, 0.5
    %v3574 = vmul.f32 %v3531, 0.5
    %v3575 = vtanh.pop %v3569
    %v3576 = vtanh.pop %v3570
    %v3577 = vtanh.pop %v3571
    %v3578 = vtanh.pop %v3572
    %v3579 = vtanh.pop %v3573
    %v3580 = vtanh.pop %v3574
    %v3581 = vmul.f32 %v3575, 0.5
    %v3582 = vmul.f32 %v3576, 0.5
    %v3583 = vmul.f32 %v3577, 0.5
    %v3584 = vmul.f32 %v3578, 0.5
    %v3585 = vmul.f32 %v3579, 0.5
    %v3586 = vmul.f32 %v3580, 0.5
    %v3587 = vadd.f32 %v3581, 0.5
    %v3588 = vadd.f32 %v3582, 0.5
    %v3589 = vadd.f32 %v3583, 0.5
    %v3590 = vadd.f32 %v3584, 0.5
    %v3591 = vadd.f32 %v3585, 0.5
    %v3592 = vadd.f32 %v3586, 0.5
    %v3593 = vtanh.pop %v3528
    %v3594 = vtanh.pop %v3532
    %v3595 = vmul.f32 %v3588, %v3267
    %v3596 = vmul.f32 %v3591, %v3268
    %v3597 = vmul.f32 %v3587, %v3593
    %v3598 = vmul.f32 %v3590, %v3594
    %v3599 = vadd.f32 %v3595, %v3597
    %v3600 = vadd.f32 %v3596, %v3598
    %v3601 = vtanh.pop %v3599
    %v3602 = vtanh.pop %v3600
    %v3603 = vmul.f32 %v3589, %v3601
    %v3604 = vmul.f32 %v3592, %v3602
    %v3605 = vpack.c.bf16 %v3568, %v3567
    %v3606 = vpack.c.bf16 %v3604, %v3603
    %3607 = vmatpush.bf16.msra.mxu0 %v2744
    %3608 = vmatpush.bf16.msra.mxu0 %v2736
    %3609 = vmatpush.bf16.msra.mxu0 %v2728
    %3610 = vmatpush.bf16.msra.mxu0 %v2720
    %3611 = vmatpush.bf16.msra.mxu0 %v2712
    %3612 = vmatpush.bf16.msra.mxu0 %v2704
    %3613 = vmatpush.bf16.msra.mxu0 %v2696
    %3614 = vmatpush.bf16.msra.mxu0 %v2688
    %3615 = vmatmul.bf16.gmra.mxu0 %v3605
    %v3616 = vpop.f32.mrf.mxu0
    %v3617 = vadd.f32 0.0, %v3616
    %v3618 = vpop.f32.mrf.mxu0
    %v3619 = vadd.f32 0.0, %v3618
    %3620 = vdwg.mxu0
    %3621 = vmatpush.bf16.msra.mxu0 %v2808
    %3622 = vmatpush.bf16.msra.mxu0 %v2800
    %3623 = vmatpush.bf16.msra.mxu0 %v2792
    %3624 = vmatpush.bf16.msra.mxu0 %v2784
    %3625 = vmatpush.bf16.msra.mxu0 %v2776
    %3626 = vmatpush.bf16.msra.mxu0 %v2768
    %3627 = vmatpush.bf16.msra.mxu0 %v2760
    %3628 = vmatpush.bf16.msra.mxu0 %v2752
    %3629 = vmatmul.bf16.gmra.mxu0 %v3606
    %v3630 = vpop.f32.mrf.mxu0
    %v3631 = vadd.f32 %v3617, %v3630
    %v3632 = vpop.f32.mrf.mxu0
    %v3633 = vadd.f32 %v3619, %v3632
    %3634 = vdwg.mxu0
    %3635 = vmatpush.bf16.msra.mxu0 %v2745
    %3636 = vmatpush.bf16.msra.mxu0 %v2737
    %3637 = vmatpush.bf16.msra.mxu0 %v2729
    %3638 = vmatpush.bf16.msra.mxu0 %v2721
    %3639 = vmatpush.bf16.msra.mxu0 %v2713
    %3640 = vmatpush.bf16.msra.mxu0 %v2705
    %3641 = vmatpush.bf16.msra.mxu0 %v2697
    %3642 = vmatpush.bf16.msra.mxu0 %v2689
    %3643 = vmatmul.bf16.gmra.mxu0 %v3605
    %v3644 = vpop.f32.mrf.mxu0
    %v3645 = vadd.f32 0.0, %v3644
    %v3646 = vpop.f32.mrf.mxu0
    %v3647 = vadd.f32 0.0, %v3646
    %3648 = vdwg.mxu0
    %3649 = vmatpush.bf16.msra.mxu0 %v2809
    %3650 = vmatpush.bf16.msra.mxu0 %v2801
    %3651 = vmatpush.bf16.msra.mxu0 %v2793
    %3652 = vmatpush.bf16.msra.mxu0 %v2785
    %3653 = vmatpush.bf16.msra.mxu0 %v2777
    %3654 = vmatpush.bf16.msra.mxu0 %v2769
    %3655 = vmatpush.bf16.msra.mxu0 %v2761
    %3656 = vmatpush.bf16.msra.mxu0 %v2753
    %3657 = vmatmul.bf16.gmra.mxu0 %v3606
    %v3658 = vpop.f32.mrf.mxu0
    %v3659 = vadd.f32 %v3645, %v3658
    %v3660 = vpop.f32.mrf.mxu0
    %v3661 = vadd.f32 %v3647, %v3660
    %3662 = vdwg.mxu0
    %3663 = vmatpush.bf16.msra.mxu0 %v2746
    %3664 = vmatpush.bf16.msra.mxu0 %v2738
    %3665 = vmatpush.bf16.msra.mxu0 %v2730
    %3666 = vmatpush.bf16.msra.mxu0 %v2722
    %3667 = vmatpush.bf16.msra.mxu0 %v2714
    %3668 = vmatpush.bf16.msra.mxu0 %v2706
    %3669 = vmatpush.bf16.msra.mxu0 %v2698
    %3670 = vmatpush.bf16.msra.mxu0 %v2690
    %3671 = vmatmul.bf16.gmra.mxu0 %v3605
    %v3672 = vpop.f32.mrf.mxu0
    %v3673 = vadd.f32 0.0, %v3672
    %v3674 = vpop.f32.mrf.mxu0
    %v3675 = vadd.f32 0.0, %v3674
    %3676 = vdwg.mxu0
    %3677 = vmatpush.bf16.msra.mxu0 %v2810
    %3678 = vmatpush.bf16.msra.mxu0 %v2802
    %3679 = vmatpush.bf16.msra.mxu0 %v2794
    %3680 = vmatpush.bf16.msra.mxu0 %v2786
    %3681 = vmatpush.bf16.msra.mxu0 %v2778
    %3682 = vmatpush.bf16.msra.mxu0 %v2770
    %3683 = vmatpush.bf16.msra.mxu0 %v2762
    %3684 = vmatpush.bf16.msra.mxu0 %v2754
    %3685 = vmatmul.bf16.gmra.mxu0 %v3606
    %v3686 = vpop.f32.mrf.mxu0
    %v3687 = vadd.f32 %v3673, %v3686
    %v3688 = vpop.f32.mrf.mxu0
    %v3689 = vadd.f32 %v3675, %v3688
    %3690 = vdwg.mxu0
    %3691 = vmatpush.bf16.msra.mxu0 %v2747
    %3692 = vmatpush.bf16.msra.mxu0 %v2739
    %3693 = vmatpush.bf16.msra.mxu0 %v2731
    %3694 = vmatpush.bf16.msra.mxu0 %v2723
    %3695 = vmatpush.bf16.msra.mxu0 %v2715
    %3696 = vmatpush.bf16.msra.mxu0 %v2707
    %3697 = vmatpush.bf16.msra.mxu0 %v2699
    %3698 = vmatpush.bf16.msra.mxu0 %v2691
    %3699 = vmatmul.bf16.gmra.mxu0 %v3605
    %v3700 = vpop.f32.mrf.mxu0
    %v3701 = vadd.f32 0.0, %v3700
    %v3702 = vpop.f32.mrf.mxu0
    %v3703 = vadd.f32 0.0, %v3702
    %3704 = vdwg.mxu0
    %3705 = vmatpush.bf16.msra.mxu0 %v2811
    %3706 = vmatpush.bf16.msra.mxu0 %v2803
    %3707 = vmatpush.bf16.msra.mxu0 %v2795
    %3708 = vmatpush.bf16.msra.mxu0 %v2787
    %3709 = vmatpush.bf16.msra.mxu0 %v2779
    %3710 = vmatpush.bf16.msra.mxu0 %v2771
    %3711 = vmatpush.bf16.msra.mxu0 %v2763
    %3712 = vmatpush.bf16.msra.mxu0 %v2755
    %3713 = vmatmul.bf16.gmra.mxu0 %v3606
    %v3714 = vpop.f32.mrf.mxu0
    %v3715 = vadd.f32 %v3701, %v3714
    %v3716 = vpop.f32.mrf.mxu0
    %v3717 = vadd.f32 %v3703, %v3716
    %3718 = vdwg.mxu0
    %3719 = vmatpush.bf16.msra.mxu0 %v2748
    %3720 = vmatpush.bf16.msra.mxu0 %v2740
    %3721 = vmatpush.bf16.msra.mxu0 %v2732
    %3722 = vmatpush.bf16.msra.mxu0 %v2724
    %3723 = vmatpush.bf16.msra.mxu0 %v2716
    %3724 = vmatpush.bf16.msra.mxu0 %v2708
    %3725 = vmatpush.bf16.msra.mxu0 %v2700
    %3726 = vmatpush.bf16.msra.mxu0 %v2692
    %3727 = vmatmul.bf16.gmra.mxu0 %v3605
    %v3728 = vpop.f32.mrf.mxu0
    %v3729 = vadd.f32 0.0, %v3728
    %v3730 = vpop.f32.mrf.mxu0
    %v3731 = vadd.f32 0.0, %v3730
    %3732 = vdwg.mxu0
    %3733 = vmatpush.bf16.msra.mxu0 %v2812
    %3734 = vmatpush.bf16.msra.mxu0 %v2804
    %3735 = vmatpush.bf16.msra.mxu0 %v2796
    %3736 = vmatpush.bf16.msra.mxu0 %v2788
    %3737 = vmatpush.bf16.msra.mxu0 %v2780
    %3738 = vmatpush.bf16.msra.mxu0 %v2772
    %3739 = vmatpush.bf16.msra.mxu0 %v2764
    %3740 = vmatpush.bf16.msra.mxu0 %v2756
    %3741 = vmatmul.bf16.gmra.mxu0 %v3606
    %v3742 = vpop.f32.mrf.mxu0
    %v3743 = vadd.f32 %v3729, %v3742
    %v3744 = vpop.f32.mrf.mxu0
    %v3745 = vadd.f32 %v3731, %v3744
    %3746 = vdwg.mxu0
    %3747 = vmatpush.bf16.msra.mxu0 %v2749
    %3748 = vmatpush.bf16.msra.mxu0 %v2741
    %3749 = vmatpush.bf16.msra.mxu0 %v2733
    %3750 = vmatpush.bf16.msra.mxu0 %v2725
    %3751 = vmatpush.bf16.msra.mxu0 %v2717
    %3752 = vmatpush.bf16.msra.mxu0 %v2709
    %3753 = vmatpush.bf16.msra.mxu0 %v2701
    %3754 = vmatpush.bf16.msra.mxu0 %v2693
    %3755 = vmatmul.bf16.gmra.mxu0 %v3605
    %v3756 = vpop.f32.mrf.mxu0
    %v3757 = vadd.f32 0.0, %v3756
    %v3758 = vpop.f32.mrf.mxu0
    %v3759 = vadd.f32 0.0, %v3758
    %3760 = vdwg.mxu0
    %3761 = vmatpush.bf16.msra.mxu0 %v2813
    %3762 = vmatpush.bf16.msra.mxu0 %v2805
    %3763 = vmatpush.bf16.msra.mxu0 %v2797
    %3764 = vmatpush.bf16.msra.mxu0 %v2789
    %3765 = vmatpush.bf16.msra.mxu0 %v2781
    %3766 = vmatpush.bf16.msra.mxu0 %v2773
    %3767 = vmatpush.bf16.msra.mxu0 %v2765
    %3768 = vmatpush.bf16.msra.mxu0 %v2757
    %3769 = vmatmul.bf16.gmra.mxu0 %v3606
    %v3770 = vpop.f32.mrf.mxu0
    %v3771 = vadd.f32 %v3757, %v3770
    %v3772 = vpop.f32.mrf.mxu0
    %v3773 = vadd.f32 %v3759, %v3772
    %3774 = vdwg.mxu0
    %3775 = vmatpush.bf16.msra.mxu0 %v2750
    %3776 = vmatpush.bf16.msra.mxu0 %v2742
    %3777 = vmatpush.bf16.msra.mxu0 %v2734
    %3778 = vmatpush.bf16.msra.mxu0 %v2726
    %3779 = vmatpush.bf16.msra.mxu0 %v2718
    %3780 = vmatpush.bf16.msra.mxu0 %v2710
    %3781 = vmatpush.bf16.msra.mxu0 %v2702
    %3782 = vmatpush.bf16.msra.mxu0 %v2694
    %3783 = vmatmul.bf16.gmra.mxu0 %v3605
    %v3784 = vpop.f32.mrf.mxu0
    %v3785 = vadd.f32 0.0, %v3784
    %v3786 = vpop.f32.mrf.mxu0
    %v3787 = vadd.f32 0.0, %v3786
    %3788 = vdwg.mxu0
    %3789 = vmatpush.bf16.msra.mxu0 %v2814
    %3790 = vmatpush.bf16.msra.mxu0 %v2806
    %3791 = vmatpush.bf16.msra.mxu0 %v2798
    %3792 = vmatpush.bf16.msra.mxu0 %v2790
    %3793 = vmatpush.bf16.msra.mxu0 %v2782
    %3794 = vmatpush.bf16.msra.mxu0 %v2774
    %3795 = vmatpush.bf16.msra.mxu0 %v2766
    %3796 = vmatpush.bf16.msra.mxu0 %v2758
    %3797 = vmatmul.bf16.gmra.mxu0 %v3606
    %v3798 = vpop.f32.mrf.mxu0
    %v3799 = vadd.f32 %v3785, %v3798
    %v3800 = vpop.f32.mrf.mxu0
    %v3801 = vadd.f32 %v3787, %v3800
    %3802 = vdwg.mxu0
    %3803 = vmatpush.bf16.msra.mxu0 %v2751
    %3804 = vmatpush.bf16.msra.mxu0 %v2743
    %3805 = vmatpush.bf16.msra.mxu0 %v2735
    %3806 = vmatpush.bf16.msra.mxu0 %v2727
    %3807 = vmatpush.bf16.msra.mxu0 %v2719
    %3808 = vmatpush.bf16.msra.mxu0 %v2711
    %3809 = vmatpush.bf16.msra.mxu0 %v2703
    %3810 = vmatpush.bf16.msra.mxu0 %v2695
    %3811 = vmatmul.bf16.gmra.mxu0 %v3605
    %v3812 = vpop.f32.mrf.mxu0
    %v3813 = vadd.f32 0.0, %v3812
    %v3814 = vpop.f32.mrf.mxu0
    %v3815 = vadd.f32 0.0, %v3814
    %3816 = vdwg.mxu0
    %3817 = vmatpush.bf16.msra.mxu0 %v2815
    %3818 = vmatpush.bf16.msra.mxu0 %v2807
    %3819 = vmatpush.bf16.msra.mxu0 %v2799
    %3820 = vmatpush.bf16.msra.mxu0 %v2791
    %3821 = vmatpush.bf16.msra.mxu0 %v2783
    %3822 = vmatpush.bf16.msra.mxu0 %v2775
    %3823 = vmatpush.bf16.msra.mxu0 %v2767
    %3824 = vmatpush.bf16.msra.mxu0 %v2759
    %3825 = vmatmul.bf16.gmra.mxu0 %v3606
    %v3826 = vpop.f32.mrf.mxu0
    %v3827 = vadd.f32 %v3813, %v3826
    %v3828 = vpop.f32.mrf.mxu0
    %v3829 = vadd.f32 %v3815, %v3828
    %3830 = vdwg.mxu0
    %s3831 = scalar_lea.vmem [#allocation2], 256
    %v3832 = vld [vmem:[%s3831] sm:$0xff]
    %v3833 = vld [vmem:[%s3831 + $0x8] sm:$0xff]
    %v3834 = vld [vmem:[%s3831 + $0x10] sm:$0xff]
    %v3835 = vld [vmem:[%s3831 + $0x18] sm:$0xff]
    %v3836 = vld [vmem:[%s3831 + $0x40] sm:$0xff]
    %v3837 = vld [vmem:[%s3831 + $0x48] sm:$0xff]
    %v3838 = vld [vmem:[%s3831 + $0x50] sm:$0xff]
    %v3839 = vld [vmem:[%s3831 + $0x58] sm:$0xff]
    %v3840 = vadd.f32 %v3832, %v3631
    %v3841 = vadd.f32 %v3833, %v3659
    %v3842 = vadd.f32 %v3834, %v3687
    %v3843 = vadd.f32 %v3835, %v3715
    %v3844 = vadd.f32 %v3836, %v3633
    %v3845 = vadd.f32 %v3837, %v3661
    %v3846 = vadd.f32 %v3838, %v3689
    %v3847 = vadd.f32 %v3839, %v3717
    %s3848 = scalar_lea.vmem [#allocation2], 640
    %v3849 = vld [vmem:[%s3848 + $0x20] sm:$0xff]
    %v3850 = vld [vmem:[%s3848 + $0x28] sm:$0xff]
    %v3851 = vld [vmem:[%s3848 + $0x30] sm:$0xff]
    %v3852 = vld [vmem:[%s3848 + $0x38] sm:$0xff]
    %v3853 = vld [vmem:[%s3848 + $0x60] sm:$0xff]
    %v3854 = vld [vmem:[%s3848 + $0x68] sm:$0xff]
    %v3855 = vld [vmem:[%s3848 + $0x70] sm:$0xff]
    %v3856 = vld [vmem:[%s3848 + $0x78] sm:$0xff]
    %v3857 = vadd.f32 %v3849, %v3743
    %v3858 = vadd.f32 %v3850, %v3771
    %v3859 = vadd.f32 %v3851, %v3799
    %v3860 = vadd.f32 %v3852, %v3827
    %v3861 = vadd.f32 %v3853, %v3745
    %v3862 = vadd.f32 %v3854, %v3773
    %v3863 = vadd.f32 %v3855, %v3801
    %v3864 = vadd.f32 %v3856, %v3829
    %v3865 = vmul.f32 %v3840, 0.5
    %v3866 = vmul.f32 %v3841, 0.5
    %v3867 = vmul.f32 %v3842, 0.5
    %v3868 = vmul.f32 %v3844, 0.5
    %v3869 = vmul.f32 %v3845, 0.5
    %v3870 = vmul.f32 %v3846, 0.5
    %v3871 = vtanh.pop %v3865
    %v3872 = vtanh.pop %v3866
    %v3873 = vtanh.pop %v3867
    %v3874 = vtanh.pop %v3868
    %v3875 = vtanh.pop %v3869
    %v3876 = vtanh.pop %v3870
    %v3877 = vmul.f32 %v3871, 0.5
    %v3878 = vmul.f32 %v3872, 0.5
    %v3879 = vmul.f32 %v3873, 0.5
    %v3880 = vmul.f32 %v3874, 0.5
    %v3881 = vmul.f32 %v3875, 0.5
    %v3882 = vmul.f32 %v3876, 0.5
    %v3883 = vadd.f32 %v3877, 0.5
    %v3884 = vadd.f32 %v3878, 0.5
    %v3885 = vadd.f32 %v3879, 0.5
    %v3886 = vadd.f32 %v3880, 0.5
    %v3887 = vadd.f32 %v3881, 0.5
    %v3888 = vadd.f32 %v3882, 0.5
    %v3889 = vtanh.pop %v3843
    %v3890 = vtanh.pop %v3847
    %v3891 = vmul.f32 %v3884, %v3563
    %v3892 = vmul.f32 %v3887, %v3564
    %v3893 = vmul.f32 %v3883, %v3889
    %v3894 = vmul.f32 %v3886, %v3890
    %v3895 = vadd.f32 %v3891, %v3893
    %v3896 = vadd.f32 %v3892, %v3894
    %v3897 = vtanh.pop %v3895
    %v3898 = vtanh.pop %v3896
    %v3899 = vmul.f32 %v3885, %v3897
    %v3900 = vmul.f32 %v3888, %v3898
    %v3901 = vmul.f32 %v3857, 0.5
    %v3902 = vmul.f32 %v3858, 0.5
    %v3903 = vmul.f32 %v3859, 0.5
    %v3904 = vmul.f32 %v3861, 0.5
    %v3905 = vmul.f32 %v3862, 0.5
    %v3906 = vmul.f32 %v3863, 0.5
    %v3907 = vtanh.pop %v3901
    %v3908 = vtanh.pop %v3902
    %v3909 = vtanh.pop %v3903
    %v3910 = vtanh.pop %v3904
    %v3911 = vtanh.pop %v3905
    %v3912 = vtanh.pop %v3906
    %v3913 = vmul.f32 %v3907, 0.5
    %v3914 = vmul.f32 %v3908, 0.5
    %v3915 = vmul.f32 %v3909, 0.5
    %v3916 = vmul.f32 %v3910, 0.5
    %v3917 = vmul.f32 %v3911, 0.5
    %v3918 = vmul.f32 %v3912, 0.5
    %v3919 = vadd.f32 %v3913, 0.5
    %v3920 = vadd.f32 %v3914, 0.5
    %v3921 = vadd.f32 %v3915, 0.5
    %v3922 = vadd.f32 %v3916, 0.5
    %v3923 = vadd.f32 %v3917, 0.5
    %v3924 = vadd.f32 %v3918, 0.5
    %v3925 = vtanh.pop %v3860
    %v3926 = vtanh.pop %v3864
    %v3927 = vmul.f32 %v3920, %v3599
    %v3928 = vmul.f32 %v3923, %v3600
    %v3929 = vmul.f32 %v3919, %v3925
    %v3930 = vmul.f32 %v3922, %v3926
    %v3931 = vadd.f32 %v3927, %v3929
    %v3932 = vadd.f32 %v3928, %v3930
    %v3933 = vtanh.pop %v3931
    %v3934 = vtanh.pop %v3932
    %v3935 = vmul.f32 %v3921, %v3933
    %v3936 = vmul.f32 %v3924, %v3934
    %v3937 = vpack.c.bf16 %v3900, %v3899
    %v3938 = vpack.c.bf16 %v3936, %v3935
    %3939 = vmatpush.bf16.msra.mxu0 %v2744
    %3940 = vmatpush.bf16.msra.mxu0 %v2736
    %3941 = vmatpush.bf16.msra.mxu0 %v2728
    %3942 = vmatpush.bf16.msra.mxu0 %v2720
    %3943 = vmatpush.bf16.msra.mxu0 %v2712
    %3944 = vmatpush.bf16.msra.mxu0 %v2704
    %3945 = vmatpush.bf16.msra.mxu0 %v2696
    %3946 = vmatpush.bf16.msra.mxu0 %v2688
    %3947 = vmatmul.bf16.gmra.mxu0 %v3937
    %v3948 = vpop.f32.mrf.mxu0
    %v3949 = vadd.f32 0.0, %v3948
    %v3950 = vpop.f32.mrf.mxu0
    %v3951 = vadd.f32 0.0, %v3950
    %3952 = vdwg.mxu0
    %3953 = vmatpush.bf16.msra.mxu0 %v2808
    %3954 = vmatpush.bf16.msra.mxu0 %v2800
    %3955 = vmatpush.bf16.msra.mxu0 %v2792
    %3956 = vmatpush.bf16.msra.mxu0 %v2784
    %3957 = vmatpush.bf16.msra.mxu0 %v2776
    %3958 = vmatpush.bf16.msra.mxu0 %v2768
    %3959 = vmatpush.bf16.msra.mxu0 %v2760
    %3960 = vmatpush.bf16.msra.mxu0 %v2752
    %3961 = vmatmul.bf16.gmra.mxu0 %v3938
    %v3962 = vpop.f32.mrf.mxu0
    %v3963 = vadd.f32 %v3949, %v3962
    %v3964 = vpop.f32.mrf.mxu0
    %v3965 = vadd.f32 %v3951, %v3964
    %3966 = vdwg.mxu0
    %3967 = vmatpush.bf16.msra.mxu0 %v2745
    %3968 = vmatpush.bf16.msra.mxu0 %v2737
    %3969 = vmatpush.bf16.msra.mxu0 %v2729
    %3970 = vmatpush.bf16.msra.mxu0 %v2721
    %3971 = vmatpush.bf16.msra.mxu0 %v2713
    %3972 = vmatpush.bf16.msra.mxu0 %v2705
    %3973 = vmatpush.bf16.msra.mxu0 %v2697
    %3974 = vmatpush.bf16.msra.mxu0 %v2689
    %3975 = vmatmul.bf16.gmra.mxu0 %v3937
    %v3976 = vpop.f32.mrf.mxu0
    %v3977 = vadd.f32 0.0, %v3976
    %v3978 = vpop.f32.mrf.mxu0
    %v3979 = vadd.f32 0.0, %v3978
    %3980 = vdwg.mxu0
    %3981 = vmatpush.bf16.msra.mxu0 %v2809
    %3982 = vmatpush.bf16.msra.mxu0 %v2801
    %3983 = vmatpush.bf16.msra.mxu0 %v2793
    %3984 = vmatpush.bf16.msra.mxu0 %v2785
    %3985 = vmatpush.bf16.msra.mxu0 %v2777
    %3986 = vmatpush.bf16.msra.mxu0 %v2769
    %3987 = vmatpush.bf16.msra.mxu0 %v2761
    %3988 = vmatpush.bf16.msra.mxu0 %v2753
    %3989 = vmatmul.bf16.gmra.mxu0 %v3938
    %v3990 = vpop.f32.mrf.mxu0
    %v3991 = vadd.f32 %v3977, %v3990
    %v3992 = vpop.f32.mrf.mxu0
    %v3993 = vadd.f32 %v3979, %v3992
    %3994 = vdwg.mxu0
    %3995 = vmatpush.bf16.msra.mxu0 %v2746
    %3996 = vmatpush.bf16.msra.mxu0 %v2738
    %3997 = vmatpush.bf16.msra.mxu0 %v2730
    %3998 = vmatpush.bf16.msra.mxu0 %v2722
    %3999 = vmatpush.bf16.msra.mxu0 %v2714
    %4000 = vmatpush.bf16.msra.mxu0 %v2706
    %4001 = vmatpush.bf16.msra.mxu0 %v2698
    %4002 = vmatpush.bf16.msra.mxu0 %v2690
    %4003 = vmatmul.bf16.gmra.mxu0 %v3937
    %v4004 = vpop.f32.mrf.mxu0
    %v4005 = vadd.f32 0.0, %v4004
    %v4006 = vpop.f32.mrf.mxu0
    %v4007 = vadd.f32 0.0, %v4006
    %4008 = vdwg.mxu0
    %4009 = vmatpush.bf16.msra.mxu0 %v2810
    %4010 = vmatpush.bf16.msra.mxu0 %v2802
    %4011 = vmatpush.bf16.msra.mxu0 %v2794
    %4012 = vmatpush.bf16.msra.mxu0 %v2786
    %4013 = vmatpush.bf16.msra.mxu0 %v2778
    %4014 = vmatpush.bf16.msra.mxu0 %v2770
    %4015 = vmatpush.bf16.msra.mxu0 %v2762
    %4016 = vmatpush.bf16.msra.mxu0 %v2754
    %4017 = vmatmul.bf16.gmra.mxu0 %v3938
    %v4018 = vpop.f32.mrf.mxu0
    %v4019 = vadd.f32 %v4005, %v4018
    %v4020 = vpop.f32.mrf.mxu0
    %v4021 = vadd.f32 %v4007, %v4020
    %4022 = vdwg.mxu0
    %4023 = vmatpush.bf16.msra.mxu0 %v2747
    %4024 = vmatpush.bf16.msra.mxu0 %v2739
    %4025 = vmatpush.bf16.msra.mxu0 %v2731
    %4026 = vmatpush.bf16.msra.mxu0 %v2723
    %4027 = vmatpush.bf16.msra.mxu0 %v2715
    %4028 = vmatpush.bf16.msra.mxu0 %v2707
    %4029 = vmatpush.bf16.msra.mxu0 %v2699
    %4030 = vmatpush.bf16.msra.mxu0 %v2691
    %4031 = vmatmul.bf16.gmra.mxu0 %v3937
    %v4032 = vpop.f32.mrf.mxu0
    %v4033 = vadd.f32 0.0, %v4032
    %v4034 = vpop.f32.mrf.mxu0
    %v4035 = vadd.f32 0.0, %v4034
    %4036 = vdwg.mxu0
    %4037 = vmatpush.bf16.msra.mxu0 %v2811
    %4038 = vmatpush.bf16.msra.mxu0 %v2803
    %4039 = vmatpush.bf16.msra.mxu0 %v2795
    %4040 = vmatpush.bf16.msra.mxu0 %v2787
    %4041 = vmatpush.bf16.msra.mxu0 %v2779
    %4042 = vmatpush.bf16.msra.mxu0 %v2771
    %4043 = vmatpush.bf16.msra.mxu0 %v2763
    %4044 = vmatpush.bf16.msra.mxu0 %v2755
    %4045 = vmatmul.bf16.gmra.mxu0 %v3938
    %v4046 = vpop.f32.mrf.mxu0
    %v4047 = vadd.f32 %v4033, %v4046
    %v4048 = vpop.f32.mrf.mxu0
    %v4049 = vadd.f32 %v4035, %v4048
    %4050 = vdwg.mxu0
    %4051 = vmatpush.bf16.msra.mxu0 %v2748
    %4052 = vmatpush.bf16.msra.mxu0 %v2740
    %4053 = vmatpush.bf16.msra.mxu0 %v2732
    %4054 = vmatpush.bf16.msra.mxu0 %v2724
    %4055 = vmatpush.bf16.msra.mxu0 %v2716
    %4056 = vmatpush.bf16.msra.mxu0 %v2708
    %4057 = vmatpush.bf16.msra.mxu0 %v2700
    %4058 = vmatpush.bf16.msra.mxu0 %v2692
    %4059 = vmatmul.bf16.gmra.mxu0 %v3937
    %v4060 = vpop.f32.mrf.mxu0
    %v4061 = vadd.f32 0.0, %v4060
    %v4062 = vpop.f32.mrf.mxu0
    %v4063 = vadd.f32 0.0, %v4062
    %4064 = vdwg.mxu0
    %4065 = vmatpush.bf16.msra.mxu0 %v2812
    %4066 = vmatpush.bf16.msra.mxu0 %v2804
    %4067 = vmatpush.bf16.msra.mxu0 %v2796
    %4068 = vmatpush.bf16.msra.mxu0 %v2788
    %4069 = vmatpush.bf16.msra.mxu0 %v2780
    %4070 = vmatpush.bf16.msra.mxu0 %v2772
    %4071 = vmatpush.bf16.msra.mxu0 %v2764
    %4072 = vmatpush.bf16.msra.mxu0 %v2756
    %4073 = vmatmul.bf16.gmra.mxu0 %v3938
    %v4074 = vpop.f32.mrf.mxu0
    %v4075 = vadd.f32 %v4061, %v4074
    %v4076 = vpop.f32.mrf.mxu0
    %v4077 = vadd.f32 %v4063, %v4076
    %4078 = vdwg.mxu0
    %4079 = vmatpush.bf16.msra.mxu0 %v2749
    %4080 = vmatpush.bf16.msra.mxu0 %v2741
    %4081 = vmatpush.bf16.msra.mxu0 %v2733
    %4082 = vmatpush.bf16.msra.mxu0 %v2725
    %4083 = vmatpush.bf16.msra.mxu0 %v2717
    %4084 = vmatpush.bf16.msra.mxu0 %v2709
    %4085 = vmatpush.bf16.msra.mxu0 %v2701
    %4086 = vmatpush.bf16.msra.mxu0 %v2693
    %4087 = vmatmul.bf16.gmra.mxu0 %v3937
    %v4088 = vpop.f32.mrf.mxu0
    %v4089 = vadd.f32 0.0, %v4088
    %v4090 = vpop.f32.mrf.mxu0
    %v4091 = vadd.f32 0.0, %v4090
    %4092 = vdwg.mxu0
    %4093 = vmatpush.bf16.msra.mxu0 %v2813
    %4094 = vmatpush.bf16.msra.mxu0 %v2805
    %4095 = vmatpush.bf16.msra.mxu0 %v2797
    %4096 = vmatpush.bf16.msra.mxu0 %v2789
    %4097 = vmatpush.bf16.msra.mxu0 %v2781
    %4098 = vmatpush.bf16.msra.mxu0 %v2773
    %4099 = vmatpush.bf16.msra.mxu0 %v2765
    %4100 = vmatpush.bf16.msra.mxu0 %v2757
    %4101 = vmatmul.bf16.gmra.mxu0 %v3938
    %v4102 = vpop.f32.mrf.mxu0
    %v4103 = vadd.f32 %v4089, %v4102
    %v4104 = vpop.f32.mrf.mxu0
    %v4105 = vadd.f32 %v4091, %v4104
    %4106 = vdwg.mxu0
    %4107 = vmatpush.bf16.msra.mxu0 %v2750
    %4108 = vmatpush.bf16.msra.mxu0 %v2742
    %4109 = vmatpush.bf16.msra.mxu0 %v2734
    %4110 = vmatpush.bf16.msra.mxu0 %v2726
    %4111 = vmatpush.bf16.msra.mxu0 %v2718
    %4112 = vmatpush.bf16.msra.mxu0 %v2710
    %4113 = vmatpush.bf16.msra.mxu0 %v2702
    %4114 = vmatpush.bf16.msra.mxu0 %v2694
    %4115 = vmatmul.bf16.gmra.mxu0 %v3937
    %v4116 = vpop.f32.mrf.mxu0
    %v4117 = vadd.f32 0.0, %v4116
    %v4118 = vpop.f32.mrf.mxu0
    %v4119 = vadd.f32 0.0, %v4118
    %4120 = vdwg.mxu0
    %4121 = vmatpush.bf16.msra.mxu0 %v2814
    %4122 = vmatpush.bf16.msra.mxu0 %v2806
    %4123 = vmatpush.bf16.msra.mxu0 %v2798
    %4124 = vmatpush.bf16.msra.mxu0 %v2790
    %4125 = vmatpush.bf16.msra.mxu0 %v2782
    %4126 = vmatpush.bf16.msra.mxu0 %v2774
    %4127 = vmatpush.bf16.msra.mxu0 %v2766
    %4128 = vmatpush.bf16.msra.mxu0 %v2758
    %4129 = vmatmul.bf16.gmra.mxu0 %v3938
    %v4130 = vpop.f32.mrf.mxu0
    %v4131 = vadd.f32 %v4117, %v4130
    %v4132 = vpop.f32.mrf.mxu0
    %v4133 = vadd.f32 %v4119, %v4132
    %4134 = vdwg.mxu0
    %4135 = vmatpush.bf16.msra.mxu0 %v2751
    %4136 = vmatpush.bf16.msra.mxu0 %v2743
    %4137 = vmatpush.bf16.msra.mxu0 %v2735
    %4138 = vmatpush.bf16.msra.mxu0 %v2727
    %4139 = vmatpush.bf16.msra.mxu0 %v2719
    %4140 = vmatpush.bf16.msra.mxu0 %v2711
    %4141 = vmatpush.bf16.msra.mxu0 %v2703
    %4142 = vmatpush.bf16.msra.mxu0 %v2695
    %4143 = vmatmul.bf16.gmra.mxu0 %v3937
    %v4144 = vpop.f32.mrf.mxu0
    %v4145 = vadd.f32 0.0, %v4144
    %v4146 = vpop.f32.mrf.mxu0
    %v4147 = vadd.f32 0.0, %v4146
    %4148 = vdwg.mxu0
    %4149 = vmatpush.bf16.msra.mxu0 %v2815
    %4150 = vmatpush.bf16.msra.mxu0 %v2807
    %4151 = vmatpush.bf16.msra.mxu0 %v2799
    %4152 = vmatpush.bf16.msra.mxu0 %v2791
    %4153 = vmatpush.bf16.msra.mxu0 %v2783
    %4154 = vmatpush.bf16.msra.mxu0 %v2775
    %4155 = vmatpush.bf16.msra.mxu0 %v2767
    %4156 = vmatpush.bf16.msra.mxu0 %v2759
    %4157 = vmatmul.bf16.gmra.mxu0 %v3938
    %v4158 = vpop.f32.mrf.mxu0
    %v4159 = vadd.f32 %v4145, %v4158
    %v4160 = vpop.f32.mrf.mxu0
    %v4161 = vadd.f32 %v4147, %v4160
    %4162 = vdwg.mxu0
    %s4163 = scalar_lea.vmem [#allocation2], 384
    %v4164 = vld [vmem:[%s4163] sm:$0xff]
    %v4165 = vld [vmem:[%s4163 + $0x8] sm:$0xff]
    %v4166 = vld [vmem:[%s4163 + $0x10] sm:$0xff]
    %v4167 = vld [vmem:[%s4163 + $0x18] sm:$0xff]
    %v4168 = vld [vmem:[%s4163 + $0x40] sm:$0xff]
    %v4169 = vld [vmem:[%s4163 + $0x48] sm:$0xff]
    %v4170 = vld [vmem:[%s4163 + $0x50] sm:$0xff]
    %v4171 = vld [vmem:[%s4163 + $0x58] sm:$0xff]
    %v4172 = vadd.f32 %v4164, %v3963
    %v4173 = vadd.f32 %v4165, %v3991
    %v4174 = vadd.f32 %v4166, %v4019
    %v4175 = vadd.f32 %v4167, %v4047
    %v4176 = vadd.f32 %v4168, %v3965
    %v4177 = vadd.f32 %v4169, %v3993
    %v4178 = vadd.f32 %v4170, %v4021
    %v4179 = vadd.f32 %v4171, %v4049
    %s4180 = scalar_lea.vmem [#allocation2], 512
    %v4181 = vld [vmem:[%s4180 + $0x20] sm:$0xff]
    %v4182 = vld [vmem:[%s4180 + $0x28] sm:$0xff]
    %v4183 = vld [vmem:[%s4180 + $0x30] sm:$0xff]
    %v4184 = vld [vmem:[%s4180 + $0x38] sm:$0xff]
    %v4185 = vld [vmem:[%s4180 + $0x60] sm:$0xff]
    %v4186 = vld [vmem:[%s4180 + $0x68] sm:$0xff]
    %v4187 = vld [vmem:[%s4180 + $0x70] sm:$0xff]
    %v4188 = vld [vmem:[%s4180 + $0x78] sm:$0xff]
    %v4189 = vadd.f32 %v4181, %v4075
    %v4190 = vadd.f32 %v4182, %v4103
    %v4191 = vadd.f32 %v4183, %v4131
    %v4192 = vadd.f32 %v4184, %v4159
    %v4193 = vadd.f32 %v4185, %v4077
    %v4194 = vadd.f32 %v4186, %v4105
    %v4195 = vadd.f32 %v4187, %v4133
    %v4196 = vadd.f32 %v4188, %v4161
    %v4197 = vmul.f32 %v4172, 0.5
    %v4198 = vmul.f32 %v4173, 0.5
    %v4199 = vmul.f32 %v4174, 0.5
    %v4200 = vmul.f32 %v4176, 0.5
    %v4201 = vmul.f32 %v4177, 0.5
    %v4202 = vmul.f32 %v4178, 0.5
    %v4203 = vtanh.pop %v4197
    %v4204 = vtanh.pop %v4198
    %v4205 = vtanh.pop %v4199
    %v4206 = vtanh.pop %v4200
    %v4207 = vtanh.pop %v4201
    %v4208 = vtanh.pop %v4202
    %v4209 = vmul.f32 %v4203, 0.5
    %v4210 = vmul.f32 %v4204, 0.5
    %v4211 = vmul.f32 %v4205, 0.5
    %v4212 = vmul.f32 %v4206, 0.5
    %v4213 = vmul.f32 %v4207, 0.5
    %v4214 = vmul.f32 %v4208, 0.5
    %v4215 = vadd.f32 %v4209, 0.5
    %v4216 = vadd.f32 %v4210, 0.5
    %v4217 = vadd.f32 %v4211, 0.5
    %v4218 = vadd.f32 %v4212, 0.5
    %v4219 = vadd.f32 %v4213, 0.5
    %v4220 = vadd.f32 %v4214, 0.5
    %v4221 = vtanh.pop %v4175
    %v4222 = vtanh.pop %v4179
    %v4223 = vmul.f32 %v4216, %v3895
    %v4224 = vmul.f32 %v4219, %v3896
    %v4225 = vmul.f32 %v4215, %v4221
    %v4226 = vmul.f32 %v4218, %v4222
    %v4227 = vadd.f32 %v4223, %v4225
    %v4228 = vadd.f32 %v4224, %v4226
    %v4229 = vtanh.pop %v4227
    %v4230 = vtanh.pop %v4228
    %v4231 = vmul.f32 %v4217, %v4229
    %v4232 = vmul.f32 %v4220, %v4230
    %v4233 = vmul.f32 %v4189, 0.5
    %v4234 = vmul.f32 %v4190, 0.5
    %v4235 = vmul.f32 %v4191, 0.5
    %v4236 = vmul.f32 %v4193, 0.5
    %v4237 = vmul.f32 %v4194, 0.5
    %v4238 = vmul.f32 %v4195, 0.5
    %v4239 = vtanh.pop %v4233
    %v4240 = vtanh.pop %v4234
    %v4241 = vtanh.pop %v4235
    %v4242 = vtanh.pop %v4236
    %v4243 = vtanh.pop %v4237
    %v4244 = vtanh.pop %v4238
    %v4245 = vmul.f32 %v4239, 0.5
    %v4246 = vmul.f32 %v4240, 0.5
    %v4247 = vmul.f32 %v4241, 0.5
    %v4248 = vmul.f32 %v4242, 0.5
    %v4249 = vmul.f32 %v4243, 0.5
    %v4250 = vmul.f32 %v4244, 0.5
    %v4251 = vadd.f32 %v4245, 0.5
    %v4252 = vadd.f32 %v4246, 0.5
    %v4253 = vadd.f32 %v4247, 0.5
    %v4254 = vadd.f32 %v4248, 0.5
    %v4255 = vadd.f32 %v4249, 0.5
    %v4256 = vadd.f32 %v4250, 0.5
    %v4257 = vtanh.pop %v4192
    %v4258 = vtanh.pop %v4196
    %v4259 = vmul.f32 %v4252, %v3931
    %v4260 = vmul.f32 %v4255, %v3932
    %v4261 = vmul.f32 %v4251, %v4257
    %v4262 = vmul.f32 %v4254, %v4258
    %v4263 = vadd.f32 %v4259, %v4261
    %v4264 = vadd.f32 %v4260, %v4262
    %v4265 = vtanh.pop %v4263
    %v4266 = vtanh.pop %v4264
    %v4267 = vmul.f32 %v4253, %v4265
    %v4268 = vmul.f32 %v4256, %v4266
    %v4269 = vpack.c.bf16 %v4232, %v4231
    %v4270 = vpack.c.bf16 %v4268, %v4267
    %4271 = vmatpush.bf16.msra.mxu0 %v2744
    %4272 = vmatpush.bf16.msra.mxu0 %v2736
    %4273 = vmatpush.bf16.msra.mxu0 %v2728
    %4274 = vmatpush.bf16.msra.mxu0 %v2720
    %4275 = vmatpush.bf16.msra.mxu0 %v2712
    %4276 = vmatpush.bf16.msra.mxu0 %v2704
    %4277 = vmatpush.bf16.msra.mxu0 %v2696
    %4278 = vmatpush.bf16.msra.mxu0 %v2688
    %4279 = vmatmul.bf16.gmra.mxu0 %v4269
    %v4280 = vpop.f32.mrf.mxu0
    %v4281 = vadd.f32 0.0, %v4280
    %v4282 = vpop.f32.mrf.mxu0
    %v4283 = vadd.f32 0.0, %v4282
    %4284 = vdwg.mxu0
    %4285 = vmatpush.bf16.msra.mxu0 %v2808
    %4286 = vmatpush.bf16.msra.mxu0 %v2800
    %4287 = vmatpush.bf16.msra.mxu0 %v2792
    %4288 = vmatpush.bf16.msra.mxu0 %v2784
    %4289 = vmatpush.bf16.msra.mxu0 %v2776
    %4290 = vmatpush.bf16.msra.mxu0 %v2768
    %4291 = vmatpush.bf16.msra.mxu0 %v2760
    %4292 = vmatpush.bf16.msra.mxu0 %v2752
    %4293 = vmatmul.bf16.gmra.mxu0 %v4270
    %v4294 = vpop.f32.mrf.mxu0
    %v4295 = vadd.f32 %v4281, %v4294
    %v4296 = vpop.f32.mrf.mxu0
    %v4297 = vadd.f32 %v4283, %v4296
    %4298 = vdwg.mxu0
    %4299 = vmatpush.bf16.msra.mxu0 %v2745
    %4300 = vmatpush.bf16.msra.mxu0 %v2737
    %4301 = vmatpush.bf16.msra.mxu0 %v2729
    %4302 = vmatpush.bf16.msra.mxu0 %v2721
    %4303 = vmatpush.bf16.msra.mxu0 %v2713
    %4304 = vmatpush.bf16.msra.mxu0 %v2705
    %4305 = vmatpush.bf16.msra.mxu0 %v2697
    %4306 = vmatpush.bf16.msra.mxu0 %v2689
    %4307 = vmatmul.bf16.gmra.mxu0 %v4269
    %v4308 = vpop.f32.mrf.mxu0
    %v4309 = vadd.f32 0.0, %v4308
    %v4310 = vpop.f32.mrf.mxu0
    %v4311 = vadd.f32 0.0, %v4310
    %4312 = vdwg.mxu0
    %4313 = vmatpush.bf16.msra.mxu0 %v2809
    %4314 = vmatpush.bf16.msra.mxu0 %v2801
    %4315 = vmatpush.bf16.msra.mxu0 %v2793
    %4316 = vmatpush.bf16.msra.mxu0 %v2785
    %4317 = vmatpush.bf16.msra.mxu0 %v2777
    %4318 = vmatpush.bf16.msra.mxu0 %v2769
    %4319 = vmatpush.bf16.msra.mxu0 %v2761
    %4320 = vmatpush.bf16.msra.mxu0 %v2753
    %4321 = vmatmul.bf16.gmra.mxu0 %v4270
    %v4322 = vpop.f32.mrf.mxu0
    %v4323 = vadd.f32 %v4309, %v4322
    %v4324 = vpop.f32.mrf.mxu0
    %v4325 = vadd.f32 %v4311, %v4324
    %4326 = vdwg.mxu0
    %4327 = vmatpush.bf16.msra.mxu0 %v2746
    %4328 = vmatpush.bf16.msra.mxu0 %v2738
    %4329 = vmatpush.bf16.msra.mxu0 %v2730
    %4330 = vmatpush.bf16.msra.mxu0 %v2722
    %4331 = vmatpush.bf16.msra.mxu0 %v2714
    %4332 = vmatpush.bf16.msra.mxu0 %v2706
    %4333 = vmatpush.bf16.msra.mxu0 %v2698
    %4334 = vmatpush.bf16.msra.mxu0 %v2690
    %4335 = vmatmul.bf16.gmra.mxu0 %v4269
    %v4336 = vpop.f32.mrf.mxu0
    %v4337 = vadd.f32 0.0, %v4336
    %v4338 = vpop.f32.mrf.mxu0
    %v4339 = vadd.f32 0.0, %v4338
    %4340 = vdwg.mxu0
    %4341 = vmatpush.bf16.msra.mxu0 %v2810
    %4342 = vmatpush.bf16.msra.mxu0 %v2802
    %4343 = vmatpush.bf16.msra.mxu0 %v2794
    %4344 = vmatpush.bf16.msra.mxu0 %v2786
    %4345 = vmatpush.bf16.msra.mxu0 %v2778
    %4346 = vmatpush.bf16.msra.mxu0 %v2770
    %4347 = vmatpush.bf16.msra.mxu0 %v2762
    %4348 = vmatpush.bf16.msra.mxu0 %v2754
    %4349 = vmatmul.bf16.gmra.mxu0 %v4270
    %v4350 = vpop.f32.mrf.mxu0
    %v4351 = vadd.f32 %v4337, %v4350
    %v4352 = vpop.f32.mrf.mxu0
    %v4353 = vadd.f32 %v4339, %v4352
    %4354 = vdwg.mxu0
    %4355 = vmatpush.bf16.msra.mxu0 %v2747
    %4356 = vmatpush.bf16.msra.mxu0 %v2739
    %4357 = vmatpush.bf16.msra.mxu0 %v2731
    %4358 = vmatpush.bf16.msra.mxu0 %v2723
    %4359 = vmatpush.bf16.msra.mxu0 %v2715
    %4360 = vmatpush.bf16.msra.mxu0 %v2707
    %4361 = vmatpush.bf16.msra.mxu0 %v2699
    %4362 = vmatpush.bf16.msra.mxu0 %v2691
    %4363 = vmatmul.bf16.gmra.mxu0 %v4269
    %v4364 = vpop.f32.mrf.mxu0
    %v4365 = vadd.f32 0.0, %v4364
    %v4366 = vpop.f32.mrf.mxu0
    %v4367 = vadd.f32 0.0, %v4366
    %4368 = vdwg.mxu0
    %4369 = vmatpush.bf16.msra.mxu0 %v2811
    %4370 = vmatpush.bf16.msra.mxu0 %v2803
    %4371 = vmatpush.bf16.msra.mxu0 %v2795
    %4372 = vmatpush.bf16.msra.mxu0 %v2787
    %4373 = vmatpush.bf16.msra.mxu0 %v2779
    %4374 = vmatpush.bf16.msra.mxu0 %v2771
    %4375 = vmatpush.bf16.msra.mxu0 %v2763
    %4376 = vmatpush.bf16.msra.mxu0 %v2755
    %4377 = vmatmul.bf16.gmra.mxu0 %v4270
    %v4378 = vpop.f32.mrf.mxu0
    %v4379 = vadd.f32 %v4365, %v4378
    %v4380 = vpop.f32.mrf.mxu0
    %v4381 = vadd.f32 %v4367, %v4380
    %4382 = vdwg.mxu0
    %4383 = vmatpush.bf16.msra.mxu0 %v2748
    %4384 = vmatpush.bf16.msra.mxu0 %v2740
    %4385 = vmatpush.bf16.msra.mxu0 %v2732
    %4386 = vmatpush.bf16.msra.mxu0 %v2724
    %4387 = vmatpush.bf16.msra.mxu0 %v2716
    %4388 = vmatpush.bf16.msra.mxu0 %v2708
    %4389 = vmatpush.bf16.msra.mxu0 %v2700
    %4390 = vmatpush.bf16.msra.mxu0 %v2692
    %4391 = vmatmul.bf16.gmra.mxu0 %v4269
    %v4392 = vpop.f32.mrf.mxu0
    %v4393 = vadd.f32 0.0, %v4392
    %v4394 = vpop.f32.mrf.mxu0
    %v4395 = vadd.f32 0.0, %v4394
    %4396 = vdwg.mxu0
    %4397 = vmatpush.bf16.msra.mxu0 %v2812
    %4398 = vmatpush.bf16.msra.mxu0 %v2804
    %4399 = vmatpush.bf16.msra.mxu0 %v2796
    %4400 = vmatpush.bf16.msra.mxu0 %v2788
    %4401 = vmatpush.bf16.msra.mxu0 %v2780
    %4402 = vmatpush.bf16.msra.mxu0 %v2772
    %4403 = vmatpush.bf16.msra.mxu0 %v2764
    %4404 = vmatpush.bf16.msra.mxu0 %v2756
    %4405 = vmatmul.bf16.gmra.mxu0 %v4270
    %v4406 = vpop.f32.mrf.mxu0
    %v4407 = vadd.f32 %v4393, %v4406
    %v4408 = vpop.f32.mrf.mxu0
    %v4409 = vadd.f32 %v4395, %v4408
    %4410 = vdwg.mxu0
    %4411 = vmatpush.bf16.msra.mxu0 %v2749
    %4412 = vmatpush.bf16.msra.mxu0 %v2741
    %4413 = vmatpush.bf16.msra.mxu0 %v2733
    %4414 = vmatpush.bf16.msra.mxu0 %v2725
    %4415 = vmatpush.bf16.msra.mxu0 %v2717
    %4416 = vmatpush.bf16.msra.mxu0 %v2709
    %4417 = vmatpush.bf16.msra.mxu0 %v2701
    %4418 = vmatpush.bf16.msra.mxu0 %v2693
    %4419 = vmatmul.bf16.gmra.mxu0 %v4269
    %v4420 = vpop.f32.mrf.mxu0
    %v4421 = vadd.f32 0.0, %v4420
    %v4422 = vpop.f32.mrf.mxu0
    %v4423 = vadd.f32 0.0, %v4422
    %4424 = vdwg.mxu0
    %4425 = vmatpush.bf16.msra.mxu0 %v2813
    %4426 = vmatpush.bf16.msra.mxu0 %v2805
    %4427 = vmatpush.bf16.msra.mxu0 %v2797
    %4428 = vmatpush.bf16.msra.mxu0 %v2789
    %4429 = vmatpush.bf16.msra.mxu0 %v2781
    %4430 = vmatpush.bf16.msra.mxu0 %v2773
    %4431 = vmatpush.bf16.msra.mxu0 %v2765
    %4432 = vmatpush.bf16.msra.mxu0 %v2757
    %4433 = vmatmul.bf16.gmra.mxu0 %v4270
    %v4434 = vpop.f32.mrf.mxu0
    %v4435 = vadd.f32 %v4421, %v4434
    %v4436 = vpop.f32.mrf.mxu0
    %v4437 = vadd.f32 %v4423, %v4436
    %4438 = vdwg.mxu0
    %4439 = vmatpush.bf16.msra.mxu0 %v2750
    %4440 = vmatpush.bf16.msra.mxu0 %v2742
    %4441 = vmatpush.bf16.msra.mxu0 %v2734
    %4442 = vmatpush.bf16.msra.mxu0 %v2726
    %4443 = vmatpush.bf16.msra.mxu0 %v2718
    %4444 = vmatpush.bf16.msra.mxu0 %v2710
    %4445 = vmatpush.bf16.msra.mxu0 %v2702
    %4446 = vmatpush.bf16.msra.mxu0 %v2694
    %4447 = vmatmul.bf16.gmra.mxu0 %v4269
    %v4448 = vpop.f32.mrf.mxu0
    %v4449 = vadd.f32 0.0, %v4448
    %v4450 = vpop.f32.mrf.mxu0
    %v4451 = vadd.f32 0.0, %v4450
    %4452 = vdwg.mxu0
    %4453 = vmatpush.bf16.msra.mxu0 %v2814
    %4454 = vmatpush.bf16.msra.mxu0 %v2806
    %4455 = vmatpush.bf16.msra.mxu0 %v2798
    %4456 = vmatpush.bf16.msra.mxu0 %v2790
    %4457 = vmatpush.bf16.msra.mxu0 %v2782
    %4458 = vmatpush.bf16.msra.mxu0 %v2774
    %4459 = vmatpush.bf16.msra.mxu0 %v2766
    %4460 = vmatpush.bf16.msra.mxu0 %v2758
    %4461 = vmatmul.bf16.gmra.mxu0 %v4270
    %v4462 = vpop.f32.mrf.mxu0
    %v4463 = vadd.f32 %v4449, %v4462
    %v4464 = vpop.f32.mrf.mxu0
    %v4465 = vadd.f32 %v4451, %v4464
    %4466 = vdwg.mxu0
    %4467 = vmatpush.bf16.msra.mxu0 %v2751
    %4468 = vmatpush.bf16.msra.mxu0 %v2743
    %4469 = vmatpush.bf16.msra.mxu0 %v2735
    %4470 = vmatpush.bf16.msra.mxu0 %v2727
    %4471 = vmatpush.bf16.msra.mxu0 %v2719
    %4472 = vmatpush.bf16.msra.mxu0 %v2711
    %4473 = vmatpush.bf16.msra.mxu0 %v2703
    %4474 = vmatpush.bf16.msra.mxu0 %v2695
    %4475 = vmatmul.bf16.gmra.mxu0 %v4269
    %v4476 = vpop.f32.mrf.mxu0
    %v4477 = vadd.f32 0.0, %v4476
    %v4478 = vpop.f32.mrf.mxu0
    %v4479 = vadd.f32 0.0, %v4478
    %4480 = vdwg.mxu0
    %4481 = vmatpush.bf16.msra.mxu0 %v2815
    %4482 = vmatpush.bf16.msra.mxu0 %v2807
    %4483 = vmatpush.bf16.msra.mxu0 %v2799
    %4484 = vmatpush.bf16.msra.mxu0 %v2791
    %4485 = vmatpush.bf16.msra.mxu0 %v2783
    %4486 = vmatpush.bf16.msra.mxu0 %v2775
    %4487 = vmatpush.bf16.msra.mxu0 %v2767
    %4488 = vmatpush.bf16.msra.mxu0 %v2759
    %4489 = vmatmul.bf16.gmra.mxu0 %v4270
    %v4490 = vpop.f32.mrf.mxu0
    %v4491 = vadd.f32 %v4477, %v4490
    %v4492 = vpop.f32.mrf.mxu0
    %v4493 = vadd.f32 %v4479, %v4492
    %4494 = vdwg.mxu0
    %v4495 = vld [vmem:[%s4180] sm:$0xff]
    %v4496 = vld [vmem:[%s4180 + $0x8] sm:$0xff]
    %v4497 = vld [vmem:[%s4180 + $0x10] sm:$0xff]
    %v4498 = vld [vmem:[%s4180 + $0x18] sm:$0xff]
    %v4499 = vld [vmem:[%s4180 + $0x40] sm:$0xff]
    %v4500 = vld [vmem:[%s4180 + $0x48] sm:$0xff]
    %v4501 = vld [vmem:[%s4180 + $0x50] sm:$0xff]
    %v4502 = vld [vmem:[%s4180 + $0x58] sm:$0xff]
    %v4503 = vadd.f32 %v4495, %v4295
    %v4504 = vadd.f32 %v4496, %v4323
    %v4505 = vadd.f32 %v4497, %v4351
    %v4506 = vadd.f32 %v4498, %v4379
    %v4507 = vadd.f32 %v4499, %v4297
    %v4508 = vadd.f32 %v4500, %v4325
    %v4509 = vadd.f32 %v4501, %v4353
    %v4510 = vadd.f32 %v4502, %v4381
    %v4511 = vld [vmem:[%s4163 + $0x20] sm:$0xff]
    %v4512 = vld [vmem:[%s4163 + $0x28] sm:$0xff]
    %v4513 = vld [vmem:[%s4163 + $0x30] sm:$0xff]
    %v4514 = vld [vmem:[%s4163 + $0x38] sm:$0xff]
    %v4515 = vld [vmem:[%s4163 + $0x60] sm:$0xff]
    %v4516 = vld [vmem:[%s4163 + $0x68] sm:$0xff]
    %v4517 = vld [vmem:[%s4163 + $0x70] sm:$0xff]
    %v4518 = vld [vmem:[%s4163 + $0x78] sm:$0xff]
    %v4519 = vadd.f32 %v4511, %v4407
    %v4520 = vadd.f32 %v4512, %v4435
    %v4521 = vadd.f32 %v4513, %v4463
    %v4522 = vadd.f32 %v4514, %v4491
    %v4523 = vadd.f32 %v4515, %v4409
    %v4524 = vadd.f32 %v4516, %v4437
    %v4525 = vadd.f32 %v4517, %v4465
    %v4526 = vadd.f32 %v4518, %v4493
    %v4527 = vmul.f32 %v4503, 0.5
    %v4528 = vmul.f32 %v4504, 0.5
    %v4529 = vmul.f32 %v4505, 0.5
    %v4530 = vmul.f32 %v4507, 0.5
    %v4531 = vmul.f32 %v4508, 0.5
    %v4532 = vmul.f32 %v4509, 0.5
    %v4533 = vtanh.pop %v4527
    %v4534 = vtanh.pop %v4528
    %v4535 = vtanh.pop %v4529
    %v4536 = vtanh.pop %v4530
    %v4537 = vtanh.pop %v4531
    %v4538 = vtanh.pop %v4532
    %v4539 = vmul.f32 %v4533, 0.5
    %v4540 = vmul.f32 %v4534, 0.5
    %v4541 = vmul.f32 %v4535, 0.5
    %v4542 = vmul.f32 %v4536, 0.5
    %v4543 = vmul.f32 %v4537, 0.5
    %v4544 = vmul.f32 %v4538, 0.5
    %v4545 = vadd.f32 %v4539, 0.5
    %v4546 = vadd.f32 %v4540, 0.5
    %v4547 = vadd.f32 %v4541, 0.5
    %v4548 = vadd.f32 %v4542, 0.5
    %v4549 = vadd.f32 %v4543, 0.5
    %v4550 = vadd.f32 %v4544, 0.5
    %v4551 = vtanh.pop %v4506
    %v4552 = vtanh.pop %v4510
    %v4553 = vmul.f32 %v4546, %v4227
    %v4554 = vmul.f32 %v4549, %v4228
    %v4555 = vmul.f32 %v4545, %v4551
    %v4556 = vmul.f32 %v4548, %v4552
    %v4557 = vadd.f32 %v4553, %v4555
    %v4558 = vadd.f32 %v4554, %v4556
    %v4559 = vtanh.pop %v4557
    %v4560 = vtanh.pop %v4558
    %v4561 = vmul.f32 %v4547, %v4559
    %v4562 = vmul.f32 %v4550, %v4560
    %v4563 = vmul.f32 %v4519, 0.5
    %v4564 = vmul.f32 %v4520, 0.5
    %v4565 = vmul.f32 %v4521, 0.5
    %v4566 = vmul.f32 %v4523, 0.5
    %v4567 = vmul.f32 %v4524, 0.5
    %v4568 = vmul.f32 %v4525, 0.5
    %v4569 = vtanh.pop %v4563
    %v4570 = vtanh.pop %v4564
    %v4571 = vtanh.pop %v4565
    %v4572 = vtanh.pop %v4566
    %v4573 = vtanh.pop %v4567
    %v4574 = vtanh.pop %v4568
    %v4575 = vmul.f32 %v4569, 0.5
    %v4576 = vmul.f32 %v4570, 0.5
    %v4577 = vmul.f32 %v4571, 0.5
    %v4578 = vmul.f32 %v4572, 0.5
    %v4579 = vmul.f32 %v4573, 0.5
    %v4580 = vmul.f32 %v4574, 0.5
    %v4581 = vadd.f32 %v4575, 0.5
    %v4582 = vadd.f32 %v4576, 0.5
    %v4583 = vadd.f32 %v4577, 0.5
    %v4584 = vadd.f32 %v4578, 0.5
    %v4585 = vadd.f32 %v4579, 0.5
    %v4586 = vadd.f32 %v4580, 0.5
    %v4587 = vtanh.pop %v4522
    %v4588 = vtanh.pop %v4526
    %v4589 = vmul.f32 %v4582, %v4263
    %v4590 = vmul.f32 %v4585, %v4264
    %v4591 = vmul.f32 %v4581, %v4587
    %v4592 = vmul.f32 %v4584, %v4588
    %v4593 = vadd.f32 %v4589, %v4591
    %v4594 = vadd.f32 %v4590, %v4592
    %v4595 = vtanh.pop %v4593
    %v4596 = vtanh.pop %v4594
    %v4597 = vmul.f32 %v4583, %v4595
    %v4598 = vmul.f32 %v4586, %v4596
    %v4599 = vpack.c.bf16 %v4562, %v4561
    %v4600 = vpack.c.bf16 %v4598, %v4597
    %4601 = vmatpush.bf16.msra.mxu0 %v2744
    %4602 = vmatpush.bf16.msra.mxu0 %v2736
    %4603 = vmatpush.bf16.msra.mxu0 %v2728
    %4604 = vmatpush.bf16.msra.mxu0 %v2720
    %4605 = vmatpush.bf16.msra.mxu0 %v2712
    %4606 = vmatpush.bf16.msra.mxu0 %v2704
    %4607 = vmatpush.bf16.msra.mxu0 %v2696
    %4608 = vmatpush.bf16.msra.mxu0 %v2688
    %4609 = vmatmul.bf16.gmra.mxu0 %v4599
    %v4610 = vpop.f32.mrf.mxu0
    %v4611 = vadd.f32 0.0, %v4610
    %v4612 = vpop.f32.mrf.mxu0
    %v4613 = vadd.f32 0.0, %v4612
    %4614 = vdwg.mxu0
    %4615 = vmatpush.bf16.msra.mxu0 %v2808
    %4616 = vmatpush.bf16.msra.mxu0 %v2800
    %4617 = vmatpush.bf16.msra.mxu0 %v2792
    %4618 = vmatpush.bf16.msra.mxu0 %v2784
    %4619 = vmatpush.bf16.msra.mxu0 %v2776
    %4620 = vmatpush.bf16.msra.mxu0 %v2768
    %4621 = vmatpush.bf16.msra.mxu0 %v2760
    %4622 = vmatpush.bf16.msra.mxu0 %v2752
    %4623 = vmatmul.bf16.gmra.mxu0 %v4600
    %v4624 = vpop.f32.mrf.mxu0
    %v4625 = vadd.f32 %v4611, %v4624
    %v4626 = vpop.f32.mrf.mxu0
    %v4627 = vadd.f32 %v4613, %v4626
    %4628 = vdwg.mxu0
    %4629 = vmatpush.bf16.msra.mxu0 %v2745
    %4630 = vmatpush.bf16.msra.mxu0 %v2737
    %4631 = vmatpush.bf16.msra.mxu0 %v2729
    %4632 = vmatpush.bf16.msra.mxu0 %v2721
    %4633 = vmatpush.bf16.msra.mxu0 %v2713
    %4634 = vmatpush.bf16.msra.mxu0 %v2705
    %4635 = vmatpush.bf16.msra.mxu0 %v2697
    %4636 = vmatpush.bf16.msra.mxu0 %v2689
    %4637 = vmatmul.bf16.gmra.mxu0 %v4599
    %v4638 = vpop.f32.mrf.mxu0
    %v4639 = vadd.f32 0.0, %v4638
    %v4640 = vpop.f32.mrf.mxu0
    %v4641 = vadd.f32 0.0, %v4640
    %4642 = vdwg.mxu0
    %4643 = vmatpush.bf16.msra.mxu0 %v2809
    %4644 = vmatpush.bf16.msra.mxu0 %v2801
    %4645 = vmatpush.bf16.msra.mxu0 %v2793
    %4646 = vmatpush.bf16.msra.mxu0 %v2785
    %4647 = vmatpush.bf16.msra.mxu0 %v2777
    %4648 = vmatpush.bf16.msra.mxu0 %v2769
    %4649 = vmatpush.bf16.msra.mxu0 %v2761
    %4650 = vmatpush.bf16.msra.mxu0 %v2753
    %4651 = vmatmul.bf16.gmra.mxu0 %v4600
    %v4652 = vpop.f32.mrf.mxu0
    %v4653 = vadd.f32 %v4639, %v4652
    %v4654 = vpop.f32.mrf.mxu0
    %v4655 = vadd.f32 %v4641, %v4654
    %4656 = vdwg.mxu0
    %4657 = vmatpush.bf16.msra.mxu0 %v2746
    %4658 = vmatpush.bf16.msra.mxu0 %v2738
    %4659 = vmatpush.bf16.msra.mxu0 %v2730
    %4660 = vmatpush.bf16.msra.mxu0 %v2722
    %4661 = vmatpush.bf16.msra.mxu0 %v2714
    %4662 = vmatpush.bf16.msra.mxu0 %v2706
    %4663 = vmatpush.bf16.msra.mxu0 %v2698
    %4664 = vmatpush.bf16.msra.mxu0 %v2690
    %4665 = vmatmul.bf16.gmra.mxu0 %v4599
    %v4666 = vpop.f32.mrf.mxu0
    %v4667 = vadd.f32 0.0, %v4666
    %v4668 = vpop.f32.mrf.mxu0
    %v4669 = vadd.f32 0.0, %v4668
    %4670 = vdwg.mxu0
    %4671 = vmatpush.bf16.msra.mxu0 %v2810
    %4672 = vmatpush.bf16.msra.mxu0 %v2802
    %4673 = vmatpush.bf16.msra.mxu0 %v2794
    %4674 = vmatpush.bf16.msra.mxu0 %v2786
    %4675 = vmatpush.bf16.msra.mxu0 %v2778
    %4676 = vmatpush.bf16.msra.mxu0 %v2770
    %4677 = vmatpush.bf16.msra.mxu0 %v2762
    %4678 = vmatpush.bf16.msra.mxu0 %v2754
    %4679 = vmatmul.bf16.gmra.mxu0 %v4600
    %v4680 = vpop.f32.mrf.mxu0
    %v4681 = vadd.f32 %v4667, %v4680
    %v4682 = vpop.f32.mrf.mxu0
    %v4683 = vadd.f32 %v4669, %v4682
    %4684 = vdwg.mxu0
    %4685 = vmatpush.bf16.msra.mxu0 %v2747
    %4686 = vmatpush.bf16.msra.mxu0 %v2739
    %4687 = vmatpush.bf16.msra.mxu0 %v2731
    %4688 = vmatpush.bf16.msra.mxu0 %v2723
    %4689 = vmatpush.bf16.msra.mxu0 %v2715
    %4690 = vmatpush.bf16.msra.mxu0 %v2707
    %4691 = vmatpush.bf16.msra.mxu0 %v2699
    %4692 = vmatpush.bf16.msra.mxu0 %v2691
    %4693 = vmatmul.bf16.gmra.mxu0 %v4599
    %v4694 = vpop.f32.mrf.mxu0
    %v4695 = vadd.f32 0.0, %v4694
    %v4696 = vpop.f32.mrf.mxu0
    %v4697 = vadd.f32 0.0, %v4696
    %4698 = vdwg.mxu0
    %4699 = vmatpush.bf16.msra.mxu0 %v2811
    %4700 = vmatpush.bf16.msra.mxu0 %v2803
    %4701 = vmatpush.bf16.msra.mxu0 %v2795
    %4702 = vmatpush.bf16.msra.mxu0 %v2787
    %4703 = vmatpush.bf16.msra.mxu0 %v2779
    %4704 = vmatpush.bf16.msra.mxu0 %v2771
    %4705 = vmatpush.bf16.msra.mxu0 %v2763
    %4706 = vmatpush.bf16.msra.mxu0 %v2755
    %4707 = vmatmul.bf16.gmra.mxu0 %v4600
    %v4708 = vpop.f32.mrf.mxu0
    %v4709 = vadd.f32 %v4695, %v4708
    %v4710 = vpop.f32.mrf.mxu0
    %v4711 = vadd.f32 %v4697, %v4710
    %4712 = vdwg.mxu0
    %4713 = vmatpush.bf16.msra.mxu0 %v2748
    %4714 = vmatpush.bf16.msra.mxu0 %v2740
    %4715 = vmatpush.bf16.msra.mxu0 %v2732
    %4716 = vmatpush.bf16.msra.mxu0 %v2724
    %4717 = vmatpush.bf16.msra.mxu0 %v2716
    %4718 = vmatpush.bf16.msra.mxu0 %v2708
    %4719 = vmatpush.bf16.msra.mxu0 %v2700
    %4720 = vmatpush.bf16.msra.mxu0 %v2692
    %4721 = vmatmul.bf16.gmra.mxu0 %v4599
    %v4722 = vpop.f32.mrf.mxu0
    %v4723 = vadd.f32 0.0, %v4722
    %v4724 = vpop.f32.mrf.mxu0
    %v4725 = vadd.f32 0.0, %v4724
    %4726 = vdwg.mxu0
    %4727 = vmatpush.bf16.msra.mxu0 %v2812
    %4728 = vmatpush.bf16.msra.mxu0 %v2804
    %4729 = vmatpush.bf16.msra.mxu0 %v2796
    %4730 = vmatpush.bf16.msra.mxu0 %v2788
    %4731 = vmatpush.bf16.msra.mxu0 %v2780
    %4732 = vmatpush.bf16.msra.mxu0 %v2772
    %4733 = vmatpush.bf16.msra.mxu0 %v2764
    %4734 = vmatpush.bf16.msra.mxu0 %v2756
    %4735 = vmatmul.bf16.gmra.mxu0 %v4600
    %v4736 = vpop.f32.mrf.mxu0
    %v4737 = vadd.f32 %v4723, %v4736
    %v4738 = vpop.f32.mrf.mxu0
    %v4739 = vadd.f32 %v4725, %v4738
    %4740 = vdwg.mxu0
    %4741 = vmatpush.bf16.msra.mxu0 %v2749
    %4742 = vmatpush.bf16.msra.mxu0 %v2741
    %4743 = vmatpush.bf16.msra.mxu0 %v2733
    %4744 = vmatpush.bf16.msra.mxu0 %v2725
    %4745 = vmatpush.bf16.msra.mxu0 %v2717
    %4746 = vmatpush.bf16.msra.mxu0 %v2709
    %4747 = vmatpush.bf16.msra.mxu0 %v2701
    %4748 = vmatpush.bf16.msra.mxu0 %v2693
    %4749 = vmatmul.bf16.gmra.mxu0 %v4599
    %v4750 = vpop.f32.mrf.mxu0
    %v4751 = vadd.f32 0.0, %v4750
    %v4752 = vpop.f32.mrf.mxu0
    %v4753 = vadd.f32 0.0, %v4752
    %4754 = vdwg.mxu0
    %4755 = vmatpush.bf16.msra.mxu0 %v2813
    %4756 = vmatpush.bf16.msra.mxu0 %v2805
    %4757 = vmatpush.bf16.msra.mxu0 %v2797
    %4758 = vmatpush.bf16.msra.mxu0 %v2789
    %4759 = vmatpush.bf16.msra.mxu0 %v2781
    %4760 = vmatpush.bf16.msra.mxu0 %v2773
    %4761 = vmatpush.bf16.msra.mxu0 %v2765
    %4762 = vmatpush.bf16.msra.mxu0 %v2757
    %4763 = vmatmul.bf16.gmra.mxu0 %v4600
    %v4764 = vpop.f32.mrf.mxu0
    %v4765 = vadd.f32 %v4751, %v4764
    %v4766 = vpop.f32.mrf.mxu0
    %v4767 = vadd.f32 %v4753, %v4766
    %4768 = vdwg.mxu0
    %4769 = vmatpush.bf16.msra.mxu0 %v2750
    %4770 = vmatpush.bf16.msra.mxu0 %v2742
    %4771 = vmatpush.bf16.msra.mxu0 %v2734
    %4772 = vmatpush.bf16.msra.mxu0 %v2726
    %4773 = vmatpush.bf16.msra.mxu0 %v2718
    %4774 = vmatpush.bf16.msra.mxu0 %v2710
    %4775 = vmatpush.bf16.msra.mxu0 %v2702
    %4776 = vmatpush.bf16.msra.mxu0 %v2694
    %4777 = vmatmul.bf16.gmra.mxu0 %v4599
    %v4778 = vpop.f32.mrf.mxu0
    %v4779 = vadd.f32 0.0, %v4778
    %v4780 = vpop.f32.mrf.mxu0
    %v4781 = vadd.f32 0.0, %v4780
    %4782 = vdwg.mxu0
    %4783 = vmatpush.bf16.msra.mxu0 %v2814
    %4784 = vmatpush.bf16.msra.mxu0 %v2806
    %4785 = vmatpush.bf16.msra.mxu0 %v2798
    %4786 = vmatpush.bf16.msra.mxu0 %v2790
    %4787 = vmatpush.bf16.msra.mxu0 %v2782
    %4788 = vmatpush.bf16.msra.mxu0 %v2774
    %4789 = vmatpush.bf16.msra.mxu0 %v2766
    %4790 = vmatpush.bf16.msra.mxu0 %v2758
    %4791 = vmatmul.bf16.gmra.mxu0 %v4600
    %v4792 = vpop.f32.mrf.mxu0
    %v4793 = vadd.f32 %v4779, %v4792
    %v4794 = vpop.f32.mrf.mxu0
    %v4795 = vadd.f32 %v4781, %v4794
    %4796 = vdwg.mxu0
    %4797 = vmatpush.bf16.msra.mxu0 %v2751
    %4798 = vmatpush.bf16.msra.mxu0 %v2743
    %4799 = vmatpush.bf16.msra.mxu0 %v2735
    %4800 = vmatpush.bf16.msra.mxu0 %v2727
    %4801 = vmatpush.bf16.msra.mxu0 %v2719
    %4802 = vmatpush.bf16.msra.mxu0 %v2711
    %4803 = vmatpush.bf16.msra.mxu0 %v2703
    %4804 = vmatpush.bf16.msra.mxu0 %v2695
    %4805 = vmatmul.bf16.gmra.mxu0 %v4599
    %v4806 = vpop.f32.mrf.mxu0
    %v4807 = vadd.f32 0.0, %v4806
    %v4808 = vpop.f32.mrf.mxu0
    %v4809 = vadd.f32 0.0, %v4808
    %4810 = vdwg.mxu0
    %4811 = vmatpush.bf16.msra.mxu0 %v2815
    %4812 = vmatpush.bf16.msra.mxu0 %v2807
    %4813 = vmatpush.bf16.msra.mxu0 %v2799
    %4814 = vmatpush.bf16.msra.mxu0 %v2791
    %4815 = vmatpush.bf16.msra.mxu0 %v2783
    %4816 = vmatpush.bf16.msra.mxu0 %v2775
    %4817 = vmatpush.bf16.msra.mxu0 %v2767
    %4818 = vmatpush.bf16.msra.mxu0 %v2759
    %4819 = vmatmul.bf16.gmra.mxu0 %v4600
    %v4820 = vpop.f32.mrf.mxu0
    %v4821 = vadd.f32 %v4807, %v4820
    %v4822 = vpop.f32.mrf.mxu0
    %v4823 = vadd.f32 %v4809, %v4822
    %4824 = vdwg.mxu0
    %v4825 = vld [vmem:[%s3848] sm:$0xff]
    %v4826 = vld [vmem:[%s3848 + $0x8] sm:$0xff]
    %v4827 = vld [vmem:[%s3848 + $0x10] sm:$0xff]
    %v4828 = vld [vmem:[%s3848 + $0x18] sm:$0xff]
    %v4829 = vld [vmem:[%s3848 + $0x40] sm:$0xff]
    %v4830 = vld [vmem:[%s3848 + $0x48] sm:$0xff]
    %v4831 = vld [vmem:[%s3848 + $0x50] sm:$0xff]
    %v4832 = vld [vmem:[%s3848 + $0x58] sm:$0xff]
    %v4833 = vadd.f32 %v4825, %v4625
    %v4834 = vadd.f32 %v4826, %v4653
    %v4835 = vadd.f32 %v4827, %v4681
    %v4836 = vadd.f32 %v4828, %v4709
    %v4837 = vadd.f32 %v4829, %v4627
    %v4838 = vadd.f32 %v4830, %v4655
    %v4839 = vadd.f32 %v4831, %v4683
    %v4840 = vadd.f32 %v4832, %v4711
    %v4841 = vld [vmem:[%s3831 + $0x20] sm:$0xff]
    %v4842 = vld [vmem:[%s3831 + $0x28] sm:$0xff]
    %v4843 = vld [vmem:[%s3831 + $0x30] sm:$0xff]
    %v4844 = vld [vmem:[%s3831 + $0x38] sm:$0xff]
    %v4845 = vld [vmem:[%s3831 + $0x60] sm:$0xff]
    %v4846 = vld [vmem:[%s3831 + $0x68] sm:$0xff]
    %v4847 = vld [vmem:[%s3831 + $0x70] sm:$0xff]
    %v4848 = vld [vmem:[%s3831 + $0x78] sm:$0xff]
    %v4849 = vadd.f32 %v4841, %v4737
    %v4850 = vadd.f32 %v4842, %v4765
    %v4851 = vadd.f32 %v4843, %v4793
    %v4852 = vadd.f32 %v4844, %v4821
    %v4853 = vadd.f32 %v4845, %v4739
    %v4854 = vadd.f32 %v4846, %v4767
    %v4855 = vadd.f32 %v4847, %v4795
    %v4856 = vadd.f32 %v4848, %v4823
    %v4857 = vmul.f32 %v4833, 0.5
    %v4858 = vmul.f32 %v4834, 0.5
    %v4859 = vmul.f32 %v4835, 0.5
    %v4860 = vmul.f32 %v4837, 0.5
    %v4861 = vmul.f32 %v4838, 0.5
    %v4862 = vmul.f32 %v4839, 0.5
    %v4863 = vtanh.pop %v4857
    %v4864 = vtanh.pop %v4858
    %v4865 = vtanh.pop %v4859
    %v4866 = vtanh.pop %v4860
    %v4867 = vtanh.pop %v4861
    %v4868 = vtanh.pop %v4862
    %v4869 = vmul.f32 %v4863, 0.5
    %v4870 = vmul.f32 %v4864, 0.5
    %v4871 = vmul.f32 %v4865, 0.5
    %v4872 = vmul.f32 %v4866, 0.5
    %v4873 = vmul.f32 %v4867, 0.5
    %v4874 = vmul.f32 %v4868, 0.5
    %v4875 = vadd.f32 %v4869, 0.5
    %v4876 = vadd.f32 %v4870, 0.5
    %v4877 = vadd.f32 %v4871, 0.5
    %v4878 = vadd.f32 %v4872, 0.5
    %v4879 = vadd.f32 %v4873, 0.5
    %v4880 = vadd.f32 %v4874, 0.5
    %v4881 = vtanh.pop %v4836
    %v4882 = vtanh.pop %v4840
    %v4883 = vmul.f32 %v4876, %v4557
    %v4884 = vmul.f32 %v4879, %v4558
    %v4885 = vmul.f32 %v4875, %v4881
    %v4886 = vmul.f32 %v4878, %v4882
    %v4887 = vadd.f32 %v4883, %v4885
    %v4888 = vadd.f32 %v4884, %v4886
    %v4889 = vtanh.pop %v4887
    %v4890 = vtanh.pop %v4888
    %v4891 = vmul.f32 %v4877, %v4889
    %v4892 = vmul.f32 %v4880, %v4890
    %v4893 = vmul.f32 %v4849, 0.5
    %v4894 = vmul.f32 %v4850, 0.5
    %v4895 = vmul.f32 %v4851, 0.5
    %v4896 = vmul.f32 %v4853, 0.5
    %v4897 = vmul.f32 %v4854, 0.5
    %v4898 = vmul.f32 %v4855, 0.5
    %v4899 = vtanh.pop %v4893
    %v4900 = vtanh.pop %v4894
    %v4901 = vtanh.pop %v4895
    %v4902 = vtanh.pop %v4896
    %v4903 = vtanh.pop %v4897
    %v4904 = vtanh.pop %v4898
    %v4905 = vmul.f32 %v4899, 0.5
    %v4906 = vmul.f32 %v4900, 0.5
    %v4907 = vmul.f32 %v4901, 0.5
    %v4908 = vmul.f32 %v4902, 0.5
    %v4909 = vmul.f32 %v4903, 0.5
    %v4910 = vmul.f32 %v4904, 0.5
    %v4911 = vadd.f32 %v4905, 0.5
    %v4912 = vadd.f32 %v4906, 0.5
    %v4913 = vadd.f32 %v4907, 0.5
    %v4914 = vadd.f32 %v4908, 0.5
    %v4915 = vadd.f32 %v4909, 0.5
    %v4916 = vadd.f32 %v4910, 0.5
    %v4917 = vtanh.pop %v4852
    %v4918 = vtanh.pop %v4856
    %v4919 = vmul.f32 %v4912, %v4593
    %v4920 = vmul.f32 %v4915, %v4594
    %v4921 = vmul.f32 %v4911, %v4917
    %v4922 = vmul.f32 %v4914, %v4918
    %v4923 = vadd.f32 %v4919, %v4921
    %v4924 = vadd.f32 %v4920, %v4922
    %v4925 = vtanh.pop %v4923
    %v4926 = vtanh.pop %v4924
    %v4927 = vmul.f32 %v4913, %v4925
    %v4928 = vmul.f32 %v4916, %v4926
    %v4929 = vpack.c.bf16 %v4892, %v4891
    %v4930 = vpack.c.bf16 %v4928, %v4927
    %4931 = vmatpush.bf16.msra.mxu0 %v2744
    %4932 = vmatpush.bf16.msra.mxu0 %v2736
    %4933 = vmatpush.bf16.msra.mxu0 %v2728
    %4934 = vmatpush.bf16.msra.mxu0 %v2720
    %4935 = vmatpush.bf16.msra.mxu0 %v2712
    %4936 = vmatpush.bf16.msra.mxu0 %v2704
    %4937 = vmatpush.bf16.msra.mxu0 %v2696
    %4938 = vmatpush.bf16.msra.mxu0 %v2688
    %4939 = vmatmul.bf16.gmra.mxu0 %v4929
    %v4940 = vpop.f32.mrf.mxu0
    %v4941 = vadd.f32 0.0, %v4940
    %v4942 = vpop.f32.mrf.mxu0
    %v4943 = vadd.f32 0.0, %v4942
    %4944 = vdwg.mxu0
    %4945 = vmatpush.bf16.msra.mxu0 %v2808
    %4946 = vmatpush.bf16.msra.mxu0 %v2800
    %4947 = vmatpush.bf16.msra.mxu0 %v2792
    %4948 = vmatpush.bf16.msra.mxu0 %v2784
    %4949 = vmatpush.bf16.msra.mxu0 %v2776
    %4950 = vmatpush.bf16.msra.mxu0 %v2768
    %4951 = vmatpush.bf16.msra.mxu0 %v2760
    %4952 = vmatpush.bf16.msra.mxu0 %v2752
    %4953 = vmatmul.bf16.gmra.mxu0 %v4930
    %v4954 = vpop.f32.mrf.mxu0
    %v4955 = vadd.f32 %v4941, %v4954
    %v4956 = vpop.f32.mrf.mxu0
    %v4957 = vadd.f32 %v4943, %v4956
    %4958 = vdwg.mxu0
    %4959 = vmatpush.bf16.msra.mxu0 %v2745
    %4960 = vmatpush.bf16.msra.mxu0 %v2737
    %4961 = vmatpush.bf16.msra.mxu0 %v2729
    %4962 = vmatpush.bf16.msra.mxu0 %v2721
    %4963 = vmatpush.bf16.msra.mxu0 %v2713
    %4964 = vmatpush.bf16.msra.mxu0 %v2705
    %4965 = vmatpush.bf16.msra.mxu0 %v2697
    %4966 = vmatpush.bf16.msra.mxu0 %v2689
    %4967 = vmatmul.bf16.gmra.mxu0 %v4929
    %v4968 = vpop.f32.mrf.mxu0
    %v4969 = vadd.f32 0.0, %v4968
    %v4970 = vpop.f32.mrf.mxu0
    %v4971 = vadd.f32 0.0, %v4970
    %4972 = vdwg.mxu0
    %4973 = vmatpush.bf16.msra.mxu0 %v2809
    %4974 = vmatpush.bf16.msra.mxu0 %v2801
    %4975 = vmatpush.bf16.msra.mxu0 %v2793
    %4976 = vmatpush.bf16.msra.mxu0 %v2785
    %4977 = vmatpush.bf16.msra.mxu0 %v2777
    %4978 = vmatpush.bf16.msra.mxu0 %v2769
    %4979 = vmatpush.bf16.msra.mxu0 %v2761
    %4980 = vmatpush.bf16.msra.mxu0 %v2753
    %4981 = vmatmul.bf16.gmra.mxu0 %v4930
    %v4982 = vpop.f32.mrf.mxu0
    %v4983 = vadd.f32 %v4969, %v4982
    %v4984 = vpop.f32.mrf.mxu0
    %v4985 = vadd.f32 %v4971, %v4984
    %4986 = vdwg.mxu0
    %4987 = vmatpush.bf16.msra.mxu0 %v2746
    %4988 = vmatpush.bf16.msra.mxu0 %v2738
    %4989 = vmatpush.bf16.msra.mxu0 %v2730
    %4990 = vmatpush.bf16.msra.mxu0 %v2722
    %4991 = vmatpush.bf16.msra.mxu0 %v2714
    %4992 = vmatpush.bf16.msra.mxu0 %v2706
    %4993 = vmatpush.bf16.msra.mxu0 %v2698
    %4994 = vmatpush.bf16.msra.mxu0 %v2690
    %4995 = vmatmul.bf16.gmra.mxu0 %v4929
    %v4996 = vpop.f32.mrf.mxu0
    %v4997 = vadd.f32 0.0, %v4996
    %v4998 = vpop.f32.mrf.mxu0
    %v4999 = vadd.f32 0.0, %v4998
    %5000 = vdwg.mxu0
    %5001 = vmatpush.bf16.msra.mxu0 %v2810
    %5002 = vmatpush.bf16.msra.mxu0 %v2802
    %5003 = vmatpush.bf16.msra.mxu0 %v2794
    %5004 = vmatpush.bf16.msra.mxu0 %v2786
    %5005 = vmatpush.bf16.msra.mxu0 %v2778
    %5006 = vmatpush.bf16.msra.mxu0 %v2770
    %5007 = vmatpush.bf16.msra.mxu0 %v2762
    %5008 = vmatpush.bf16.msra.mxu0 %v2754
    %5009 = vmatmul.bf16.gmra.mxu0 %v4930
    %v5010 = vpop.f32.mrf.mxu0
    %v5011 = vadd.f32 %v4997, %v5010
    %v5012 = vpop.f32.mrf.mxu0
    %v5013 = vadd.f32 %v4999, %v5012
    %5014 = vdwg.mxu0
    %5015 = vmatpush.bf16.msra.mxu0 %v2747
    %5016 = vmatpush.bf16.msra.mxu0 %v2739
    %5017 = vmatpush.bf16.msra.mxu0 %v2731
    %5018 = vmatpush.bf16.msra.mxu0 %v2723
    %5019 = vmatpush.bf16.msra.mxu0 %v2715
    %5020 = vmatpush.bf16.msra.mxu0 %v2707
    %5021 = vmatpush.bf16.msra.mxu0 %v2699
    %5022 = vmatpush.bf16.msra.mxu0 %v2691
    %5023 = vmatmul.bf16.gmra.mxu0 %v4929
    %v5024 = vpop.f32.mrf.mxu0
    %v5025 = vadd.f32 0.0, %v5024
    %v5026 = vpop.f32.mrf.mxu0
    %v5027 = vadd.f32 0.0, %v5026
    %5028 = vdwg.mxu0
    %5029 = vmatpush.bf16.msra.mxu0 %v2811
    %5030 = vmatpush.bf16.msra.mxu0 %v2803
    %5031 = vmatpush.bf16.msra.mxu0 %v2795
    %5032 = vmatpush.bf16.msra.mxu0 %v2787
    %5033 = vmatpush.bf16.msra.mxu0 %v2779
    %5034 = vmatpush.bf16.msra.mxu0 %v2771
    %5035 = vmatpush.bf16.msra.mxu0 %v2763
    %5036 = vmatpush.bf16.msra.mxu0 %v2755
    %5037 = vmatmul.bf16.gmra.mxu0 %v4930
    %v5038 = vpop.f32.mrf.mxu0
    %v5039 = vadd.f32 %v5025, %v5038
    %v5040 = vpop.f32.mrf.mxu0
    %v5041 = vadd.f32 %v5027, %v5040
    %5042 = vdwg.mxu0
    %5043 = vmatpush.bf16.msra.mxu0 %v2748
    %5044 = vmatpush.bf16.msra.mxu0 %v2740
    %5045 = vmatpush.bf16.msra.mxu0 %v2732
    %5046 = vmatpush.bf16.msra.mxu0 %v2724
    %5047 = vmatpush.bf16.msra.mxu0 %v2716
    %5048 = vmatpush.bf16.msra.mxu0 %v2708
    %5049 = vmatpush.bf16.msra.mxu0 %v2700
    %5050 = vmatpush.bf16.msra.mxu0 %v2692
    %5051 = vmatmul.bf16.gmra.mxu0 %v4929
    %v5052 = vpop.f32.mrf.mxu0
    %v5053 = vadd.f32 0.0, %v5052
    %v5054 = vpop.f32.mrf.mxu0
    %v5055 = vadd.f32 0.0, %v5054
    %5056 = vdwg.mxu0
    %5057 = vmatpush.bf16.msra.mxu0 %v2812
    %5058 = vmatpush.bf16.msra.mxu0 %v2804
    %5059 = vmatpush.bf16.msra.mxu0 %v2796
    %5060 = vmatpush.bf16.msra.mxu0 %v2788
    %5061 = vmatpush.bf16.msra.mxu0 %v2780
    %5062 = vmatpush.bf16.msra.mxu0 %v2772
    %5063 = vmatpush.bf16.msra.mxu0 %v2764
    %5064 = vmatpush.bf16.msra.mxu0 %v2756
    %5065 = vmatmul.bf16.gmra.mxu0 %v4930
    %v5066 = vpop.f32.mrf.mxu0
    %v5067 = vadd.f32 %v5053, %v5066
    %v5068 = vpop.f32.mrf.mxu0
    %v5069 = vadd.f32 %v5055, %v5068
    %5070 = vdwg.mxu0
    %5071 = vmatpush.bf16.msra.mxu0 %v2749
    %5072 = vmatpush.bf16.msra.mxu0 %v2741
    %5073 = vmatpush.bf16.msra.mxu0 %v2733
    %5074 = vmatpush.bf16.msra.mxu0 %v2725
    %5075 = vmatpush.bf16.msra.mxu0 %v2717
    %5076 = vmatpush.bf16.msra.mxu0 %v2709
    %5077 = vmatpush.bf16.msra.mxu0 %v2701
    %5078 = vmatpush.bf16.msra.mxu0 %v2693
    %5079 = vmatmul.bf16.gmra.mxu0 %v4929
    %v5080 = vpop.f32.mrf.mxu0
    %v5081 = vadd.f32 0.0, %v5080
    %v5082 = vpop.f32.mrf.mxu0
    %v5083 = vadd.f32 0.0, %v5082
    %5084 = vdwg.mxu0
    %5085 = vmatpush.bf16.msra.mxu0 %v2813
    %5086 = vmatpush.bf16.msra.mxu0 %v2805
    %5087 = vmatpush.bf16.msra.mxu0 %v2797
    %5088 = vmatpush.bf16.msra.mxu0 %v2789
    %5089 = vmatpush.bf16.msra.mxu0 %v2781
    %5090 = vmatpush.bf16.msra.mxu0 %v2773
    %5091 = vmatpush.bf16.msra.mxu0 %v2765
    %5092 = vmatpush.bf16.msra.mxu0 %v2757
    %5093 = vmatmul.bf16.gmra.mxu0 %v4930
    %v5094 = vpop.f32.mrf.mxu0
    %v5095 = vadd.f32 %v5081, %v5094
    %v5096 = vpop.f32.mrf.mxu0
    %v5097 = vadd.f32 %v5083, %v5096
    %5098 = vdwg.mxu0
    %5099 = vmatpush.bf16.msra.mxu0 %v2750
    %5100 = vmatpush.bf16.msra.mxu0 %v2742
    %5101 = vmatpush.bf16.msra.mxu0 %v2734
    %5102 = vmatpush.bf16.msra.mxu0 %v2726
    %5103 = vmatpush.bf16.msra.mxu0 %v2718
    %5104 = vmatpush.bf16.msra.mxu0 %v2710
    %5105 = vmatpush.bf16.msra.mxu0 %v2702
    %5106 = vmatpush.bf16.msra.mxu0 %v2694
    %5107 = vmatmul.bf16.gmra.mxu0 %v4929
    %v5108 = vpop.f32.mrf.mxu0
    %v5109 = vadd.f32 0.0, %v5108
    %v5110 = vpop.f32.mrf.mxu0
    %v5111 = vadd.f32 0.0, %v5110
    %5112 = vdwg.mxu0
    %5113 = vmatpush.bf16.msra.mxu0 %v2814
    %5114 = vmatpush.bf16.msra.mxu0 %v2806
    %5115 = vmatpush.bf16.msra.mxu0 %v2798
    %5116 = vmatpush.bf16.msra.mxu0 %v2790
    %5117 = vmatpush.bf16.msra.mxu0 %v2782
    %5118 = vmatpush.bf16.msra.mxu0 %v2774
    %5119 = vmatpush.bf16.msra.mxu0 %v2766
    %5120 = vmatpush.bf16.msra.mxu0 %v2758
    %5121 = vmatmul.bf16.gmra.mxu0 %v4930
    %v5122 = vpop.f32.mrf.mxu0
    %v5123 = vadd.f32 %v5109, %v5122
    %v5124 = vpop.f32.mrf.mxu0
    %v5125 = vadd.f32 %v5111, %v5124
    %5126 = vdwg.mxu0
    %5127 = vmatpush.bf16.msra.mxu0 %v2751
    %5128 = vmatpush.bf16.msra.mxu0 %v2743
    %5129 = vmatpush.bf16.msra.mxu0 %v2735
    %5130 = vmatpush.bf16.msra.mxu0 %v2727
    %5131 = vmatpush.bf16.msra.mxu0 %v2719
    %5132 = vmatpush.bf16.msra.mxu0 %v2711
    %5133 = vmatpush.bf16.msra.mxu0 %v2703
    %5134 = vmatpush.bf16.msra.mxu0 %v2695
    %5135 = vmatmul.bf16.gmra.mxu0 %v4929
    %v5136 = vpop.f32.mrf.mxu0
    %v5137 = vadd.f32 0.0, %v5136
    %v5138 = vpop.f32.mrf.mxu0
    %v5139 = vadd.f32 0.0, %v5138
    %5140 = vdwg.mxu0
    %5141 = vmatpush.bf16.msra.mxu0 %v2815
    %5142 = vmatpush.bf16.msra.mxu0 %v2807
    %5143 = vmatpush.bf16.msra.mxu0 %v2799
    %5144 = vmatpush.bf16.msra.mxu0 %v2791
    %5145 = vmatpush.bf16.msra.mxu0 %v2783
    %5146 = vmatpush.bf16.msra.mxu0 %v2775
    %5147 = vmatpush.bf16.msra.mxu0 %v2767
    %5148 = vmatpush.bf16.msra.mxu0 %v2759
    %5149 = vmatmul.bf16.gmra.mxu0 %v4930
    %v5150 = vpop.f32.mrf.mxu0
    %v5151 = vadd.f32 %v5137, %v5150
    %v5152 = vpop.f32.mrf.mxu0
    %v5153 = vadd.f32 %v5139, %v5152
    %5154 = vdwg.mxu0
    %v5155 = vld [vmem:[%s3516] sm:$0xff]
    %v5156 = vld [vmem:[%s3516 + $0x8] sm:$0xff]
    %v5157 = vld [vmem:[%s3516 + $0x10] sm:$0xff]
    %v5158 = vld [vmem:[%s3516 + $0x18] sm:$0xff]
    %v5159 = vld [vmem:[%s3516 + $0x40] sm:$0xff]
    %v5160 = vld [vmem:[%s3516 + $0x48] sm:$0xff]
    %v5161 = vld [vmem:[%s3516 + $0x50] sm:$0xff]
    %v5162 = vld [vmem:[%s3516 + $0x58] sm:$0xff]
    %v5163 = vadd.f32 %v5155, %v4955
    %v5164 = vadd.f32 %v5156, %v4983
    %v5165 = vadd.f32 %v5157, %v5011
    %v5166 = vadd.f32 %v5158, %v5039
    %v5167 = vadd.f32 %v5159, %v4957
    %v5168 = vadd.f32 %v5160, %v4985
    %v5169 = vadd.f32 %v5161, %v5013
    %v5170 = vadd.f32 %v5162, %v5041
    %v5171 = vld [vmem:[%s3499 + $0x20] sm:$0xff]
    %v5172 = vld [vmem:[%s3499 + $0x28] sm:$0xff]
    %v5173 = vld [vmem:[%s3499 + $0x30] sm:$0xff]
    %v5174 = vld [vmem:[%s3499 + $0x38] sm:$0xff]
    %v5175 = vld [vmem:[%s3499 + $0x60] sm:$0xff]
    %v5176 = vld [vmem:[%s3499 + $0x68] sm:$0xff]
    %v5177 = vld [vmem:[%s3499 + $0x70] sm:$0xff]
    %v5178 = vld [vmem:[%s3499 + $0x78] sm:$0xff]
    %v5179 = vadd.f32 %v5171, %v5067
    %v5180 = vadd.f32 %v5172, %v5095
    %v5181 = vadd.f32 %v5173, %v5123
    %v5182 = vadd.f32 %v5174, %v5151
    %v5183 = vadd.f32 %v5175, %v5069
    %v5184 = vadd.f32 %v5176, %v5097
    %v5185 = vadd.f32 %v5177, %v5125
    %v5186 = vadd.f32 %v5178, %v5153
    %v5187 = vmul.f32 %v5163, 0.5
    %v5188 = vmul.f32 %v5164, 0.5
    %v5189 = vmul.f32 %v5165, 0.5
    %v5190 = vmul.f32 %v5167, 0.5
    %v5191 = vmul.f32 %v5168, 0.5
    %v5192 = vmul.f32 %v5169, 0.5
    %v5193 = vtanh.pop %v5187
    %v5194 = vtanh.pop %v5188
    %v5195 = vtanh.pop %v5189
    %v5196 = vtanh.pop %v5190
    %v5197 = vtanh.pop %v5191
    %v5198 = vtanh.pop %v5192
    %v5199 = vmul.f32 %v5193, 0.5
    %v5200 = vmul.f32 %v5194, 0.5
    %v5201 = vmul.f32 %v5195, 0.5
    %v5202 = vmul.f32 %v5196, 0.5
    %v5203 = vmul.f32 %v5197, 0.5
    %v5204 = vmul.f32 %v5198, 0.5
    %v5205 = vadd.f32 %v5199, 0.5
    %v5206 = vadd.f32 %v5200, 0.5
    %v5207 = vadd.f32 %v5201, 0.5
    %v5208 = vadd.f32 %v5202, 0.5
    %v5209 = vadd.f32 %v5203, 0.5
    %v5210 = vadd.f32 %v5204, 0.5
    %v5211 = vtanh.pop %v5166
    %v5212 = vtanh.pop %v5170
    %v5213 = vmul.f32 %v5206, %v4887
    %v5214 = vmul.f32 %v5209, %v4888
    %v5215 = vmul.f32 %v5205, %v5211
    %v5216 = vmul.f32 %v5208, %v5212
    %v5217 = vadd.f32 %v5213, %v5215
    %v5218 = vadd.f32 %v5214, %v5216
    %v5219 = vtanh.pop %v5217
    %v5220 = vtanh.pop %v5218
    %v5221 = vmul.f32 %v5207, %v5219
    %v5222 = vmul.f32 %v5210, %v5220
    %v5223 = vmul.f32 %v5179, 0.5
    %v5224 = vmul.f32 %v5180, 0.5
    %v5225 = vmul.f32 %v5181, 0.5
    %v5226 = vmul.f32 %v5183, 0.5
    %v5227 = vmul.f32 %v5184, 0.5
    %v5228 = vmul.f32 %v5185, 0.5
    %v5229 = vtanh.pop %v5223
    %v5230 = vtanh.pop %v5224
    %v5231 = vtanh.pop %v5225
    %v5232 = vtanh.pop %v5226
    %v5233 = vtanh.pop %v5227
    %v5234 = vtanh.pop %v5228
    %v5235 = vmul.f32 %v5229, 0.5
    %v5236 = vmul.f32 %v5230, 0.5
    %v5237 = vmul.f32 %v5231, 0.5
    %v5238 = vmul.f32 %v5232, 0.5
    %v5239 = vmul.f32 %v5233, 0.5
    %v5240 = vmul.f32 %v5234, 0.5
    %v5241 = vadd.f32 %v5235, 0.5
    %v5242 = vadd.f32 %v5236, 0.5
    %v5243 = vadd.f32 %v5237, 0.5
    %v5244 = vadd.f32 %v5238, 0.5
    %v5245 = vadd.f32 %v5239, 0.5
    %v5246 = vadd.f32 %v5240, 0.5
    %v5247 = vtanh.pop %v5182
    %v5248 = vtanh.pop %v5186
    %v5249 = vmul.f32 %v5242, %v4923
    %v5250 = vmul.f32 %v5245, %v4924
    %v5251 = vmul.f32 %v5241, %v5247
    %v5252 = vmul.f32 %v5244, %v5248
    %v5253 = vadd.f32 %v5249, %v5251
    %v5254 = vadd.f32 %v5250, %v5252
    %v5255 = vtanh.pop %v5253
    %v5256 = vtanh.pop %v5254
    %v5257 = vmul.f32 %v5243, %v5255
    %v5258 = vmul.f32 %v5246, %v5256
    %v5259 = vpack.c.bf16 %v5222, %v5221
    %v5260 = vpack.c.bf16 %v5258, %v5257
    %5261 = vmatpush.bf16.msra.mxu0 %v2744
    %5262 = vmatpush.bf16.msra.mxu0 %v2736
    %5263 = vmatpush.bf16.msra.mxu0 %v2728
    %5264 = vmatpush.bf16.msra.mxu0 %v2720
    %5265 = vmatpush.bf16.msra.mxu0 %v2712
    %5266 = vmatpush.bf16.msra.mxu0 %v2704
    %5267 = vmatpush.bf16.msra.mxu0 %v2696
    %5268 = vmatpush.bf16.msra.mxu0 %v2688
    %5269 = vmatmul.bf16.gmra.mxu0 %v5259
    %v5270 = vpop.f32.mrf.mxu0
    %v5271 = vadd.f32 0.0, %v5270
    %v5272 = vpop.f32.mrf.mxu0
    %v5273 = vadd.f32 0.0, %v5272
    %5274 = vdwg.mxu0
    %5275 = vmatpush.bf16.msra.mxu0 %v2808
    %5276 = vmatpush.bf16.msra.mxu0 %v2800
    %5277 = vmatpush.bf16.msra.mxu0 %v2792
    %5278 = vmatpush.bf16.msra.mxu0 %v2784
    %5279 = vmatpush.bf16.msra.mxu0 %v2776
    %5280 = vmatpush.bf16.msra.mxu0 %v2768
    %5281 = vmatpush.bf16.msra.mxu0 %v2760
    %5282 = vmatpush.bf16.msra.mxu0 %v2752
    %5283 = vmatmul.bf16.gmra.mxu0 %v5260
    %v5284 = vpop.f32.mrf.mxu0
    %v5285 = vadd.f32 %v5271, %v5284
    %v5286 = vpop.f32.mrf.mxu0
    %v5287 = vadd.f32 %v5273, %v5286
    %5288 = vdwg.mxu0
    %5289 = vmatpush.bf16.msra.mxu0 %v2745
    %5290 = vmatpush.bf16.msra.mxu0 %v2737
    %5291 = vmatpush.bf16.msra.mxu0 %v2729
    %5292 = vmatpush.bf16.msra.mxu0 %v2721
    %5293 = vmatpush.bf16.msra.mxu0 %v2713
    %5294 = vmatpush.bf16.msra.mxu0 %v2705
    %5295 = vmatpush.bf16.msra.mxu0 %v2697
    %5296 = vmatpush.bf16.msra.mxu0 %v2689
    %5297 = vmatmul.bf16.gmra.mxu0 %v5259
    %v5298 = vpop.f32.mrf.mxu0
    %v5299 = vadd.f32 0.0, %v5298
    %v5300 = vpop.f32.mrf.mxu0
    %v5301 = vadd.f32 0.0, %v5300
    %5302 = vdwg.mxu0
    %5303 = vmatpush.bf16.msra.mxu0 %v2809
    %5304 = vmatpush.bf16.msra.mxu0 %v2801
    %5305 = vmatpush.bf16.msra.mxu0 %v2793
    %5306 = vmatpush.bf16.msra.mxu0 %v2785
    %5307 = vmatpush.bf16.msra.mxu0 %v2777
    %5308 = vmatpush.bf16.msra.mxu0 %v2769
    %5309 = vmatpush.bf16.msra.mxu0 %v2761
    %5310 = vmatpush.bf16.msra.mxu0 %v2753
    %5311 = vmatmul.bf16.gmra.mxu0 %v5260
    %v5312 = vpop.f32.mrf.mxu0
    %v5313 = vadd.f32 %v5299, %v5312
    %v5314 = vpop.f32.mrf.mxu0
    %v5315 = vadd.f32 %v5301, %v5314
    %5316 = vdwg.mxu0
    %5317 = vmatpush.bf16.msra.mxu0 %v2746
    %5318 = vmatpush.bf16.msra.mxu0 %v2738
    %5319 = vmatpush.bf16.msra.mxu0 %v2730
    %5320 = vmatpush.bf16.msra.mxu0 %v2722
    %5321 = vmatpush.bf16.msra.mxu0 %v2714
    %5322 = vmatpush.bf16.msra.mxu0 %v2706
    %5323 = vmatpush.bf16.msra.mxu0 %v2698
    %5324 = vmatpush.bf16.msra.mxu0 %v2690
    %5325 = vmatmul.bf16.gmra.mxu0 %v5259
    %v5326 = vpop.f32.mrf.mxu0
    %v5327 = vadd.f32 0.0, %v5326
    %v5328 = vpop.f32.mrf.mxu0
    %v5329 = vadd.f32 0.0, %v5328
    %5330 = vdwg.mxu0
    %5331 = vmatpush.bf16.msra.mxu0 %v2810
    %5332 = vmatpush.bf16.msra.mxu0 %v2802
    %5333 = vmatpush.bf16.msra.mxu0 %v2794
    %5334 = vmatpush.bf16.msra.mxu0 %v2786
    %5335 = vmatpush.bf16.msra.mxu0 %v2778
    %5336 = vmatpush.bf16.msra.mxu0 %v2770
    %5337 = vmatpush.bf16.msra.mxu0 %v2762
    %5338 = vmatpush.bf16.msra.mxu0 %v2754
    %5339 = vmatmul.bf16.gmra.mxu0 %v5260
    %v5340 = vpop.f32.mrf.mxu0
    %v5341 = vadd.f32 %v5327, %v5340
    %v5342 = vpop.f32.mrf.mxu0
    %v5343 = vadd.f32 %v5329, %v5342
    %5344 = vdwg.mxu0
    %5345 = vmatpush.bf16.msra.mxu0 %v2747
    %5346 = vmatpush.bf16.msra.mxu0 %v2739
    %5347 = vmatpush.bf16.msra.mxu0 %v2731
    %5348 = vmatpush.bf16.msra.mxu0 %v2723
    %5349 = vmatpush.bf16.msra.mxu0 %v2715
    %5350 = vmatpush.bf16.msra.mxu0 %v2707
    %5351 = vmatpush.bf16.msra.mxu0 %v2699
    %5352 = vmatpush.bf16.msra.mxu0 %v2691
    %5353 = vmatmul.bf16.gmra.mxu0 %v5259
    %v5354 = vpop.f32.mrf.mxu0
    %v5355 = vadd.f32 0.0, %v5354
    %v5356 = vpop.f32.mrf.mxu0
    %v5357 = vadd.f32 0.0, %v5356
    %5358 = vdwg.mxu0
    %5359 = vmatpush.bf16.msra.mxu0 %v2811
    %5360 = vmatpush.bf16.msra.mxu0 %v2803
    %5361 = vmatpush.bf16.msra.mxu0 %v2795
    %5362 = vmatpush.bf16.msra.mxu0 %v2787
    %5363 = vmatpush.bf16.msra.mxu0 %v2779
    %5364 = vmatpush.bf16.msra.mxu0 %v2771
    %5365 = vmatpush.bf16.msra.mxu0 %v2763
    %5366 = vmatpush.bf16.msra.mxu0 %v2755
    %5367 = vmatmul.bf16.gmra.mxu0 %v5260
    %v5368 = vpop.f32.mrf.mxu0
    %v5369 = vadd.f32 %v5355, %v5368
    %v5370 = vpop.f32.mrf.mxu0
    %v5371 = vadd.f32 %v5357, %v5370
    %5372 = vdwg.mxu0
    %5373 = vmatpush.bf16.msra.mxu0 %v2748
    %5374 = vmatpush.bf16.msra.mxu0 %v2740
    %5375 = vmatpush.bf16.msra.mxu0 %v2732
    %5376 = vmatpush.bf16.msra.mxu0 %v2724
    %5377 = vmatpush.bf16.msra.mxu0 %v2716
    %5378 = vmatpush.bf16.msra.mxu0 %v2708
    %5379 = vmatpush.bf16.msra.mxu0 %v2700
    %5380 = vmatpush.bf16.msra.mxu0 %v2692
    %5381 = vmatmul.bf16.gmra.mxu0 %v5259
    %v5382 = vpop.f32.mrf.mxu0
    %v5383 = vadd.f32 0.0, %v5382
    %v5384 = vpop.f32.mrf.mxu0
    %v5385 = vadd.f32 0.0, %v5384
    %5386 = vdwg.mxu0
    %5387 = vmatpush.bf16.msra.mxu0 %v2812
    %5388 = vmatpush.bf16.msra.mxu0 %v2804
    %5389 = vmatpush.bf16.msra.mxu0 %v2796
    %5390 = vmatpush.bf16.msra.mxu0 %v2788
    %5391 = vmatpush.bf16.msra.mxu0 %v2780
    %5392 = vmatpush.bf16.msra.mxu0 %v2772
    %5393 = vmatpush.bf16.msra.mxu0 %v2764
    %5394 = vmatpush.bf16.msra.mxu0 %v2756
    %5395 = vmatmul.bf16.gmra.mxu0 %v5260
    %v5396 = vpop.f32.mrf.mxu0
    %v5397 = vadd.f32 %v5383, %v5396
    %v5398 = vpop.f32.mrf.mxu0
    %v5399 = vadd.f32 %v5385, %v5398
    %5400 = vdwg.mxu0
    %5401 = vmatpush.bf16.msra.mxu0 %v2749
    %5402 = vmatpush.bf16.msra.mxu0 %v2741
    %5403 = vmatpush.bf16.msra.mxu0 %v2733
    %5404 = vmatpush.bf16.msra.mxu0 %v2725
    %5405 = vmatpush.bf16.msra.mxu0 %v2717
    %5406 = vmatpush.bf16.msra.mxu0 %v2709
    %5407 = vmatpush.bf16.msra.mxu0 %v2701
    %5408 = vmatpush.bf16.msra.mxu0 %v2693
    %5409 = vmatmul.bf16.gmra.mxu0 %v5259
    %v5410 = vpop.f32.mrf.mxu0
    %v5411 = vadd.f32 0.0, %v5410
    %v5412 = vpop.f32.mrf.mxu0
    %v5413 = vadd.f32 0.0, %v5412
    %5414 = vdwg.mxu0
    %5415 = vmatpush.bf16.msra.mxu0 %v2813
    %5416 = vmatpush.bf16.msra.mxu0 %v2805
    %5417 = vmatpush.bf16.msra.mxu0 %v2797
    %5418 = vmatpush.bf16.msra.mxu0 %v2789
    %5419 = vmatpush.bf16.msra.mxu0 %v2781
    %5420 = vmatpush.bf16.msra.mxu0 %v2773
    %5421 = vmatpush.bf16.msra.mxu0 %v2765
    %5422 = vmatpush.bf16.msra.mxu0 %v2757
    %5423 = vmatmul.bf16.gmra.mxu0 %v5260
    %v5424 = vpop.f32.mrf.mxu0
    %v5425 = vadd.f32 %v5411, %v5424
    %v5426 = vpop.f32.mrf.mxu0
    %v5427 = vadd.f32 %v5413, %v5426
    %5428 = vdwg.mxu0
    %5429 = vmatpush.bf16.msra.mxu0 %v2750
    %5430 = vmatpush.bf16.msra.mxu0 %v2742
    %5431 = vmatpush.bf16.msra.mxu0 %v2734
    %5432 = vmatpush.bf16.msra.mxu0 %v2726
    %5433 = vmatpush.bf16.msra.mxu0 %v2718
    %5434 = vmatpush.bf16.msra.mxu0 %v2710
    %5435 = vmatpush.bf16.msra.mxu0 %v2702
    %5436 = vmatpush.bf16.msra.mxu0 %v2694
    %5437 = vmatmul.bf16.gmra.mxu0 %v5259
    %v5438 = vpop.f32.mrf.mxu0
    %v5439 = vadd.f32 0.0, %v5438
    %v5440 = vpop.f32.mrf.mxu0
    %v5441 = vadd.f32 0.0, %v5440
    %5442 = vdwg.mxu0
    %5443 = vmatpush.bf16.msra.mxu0 %v2814
    %5444 = vmatpush.bf16.msra.mxu0 %v2806
    %5445 = vmatpush.bf16.msra.mxu0 %v2798
    %5446 = vmatpush.bf16.msra.mxu0 %v2790
    %5447 = vmatpush.bf16.msra.mxu0 %v2782
    %5448 = vmatpush.bf16.msra.mxu0 %v2774
    %5449 = vmatpush.bf16.msra.mxu0 %v2766
    %5450 = vmatpush.bf16.msra.mxu0 %v2758
    %5451 = vmatmul.bf16.gmra.mxu0 %v5260
    %v5452 = vpop.f32.mrf.mxu0
    %v5453 = vadd.f32 %v5439, %v5452
    %v5454 = vpop.f32.mrf.mxu0
    %v5455 = vadd.f32 %v5441, %v5454
    %5456 = vdwg.mxu0
    %5457 = vmatpush.bf16.msra.mxu0 %v2751
    %5458 = vmatpush.bf16.msra.mxu0 %v2743
    %5459 = vmatpush.bf16.msra.mxu0 %v2735
    %5460 = vmatpush.bf16.msra.mxu0 %v2727
    %5461 = vmatpush.bf16.msra.mxu0 %v2719
    %5462 = vmatpush.bf16.msra.mxu0 %v2711
    %5463 = vmatpush.bf16.msra.mxu0 %v2703
    %5464 = vmatpush.bf16.msra.mxu0 %v2695
    %5465 = vmatmul.bf16.gmra.mxu0 %v5259
    %v5466 = vpop.f32.mrf.mxu0
    %v5467 = vadd.f32 0.0, %v5466
    %v5468 = vpop.f32.mrf.mxu0
    %v5469 = vadd.f32 0.0, %v5468
    %5470 = vdwg.mxu0
    %5471 = vmatpush.bf16.msra.mxu0 %v2815
    %5472 = vmatpush.bf16.msra.mxu0 %v2807
    %5473 = vmatpush.bf16.msra.mxu0 %v2799
    %5474 = vmatpush.bf16.msra.mxu0 %v2791
    %5475 = vmatpush.bf16.msra.mxu0 %v2783
    %5476 = vmatpush.bf16.msra.mxu0 %v2775
    %5477 = vmatpush.bf16.msra.mxu0 %v2767
    %5478 = vmatpush.bf16.msra.mxu0 %v2759
    %5479 = vmatmul.bf16.gmra.mxu0 %v5260
    %v5480 = vpop.f32.mrf.mxu0
    %v5481 = vadd.f32 %v5467, %v5480
    %v5482 = vpop.f32.mrf.mxu0
    %v5483 = vadd.f32 %v5469, %v5482
    %5484 = vdwg.mxu0
    %v5485 = vld [vmem:[%s3184] sm:$0xff]
    %v5486 = vld [vmem:[%s3184 + $0x8] sm:$0xff]
    %v5487 = vld [vmem:[%s3184 + $0x10] sm:$0xff]
    %v5488 = vld [vmem:[%s3184 + $0x18] sm:$0xff]
    %v5489 = vld [vmem:[%s3184 + $0x40] sm:$0xff]
    %v5490 = vld [vmem:[%s3184 + $0x48] sm:$0xff]
    %v5491 = vld [vmem:[%s3184 + $0x50] sm:$0xff]
    %v5492 = vld [vmem:[%s3184 + $0x58] sm:$0xff]
    %v5493 = vadd.f32 %v5485, %v5285
    %v5494 = vadd.f32 %v5486, %v5313
    %v5495 = vadd.f32 %v5487, %v5341
    %v5496 = vadd.f32 %v5488, %v5369
    %v5497 = vadd.f32 %v5489, %v5287
    %v5498 = vadd.f32 %v5490, %v5315
    %v5499 = vadd.f32 %v5491, %v5343
    %v5500 = vadd.f32 %v5492, %v5371
    %v5501 = vld [vmem:[#allocation2 + $0x20] sm:$0xff]
    %v5502 = vld [vmem:[#allocation2 + $0x28] sm:$0xff]
    %v5503 = vld [vmem:[#allocation2 + $0x30] sm:$0xff]
    %v5504 = vld [vmem:[#allocation2 + $0x38] sm:$0xff]
    %v5505 = vld [vmem:[#allocation2 + $0x60] sm:$0xff]
    %v5506 = vld [vmem:[#allocation2 + $0x68] sm:$0xff]
    %v5507 = vld [vmem:[#allocation2 + $0x70] sm:$0xff]
    %v5508 = vld [vmem:[#allocation2 + $0x78] sm:$0xff]
    %v5509 = vadd.f32 %v5501, %v5397
    %v5510 = vadd.f32 %v5502, %v5425
    %v5511 = vadd.f32 %v5503, %v5453
    %v5512 = vadd.f32 %v5504, %v5481
    %v5513 = vadd.f32 %v5505, %v5399
    %v5514 = vadd.f32 %v5506, %v5427
    %v5515 = vadd.f32 %v5507, %v5455
    %v5516 = vadd.f32 %v5508, %v5483
    %v5517 = vmul.f32 %v5493, 0.5
    %v5518 = vmul.f32 %v5494, 0.5
    %v5519 = vmul.f32 %v5495, 0.5
    %v5520 = vmul.f32 %v5497, 0.5
    %v5521 = vmul.f32 %v5498, 0.5
    %v5522 = vmul.f32 %v5499, 0.5
    %v5523 = vtanh.pop %v5517
    %v5524 = vtanh.pop %v5518
    %v5525 = vtanh.pop %v5519
    %v5526 = vtanh.pop %v5520
    %v5527 = vtanh.pop %v5521
    %v5528 = vtanh.pop %v5522
    %v5529 = vmul.f32 %v5523, 0.5
    %v5530 = vmul.f32 %v5524, 0.5
    %v5531 = vmul.f32 %v5525, 0.5
    %v5532 = vmul.f32 %v5526, 0.5
    %v5533 = vmul.f32 %v5527, 0.5
    %v5534 = vmul.f32 %v5528, 0.5
    %v5535 = vadd.f32 %v5529, 0.5
    %v5536 = vadd.f32 %v5530, 0.5
    %v5537 = vadd.f32 %v5531, 0.5
    %v5538 = vadd.f32 %v5532, 0.5
    %v5539 = vadd.f32 %v5533, 0.5
    %v5540 = vadd.f32 %v5534, 0.5
    %v5541 = vtanh.pop %v5496
    %v5542 = vtanh.pop %v5500
    %v5543 = vmul.f32 %v5536, %v5217
    %v5544 = vmul.f32 %v5539, %v5218
    %v5545 = vmul.f32 %v5535, %v5541
    %v5546 = vmul.f32 %v5538, %v5542
    %v5547 = vadd.f32 %v5543, %v5545
    %v5548 = vadd.f32 %v5544, %v5546
    %v5549 = vtanh.pop %v5547
    %v5550 = vtanh.pop %v5548
    %v5551 = vmul.f32 %v5537, %v5549
    %v5552 = vmul.f32 %v5540, %v5550
    %v5553 = vmul.f32 %v5509, 0.5
    %v5554 = vmul.f32 %v5510, 0.5
    %v5555 = vmul.f32 %v5511, 0.5
    %v5556 = vmul.f32 %v5513, 0.5
    %v5557 = vmul.f32 %v5514, 0.5
    %v5558 = vmul.f32 %v5515, 0.5
    %v5559 = vtanh.pop %v5553
    %v5560 = vtanh.pop %v5554
    %v5561 = vtanh.pop %v5555
    %v5562 = vtanh.pop %v5556
    %v5563 = vtanh.pop %v5557
    %v5564 = vtanh.pop %v5558
    %v5565 = vmul.f32 %v5559, 0.5
    %v5566 = vmul.f32 %v5560, 0.5
    %v5567 = vmul.f32 %v5561, 0.5
    %v5568 = vmul.f32 %v5562, 0.5
    %v5569 = vmul.f32 %v5563, 0.5
    %v5570 = vmul.f32 %v5564, 0.5
    %v5571 = vadd.f32 %v5565, 0.5
    %v5572 = vadd.f32 %v5566, 0.5
    %v5573 = vadd.f32 %v5567, 0.5
    %v5574 = vadd.f32 %v5568, 0.5
    %v5575 = vadd.f32 %v5569, 0.5
    %v5576 = vadd.f32 %v5570, 0.5
    %v5577 = vtanh.pop %v5512
    %v5578 = vtanh.pop %v5516
    %v5579 = vmul.f32 %v5572, %v5253
    %v5580 = vmul.f32 %v5575, %v5254
    %v5581 = vmul.f32 %v5571, %v5577
    %v5582 = vmul.f32 %v5574, %v5578
    %v5583 = vadd.f32 %v5579, %v5581
    %v5584 = vadd.f32 %v5580, %v5582
    %v5585 = vtanh.pop %v5583
    %v5586 = vtanh.pop %v5584
    %v5587 = vmul.f32 %v5573, %v5585
    %v5588 = vmul.f32 %v5576, %v5586
    %v5589 = vpack.c.bf16 %v5552, %v5551
    %v5590 = vld [vmem:[%s5] sm:$0xf]
    %v5591 = vld [vmem:[%s5 + $0x4] sm:$0xf]
    %v5592 = vld [vmem:[%s5 + $0x8] sm:$0xf]
    %v5593 = vld [vmem:[%s5 + $0xc] sm:$0xf]
    %v5594 = vld [vmem:[%s5 + $0x10] sm:$0xf]
    %v5595 = vld [vmem:[%s5 + $0x14] sm:$0xf]
    %v5596 = vld [vmem:[%s5 + $0x18] sm:$0xf]
    %v5597 = vld [vmem:[%s5 + $0x1c] sm:$0xf]
    %v5598 = vld [vmem:[%s5 + $0x20] sm:$0xf]
    %v5599 = vld [vmem:[%s5 + $0x24] sm:$0xf]
    %v5600 = vld [vmem:[%s5 + $0x28] sm:$0xf]
    %v5601 = vld [vmem:[%s5 + $0x2c] sm:$0xf]
    %v5602 = vld [vmem:[%s5 + $0x30] sm:$0xf]
    %v5603 = vld [vmem:[%s5 + $0x34] sm:$0xf]
    %v5604 = vld [vmem:[%s5 + $0x38] sm:$0xf]
    %v5605 = vld [vmem:[%s5 + $0x3c] sm:$0xf]
    %v5606 = vpack.c.bf16 %v5588, %v5587
    %v5607 = vld [vmem:[#allocation8] sm:$0xf]
    %v5608 = vld [vmem:[#allocation8 + $0x4] sm:$0xf]
    %v5609 = vld [vmem:[#allocation8 + $0x8] sm:$0xf]
    %v5610 = vld [vmem:[#allocation8 + $0xc] sm:$0xf]
    %v5611 = vld [vmem:[#allocation8 + $0x10] sm:$0xf]
    %v5612 = vld [vmem:[#allocation8 + $0x14] sm:$0xf]
    %v5613 = vld [vmem:[#allocation8 + $0x18] sm:$0xf]
    %v5614 = vld [vmem:[#allocation8 + $0x1c] sm:$0xf]
    %v5615 = vld [vmem:[#allocation8 + $0x20] sm:$0xf]
    %v5616 = vld [vmem:[#allocation8 + $0x24] sm:$0xf]
    %v5617 = vld [vmem:[#allocation8 + $0x28] sm:$0xf]
    %v5618 = vld [vmem:[#allocation8 + $0x2c] sm:$0xf]
    %v5619 = vld [vmem:[#allocation8 + $0x30] sm:$0xf]
    %v5620 = vld [vmem:[#allocation8 + $0x34] sm:$0xf]
    %v5621 = vld [vmem:[#allocation8 + $0x38] sm:$0xf]
    %v5622 = vld [vmem:[#allocation8 + $0x3c] sm:$0xf]
    %v5639 = vunpack.c.l.b16 %v5607
    %v5640 = vunpack.c.l.b16 %v5608
    %v5641 = vunpack.c.l.b16 %v5609
    %v5642 = vunpack.c.l.b16 %v5610
    %v5643 = vunpack.c.l.b16 %v5611
    %v5644 = vunpack.c.l.b16 %v5612
    %v5645 = vunpack.c.l.b16 %v5613
    %v5646 = vunpack.c.l.b16 %v5614
    %v5647 = vunpack.c.l.b16 %v5615
    %v5648 = vunpack.c.l.b16 %v5616
    %v5649 = vunpack.c.l.b16 %v5617
    %v5650 = vunpack.c.l.b16 %v5618
    %v5651 = vunpack.c.l.b16 %v5619
    %v5652 = vunpack.c.l.b16 %v5620
    %v5653 = vunpack.c.l.b16 %v5621
    %v5654 = vunpack.c.l.b16 %v5622
    %v5655 = vpack.c.b16 %v5640, %v5639
    %v5656 = vpack.c.b16 %v5642, %v5641
    %v5657 = vpack.c.b16 %v5644, %v5643
    %v5658 = vpack.c.b16 %v5646, %v5645
    %v5659 = vpack.c.b16 %v5648, %v5647
    %v5660 = vpack.c.b16 %v5650, %v5649
    %v5661 = vpack.c.b16 %v5652, %v5651
    %v5662 = vpack.c.b16 %v5654, %v5653
    %5671 = vmatpush.bf16.msra.mxu0 %v5662
    %5672 = vmatpush.bf16.msra.mxu0 %v5661
    %5673 = vmatpush.bf16.msra.mxu0 %v5660
    %5674 = vmatpush.bf16.msra.mxu0 %v5659
    %5675 = vmatpush.bf16.msra.mxu0 %v5658
    %5676 = vmatpush.bf16.msra.mxu0 %v5657
    %5677 = vmatpush.bf16.msra.mxu0 %v5656
    %5678 = vmatpush.bf16.msra.mxu0 %v5655
    %5679 = vmatmul.bf16.gmra.mxu0 %v5606
    %v5680 = vpop.f32.mrf.mxu0
    %v5681 = vadd.f32 0.0, %v5680
    %v5682 = vpop.f32.mrf.mxu0
    %v5683 = vadd.f32 0.0, %v5682
    %5684 = vdwg.mxu0
    %v5701 = vunpack.c.l.b16 %v5590
    %v5702 = vunpack.c.l.b16 %v5591
    %v5703 = vunpack.c.l.b16 %v5592
    %v5704 = vunpack.c.l.b16 %v5593
    %v5705 = vunpack.c.l.b16 %v5594
    %v5706 = vunpack.c.l.b16 %v5595
    %v5707 = vunpack.c.l.b16 %v5596
    %v5708 = vunpack.c.l.b16 %v5597
    %v5709 = vunpack.c.l.b16 %v5598
    %v5710 = vunpack.c.l.b16 %v5599
    %v5711 = vunpack.c.l.b16 %v5600
    %v5712 = vunpack.c.l.b16 %v5601
    %v5713 = vunpack.c.l.b16 %v5602
    %v5714 = vunpack.c.l.b16 %v5603
    %v5715 = vunpack.c.l.b16 %v5604
    %v5716 = vunpack.c.l.b16 %v5605
    %v5717 = vpack.c.b16 %v5702, %v5701
    %v5718 = vpack.c.b16 %v5704, %v5703
    %v5719 = vpack.c.b16 %v5706, %v5705
    %v5720 = vpack.c.b16 %v5708, %v5707
    %v5721 = vpack.c.b16 %v5710, %v5709
    %v5722 = vpack.c.b16 %v5712, %v5711
    %v5723 = vpack.c.b16 %v5714, %v5713
    %v5724 = vpack.c.b16 %v5716, %v5715
    %5733 = vmatpush.bf16.msra.mxu0 %v5724
    %5734 = vmatpush.bf16.msra.mxu0 %v5723
    %5735 = vmatpush.bf16.msra.mxu0 %v5722
    %5736 = vmatpush.bf16.msra.mxu0 %v5721
    %5737 = vmatpush.bf16.msra.mxu0 %v5720
    %5738 = vmatpush.bf16.msra.mxu0 %v5719
    %5739 = vmatpush.bf16.msra.mxu0 %v5718
    %5740 = vmatpush.bf16.msra.mxu0 %v5717
    %5741 = vmatmul.bf16.gmra.mxu0 %v5589
    %v5742 = vpop.f32.mrf.mxu0
    %v5743 = vadd.f32 %v5681, %v5742
    %v5744 = vpop.f32.mrf.mxu0
    %v5745 = vadd.f32 %v5683, %v5744
    %5746 = vdwg.mxu0
    %v5747 = vld [vmem:[%s7] sm:$0x1]
    %v5749 = vperm.slane %v5747, 0
    %v5751 = vadd.f32 %v5743, %v5749
    %v5752 = vadd.f32 %v5745, %v5749
    %5753 = vst [vmem:[%s8] sm:$0xff] %v5751
    %5754 = vst [vmem:[%s8 + $0x8] sm:$0xff] %v5752
    // Predicated region
    $region50: #{sentiment_lstm_forward.3} parent=1 // pred_check
      _
    $region51: #{sentiment_lstm_forward.3} parent=1 // pred_check_branch
      %5756 = sbr.rel (0) target = $region53
    $region52: #{sentiment_lstm_forward.3} parent=1 // pred_region
      _
    $region53: #{sentiment_lstm_forward.3} parent=1 // pred_fallthru
      _
    // Predicated region
    $region54: #{sentiment_lstm_forward.3} parent=1 // pred_check
      _
    $region55: #{sentiment_lstm_forward.3} parent=1 // pred_check_branch
      %5758 = sbr.rel (0) target = $region57
    $region56: #{sentiment_lstm_forward.3} parent=1 // pred_region
      _
    $region57: #{sentiment_lstm_forward.3} parent=1 // pred_fallthru
      _
    %5759 = vsyncpa [#allocation4], 1
    %5760 = vsyncpa [#allocation6], 1
    %5761 = vsyncpa [#allocation9], 1

</llo_original>
